<compile_context>
chip_gen: v7x
topology: tpu7x:2x2x1
jax: 0.10.0
libtpu: 0.0.40
codegen_flags: <defaults>
</compile_context>

<pallas_src>
import functools

import jax
import jax.numpy as jnp
from jax import lax
from jax.experimental import pallas as pl
from jax.experimental.pallas import tpu as pltpu


# ----------------------------- fused Pallas kernel -----------------------------

def _bottleneck_kernel(x_ref, *rest, bb, th, W, P, Cin, Cout, use_halo):
    """One (batch-block, row-tile) step of the fused bottleneck.

    x_ref   : (bb, th, W, Cin)   main tile (compute dtype)
    [xt_ref]: (1, 1, W, Cin)     row above the tile (only when use_halo)
    [xb_ref]: (1, 1, W, Cin)     row below the tile (only when use_halo)
    w1_ref  : (Cin, P)           conv1 weight, BN1 scale folded in
    b1_ref  : (1, P)             BN1 bias (f32)
    w2_ref  : (3, 3P, P)         conv2 weight per kh, kw-major rows, BN2 folded
    b2_ref  : (1, P)             BN2 bias (f32)
    w3sc_ref: (P+Cin, Cout)      [conv3 | shortcut] weights, BN scales folded
    bout_ref: (1, Cout)          BN3 bias + shortcut-conv bias folded thru BNsc
    o_ref   : (bb, th, W, Cout)  output tile
    h1s_ref : (bb, th+2, W+2, P) compute-dtype scratch: zero-padded conv1 out
    """
    if use_halo:
        (xt_ref, xb_ref, w1_ref, b1_ref, w2_ref, b2_ref,
         w3sc_ref, bout_ref, o_ref, h1s_ref) = rest
    else:
        (w1_ref, b1_ref, w2_ref, b2_ref,
         w3sc_ref, bout_ref, o_ref, h1s_ref) = rest

    cdt = x_ref.dtype
    rows = bb * th * W

    xm = x_ref[...]                                   # (bb, th, W, Cin)
    xm2d = xm.reshape(rows, Cin)
    w1 = w1_ref[...]
    b1 = b1_ref[...]

    # ---- conv1 (1x1) + BN1 + ReLU: a single MXU push (halos included) -------
    if use_halo:
        i = pl.program_id(1)
        nrt = pl.num_programs(1)
        xall = jnp.concatenate([xt_ref[...], xm, xb_ref[...]], axis=1)
        h1 = jnp.dot(xall.reshape((th + 2) * W, Cin), w1,
                     preferred_element_type=jnp.float32)
        h1 = jnp.maximum(h1 + b1, 0.0).astype(cdt)
        h1s_ref[:, :, pl.ds(1, W), :] = h1.reshape(1, th + 2, W, P)

        # conv2's zero padding lives in h1 space, so halo rows that fall
        # outside the image must be exactly zero (NOT relu(bias)).
        zrow = jnp.zeros((1, 1, W + 2, P), cdt)

        @pl.when(i == 0)
        def _():
            h1s_ref[:, pl.ds(0, 1), :, :] = zrow

        @pl.when(i == nrt - 1)
        def _():
            h1s_ref[:, pl.ds(th + 1, 1), :, :] = zrow
    else:
        # th == H: no halos at all; top/bottom pad rows are always zero.
        h1 = jnp.dot(xm2d, w1, preferred_element_type=jnp.float32)
        h1 = jnp.maximum(h1 + b1, 0.0).astype(cdt)
        h1s_ref[:, pl.ds(1, th), pl.ds(1, W), :] = h1.reshape(bb, th, W, P)
        zrow = jnp.zeros((bb, 1, W + 2, P), cdt)
        h1s_ref[:, pl.ds(0, 1), :, :] = zrow
        h1s_ref[:, pl.ds(th + 1, 1), :, :] = zrow

    # left/right zero padding columns (also clears the corners)
    zcol = jnp.zeros((bb, th + 2, 1, P), cdt)
    h1s_ref[:, :, pl.ds(0, 1), :] = zcol
    h1s_ref[:, :, pl.ds(W + 1, 1), :] = zcol

    # ---- conv2 (3x3, pad=1) + BN2 + ReLU: three K=3P matmuls (one per kh) ---
    b2 = b2_ref[...]
    acc = None
    for kh in range(3):
        slab = jnp.concatenate(
            [h1s_ref[:, pl.ds(kh, th), pl.ds(kw, W), :] for kw in range(3)],
            axis=-1)                                  # (bb, th, W, 3P)
        part = jnp.dot(slab.reshape(rows, 3 * P), w2_ref[kh],
                       preferred_element_type=jnp.float32)
        acc = part if acc is None else acc + part
    h2 = jnp.maximum(acc + b2, 0.0).astype(cdt)       # (rows, P)

    # ---- conv3 + BN3 fused with the 1x1 shortcut: one K=(P+Cin) matmul ------
    hs = jnp.concatenate([h2, xm2d], axis=-1)         # (rows, P+Cin)
    y = jnp.dot(hs, w3sc_ref[...], preferred_element_type=jnp.float32)
    y = jnp.maximum(y + bout_ref[...], 0.0)
    o_ref[...] = y.reshape(bb, th, W, Cout).astype(o_ref.dtype)


# ----------------------------- helpers -----------------------------

def _fold_bn(gamma, beta, mean, var, eps=1e-5):
    scale = gamma / jnp.sqrt(var + eps)
    bias = beta - mean * scale
    return scale, bias


def _vmem_capacity_bytes():
    try:
        return int(pltpu.get_tpu_info().vmem_capacity_bytes)
    except Exception:
        return 64 * 1024 * 1024          # conservative (v7x per-core VMEM)


def _pick_target_rows(Cin, P, Cout, cdt, odt, override):
    """Flattened rows per grid step, keyed on VMEM capacity and the per-row cost."""
    if override is not None:
        return max(8, int(override))
    cap = _vmem_capacity_bytes()
    base = 2048 if cap >= (96 << 20) else 1024        # v5e/v6e: larger; v7x: ~1024
    cs = jnp.dtype(cdt).itemsize
    osz = jnp.dtype(odt).itemsize
    consts = (Cin * P + 9 * P * P + (P + Cin) * Cout) * cs + (2 * P + Cout) * 4
    per_row = (2 * Cin * cs + 2 * Cout * osz + P * cs        # in/out blocks + scratch
               + 3 * P * cs + (P + Cin) * cs                 # conv2 slab + epilogue cat
               + 2 * P * 4 + Cout * 4)                       # f32 accumulators
    budget = max(int(0.55 * cap) - 2 * consts, 1 << 20)
    return max(64, min(base, budget // max(per_row, 1)))


def _pick_tiling(B, H, W, target_rows):
    """Return (batch_block bb, row_tile th); bb > 1 only when th == H."""
    hw = H * W
    if hw > target_rows:
        th = max(1, min(H, target_rows // max(W, 1)))
        while H % th:                # keep tiles even -> no masked tail rows
            th -= 1
        return 1, th
    # whole image per step; block batches (keep >=2 grid steps for v7x's 2 TCs)
    bb = max(1, min(B, target_rows // max(hw, 1)))
    while bb > 1 and (B // bb) < 2:
        bb -= 1
    while B % bb:
        bb -= 1
    return bb, H


def _derive_vmem_limit_bytes(bb, th, W, Cin, P, Cout, cdt, odt, use_halo):
    cs = jnp.dtype(cdt).itemsize
    osz = jnp.dtype(odt).itemsize
    rows = bb * th * W
    need = 2 * rows * Cin * cs                        # main input block (x2 buffers)
    if use_halo:
        need += 2 * 2 * bb * W * Cin * cs             # halo rows (x2 buffers)
    need += 2 * rows * Cout * osz                     # output block (x2 buffers)
    need += 2 * ((Cin * P + 9 * P * P + (P + Cin) * Cout) * cs
                 + (2 * P + Cout) * 4)                # weights/biases (worst case x2)
    need += bb * (th + 2) * (W + 2) * P * cs          # padded conv1 scratch
    need += rows * 3 * P * cs                         # conv2 im2col slab
    need += 2 * rows * P * 4                          # conv2 f32 accumulators
    need += rows * (P + Cin) * cs                     # epilogue concat
    need += rows * Cout * 4                           # epilogue f32 accumulator
    need += (rows + 2 * bb * W) * P * 4               # conv1 f32 result
    need = int(1.3 * need) + (4 << 20)
    cap = min(int(0.9 * _vmem_capacity_bytes()), 100 << 20)
    return int(min(max(need, 32 << 20), cap))


def _const_spec(shape, single_buffer):
    ndim = len(shape)
    index_map = lambda b, i, _n=ndim: (0,) * _n
    if single_buffer:
        # grid-invariant operand: no need to double-buffer it
        return pl.BlockSpec(shape, index_map, pipeline_mode=pl.Buffered(1))
    return pl.BlockSpec(shape, index_map)


# ----------------------------- wrappers -----------------------------

def bottleneck_forward_nhwc(x_nhwc, p, *, compute_dtype=jnp.bfloat16,
                            out_dtype=None, target_rows=None):
    """Fused bottleneck on NHWC input; returns NHWC in `out_dtype`."""
    B, H, W, Cin = x_nhwc.shape
    P = p["w1"].shape[-1]
    Cout = p["w3"].shape[-1]
    odt = compute_dtype if out_dtype is None else out_dtype

    s1, b1 = _fold_bn(p["bn1_g"], p["bn1_b"], p["bn1_m"], p["bn1_v"])
    s2, b2 = _fold_bn(p["bn2_g"], p["bn2_b"], p["bn2_m"], p["bn2_v"])
    s3, b3 = _fold_bn(p["bn3_g"], p["bn3_b"], p["bn3_m"], p["bn3_v"])
    ssc, bsc = _fold_bn(p["bnsc_g"], p["bnsc_b"], p["bnsc_m"], p["bnsc_v"])

    # Fold BN scales into the conv weights; fold the shortcut conv bias through
    # its BN; fuse conv3 and shortcut weights along the contraction dim.
    w1s = (p["w1"].reshape(Cin, P) * s1[None, :]).astype(compute_dtype)
    # (kh, kw, ci, co) -> (kh, kw*P + ci, co): matches the [kw0|kw1|kw2] slab.
    w2r = (p["w2"] * s2[None, None, None, :]).reshape(3, 3 * P, P).astype(compute_dtype)
    w3s = p["w3"].reshape(P, Cout) * s3[None, :]
    wscs = p["wsc"].reshape(Cin, Cout) * ssc[None, :]
    w3sc = jnp.concatenate([w3s, wscs], axis=0).astype(compute_dtype)   # (P+Cin, Cout)
    bout = (b3 + p["wsc_bias"] * ssc + bsc).reshape(1, Cout).astype(jnp.float32)
    b1 = b1.reshape(1, P).astype(jnp.float32)
    b2 = b2.reshape(1, P).astype(jnp.float32)

    tgt = _pick_target_rows(Cin, P, Cout, compute_dtype, odt, target_rows)
    bb, th = _pick_tiling(B, H, W, tgt)
    use_halo = th < H
    grid = (B // bb, H // th)

    x4 = x_nhwc.astype(compute_dtype)

    kernel = functools.partial(_bottleneck_kernel, bb=bb, th=th, W=W, P=P,
                               Cin=Cin, Cout=Cout, use_halo=use_halo)
    vmem_limit = _derive_vmem_limit_bytes(bb, th, W, Cin, P, Cout,
                                          compute_dtype, odt, use_halo)

    main_spec = pl.BlockSpec((bb, th, W, Cin), lambda b, i: (b, i, 0, 0))
    halo_specs, halo_args = [], []
    if use_halo:
        halo_specs = [
            # 1-row top halo (clamped at the image top, zeroed in-kernel)
            pl.BlockSpec((1, 1, W, Cin),
                         lambda b, i: (b, jnp.maximum(i * th - 1, 0), 0, 0)),
            # 1-row bottom halo (clamped at the image bottom, zeroed in-kernel)
            pl.BlockSpec((1, 1, W, Cin),
                         lambda b, i: (b, jnp.minimum(i * th + th, H - 1), 0, 0)),
        ]
        halo_args = [x4, x4]

    const_shapes = [(Cin, P), (1, P), (3, 3 * P, P), (1, P),
                    (P + Cin, Cout), (1, Cout)]
    const_args = [w1s, b1, w2r, b2, w3sc, bout]
    out_spec = pl.BlockSpec((bb, th, W, Cout), lambda b, i: (b, i, 0, 0))

    def run(single_buffer_consts):
        in_specs = ([main_spec] + halo_specs +
                    [_const_spec(s, single_buffer_consts) for s in const_shapes])
        call = pl.pallas_call(
            kernel,
            out_shape=jax.ShapeDtypeStruct((B, H, W, Cout), odt),
            grid=grid,
            in_specs=in_specs,
            out_specs=out_spec,
            scratch_shapes=[pltpu.VMEM((bb, th + 2, W + 2, P), compute_dtype)],
            compiler_params=pltpu.CompilerParams(
                dimension_semantics=("parallel", "parallel"),
                vmem_limit_bytes=vmem_limit),
        )
        return call(x4, *halo_args, *const_args)

    try:
        return run(True)
    except Exception:
        # Compatibility fallback: some jax versions reject single-buffered
        # (pipeline_mode=pl.Buffered(1)) operands; retry with the default.
        return run(False)


def bottleneck_forward(x_nchw, p, **kwargs):
    """NCHW wrapper matching the PyTorch module's layout."""
    x = jnp.transpose(x_nchw, (0, 2, 3, 1))
    out = bottleneck_forward_nhwc(x, p, **kwargs)
    return jnp.transpose(out, (0, 3, 1, 2))


# ----------------------------- pure-JAX reference -----------------------------

def _bn(y, g, b, m, v, eps=1e-5):
    return (y - m) / jnp.sqrt(v + eps) * g + b


def bottleneck_reference(x_nchw, p):
    dn = ("NHWC", "HWIO", "NHWC")
    x = jnp.transpose(x_nchw, (0, 2, 3, 1))
    h = lax.conv_general_dilated(x, p["w1"], (1, 1), "VALID", dimension_numbers=dn)
    h = jax.nn.relu(_bn(h, p["bn1_g"], p["bn1_b"], p["bn1_m"], p["bn1_v"]))
    h = lax.conv_general_dilated(h, p["w2"], (1, 1), "SAME", dimension_numbers=dn)
    h = jax.nn.relu(_bn(h, p["bn2_g"], p["bn2_b"], p["bn2_m"], p["bn2_v"]))
    h = lax.conv_general_dilated(h, p["w3"], (1, 1), "VALID", dimension_numbers=dn)
    h = _bn(h, p["bn3_g"], p["bn3_b"], p["bn3_m"], p["bn3_v"])
    sc = lax.conv_general_dilated(x, p["wsc"], (1, 1), "VALID", dimension_numbers=dn)
    sc = sc + p["wsc_bias"]
    sc = _bn(sc, p["bnsc_g"], p["bnsc_b"], p["bnsc_m"], p["bnsc_v"])
    out = jax.nn.relu(h + sc)
    return jnp.transpose(out, (0, 3, 1, 2))


# ----------------------------- main -----------------------------

if __name__ == "__main__":
    key = jax.random.PRNGKey(0)
    B, Cin, H, W = 2, 4, 16, 16
    planes, expansion = 4, 4
    Cout = expansion * planes

    ks = jax.random.split(key, 10)
    f32 = jnp.float32

    def bn_params(k, c):
        k1, k2, k3, k4 = jax.random.split(k, 4)
        return (jax.random.uniform(k1, (c,), f32, 0.5, 1.5),       # gamma
                0.1 * jax.random.normal(k2, (c,), f32),            # beta
                0.1 * jax.random.normal(k3, (c,), f32),            # running_mean
                jax.random.uniform(k4, (c,), f32, 0.5, 1.5))       # running_var

    params = {}
    params["w1"] = 0.3 * jax.random.normal(ks[0], (1, 1, Cin, planes), f32)     # HWIO
    params["w2"] = 0.1 * jax.random.normal(ks[1], (3, 3, planes, planes), f32)  # HWIO
    params["w3"] = 0.2 * jax.random.normal(ks[2], (1, 1, planes, Cout), f32)    # HWIO
    params["wsc"] = 0.2 * jax.random.normal(ks[3], (1, 1, Cin, Cout), f32)      # HWIO
    params["wsc_bias"] = 0.05 * jax.random.normal(ks[4], (Cout,), f32)

    (params["bn1_g"], params["bn1_b"], params["bn1_m"], params["bn1_v"]) = bn_params(ks[5], planes)
    (params["bn2_g"], params["bn2_b"], params["bn2_m"], params["bn2_v"]) = bn_params(ks[6], planes)
    (params["bn3_g"], params["bn3_b"], params["bn3_m"], params["bn3_v"]) = bn_params(ks[7], Cout)
    (params["bnsc_g"], params["bnsc_b"], params["bnsc_m"], params["bnsc_v"]) = bn_params(ks[8], Cout)

    x = jax.random.normal(ks[9], (B, Cin, H, W), f32)

    ref = jax.block_until_ready(bottleneck_reference(x, params))

    # f32 compute + f32 output, derived tiling (whole image / batch-block path)
    out_a = jax.block_until_ready(
        bottleneck_forward(x, params, compute_dtype=jnp.float32,
                           out_dtype=jnp.float32))
    assert out_a.shape == (B, Cout, H, W), out_a.shape
    assert jnp.allclose(out_a, ref, atol=2e-4, rtol=2e-4), \
        float(jnp.max(jnp.abs(out_a - ref)))

    # f32 compute, forced small row target -> spatial row tiling with halos
    out_b = jax.block_until_ready(
        bottleneck_forward(x, params, compute_dtype=jnp.float32,
                           out_dtype=jnp.float32, target_rows=128))
    assert out_b.shape == (B, Cout, H, W), out_b.shape
    assert jnp.allclose(out_b, ref, atol=2e-4, rtol=2e-4), \
        float(jnp.max(jnp.abs(out_b - ref)))

    # default path: bf16 compute, bf16 output, derived tiling
    out_c = jax.block_until_ready(bottleneck_forward(x, params))
    assert out_c.shape == (B, Cout, H, W), out_c.shape
    assert jnp.allclose(out_c.astype(jnp.float32), ref, atol=5e-2, rtol=5e-2), \
        float(jnp.max(jnp.abs(out_c.astype(jnp.float32) - ref)))

    print("KERNEL_OK")
</pallas_src>

<mosaic_0001>
module attributes {stable_mosaic.version = 11 : i64} {
  func.func @_bottleneck_kernel(%arg0: i32, %arg1: i32, %arg2: memref<1x16x16x4xf32, #tpu.memory_space<vmem>>, %arg3: memref<4x4xf32, #tpu.memory_space<vmem>>, %arg4: memref<1x4xf32, #tpu.memory_space<vmem>>, %arg5: memref<3x12x4xf32, #tpu.memory_space<vmem>>, %arg6: memref<1x4xf32, #tpu.memory_space<vmem>>, %arg7: memref<8x16xf32, #tpu.memory_space<vmem>>, %arg8: memref<1x16xf32, #tpu.memory_space<vmem>>, %arg9: memref<1x16x16x16xf32, #tpu.memory_space<vmem>>, %arg10: memref<1x18x18x4xf32, #tpu.memory_space<vmem>>) attributes {dimension_semantics = [#tpu.dimension_semantics<parallel>, #tpu.dimension_semantics<parallel>], iteration_bounds = array<i64: 2, 1>, scalar_prefetch = 0 : i64, scratch_operands = 1 : i64, tpu.core_type = #tpu.core_type<tc>, window_params = [{transform_indices = @transform_0, window_bounds = array<i64: 1, 16, 16, 4>}, {pipeline_mode = #tpu.pipeline_mode<synchronous>, transform_indices = @transform_1, window_bounds = array<i64: 4, 4>}, {pipeline_mode = #tpu.pipeline_mode<synchronous>, transform_indices = @transform_2, window_bounds = array<i64: 1, 4>}, {pipeline_mode = #tpu.pipeline_mode<synchronous>, transform_indices = @transform_3, window_bounds = array<i64: 3, 12, 4>}, {pipeline_mode = #tpu.pipeline_mode<synchronous>, transform_indices = @transform_4, window_bounds = array<i64: 1, 4>}, {pipeline_mode = #tpu.pipeline_mode<synchronous>, transform_indices = @transform_5, window_bounds = array<i64: 8, 16>}, {pipeline_mode = #tpu.pipeline_mode<synchronous>, transform_indices = @transform_6, window_bounds = array<i64: 1, 16>}, {transform_indices = @transform_7, window_bounds = array<i64: 1, 16, 16, 16>}]} {
    %c0 = arith.constant 0 : index
    %c0_0 = arith.constant 0 : index
    %c0_1 = arith.constant 0 : index
    %c0_2 = arith.constant 0 : index
    %0 = vector.load %arg2[%c0, %c0_0, %c0_1, %c0_2] : memref<1x16x16x4xf32, #tpu.memory_space<vmem>>, vector<1x16x16x4xf32>
    %1 = vector.shape_cast %0 : vector<1x16x16x4xf32> to vector<256x4xf32>
    %c0_3 = arith.constant 0 : index
    %c0_4 = arith.constant 0 : index
    %2 = vector.load %arg3[%c0_3, %c0_4] : memref<4x4xf32, #tpu.memory_space<vmem>>, vector<4x4xf32>
    %c0_5 = arith.constant 0 : index
    %c0_6 = arith.constant 0 : index
    %3 = vector.load %arg4[%c0_5, %c0_6] : memref<1x4xf32, #tpu.memory_space<vmem>>, vector<1x4xf32>
    %cst = arith.constant dense<0.000000e+00> : vector<256x4xf32>
    %4 = tpu.matmul %1, %2, %cst {dimension_numbers = #tpu.dot_dimension_numbers<[1], [0], [0], [1], [0, 0, 1, 1], [], []>} : vector<256x4xf32>, vector<4x4xf32>, vector<256x4xf32> -> vector<256x4xf32>
    %5 = vector.broadcast %3 : vector<1x4xf32> to vector<256x4xf32>
    %6 = arith.addf %4, %5 : vector<256x4xf32>
    %cst_7 = arith.constant 0.000000e+00 : f32
    %7 = vector.broadcast %cst_7 : f32 to vector<256x4xf32>
    %8 = arith.maximumf %6, %7 : vector<256x4xf32>
    %9 = vector.shape_cast %8 : vector<256x4xf32> to vector<1x16x16x4xf32>
    %c0_8 = arith.constant 0 : index
    %c1 = arith.constant 1 : index
    %c1_9 = arith.constant 1 : index
    %c0_10 = arith.constant 0 : index
    %10 = vector.load %arg10[%c0_8, %c1, %c1_9, %c0_10] : memref<1x18x18x4xf32, #tpu.memory_space<vmem>>, vector<1x16x16x4xf32>
    tpu.vector_store %arg10[%c0_8, %c1, %c1_9, %c0_10], %9 {strides = array<i32>} : memref<1x18x18x4xf32, #tpu.memory_space<vmem>>, vector<1x16x16x4xf32>,
    %cst_11 = arith.constant 0.000000e+00 : f32
    %11 = vector.broadcast %cst_11 : f32 to vector<1x1x18x4xf32>
    %c0_12 = arith.constant 0 : index
    %c0_13 = arith.constant 0 : index
    %c0_14 = arith.constant 0 : index
    %c0_15 = arith.constant 0 : index
    %12 = vector.load %arg10[%c0_12, %c0_13, %c0_14, %c0_15] : memref<1x18x18x4xf32, #tpu.memory_space<vmem>>, vector<1x1x18x4xf32>
    tpu.vector_store %arg10[%c0_12, %c0_13, %c0_14, %c0_15], %11 {strides = array<i32>} : memref<1x18x18x4xf32, #tpu.memory_space<vmem>>, vector<1x1x18x4xf32>,
    %c0_16 = arith.constant 0 : index
    %c17 = arith.constant 17 : index
    %c0_17 = arith.constant 0 : index
    %c0_18 = arith.constant 0 : index
    %13 = vector.load %arg10[%c0_16, %c17, %c0_17, %c0_18] : memref<1x18x18x4xf32, #tpu.memory_space<vmem>>, vector<1x1x18x4xf32>
    tpu.vector_store %arg10[%c0_16, %c17, %c0_17, %c0_18], %11 {strides = array<i32>} : memref<1x18x18x4xf32, #tpu.memory_space<vmem>>, vector<1x1x18x4xf32>,
    %cst_19 = arith.constant 0.000000e+00 : f32
    %14 = vector.broadcast %cst_19 : f32 to vector<1x18x1x4xf32>
    %c0_20 = arith.constant 0 : index
    %c0_21 = arith.constant 0 : index
    %c0_22 = arith.constant 0 : index
    %c0_23 = arith.constant 0 : index
    %15 = vector.load %arg10[%c0_20, %c0_21, %c0_22, %c0_23] : memref<1x18x18x4xf32, #tpu.memory_space<vmem>>, vector<1x18x1x4xf32>
    tpu.vector_store %arg10[%c0_20, %c0_21, %c0_22, %c0_23], %14 {strides = array<i32>} : memref<1x18x18x4xf32, #tpu.memory_space<vmem>>, vector<1x18x1x4xf32>,
    %c0_24 = arith.constant 0 : index
    %c0_25 = arith.constant 0 : index
    %c17_26 = arith.constant 17 : index
    %c0_27 = arith.constant 0 : index
    %16 = vector.load %arg10[%c0_24, %c0_25, %c17_26, %c0_27] : memref<1x18x18x4xf32, #tpu.memory_space<vmem>>, vector<1x18x1x4xf32>
    tpu.vector_store %arg10[%c0_24, %c0_25, %c17_26, %c0_27], %14 {strides = array<i32>} : memref<1x18x18x4xf32, #tpu.memory_space<vmem>>, vector<1x18x1x4xf32>,
    %c0_28 = arith.constant 0 : index
    %c0_29 = arith.constant 0 : index
    %17 = vector.load %arg6[%c0_28, %c0_29] : memref<1x4xf32, #tpu.memory_space<vmem>>, vector<1x4xf32>
    %c0_30 = arith.constant 0 : index
    %c0_31 = arith.constant 0 : index
    %c0_32 = arith.constant 0 : index
    %c0_33 = arith.constant 0 : index
    %18 = vector.load %arg10[%c0_30, %c0_31, %c0_32, %c0_33] : memref<1x18x18x4xf32, #tpu.memory_space<vmem>>, vector<1x16x16x4xf32>
    %c0_34 = arith.constant 0 : index
    %c0_35 = arith.constant 0 : index
    %c1_36 = arith.constant 1 : index
    %c0_37 = arith.constant 0 : index
    %19 = vector.load %arg10[%c0_34, %c0_35, %c1_36, %c0_37] : memref<1x18x18x4xf32, #tpu.memory_space<vmem>>, vector<1x16x16x4xf32>
    %c0_38 = arith.constant 0 : index
    %c0_39 = arith.constant 0 : index
    %c2 = arith.constant 2 : index
    %c0_40 = arith.constant 0 : index
    %20 = vector.load %arg10[%c0_38, %c0_39, %c2, %c0_40] : memref<1x18x18x4xf32, #tpu.memory_space<vmem>>, vector<1x16x16x4xf32>
    %21 = tpu.concatenate %18, %19, %20 in 3 : vector<1x16x16x4xf32>, vector<1x16x16x4xf32>, vector<1x16x16x4xf32> -> vector<1x16x16x12xf32>
    %22 = vector.shape_cast %21 : vector<1x16x16x12xf32> to vector<256x12xf32>
    %c0_41 = arith.constant 0 : index
    %c0_42 = arith.constant 0 : index
    %c0_43 = arith.constant 0 : index
    %23 = vector.load %arg5[%c0_41, %c0_42, %c0_43] : memref<3x12x4xf32, #tpu.memory_space<vmem>>, vector<1x12x4xf32>
    %24 = vector.shape_cast %23 : vector<1x12x4xf32> to vector<12x4xf32>
    %cst_44 = arith.constant dense<0.000000e+00> : vector<256x4xf32>
    %25 = tpu.matmul %22, %24, %cst_44 {dimension_numbers = #tpu.dot_dimension_numbers<[1], [0], [0], [1], [0, 0, 1, 1], [], []>} : vector<256x12xf32>, vector<12x4xf32>, vector<256x4xf32> -> vector<256x4xf32>
    %c0_45 = arith.constant 0 : index
    %c1_46 = arith.constant 1 : index
    %c0_47 = arith.constant 0 : index
    %c0_48 = arith.constant 0 : index
    %26 = vector.load %arg10[%c0_45, %c1_46, %c0_47, %c0_48] : memref<1x18x18x4xf32, #tpu.memory_space<vmem>>, vector<1x16x16x4xf32>
    %c0_49 = arith.constant 0 : index
    %c1_50 = arith.constant 1 : index
    %c1_51 = arith.constant 1 : index
    %c0_52 = arith.constant 0 : index
    %27 = vector.load %arg10[%c0_49, %c1_50, %c1_51, %c0_52] : memref<1x18x18x4xf32, #tpu.memory_space<vmem>>, vector<1x16x16x4xf32>
    %c0_53 = arith.constant 0 : index
    %c1_54 = arith.constant 1 : index
    %c2_55 = arith.constant 2 : index
    %c0_56 = arith.constant 0 : index
    %28 = vector.load %arg10[%c0_53, %c1_54, %c2_55, %c0_56] : memref<1x18x18x4xf32, #tpu.memory_space<vmem>>, vector<1x16x16x4xf32>
    %29 = tpu.concatenate %26, %27, %28 in 3 : vector<1x16x16x4xf32>, vector<1x16x16x4xf32>, vector<1x16x16x4xf32> -> vector<1x16x16x12xf32>
    %30 = vector.shape_cast %29 : vector<1x16x16x12xf32> to vector<256x12xf32>
    %c1_57 = arith.constant 1 : index
    %c0_58 = arith.constant 0 : index
    %c0_59 = arith.constant 0 : index
    %31 = vector.load %arg5[%c1_57, %c0_58, %c0_59] : memref<3x12x4xf32, #tpu.memory_space<vmem>>, vector<1x12x4xf32>
    %32 = vector.shape_cast %31 : vector<1x12x4xf32> to vector<12x4xf32>
    %cst_60 = arith.constant dense<0.000000e+00> : vector<256x4xf32>
    %33 = tpu.matmul %30, %32, %cst_60 {dimension_numbers = #tpu.dot_dimension_numbers<[1], [0], [0], [1], [0, 0, 1, 1], [], []>} : vector<256x12xf32>, vector<12x4xf32>, vector<256x4xf32> -> vector<256x4xf32>
    %34 = arith.addf %25, %33 : vector<256x4xf32>
    %c0_61 = arith.constant 0 : index
    %c2_62 = arith.constant 2 : index
    %c0_63 = arith.constant 0 : index
    %c0_64 = arith.constant 0 : index
    %35 = vector.load %arg10[%c0_61, %c2_62, %c0_63, %c0_64] : memref<1x18x18x4xf32, #tpu.memory_space<vmem>>, vector<1x16x16x4xf32>
    %c0_65 = arith.constant 0 : index
    %c2_66 = arith.constant 2 : index
    %c1_67 = arith.constant 1 : index
    %c0_68 = arith.constant 0 : index
    %36 = vector.load %arg10[%c0_65, %c2_66, %c1_67, %c0_68] : memref<1x18x18x4xf32, #tpu.memory_space<vmem>>, vector<1x16x16x4xf32>
    %c0_69 = arith.constant 0 : index
    %c2_70 = arith.constant 2 : index
    %c2_71 = arith.constant 2 : index
    %c0_72 = arith.constant 0 : index
    %37 = vector.load %arg10[%c0_69, %c2_70, %c2_71, %c0_72] : memref<1x18x18x4xf32, #tpu.memory_space<vmem>>, vector<1x16x16x4xf32>
    %38 = tpu.concatenate %35, %36, %37 in 3 : vector<1x16x16x4xf32>, vector<1x16x16x4xf32>, vector<1x16x16x4xf32> -> vector<1x16x16x12xf32>
    %39 = vector.shape_cast %38 : vector<1x16x16x12xf32> to vector<256x12xf32>
    %c2_73 = arith.constant 2 : index
    %c0_74 = arith.constant 0 : index
    %c0_75 = arith.constant 0 : index
    %40 = vector.load %arg5[%c2_73, %c0_74, %c0_75] : memref<3x12x4xf32, #tpu.memory_space<vmem>>, vector<1x12x4xf32>
    %41 = vector.shape_cast %40 : vector<1x12x4xf32> to vector<12x4xf32>
    %cst_76 = arith.constant dense<0.000000e+00> : vector<256x4xf32>
    %42 = tpu.matmul %39, %41, %cst_76 {dimension_numbers = #tpu.dot_dimension_numbers<[1], [0], [0], [1], [0, 0, 1, 1], [], []>} : vector<256x12xf32>, vector<12x4xf32>, vector<256x4xf32> -> vector<256x4xf32>
    %43 = arith.addf %34, %42 : vector<256x4xf32>
    %44 = vector.broadcast %17 : vector<1x4xf32> to vector<256x4xf32>
    %45 = arith.addf %43, %44 : vector<256x4xf32>
    %cst_77 = arith.constant 0.000000e+00 : f32
    %46 = vector.broadcast %cst_77 : f32 to vector<256x4xf32>
    %47 = arith.maximumf %45, %46 : vector<256x4xf32>
    %48 = tpu.concatenate %47, %1 in 1 : vector<256x4xf32>, vector<256x4xf32> -> vector<256x8xf32>
    %c0_78 = arith.constant 0 : index
    %c0_79 = arith.constant 0 : index
    %49 = vector.load %arg7[%c0_78, %c0_79] : memref<8x16xf32, #tpu.memory_space<vmem>>, vector<8x16xf32>
    %cst_80 = arith.constant dense<0.000000e+00> : vector<256x16xf32>
    %50 = tpu.matmul %48, %49, %cst_80 {dimension_numbers = #tpu.dot_dimension_numbers<[1], [0], [0], [1], [0, 0, 1, 1], [], []>} : vector<256x8xf32>, vector<8x16xf32>, vector<256x16xf32> -> vector<256x16xf32>
    %c0_81 = arith.constant 0 : index
    %c0_82 = arith.constant 0 : index
    %51 = vector.load %arg8[%c0_81, %c0_82] : memref<1x16xf32, #tpu.memory_space<vmem>>, vector<1x16xf32>
    %52 = vector.broadcast %51 : vector<1x16xf32> to vector<256x16xf32>
    %53 = arith.addf %50, %52 : vector<256x16xf32>
    %cst_83 = arith.constant 0.000000e+00 : f32
    %54 = vector.broadcast %cst_83 : f32 to vector<256x16xf32>
    %55 = arith.maximumf %53, %54 : vector<256x16xf32>
    %56 = vector.shape_cast %55 : vector<256x16xf32> to vector<1x16x16x16xf32>
    %c0_84 = arith.constant 0 : index
    %c0_85 = arith.constant 0 : index
    %c0_86 = arith.constant 0 : index
    %c0_87 = arith.constant 0 : index
    %57 = vector.load %arg9[%c0_84, %c0_85, %c0_86, %c0_87] : memref<1x16x16x16xf32, #tpu.memory_space<vmem>>, vector<1x16x16x16xf32>
    tpu.vector_store %arg9[%c0_84, %c0_85, %c0_86, %c0_87], %56 {strides = array<i32>} : memref<1x16x16x16xf32, #tpu.memory_space<vmem>>, vector<1x16x16x16xf32>,
    return
  }
  func.func @transform_0(%arg0: i32, %arg1: i32) -> (i32, i32, i32, i32) {
    %c0_i32 = arith.constant 0 : i32
    %c0_i32_0 = arith.constant 0 : i32
    %c0_i32_1 = arith.constant 0 : i32
    return %arg0, %arg1, %c0_i32, %c0_i32_0 : i32, i32, i32, i32
  }
  func.func @transform_1(%arg0: i32, %arg1: i32) -> (i32, i32) {
    %c0_i32 = arith.constant 0 : i32
    %c0_i32_0 = arith.constant 0 : i32
    %c0_i32_1 = arith.constant 0 : i32
    return %c0_i32, %c0_i32_0 : i32, i32
  }
  func.func @transform_2(%arg0: i32, %arg1: i32) -> (i32, i32) {
    %c0_i32 = arith.constant 0 : i32
    %c0_i32_0 = arith.constant 0 : i32
    %c0_i32_1 = arith.constant 0 : i32
    return %c0_i32, %c0_i32_0 : i32, i32
  }
  func.func @transform_3(%arg0: i32, %arg1: i32) -> (i32, i32, i32) {
    %c0_i32 = arith.constant 0 : i32
    %c0_i32_0 = arith.constant 0 : i32
    %c0_i32_1 = arith.constant 0 : i32
    %c0_i32_2 = arith.constant 0 : i32
    return %c0_i32, %c0_i32_0, %c0_i32_1 : i32, i32, i32
  }
  func.func @transform_4(%arg0: i32, %arg1: i32) -> (i32, i32) {
    %c0_i32 = arith.constant 0 : i32
    %c0_i32_0 = arith.constant 0 : i32
    %c0_i32_1 = arith.constant 0 : i32
    return %c0_i32, %c0_i32_0 : i32, i32
  }
  func.func @transform_5(%arg0: i32, %arg1: i32) -> (i32, i32) {
    %c0_i32 = arith.constant 0 : i32
    %c0_i32_0 = arith.constant 0 : i32
    %c0_i32_1 = arith.constant 0 : i32
    return %c0_i32, %c0_i32_0 : i32, i32
  }
  func.func @transform_6(%arg0: i32, %arg1: i32) -> (i32, i32) {
    %c0_i32 = arith.constant 0 : i32
    %c0_i32_0 = arith.constant 0 : i32
    %c0_i32_1 = arith.constant 0 : i32
    return %c0_i32, %c0_i32_0 : i32, i32
  }
  func.func @transform_7(%arg0: i32, %arg1: i32) -> (i32, i32, i32, i32) {
    %c0_i32 = arith.constant 0 : i32
    %c0_i32_0 = arith.constant 0 : i32
    %c0_i32_1 = arith.constant 0 : i32
    return %arg0, %arg1, %c0_i32, %c0_i32_0 : i32, i32, i32, i32
  }
}

module attributes {stable_mosaic.version = 11 : i64} {
  func.func @_bottleneck_kernel(%arg0: i32, %arg1: i32, %arg2: memref<1x16x16x4xf32, #tpu.memory_space<vmem>>, %arg3: memref<4x4xf32, #tpu.memory_space<vmem>>, %arg4: memref<1x4xf32, #tpu.memory_space<vmem>>, %arg5: memref<3x12x4xf32, #tpu.memory_space<vmem>>, %arg6: memref<1x4xf32, #tpu.memory_space<vmem>>, %arg7: memref<8x16xf32, #tpu.memory_space<vmem>>, %arg8: memref<1x16xf32, #tpu.memory_space<vmem>>, %arg9: memref<1x16x16x16xf32, #tpu.memory_space<vmem>>, %arg10: memref<1x18x18x4xf32, #tpu.memory_space<vmem>>) attributes {dimension_semantics = [#tpu.dimension_semantics<parallel>, #tpu.dimension_semantics<parallel>], iteration_bounds = array<i64: 2, 1>, scalar_prefetch = 0 : i64, scratch_operands = 1 : i64, tpu.core_type = #tpu.core_type<tc>, window_params = [{transform_indices = @transform_0, window_bounds = array<i64: 1, 16, 16, 4>}, {pipeline_mode = #tpu.pipeline_mode<synchronous>, transform_indices = @transform_1, window_bounds = array<i64: 4, 4>}, {pipeline_mode = #tpu.pipeline_mode<synchronous>, transform_indices = @transform_2, window_bounds = array<i64: 1, 4>}, {pipeline_mode = #tpu.pipeline_mode<synchronous>, transform_indices = @transform_3, window_bounds = array<i64: 3, 12, 4>}, {pipeline_mode = #tpu.pipeline_mode<synchronous>, transform_indices = @transform_4, window_bounds = array<i64: 1, 4>}, {pipeline_mode = #tpu.pipeline_mode<synchronous>, transform_indices = @transform_5, window_bounds = array<i64: 8, 16>}, {pipeline_mode = #tpu.pipeline_mode<synchronous>, transform_indices = @transform_6, window_bounds = array<i64: 1, 16>}, {transform_indices = @transform_7, window_bounds = array<i64: 1, 16, 16, 16>}]} {
    %c0 = arith.constant 0 : index
    %c0_0 = arith.constant 0 : index
    %c0_1 = arith.constant 0 : index
    %c0_2 = arith.constant 0 : index
    %0 = vector.load %arg2[%c0, %c0_0, %c0_1, %c0_2] : memref<1x16x16x4xf32, #tpu.memory_space<vmem>>, vector<1x16x16x4xf32>
    %1 = vector.shape_cast %0 : vector<1x16x16x4xf32> to vector<256x4xf32>
    %c0_3 = arith.constant 0 : index
    %c0_4 = arith.constant 0 : index
    %2 = vector.load %arg3[%c0_3, %c0_4] : memref<4x4xf32, #tpu.memory_space<vmem>>, vector<4x4xf32>
    %c0_5 = arith.constant 0 : index
    %c0_6 = arith.constant 0 : index
    %3 = vector.load %arg4[%c0_5, %c0_6] : memref<1x4xf32, #tpu.memory_space<vmem>>, vector<1x4xf32>
    %cst = arith.constant dense<0.000000e+00> : vector<256x4xf32>
    %4 = tpu.matmul %1, %2, %cst {dimension_numbers = #tpu.dot_dimension_numbers<[1], [0], [0], [1], [0, 0, 1, 1], [], []>} : vector<256x4xf32>, vector<4x4xf32>, vector<256x4xf32> -> vector<256x4xf32>
    %5 = vector.broadcast %3 : vector<1x4xf32> to vector<256x4xf32>
    %6 = arith.addf %4, %5 : vector<256x4xf32>
    %cst_7 = arith.constant 0.000000e+00 : f32
    %7 = vector.broadcast %cst_7 : f32 to vector<256x4xf32>
    %8 = arith.maximumf %6, %7 : vector<256x4xf32>
    %9 = vector.shape_cast %8 : vector<256x4xf32> to vector<1x16x16x4xf32>
    %c0_8 = arith.constant 0 : index
    %c1 = arith.constant 1 : index
    %c1_9 = arith.constant 1 : index
    %c0_10 = arith.constant 0 : index
    %10 = vector.load %arg10[%c0_8, %c1, %c1_9, %c0_10] : memref<1x18x18x4xf32, #tpu.memory_space<vmem>>, vector<1x16x16x4xf32>
    tpu.vector_store %arg10[%c0_8, %c1, %c1_9, %c0_10], %9 {strides = array<i32>} : memref<1x18x18x4xf32, #tpu.memory_space<vmem>>, vector<1x16x16x4xf32>,
    %cst_11 = arith.constant 0.000000e+00 : f32
    %11 = vector.broadcast %cst_11 : f32 to vector<1x1x18x4xf32>
    %c0_12 = arith.constant 0 : index
    %c0_13 = arith.constant 0 : index
    %c0_14 = arith.constant 0 : index
    %c0_15 = arith.constant 0 : index
    %12 = vector.load %arg10[%c0_12, %c0_13, %c0_14, %c0_15] : memref<1x18x18x4xf32, #tpu.memory_space<vmem>>, vector<1x1x18x4xf32>
    tpu.vector_store %arg10[%c0_12, %c0_13, %c0_14, %c0_15], %11 {strides = array<i32>} : memref<1x18x18x4xf32, #tpu.memory_space<vmem>>, vector<1x1x18x4xf32>,
    %c0_16 = arith.constant 0 : index
    %c17 = arith.constant 17 : index
    %c0_17 = arith.constant 0 : index
    %c0_18 = arith.constant 0 : index
    %13 = vector.load %arg10[%c0_16, %c17, %c0_17, %c0_18] : memref<1x18x18x4xf32, #tpu.memory_space<vmem>>, vector<1x1x18x4xf32>
    tpu.vector_store %arg10[%c0_16, %c17, %c0_17, %c0_18], %11 {strides = array<i32>} : memref<1x18x18x4xf32, #tpu.memory_space<vmem>>, vector<1x1x18x4xf32>,
    %cst_19 = arith.constant 0.000000e+00 : f32
    %14 = vector.broadcast %cst_19 : f32 to vector<1x18x1x4xf32>
    %c0_20 = arith.constant 0 : index
    %c0_21 = arith.constant 0 : index
    %c0_22 = arith.constant 0 : index
    %c0_23 = arith.constant 0 : index
    %15 = vector.load %arg10[%c0_20, %c0_21, %c0_22, %c0_23] : memref<1x18x18x4xf32, #tpu.memory_space<vmem>>, vector<1x18x1x4xf32>
    tpu.vector_store %arg10[%c0_20, %c0_21, %c0_22, %c0_23], %14 {strides = array<i32>} : memref<1x18x18x4xf32, #tpu.memory_space<vmem>>, vector<1x18x1x4xf32>,
    %c0_24 = arith.constant 0 : index
    %c0_25 = arith.constant 0 : index
    %c17_26 = arith.constant 17 : index
    %c0_27 = arith.constant 0 : index
    %16 = vector.load %arg10[%c0_24, %c0_25, %c17_26, %c0_27] : memref<1x18x18x4xf32, #tpu.memory_space<vmem>>, vector<1x18x1x4xf32>
    tpu.vector_store %arg10[%c0_24, %c0_25, %c17_26, %c0_27], %14 {strides = array<i32>} : memref<1x18x18x4xf32, #tpu.memory_space<vmem>>, vector<1x18x1x4xf32>,
    %c0_28 = arith.constant 0 : index
    %c0_29 = arith.constant 0 : index
    %17 = vector.load %arg6[%c0_28, %c0_29] : memref<1x4xf32, #tpu.memory_space<vmem>>, vector<1x4xf32>
    %c0_30 = arith.constant 0 : index
    %c0_31 = arith.constant 0 : index
    %c0_32 = arith.constant 0 : index
    %c0_33 = arith.constant 0 : index
    %18 = vector.load %arg10[%c0_30, %c0_31, %c0_32, %c0_33] : memref<1x18x18x4xf32, #tpu.memory_space<vmem>>, vector<1x16x16x4xf32>
    %c0_34 = arith.constant 0 : index
    %c0_35 = arith.constant 0 : index
    %c1_36 = arith.constant 1 : index
    %c0_37 = arith.constant 0 : index
    %19 = vector.load %arg10[%c0_34, %c0_35, %c1_36, %c0_37] : memref<1x18x18x4xf32, #tpu.memory_space<vmem>>, vector<1x16x16x4xf32>
    %c0_38 = arith.constant 0 : index
    %c0_39 = arith.constant 0 : index
    %c2 = arith.constant 2 : index
    %c0_40 = arith.constant 0 : index
    %20 = vector.load %arg10[%c0_38, %c0_39, %c2, %c0_40] : memref<1x18x18x4xf32, #tpu.memory_space<vmem>>, vector<1x16x16x4xf32>
    %21 = tpu.concatenate %18, %19, %20 in 3 : vector<1x16x16x4xf32>, vector<1x16x16x4xf32>, vector<1x16x16x4xf32> -> vector<1x16x16x12xf32>
    %22 = vector.shape_cast %21 : vector<1x16x16x12xf32> to vector<256x12xf32>
    %c0_41 = arith.constant 0 : index
    %c0_42 = arith.constant 0 : index
    %c0_43 = arith.constant 0 : index
    %23 = vector.load %arg5[%c0_41, %c0_42, %c0_43] : memref<3x12x4xf32, #tpu.memory_space<vmem>>, vector<1x12x4xf32>
    %24 = vector.shape_cast %23 : vector<1x12x4xf32> to vector<12x4xf32>
    %cst_44 = arith.constant dense<0.000000e+00> : vector<256x4xf32>
    %25 = tpu.matmul %22, %24, %cst_44 {dimension_numbers = #tpu.dot_dimension_numbers<[1], [0], [0], [1], [0, 0, 1, 1], [], []>} : vector<256x12xf32>, vector<12x4xf32>, vector<256x4xf32> -> vector<256x4xf32>
    %c0_45 = arith.constant 0 : index
    %c1_46 = arith.constant 1 : index
    %c0_47 = arith.constant 0 : index
    %c0_48 = arith.constant 0 : index
    %26 = vector.load %arg10[%c0_45, %c1_46, %c0_47, %c0_48] : memref<1x18x18x4xf32, #tpu.memory_space<vmem>>, vector<1x16x16x4xf32>
    %c0_49 = arith.constant 0 : index
    %c1_50 = arith.constant 1 : index
    %c1_51 = arith.constant 1 : index
    %c0_52 = arith.constant 0 : index
    %27 = vector.load %arg10[%c0_49, %c1_50, %c1_51, %c0_52] : memref<1x18x18x4xf32, #tpu.memory_space<vmem>>, vector<1x16x16x4xf32>
    %c0_53 = arith.constant 0 : index
    %c1_54 = arith.constant 1 : index
    %c2_55 = arith.constant 2 : index
    %c0_56 = arith.constant 0 : index
    %28 = vector.load %arg10[%c0_53, %c1_54, %c2_55, %c0_56] : memref<1x18x18x4xf32, #tpu.memory_space<vmem>>, vector<1x16x16x4xf32>
    %29 = tpu.concatenate %26, %27, %28 in 3 : vector<1x16x16x4xf32>, vector<1x16x16x4xf32>, vector<1x16x16x4xf32> -> vector<1x16x16x12xf32>
    %30 = vector.shape_cast %29 : vector<1x16x16x12xf32> to vector<256x12xf32>
    %c1_57 = arith.constant 1 : index
    %c0_58 = arith.constant 0 : index
    %c0_59 = arith.constant 0 : index
    %31 = vector.load %arg5[%c1_57, %c0_58, %c0_59] : memref<3x12x4xf32, #tpu.memory_space<vmem>>, vector<1x12x4xf32>
    %32 = vector.shape_cast %31 : vector<1x12x4xf32> to vector<12x4xf32>
    %cst_60 = arith.constant dense<0.000000e+00> : vector<256x4xf32>
    %33 = tpu.matmul %30, %32, %cst_60 {dimension_numbers = #tpu.dot_dimension_numbers<[1], [0], [0], [1], [0, 0, 1, 1], [], []>} : vector<256x12xf32>, vector<12x4xf32>, vector<256x4xf32> -> vector<256x4xf32>
    %34 = arith.addf %25, %33 : vector<256x4xf32>
    %c0_61 = arith.constant 0 : index
    %c2_62 = arith.constant 2 : index
    %c0_63 = arith.constant 0 : index
    %c0_64 = arith.constant 0 : index
    %35 = vector.load %arg10[%c0_61, %c2_62, %c0_63, %c0_64] : memref<1x18x18x4xf32, #tpu.memory_space<vmem>>, vector<1x16x16x4xf32>
    %c0_65 = arith.constant 0 : index
    %c2_66 = arith.constant 2 : index
    %c1_67 = arith.constant 1 : index
    %c0_68 = arith.constant 0 : index
    %36 = vector.load %arg10[%c0_65, %c2_66, %c1_67, %c0_68] : memref<1x18x18x4xf32, #tpu.memory_space<vmem>>, vector<1x16x16x4xf32>
    %c0_69 = arith.constant 0 : index
    %c2_70 = arith.constant 2 : index
    %c2_71 = arith.constant 2 : index
    %c0_72 = arith.constant 0 : index
    %37 = vector.load %arg10[%c0_69, %c2_70, %c2_71, %c0_72] : memref<1x18x18x4xf32, #tpu.memory_space<vmem>>, vector<1x16x16x4xf32>
    %38 = tpu.concatenate %35, %36, %37 in 3 : vector<1x16x16x4xf32>, vector<1x16x16x4xf32>, vector<1x16x16x4xf32> -> vector<1x16x16x12xf32>
    %39 = vector.shape_cast %38 : vector<1x16x16x12xf32> to vector<256x12xf32>
    %c2_73 = arith.constant 2 : index
    %c0_74 = arith.constant 0 : index
    %c0_75 = arith.constant 0 : index
    %40 = vector.load %arg5[%c2_73, %c0_74, %c0_75] : memref<3x12x4xf32, #tpu.memory_space<vmem>>, vector<1x12x4xf32>
    %41 = vector.shape_cast %40 : vector<1x12x4xf32> to vector<12x4xf32>
    %cst_76 = arith.constant dense<0.000000e+00> : vector<256x4xf32>
    %42 = tpu.matmul %39, %41, %cst_76 {dimension_numbers = #tpu.dot_dimension_numbers<[1], [0], [0], [1], [0, 0, 1, 1], [], []>} : vector<256x12xf32>, vector<12x4xf32>, vector<256x4xf32> -> vector<256x4xf32>
    %43 = arith.addf %34, %42 : vector<256x4xf32>
    %44 = vector.broadcast %17 : vector<1x4xf32> to vector<256x4xf32>
    %45 = arith.addf %43, %44 : vector<256x4xf32>
    %cst_77 = arith.constant 0.000000e+00 : f32
    %46 = vector.broadcast %cst_77 : f32 to vector<256x4xf32>
    %47 = arith.maximumf %45, %46 : vector<256x4xf32>
    %48 = tpu.concatenate %47, %1 in 1 : vector<256x4xf32>, vector<256x4xf32> -> vector<256x8xf32>
    %c0_78 = arith.constant 0 : index
    %c0_79 = arith.constant 0 : index
    %49 = vector.load %arg7[%c0_78, %c0_79] : memref<8x16xf32, #tpu.memory_space<vmem>>, vector<8x16xf32>
    %cst_80 = arith.constant dense<0.000000e+00> : vector<256x16xf32>
    %50 = tpu.matmul %48, %49, %cst_80 {dimension_numbers = #tpu.dot_dimension_numbers<[1], [0], [0], [1], [0, 0, 1, 1], [], []>} : vector<256x8xf32>, vector<8x16xf32>, vector<256x16xf32> -> vector<256x16xf32>
    %c0_81 = arith.constant 0 : index
    %c0_82 = arith.constant 0 : index
    %51 = vector.load %arg8[%c0_81, %c0_82] : memref<1x16xf32, #tpu.memory_space<vmem>>, vector<1x16xf32>
    %52 = vector.broadcast %51 : vector<1x16xf32> to vector<256x16xf32>
    %53 = arith.addf %50, %52 : vector<256x16xf32>
    %cst_83 = arith.constant 0.000000e+00 : f32
    %54 = vector.broadcast %cst_83 : f32 to vector<256x16xf32>
    %55 = arith.maximumf %53, %54 : vector<256x16xf32>
    %56 = vector.shape_cast %55 : vector<256x16xf32> to vector<1x16x16x16xf32>
    %c0_84 = arith.constant 0 : index
    %c0_85 = arith.constant 0 : index
    %c0_86 = arith.constant 0 : index
    %c0_87 = arith.constant 0 : index
    %57 = vector.load %arg9[%c0_84, %c0_85, %c0_86, %c0_87] : memref<1x16x16x16xf32, #tpu.memory_space<vmem>>, vector<1x16x16x16xf32>
    tpu.vector_store %arg9[%c0_84, %c0_85, %c0_86, %c0_87], %56 {strides = array<i32>} : memref<1x16x16x16xf32, #tpu.memory_space<vmem>>, vector<1x16x16x16xf32>,
    return
  }
  func.func @transform_0(%arg0: i32, %arg1: i32) -> (i32, i32, i32, i32) {
    %c0_i32 = arith.constant 0 : i32
    %c0_i32_0 = arith.constant 0 : i32
    %c0_i32_1 = arith.constant 0 : i32
    return %arg0, %arg1, %c0_i32, %c0_i32_0 : i32, i32, i32, i32
  }
  func.func @transform_1(%arg0: i32, %arg1: i32) -> (i32, i32) {
    %c0_i32 = arith.constant 0 : i32
    %c0_i32_0 = arith.constant 0 : i32
    %c0_i32_1 = arith.constant 0 : i32
    return %c0_i32, %c0_i32_0 : i32, i32
  }
  func.func @transform_2(%arg0: i32, %arg1: i32) -> (i32, i32) {
    %c0_i32 = arith.constant 0 : i32
    %c0_i32_0 = arith.constant 0 : i32
    %c0_i32_1 = arith.constant 0 : i32
    return %c0_i32, %c0_i32_0 : i32, i32
  }
  func.func @transform_3(%arg0: i32, %arg1: i32) -> (i32, i32, i32) {
    %c0_i32 = arith.constant 0 : i32
    %c0_i32_0 = arith.constant 0 : i32
    %c0_i32_1 = arith.constant 0 : i32
    %c0_i32_2 = arith.constant 0 : i32
    return %c0_i32, %c0_i32_0, %c0_i32_1 : i32, i32, i32
  }
  func.func @transform_4(%arg0: i32, %arg1: i32) -> (i32, i32) {
    %c0_i32 = arith.constant 0 : i32
    %c0_i32_0 = arith.constant 0 : i32
    %c0_i32_1 = arith.constant 0 : i32
    return %c0_i32, %c0_i32_0 : i32, i32
  }
  func.func @transform_5(%arg0: i32, %arg1: i32) -> (i32, i32) {
    %c0_i32 = arith.constant 0 : i32
    %c0_i32_0 = arith.constant 0 : i32
    %c0_i32_1 = arith.constant 0 : i32
    return %c0_i32, %c0_i32_0 : i32, i32
  }
  func.func @transform_6(%arg0: i32, %arg1: i32) -> (i32, i32) {
    %c0_i32 = arith.constant 0 : i32
    %c0_i32_0 = arith.constant 0 : i32
    %c0_i32_1 = arith.constant 0 : i32
    return %c0_i32, %c0_i32_0 : i32, i32
  }
  func.func @transform_7(%arg0: i32, %arg1: i32) -> (i32, i32, i32, i32) {
    %c0_i32 = arith.constant 0 : i32
    %c0_i32_0 = arith.constant 0 : i32
    %c0_i32_1 = arith.constant 0 : i32
    return %arg0, %arg1, %c0_i32, %c0_i32_0 : i32, i32, i32, i32
  }
}

</mosaic_0001>

<llo_original>
// kernel: tpu_custom_call.1
$region0: #{tpu_custom_call.1}
  #allocation0 [shape = 'u32[]', space=smem, size = 0x4, offset = 0x4, fixed_abs, tag = 'smem constant byte address 0x4 - core index']
  #allocation1 [shape = 'u32[144,128]{1,0:T(1,128)}', space=vmem, size = 0x12000, scoped, tag = 'internal scratch']
  #allocation2 [shape = 'f32[1,18,18,4]{3,2,1,0:T(8,128)}', space=vmem, size = 0x36000, scoped, tag = 'scratch operand']
  %s0 = inlined_call_operand.vmem [shape: f32[2,16,16,4], index: 0, kind: input, shape index: {}]
  %s1 = inlined_call_operand.vmem [shape: f32[4,4], index: 1, kind: input, shape index: {}]
  %s2 = inlined_call_operand.vmem [shape: f32[1,4], index: 2, kind: input, shape index: {}]
  %s3 = inlined_call_operand.vmem [shape: f32[3,12,4], index: 3, kind: input, shape index: {}]
  %s4 = inlined_call_operand.vmem [shape: f32[1,4], index: 4, kind: input, shape index: {}]
  %s5 = inlined_call_operand.vmem [shape: f32[8,16], index: 5, kind: input, shape index: {}]
  %s6 = inlined_call_operand.vmem [shape: f32[1,16], index: 6, kind: input, shape index: {}]
  %s7 = inlined_call_operand.hbm [shape: f32[2,16,16,16], index: 7, kind: output, shape index: {}]
  %s8 = sld [smem:[#allocation0]]
  $region61: #{tpu_custom_call.1} parent=0
    _
  %s10 = ssub.s32 1, %s8
  %s11 = scalar_select 0, %s10, %s8
  $region1: #{tpu_custom_call.1} parent=0
    #allocation3 [shape = 'u8[262144]{0}', space=vmem, size = 0x40000, scoped, tag = 'output window, operand 0']
    #allocation4 [shape = 's32[2]{0}', space=sflag, size = 0x8, scoped, tag = 'scoped memory for tpu_custom_call.1']
    %12 = vsyncpa [#allocation4], 0
    %s13 = scalar_lea.sflag [#allocation4], 1
    %14 = vsyncpa %s13, 0
    loop: start=0, step=1, limit=4
    $region2: #{tpu_custom_call.1} parent=1 // loop_pre_header
      _
    $region3: #{tpu_custom_call.1} parent=1 // loop_header
      %s16 = sphi 0, %s20
      %p17 = scmp.ge.s32.totalorder %s16, 4
      %s23 = sphi 0, %s35
      %s24 = sphi 0, %s31
      %s25 = sphi 0, %s23
      %s26 = sphi 0, %s24
      %s27 = sphi 0, %s25
      %s28 = sphi 0, %s26
      %s40 = sphi 0, %s42
      %s43 = sphi 0, %s40
      %s44 = sphi 0, %s43
      %s60 = sphi 0, %s44
      %s64 = sphi 0, %s64
      %s66 = sphi 0, %s64
      %s67 = sphi 0, %s66
      %s81 = sphi 0, %s67
      %s85 = sphi 0, %s85
      %s87 = sphi 0, %s85
      %s88 = sphi 0, %s87
      %s102 = sphi 0, %s88
      %s106 = sphi 0, %s106
      %s108 = sphi 0, %s106
      %s109 = sphi 0, %s108
      %s123 = sphi 0, %s109
      %s127 = sphi 0, %s127
      %s129 = sphi 0, %s127
      %s130 = sphi 0, %s129
      %s144 = sphi 0, %s130
      %s148 = sphi 0, %s148
      %s150 = sphi 0, %s148
      %s151 = sphi 0, %s150
      %s165 = sphi 0, %s151
      %s169 = sphi 0, %s169
      %s171 = sphi 0, %s169
      %s172 = sphi 0, %s171
      %s186 = sphi 0, %s172
      %s194 = sphi 0, %s196
      %s197 = sphi 0, %s194
      %s198 = sphi 0, %s197
      %s214 = sphi 0, %s198
    $region4: #{tpu_custom_call.1} parent=1 // loop_header_branch
      %19 = sbr.rel (%p17) target = $region8
    $region5: #{tpu_custom_call.1} parent=1 // loop_body
      %s21 = ssub.s32 %s16, 1
      %s22 = ssub.s32 %s16, 2
      %s29 = sadd.s32 1, %s24
      %p30 = scmp.ge.s32.totalorder %s29, 1
      %s31 = scalar_select %p30, 0, %s29
      %s32 = sadd.s32 1, %s23
      %s33 = scalar_select %p30, %s32, %s23
      %p34 = scmp.ge.s32.totalorder %s33, 2
      %s35 = scalar_select %p34, 0, %s33
      %s36 = ssub.s32 %s23, %s35
      %s37 = ssub.s32 %s24, %s31
      %s38 = sor.u32 %s36, %s37
      %p39 = scmp.eq.s32.totalorder %s38, 0
      %s41 = sadd.s32 %s40, 1
      %s42 = scalar_select %p39, %s40, %s41
      %p45 = pneg %p39
      %p46 = scmp.eq.s32.totalorder %s16, 1
      %p47 = por %p45, %p46
      %p48 = scmp.ne.s32.totalorder %s40, %s43
      %p49 = scmp.eq.s32.totalorder %s16, 0
      %p50 = por %p48, %p49
      %p51 = scmp.ne.s32.totalorder %s40, %s43
      %p52 = scmp.eq.s32.totalorder %s21, 1
      %p53 = por %p51, %p52
      %p54 = scmp.ne.s32.totalorder %s43, %s44
      %p55 = scmp.eq.s32.totalorder %s21, 0
      %p56 = por %p54, %p55
      %p57 = scmp.ne.s32.totalorder %s43, %s44
      %p58 = scmp.eq.s32.totalorder %s22, 1
      %p59 = por %p57, %p58
      %p61 = scmp.ne.s32.totalorder %s44, %s60
      %p62 = scmp.eq.s32.totalorder %s22, 0
      %p63 = por %p61, %p62
      %s65 = sadd.s32 %s64, 1
      %p68 = scmp.eq.s32.totalorder %s16, 1
      %p69 = scmp.ne.s32.totalorder %s64, %s66
      %p70 = scmp.eq.s32.totalorder %s16, 0
      %p71 = por %p69, %p70
      %p72 = scmp.ne.s32.totalorder %s64, %s66
      %p73 = scmp.eq.s32.totalorder %s21, 1
      %p74 = por %p72, %p73
      %p75 = scmp.ne.s32.totalorder %s66, %s67
      %p76 = scmp.eq.s32.totalorder %s21, 0
      %p77 = por %p75, %p76
      %p78 = scmp.ne.s32.totalorder %s66, %s67
      %p79 = scmp.eq.s32.totalorder %s22, 1
      %p80 = por %p78, %p79
      %p82 = scmp.ne.s32.totalorder %s67, %s81
      %p83 = scmp.eq.s32.totalorder %s22, 0
      %p84 = por %p82, %p83
      %s86 = sadd.s32 %s85, 1
      %p89 = scmp.eq.s32.totalorder %s16, 1
      %p90 = scmp.ne.s32.totalorder %s85, %s87
      %p91 = scmp.eq.s32.totalorder %s16, 0
      %p92 = por %p90, %p91
      %p93 = scmp.ne.s32.totalorder %s85, %s87
      %p94 = scmp.eq.s32.totalorder %s21, 1
      %p95 = por %p93, %p94
      %p96 = scmp.ne.s32.totalorder %s87, %s88
      %p97 = scmp.eq.s32.totalorder %s21, 0
      %p98 = por %p96, %p97
      %p99 = scmp.ne.s32.totalorder %s87, %s88
      %p100 = scmp.eq.s32.totalorder %s22, 1
      %p101 = por %p99, %p100
      %p103 = scmp.ne.s32.totalorder %s88, %s102
      %p104 = scmp.eq.s32.totalorder %s22, 0
      %p105 = por %p103, %p104
      %s107 = sadd.s32 %s106, 1
      %p110 = scmp.eq.s32.totalorder %s16, 1
      %p111 = scmp.ne.s32.totalorder %s106, %s108
      %p112 = scmp.eq.s32.totalorder %s16, 0
      %p113 = por %p111, %p112
      %p114 = scmp.ne.s32.totalorder %s106, %s108
      %p115 = scmp.eq.s32.totalorder %s21, 1
      %p116 = por %p114, %p115
      %p117 = scmp.ne.s32.totalorder %s108, %s109
      %p118 = scmp.eq.s32.totalorder %s21, 0
      %p119 = por %p117, %p118
      %p120 = scmp.ne.s32.totalorder %s108, %s109
      %p121 = scmp.eq.s32.totalorder %s22, 1
      %p122 = por %p120, %p121
      %p124 = scmp.ne.s32.totalorder %s109, %s123
      %p125 = scmp.eq.s32.totalorder %s22, 0
      %p126 = por %p124, %p125
      %s128 = sadd.s32 %s127, 1
      %p131 = scmp.eq.s32.totalorder %s16, 1
      %p132 = scmp.ne.s32.totalorder %s127, %s129
      %p133 = scmp.eq.s32.totalorder %s16, 0
      %p134 = por %p132, %p133
      %p135 = scmp.ne.s32.totalorder %s127, %s129
      %p136 = scmp.eq.s32.totalorder %s21, 1
      %p137 = por %p135, %p136
      %p138 = scmp.ne.s32.totalorder %s129, %s130
      %p139 = scmp.eq.s32.totalorder %s21, 0
      %p140 = por %p138, %p139
      %p141 = scmp.ne.s32.totalorder %s129, %s130
      %p142 = scmp.eq.s32.totalorder %s22, 1
      %p143 = por %p141, %p142
      %p145 = scmp.ne.s32.totalorder %s130, %s144
      %p146 = scmp.eq.s32.totalorder %s22, 0
      %p147 = por %p145, %p146
      %s149 = sadd.s32 %s148, 1
      %p152 = scmp.eq.s32.totalorder %s16, 1
      %p153 = scmp.ne.s32.totalorder %s148, %s150
      %p154 = scmp.eq.s32.totalorder %s16, 0
      %p155 = por %p153, %p154
      %p156 = scmp.ne.s32.totalorder %s148, %s150
      %p157 = scmp.eq.s32.totalorder %s21, 1
      %p158 = por %p156, %p157
      %p159 = scmp.ne.s32.totalorder %s150, %s151
      %p160 = scmp.eq.s32.totalorder %s21, 0
      %p161 = por %p159, %p160
      %p162 = scmp.ne.s32.totalorder %s150, %s151
      %p163 = scmp.eq.s32.totalorder %s22, 1
      %p164 = por %p162, %p163
      %p166 = scmp.ne.s32.totalorder %s151, %s165
      %p167 = scmp.eq.s32.totalorder %s22, 0
      %p168 = por %p166, %p167
      %s170 = sadd.s32 %s169, 1
      %p173 = scmp.eq.s32.totalorder %s16, 1
      %p174 = scmp.ne.s32.totalorder %s169, %s171
      %p175 = scmp.eq.s32.totalorder %s16, 0
      %p176 = por %p174, %p175
      %p177 = scmp.ne.s32.totalorder %s169, %s171
      %p178 = scmp.eq.s32.totalorder %s21, 1
      %p179 = por %p177, %p178
      %p180 = scmp.ne.s32.totalorder %s171, %s172
      %p181 = scmp.eq.s32.totalorder %s21, 0
      %p182 = por %p180, %p181
      %p183 = scmp.ne.s32.totalorder %s171, %s172
      %p184 = scmp.eq.s32.totalorder %s22, 1
      %p185 = por %p183, %p184
      %p187 = scmp.ne.s32.totalorder %s172, %s186
      %p188 = scmp.eq.s32.totalorder %s22, 0
      %p189 = por %p187, %p188
      %s190 = ssub.s32 %s23, %s35
      %s191 = ssub.s32 %s24, %s31
      %s192 = sor.u32 %s190, %s191
      %p193 = scmp.eq.s32.totalorder %s192, 0
      %s195 = sadd.s32 %s194, 1
      %s196 = scalar_select %p193, %s194, %s195
      %p199 = pneg %p193
      %p200 = scmp.eq.s32.totalorder %s16, 1
      %p201 = por %p199, %p200
      %p202 = scmp.ne.s32.totalorder %s194, %s197
      %p203 = scmp.eq.s32.totalorder %s16, 0
      %p204 = por %p202, %p203
      %p205 = scmp.ne.s32.totalorder %s194, %s197
      %p206 = scmp.eq.s32.totalorder %s21, 1
      %p207 = por %p205, %p206
      %p208 = scmp.ne.s32.totalorder %s197, %s198
      %p209 = scmp.eq.s32.totalorder %s21, 0
      %p210 = por %p208, %p209
      %p211 = scmp.ne.s32.totalorder %s197, %s198
      %p212 = scmp.eq.s32.totalorder %s22, 1
      %p213 = por %p211, %p212
      %p215 = scmp.ne.s32.totalorder %s198, %s214
      %p216 = scmp.eq.s32.totalorder %s22, 0
      %p217 = por %p215, %p216
      %p218 = scmp.le.s32.totalorder 1, %s16
      %p219 = scmp.lt.s32.totalorder %s16, 3
      %p220 = pnand %p218, %p219
      %p221 = pneg %p220
      // Predicated region
      $region9: #{tpu_custom_call.1} parent=5 // pred_check
        _
      $region10: #{tpu_custom_call.1} parent=5 // pred_check_branch
        %223 = sbr.rel (%p220) target = $region12
      $region11: #{tpu_custom_call.1} parent=5 // pred_region
        %s224 = ssub.s32 %s16, 1
        // Predicated region
        $region13: #{tpu_custom_call.1} parent=11 // pred_check
          %p225 = pneg %p77
        $region14: #{tpu_custom_call.1} parent=11 // pred_check_branch
          %227 = sbr.rel (%p225) target = $region16
        $region15: #{tpu_custom_call.1} parent=11 // pred_region
          _
        $region16: #{tpu_custom_call.1} parent=11 // pred_fallthru
          _
        // Predicated region
        $region17: #{tpu_custom_call.1} parent=11 // pred_check
          %p228 = pneg %p98
        $region18: #{tpu_custom_call.1} parent=11 // pred_check_branch
          %230 = sbr.rel (%p228) target = $region20
        $region19: #{tpu_custom_call.1} parent=11 // pred_region
          _
        $region20: #{tpu_custom_call.1} parent=11 // pred_fallthru
          _
        // Predicated region
        $region21: #{tpu_custom_call.1} parent=11 // pred_check
          %p231 = pneg %p119
        $region22: #{tpu_custom_call.1} parent=11 // pred_check_branch
          %233 = sbr.rel (%p231) target = $region24
        $region23: #{tpu_custom_call.1} parent=11 // pred_region
          _
        $region24: #{tpu_custom_call.1} parent=11 // pred_fallthru
          _
        // Predicated region
        $region25: #{tpu_custom_call.1} parent=11 // pred_check
          %p234 = pneg %p140
        $region26: #{tpu_custom_call.1} parent=11 // pred_check_branch
          %236 = sbr.rel (%p234) target = $region28
        $region27: #{tpu_custom_call.1} parent=11 // pred_region
          _
        $region28: #{tpu_custom_call.1} parent=11 // pred_fallthru
          _
        // Predicated region
        $region29: #{tpu_custom_call.1} parent=11 // pred_check
          %p237 = pneg %p161
        $region30: #{tpu_custom_call.1} parent=11 // pred_check_branch
          %239 = sbr.rel (%p237) target = $region32
        $region31: #{tpu_custom_call.1} parent=11 // pred_region
          _
        $region32: #{tpu_custom_call.1} parent=11 // pred_fallthru
          _
        // Predicated region
        $region33: #{tpu_custom_call.1} parent=11 // pred_check
          %p240 = pneg %p182
        $region34: #{tpu_custom_call.1} parent=11 // pred_check_branch
          %242 = sbr.rel (%p240) target = $region36
        $region35: #{tpu_custom_call.1} parent=11 // pred_region
          _
        $region36: #{tpu_custom_call.1} parent=11 // pred_fallthru
          _
      $region12: #{tpu_custom_call.1} parent=5 // pred_fallthru
        _
      %p243 = scmp.lt.s32.totalorder %s16, 2
      // Predicated region
      $region37: #{tpu_custom_call.1} parent=5 // pred_check
        %p244 = pneg %p243
      $region38: #{tpu_custom_call.1} parent=5 // pred_check_branch
        %246 = sbr.rel (%p244) target = $region40
      $region39: #{tpu_custom_call.1} parent=5 // pred_region
        // Predicated region
        $region41: #{tpu_custom_call.1} parent=39 // pred_check
          %p247 = pneg %p50
        $region42: #{tpu_custom_call.1} parent=39 // pred_check_branch
          %249 = sbr.rel (%p247) target = $region44
        $region43: #{tpu_custom_call.1} parent=39 // pred_region
          %s250 = smul.u32 16, %s24
          %p251 = scmp.lt.s32.totalorder %s23, 1
          %s252 = scalar_select %p251, %s23, 1
          %p253 = scmp.lt.s32.totalorder %s250, 15
          %s254 = scalar_select %p253, %s250, 15
          %s255 = smul.addr %s254, 2
          %s256 = smul.addr %s252, 32
          %s257 = sadd.s32 %s255, %s256
          %s258 = smul.addr %s257, 8
          %s259 = scalar_lea.vmem %s0, %s258
          %s260 = smul.u32 16, %s24
        $region44: #{tpu_custom_call.1} parent=39 // pred_fallthru
          _
      $region40: #{tpu_custom_call.1} parent=5 // pred_fallthru
        _
      %p261 = scmp.le.s32.totalorder 1, %s16
      %p262 = scmp.lt.s32.totalorder %s16, 3
      %p263 = pnand %p261, %p262
      %p264 = pneg %p263
      // Predicated region
      $region45: #{tpu_custom_call.1} parent=5 // pred_check
        _
      $region46: #{tpu_custom_call.1} parent=5 // pred_check_branch
        %266 = sbr.rel (%p263) target = $region48
      $region47: #{tpu_custom_call.1} parent=5 // pred_region
        %s267 = ssub.s32 %s16, 1
        %s268 = smul.u32 16, %s26
        %p269 = scmp.lt.s32.totalorder %s25, 1
        %s270 = scalar_select %p269, %s25, 1
        %p271 = scmp.lt.s32.totalorder %s268, 15
        %s272 = scalar_select %p271, %s268, 15
        %s273 = smul.addr %s272, 2
        %s274 = smul.addr %s270, 32
        %s275 = sadd.s32 %s273, %s274
        %s276 = smul.addr %s275, 8
        %s277 = scalar_lea.vmem %s0, %s276
        %p278 = pneg %p56
        %p279 = pneg %p53
        %p280 = pneg %p77
        %p281 = pneg %p74
        %p282 = pneg %p98
        %p283 = pneg %p95
        %p284 = pneg %p119
        %p285 = pneg %p116
        %p286 = pneg %p140
        %p287 = pneg %p137
        %p288 = pneg %p161
        %p289 = pneg %p158
        %p290 = pneg %p182
        %p291 = pneg %p179
        %p292 = pneg %p210
        %p293 = pneg %p207
        %s294 = sand.u32 %s197, 1
        %s295 = scalar_lea.sflag [#allocation4], %s294
        %s296 = sand.u32 %s197, 1
        %s297 = smul.addr %s296, 256
        %s298 = scalar_lea.vmem [#allocation3], %s297
        %s299 = smul.u32 16, %s26
        %p300 = scmp.lt.s32.totalorder %s25, 1
        %s301 = scalar_select %p300, %s25, 1
        %p302 = scmp.lt.s32.totalorder %s299, 15
        %s303 = scalar_select %p302, %s299, 15
        %s304 = smul.addr %s303, 2
        %s305 = smul.addr %s301, 32
        %s306 = sadd.s32 %s304, %s305
        %s307 = smul.addr %s306, 8
        %s308 = scalar_lea.vmem %s0, %s307
        %s309 = smul.u32 16, %s26
        %s310 = smul.u32 16, %s26
        %v311 = vld [vmem:[%s308] sm:$0xff]
        %v312 = vld [vmem:[%s308 + $0x8] sm:$0xff]
        %v313 = vld [vmem:[%s308 + $0x10] sm:$0xff]
        %v314 = vld [vmem:[%s308 + $0x18] sm:$0xff]
        %v315 = vld [vmem:[%s308 + $0x20] sm:$0xff]
        %v316 = vld [vmem:[%s308 + $0x28] sm:$0xff]
        %v317 = vld [vmem:[%s308 + $0x30] sm:$0xff]
        %v318 = vld [vmem:[%s308 + $0x38] sm:$0xff]
        %v319 = vld [vmem:[%s308 + $0x40] sm:$0xff]
        %v320 = vld [vmem:[%s308 + $0x48] sm:$0xff]
        %v321 = vld [vmem:[%s308 + $0x50] sm:$0xff]
        %v322 = vld [vmem:[%s308 + $0x58] sm:$0xff]
        %v323 = vld [vmem:[%s308 + $0x60] sm:$0xff]
        %v324 = vld [vmem:[%s308 + $0x68] sm:$0xff]
        %v325 = vld [vmem:[%s308 + $0x70] sm:$0xff]
        %v326 = vld [vmem:[%s308 + $0x78] sm:$0xff]
        %v327 = vld [vmem:[%s308 + $0x80] sm:$0xff]
        %v328 = vld [vmem:[%s308 + $0x88] sm:$0xff]
        %v329 = vld [vmem:[%s308 + $0x90] sm:$0xff]
        %v330 = vld [vmem:[%s308 + $0x98] sm:$0xff]
        %v331 = vld [vmem:[%s308 + $0xa0] sm:$0xff]
        %v332 = vld [vmem:[%s308 + $0xa8] sm:$0xff]
        %v333 = vld [vmem:[%s308 + $0xb0] sm:$0xff]
        %v334 = vld [vmem:[%s308 + $0xb8] sm:$0xff]
        %v335 = vld [vmem:[%s308 + $0xc0] sm:$0xff]
        %v336 = vld [vmem:[%s308 + $0xc8] sm:$0xff]
        %v337 = vld [vmem:[%s308 + $0xd0] sm:$0xff]
        %v338 = vld [vmem:[%s308 + $0xd8] sm:$0xff]
        %v339 = vld [vmem:[%s308 + $0xe0] sm:$0xff]
        %v340 = vld [vmem:[%s308 + $0xe8] sm:$0xff]
        %v341 = vld [vmem:[%s308 + $0xf0] sm:$0xff]
        %v342 = vld [vmem:[%s308 + $0xf8] sm:$0xff]
        %v343 = vld [vmem:[%s1] sm:$0xf]
        %v344 = vld [vmem:[%s2] sm:$0x1]
        %v346 = vlaneseq
        %v347 = vshrl.u32 %v346, 7
        %v348 = vsub.s32 0, %v347
        %v349 = vrot.slane %v344, %v348
        %vm351 = vcmask 31744
        %v353 = vsel %vm351, %v311, 0
        %v356 = vsel %vm351, %v312, 0
        %v359 = vsel %vm351, %v313, 0
        %v362 = vsel %vm351, %v314, 0
        %v365 = vsel %vm351, %v315, 0
        %v368 = vsel %vm351, %v316, 0
        %v371 = vsel %vm351, %v317, 0
        %v374 = vsel %vm351, %v318, 0
        %v377 = vsel %vm351, %v319, 0
        %v380 = vsel %vm351, %v320, 0
        %v383 = vsel %vm351, %v321, 0
        %v386 = vsel %vm351, %v322, 0
        %v389 = vsel %vm351, %v323, 0
        %v392 = vsel %vm351, %v324, 0
        %v395 = vsel %vm351, %v325, 0
        %v398 = vsel %vm351, %v326, 0
        %v401 = vsel %vm351, %v327, 0
        %v404 = vsel %vm351, %v328, 0
        %v407 = vsel %vm351, %v329, 0
        %v410 = vsel %vm351, %v330, 0
        %v413 = vsel %vm351, %v331, 0
        %v416 = vsel %vm351, %v332, 0
        %v419 = vsel %vm351, %v333, 0
        %v422 = vsel %vm351, %v334, 0
        %v425 = vsel %vm351, %v335, 0
        %v428 = vsel %vm351, %v336, 0
        %v431 = vsel %vm351, %v337, 0
        %v434 = vsel %vm351, %v338, 0
        %v437 = vsel %vm351, %v339, 0
        %v440 = vsel %vm351, %v340, 0
        %v443 = vsel %vm351, %v341, 0
        %v446 = vsel %vm351, %v342, 0
        %vm448 = vcmask 1043456
        %v450 = vsel %vm448, %v343, 0
        %452 = vmatprep.subr.mxu0 0.0
        %453 = vmatpush1.msra.mxu0 %v450
        %454 = vmatprep.subr.mxu0 0.0
        %455 = vmatpush1.msra.mxu0 0.0
        %456 = vmatprep.subr.mxu0 0.0
        %457 = vmatpush1.msra.mxu0 0.0
        %458 = vmatprep.subr.mxu0 0.0
        %459 = vmatpush1.msra.mxu0 0.0
        %460 = vmatprep.subr.mxu0 0.0
        %461 = vmatpush1.msra.mxu0 0.0
        %462 = vmatprep.subr.mxu0 0.0
        %463 = vmatpush1.msra.mxu0 0.0
        %464 = vmatprep.subr.mxu0 0.0
        %465 = vmatpush1.msra.mxu0 0.0
        %466 = vmatprep.subr.mxu0 0.0
        %467 = vmatpush1.msra.mxu0 0.0
        %468 = vmatprep.subr.mxu0 0.0
        %469 = vmatpush1.msra.mxu0 0.0
        %470 = vmatprep.subr.mxu0 0.0
        %471 = vmatpush1.msra.mxu0 0.0
        %472 = vmatprep.subr.mxu0 0.0
        %473 = vmatpush1.msra.mxu0 0.0
        %474 = vmatprep.subr.mxu0 0.0
        %475 = vmatpush1.msra.mxu0 0.0
        %476 = vmatprep.subr.mxu0 0.0
        %477 = vmatpush1.msra.mxu0 0.0
        %478 = vmatprep.subr.mxu0 0.0
        %479 = vmatpush1.msra.mxu0 0.0
        %480 = vmatprep.subr.mxu0 0.0
        %481 = vmatpush1.msra.mxu0 0.0
        %482 = vmatprep.subr.mxu0 0.0
        %483 = vmatpush1.msra.mxu0 0.0
        %484 = vmatprep.subr.mxu0 0.0
        %485 = vmatpush1.msra.mxu0 0.0
        %486 = vmatprep.subr.mxu0 0.0
        %487 = vmatpush1.msra.mxu0 0.0
        %488 = vmatprep.subr.mxu0 0.0
        %489 = vmatpush1.msra.mxu0 0.0
        %490 = vmatprep.subr.mxu0 0.0
        %491 = vmatpush1.msra.mxu0 0.0
        %492 = vmatprep.subr.mxu0 0.0
        %493 = vmatpush1.msra.mxu0 0.0
        %494 = vmatprep.subr.mxu0 0.0
        %495 = vmatpush1.msra.mxu0 0.0
        %496 = vmatprep.subr.mxu0 0.0
        %497 = vmatpush1.msra.mxu0 0.0
        %498 = vmatprep.subr.mxu0 0.0
        %499 = vmatpush1.msra.mxu0 0.0
        %500 = vmatprep.subr.mxu0 0.0
        %501 = vmatpush1.msra.mxu0 0.0
        %502 = vmatprep.subr.mxu0 0.0
        %503 = vmatpush1.msra.mxu0 0.0
        %504 = vmatprep.subr.mxu0 0.0
        %505 = vmatpush1.msra.mxu0 0.0
        %506 = vmatprep.subr.mxu0 0.0
        %507 = vmatpush1.msra.mxu0 0.0
        %508 = vmatprep.subr.mxu0 0.0
        %509 = vmatpush1.msra.mxu0 0.0
        %510 = vmatprep.subr.mxu0 0.0
        %511 = vmatpush1.msra.mxu0 0.0
        %512 = vmatprep.subr.mxu0 0.0
        %513 = vmatpush1.msra.mxu0 0.0
        %514 = vmatprep.subr.mxu0 0.0
        %515 = vmatpush1.msra.mxu0 0.0
        %516 = vmatprep.mubr.f32.mxu0 0.0
        %517 = vmatmul.mubr.f32.gmra.mrb[0].mxu0 %v353
        %v518 = vpop.f32.mrb[0].mxu0
        %v519 = vadd.f32 %v349, %v518
        %v520 = vpop.f32.mrb[0].mxu0
        %521 = vmatprep.mubr.f32.mxu0 0.0
        %522 = vmatmul.mubr.f32.gmra.mrb[0].mxu0 %v356
        %v523 = vpop.f32.mrb[0].mxu0
        %v524 = vadd.f32 %v349, %v523
        %v525 = vpop.f32.mrb[0].mxu0
        %526 = vmatprep.mubr.f32.mxu0 0.0
        %527 = vmatmul.mubr.f32.gmra.mrb[0].mxu0 %v359
        %v528 = vpop.f32.mrb[0].mxu0
        %v529 = vadd.f32 %v349, %v528
        %v530 = vpop.f32.mrb[0].mxu0
        %531 = vmatprep.mubr.f32.mxu0 0.0
        %532 = vmatmul.mubr.f32.gmra.mrb[0].mxu0 %v362
        %v533 = vpop.f32.mrb[0].mxu0
        %v534 = vadd.f32 %v349, %v533
        %v535 = vpop.f32.mrb[0].mxu0
        %536 = vmatprep.mubr.f32.mxu0 0.0
        %537 = vmatmul.mubr.f32.gmra.mrb[0].mxu0 %v365
        %v538 = vpop.f32.mrb[0].mxu0
        %v539 = vadd.f32 %v349, %v538
        %v540 = vpop.f32.mrb[0].mxu0
        %541 = vmatprep.mubr.f32.mxu0 0.0
        %542 = vmatmul.mubr.f32.gmra.mrb[0].mxu0 %v368
        %v543 = vpop.f32.mrb[0].mxu0
        %v544 = vadd.f32 %v349, %v543
        %v545 = vpop.f32.mrb[0].mxu0
        %546 = vmatprep.mubr.f32.mxu0 0.0
        %547 = vmatmul.mubr.f32.gmra.mrb[0].mxu0 %v371
        %v548 = vpop.f32.mrb[0].mxu0
        %v549 = vadd.f32 %v349, %v548
        %v550 = vpop.f32.mrb[0].mxu0
        %551 = vmatprep.mubr.f32.mxu0 0.0
        %552 = vmatmul.mubr.f32.gmra.mrb[0].mxu0 %v374
        %v553 = vpop.f32.mrb[0].mxu0
        %v554 = vadd.f32 %v349, %v553
        %v555 = vpop.f32.mrb[0].mxu0
        %556 = vmatprep.mubr.f32.mxu0 0.0
        %557 = vmatmul.mubr.f32.gmra.mrb[0].mxu0 %v377
        %v558 = vpop.f32.mrb[0].mxu0
        %v559 = vadd.f32 %v349, %v558
        %v560 = vpop.f32.mrb[0].mxu0
        %561 = vmatprep.mubr.f32.mxu0 0.0
        %562 = vmatmul.mubr.f32.gmra.mrb[0].mxu0 %v380
        %v563 = vpop.f32.mrb[0].mxu0
        %v564 = vadd.f32 %v349, %v563
        %v565 = vpop.f32.mrb[0].mxu0
        %566 = vmatprep.mubr.f32.mxu0 0.0
        %567 = vmatmul.mubr.f32.gmra.mrb[0].mxu0 %v383
        %v568 = vpop.f32.mrb[0].mxu0
        %v569 = vadd.f32 %v349, %v568
        %v570 = vpop.f32.mrb[0].mxu0
        %571 = vmatprep.mubr.f32.mxu0 0.0
        %572 = vmatmul.mubr.f32.gmra.mrb[0].mxu0 %v386
        %v573 = vpop.f32.mrb[0].mxu0
        %v574 = vadd.f32 %v349, %v573
        %v575 = vpop.f32.mrb[0].mxu0
        %576 = vmatprep.mubr.f32.mxu0 0.0
        %577 = vmatmul.mubr.f32.gmra.mrb[0].mxu0 %v389
        %v578 = vpop.f32.mrb[0].mxu0
        %v579 = vadd.f32 %v349, %v578
        %v580 = vpop.f32.mrb[0].mxu0
        %581 = vmatprep.mubr.f32.mxu0 0.0
        %582 = vmatmul.mubr.f32.gmra.mrb[0].mxu0 %v392
        %v583 = vpop.f32.mrb[0].mxu0
        %v584 = vadd.f32 %v349, %v583
        %v585 = vpop.f32.mrb[0].mxu0
        %586 = vmatprep.mubr.f32.mxu0 0.0
        %587 = vmatmul.mubr.f32.gmra.mrb[0].mxu0 %v395
        %v588 = vpop.f32.mrb[0].mxu0
        %v589 = vadd.f32 %v349, %v588
        %v590 = vpop.f32.mrb[0].mxu0
        %591 = vmatprep.mubr.f32.mxu0 0.0
        %592 = vmatmul.mubr.f32.gmra.mrb[0].mxu0 %v398
        %v593 = vpop.f32.mrb[0].mxu0
        %v594 = vadd.f32 %v349, %v593
        %v595 = vpop.f32.mrb[0].mxu0
        %596 = vmatprep.mubr.f32.mxu0 0.0
        %597 = vmatmul.mubr.f32.gmra.mrb[0].mxu0 %v401
        %v598 = vpop.f32.mrb[0].mxu0
        %v599 = vadd.f32 %v349, %v598
        %v600 = vpop.f32.mrb[0].mxu0
        %601 = vmatprep.mubr.f32.mxu0 0.0
        %602 = vmatmul.mubr.f32.gmra.mrb[0].mxu0 %v404
        %v603 = vpop.f32.mrb[0].mxu0
        %v604 = vadd.f32 %v349, %v603
        %v605 = vpop.f32.mrb[0].mxu0
        %606 = vmatprep.mubr.f32.mxu0 0.0
        %607 = vmatmul.mubr.f32.gmra.mrb[0].mxu0 %v407
        %v608 = vpop.f32.mrb[0].mxu0
        %v609 = vadd.f32 %v349, %v608
        %v610 = vpop.f32.mrb[0].mxu0
        %611 = vmatprep.mubr.f32.mxu0 0.0
        %612 = vmatmul.mubr.f32.gmra.mrb[0].mxu0 %v410
        %v613 = vpop.f32.mrb[0].mxu0
        %v614 = vadd.f32 %v349, %v613
        %v615 = vpop.f32.mrb[0].mxu0
        %616 = vmatprep.mubr.f32.mxu0 0.0
        %617 = vmatmul.mubr.f32.gmra.mrb[0].mxu0 %v413
        %v618 = vpop.f32.mrb[0].mxu0
        %v619 = vadd.f32 %v349, %v618
        %v620 = vpop.f32.mrb[0].mxu0
        %621 = vmatprep.mubr.f32.mxu0 0.0
        %622 = vmatmul.mubr.f32.gmra.mrb[0].mxu0 %v416
        %v623 = vpop.f32.mrb[0].mxu0
        %v624 = vadd.f32 %v349, %v623
        %v625 = vpop.f32.mrb[0].mxu0
        %626 = vmatprep.mubr.f32.mxu0 0.0
        %627 = vmatmul.mubr.f32.gmra.mrb[0].mxu0 %v419
        %v628 = vpop.f32.mrb[0].mxu0
        %v629 = vadd.f32 %v349, %v628
        %v630 = vpop.f32.mrb[0].mxu0
        %631 = vmatprep.mubr.f32.mxu0 0.0
        %632 = vmatmul.mubr.f32.gmra.mrb[0].mxu0 %v422
        %v633 = vpop.f32.mrb[0].mxu0
        %v634 = vadd.f32 %v349, %v633
        %v635 = vpop.f32.mrb[0].mxu0
        %636 = vmatprep.mubr.f32.mxu0 0.0
        %637 = vmatmul.mubr.f32.gmra.mrb[0].mxu0 %v425
        %v638 = vpop.f32.mrb[0].mxu0
        %v639 = vadd.f32 %v349, %v638
        %v640 = vpop.f32.mrb[0].mxu0
        %641 = vmatprep.mubr.f32.mxu0 0.0
        %642 = vmatmul.mubr.f32.gmra.mrb[0].mxu0 %v428
        %v643 = vpop.f32.mrb[0].mxu0
        %v644 = vadd.f32 %v349, %v643
        %v645 = vpop.f32.mrb[0].mxu0
        %646 = vmatprep.mubr.f32.mxu0 0.0
        %647 = vmatmul.mubr.f32.gmra.mrb[0].mxu0 %v431
        %v648 = vpop.f32.mrb[0].mxu0
        %v649 = vadd.f32 %v349, %v648
        %v650 = vpop.f32.mrb[0].mxu0
        %651 = vmatprep.mubr.f32.mxu0 0.0
        %652 = vmatmul.mubr.f32.gmra.mrb[0].mxu0 %v434
        %v653 = vpop.f32.mrb[0].mxu0
        %v654 = vadd.f32 %v349, %v653
        %v655 = vpop.f32.mrb[0].mxu0
        %656 = vmatprep.mubr.f32.mxu0 0.0
        %657 = vmatmul.mubr.f32.gmra.mrb[0].mxu0 %v437
        %v658 = vpop.f32.mrb[0].mxu0
        %v659 = vadd.f32 %v349, %v658
        %v660 = vpop.f32.mrb[0].mxu0
        %661 = vmatprep.mubr.f32.mxu0 0.0
        %662 = vmatmul.mubr.f32.gmra.mrb[0].mxu0 %v440
        %v663 = vpop.f32.mrb[0].mxu0
        %v664 = vadd.f32 %v349, %v663
        %v665 = vpop.f32.mrb[0].mxu0
        %666 = vmatprep.mubr.f32.mxu0 0.0
        %667 = vmatmul.mubr.f32.gmra.mrb[0].mxu0 %v443
        %v668 = vpop.f32.mrb[0].mxu0
        %v669 = vadd.f32 %v349, %v668
        %v670 = vpop.f32.mrb[0].mxu0
        %671 = vmatprep.mubr.f32.mxu0 0.0
        %672 = vmatmul.mubr.f32.gmra.mrb[0].mxu0 %v446
        %v673 = vpop.f32.mrb[0].mxu0
        %v674 = vadd.f32 %v349, %v673
        %v675 = vpop.f32.mrb[0].mxu0
        %676 = vdwg.mxu0
        %v677 = vmax.f32 %v519, 0.0
        %v678 = vmax.f32 %v524, 0.0
        %v679 = vmax.f32 %v529, 0.0
        %v680 = vmax.f32 %v534, 0.0
        %v681 = vmax.f32 %v539, 0.0
        %v682 = vmax.f32 %v544, 0.0
        %v683 = vmax.f32 %v549, 0.0
        %v684 = vmax.f32 %v554, 0.0
        %v685 = vmax.f32 %v559, 0.0
        %v686 = vmax.f32 %v564, 0.0
        %v687 = vmax.f32 %v569, 0.0
        %v688 = vmax.f32 %v574, 0.0
        %v689 = vmax.f32 %v579, 0.0
        %v690 = vmax.f32 %v584, 0.0
        %v691 = vmax.f32 %v589, 0.0
        %v692 = vmax.f32 %v594, 0.0
        %v693 = vmax.f32 %v599, 0.0
        %v694 = vmax.f32 %v604, 0.0
        %v695 = vmax.f32 %v609, 0.0
        %v696 = vmax.f32 %v614, 0.0
        %v697 = vmax.f32 %v619, 0.0
        %v698 = vmax.f32 %v624, 0.0
        %v699 = vmax.f32 %v629, 0.0
        %v700 = vmax.f32 %v634, 0.0
        %v701 = vmax.f32 %v639, 0.0
        %v702 = vmax.f32 %v644, 0.0
        %v703 = vmax.f32 %v649, 0.0
        %v704 = vmax.f32 %v654, 0.0
        %v705 = vmax.f32 %v659, 0.0
        %v706 = vmax.f32 %v664, 0.0
        %v707 = vmax.f32 %v669, 0.0
        %v708 = vmax.f32 %v674, 0.0
        %s709 = scalar_lea.vmem [#allocation2], 24
        %710 = vst.msk [vmem:[%s709 + $0x1] sm:$0xff] %vm351, %v677
        %711 = vst.msk [vmem:[%s709 + $0x9] sm:$0xff] %vm351, %v678
        %712 = vst.msk [vmem:[%s709 + $0x19] sm:$0xff] %vm351, %v679
        %713 = vst.msk [vmem:[%s709 + $0x21] sm:$0xff] %vm351, %v680
        %714 = vst.msk [vmem:[%s709 + $0x31] sm:$0xff] %vm351, %v681
        %715 = vst.msk [vmem:[%s709 + $0x39] sm:$0xff] %vm351, %v682
        %716 = vst.msk [vmem:[%s709 + $0x49] sm:$0xff] %vm351, %v683
        %717 = vst.msk [vmem:[%s709 + $0x51] sm:$0xff] %vm351, %v684
        %718 = vst.msk [vmem:[%s709 + $0x61] sm:$0xff] %vm351, %v685
        %719 = vst.msk [vmem:[%s709 + $0x69] sm:$0xff] %vm351, %v686
        %720 = vst.msk [vmem:[%s709 + $0x79] sm:$0xff] %vm351, %v687
        %721 = vst.msk [vmem:[%s709 + $0x81] sm:$0xff] %vm351, %v688
        %722 = vst.msk [vmem:[%s709 + $0x91] sm:$0xff] %vm351, %v689
        %723 = vst.msk [vmem:[%s709 + $0x99] sm:$0xff] %vm351, %v690
        %724 = vst.msk [vmem:[%s709 + $0xa9] sm:$0xff] %vm351, %v691
        %725 = vst.msk [vmem:[%s709 + $0xb1] sm:$0xff] %vm351, %v692
        %726 = vst.msk [vmem:[%s709 + $0xc1] sm:$0xff] %vm351, %v693
        %727 = vst.msk [vmem:[%s709 + $0xc9] sm:$0xff] %vm351, %v694
        %728 = vst.msk [vmem:[%s709 + $0xd9] sm:$0xff] %vm351, %v695
        %729 = vst.msk [vmem:[%s709 + $0xe1] sm:$0xff] %vm351, %v696
        %730 = vst.msk [vmem:[%s709 + $0xf1] sm:$0xff] %vm351, %v697
        %731 = vst.msk [vmem:[%s709 + $0xf9] sm:$0xff] %vm351, %v698
        %732 = vst.msk [vmem:[%s709 + $0x109] sm:$0xff] %vm351, %v699
        %733 = vst.msk [vmem:[%s709 + $0x111] sm:$0xff] %vm351, %v700
        %734 = vst.msk [vmem:[%s709 + $0x121] sm:$0xff] %vm351, %v701
        %735 = vst.msk [vmem:[%s709 + $0x129] sm:$0xff] %vm351, %v702
        %736 = vst.msk [vmem:[%s709 + $0x139] sm:$0xff] %vm351, %v703
        %737 = vst.msk [vmem:[%s709 + $0x141] sm:$0xff] %vm351, %v704
        %738 = vst.msk [vmem:[%s709 + $0x151] sm:$0xff] %vm351, %v705
        %739 = vst.msk [vmem:[%s709 + $0x159] sm:$0xff] %vm351, %v706
        %740 = vst.msk [vmem:[%s709 + $0x169] sm:$0xff] %vm351, %v707
        %741 = vst.msk [vmem:[%s709 + $0x171] sm:$0xff] %vm351, %v708
        %742 = vst.msk [vmem:[#allocation2] sm:$0xff] %vm351, 0.0
        %743 = vst.msk [vmem:[#allocation2 + $0x8] sm:$0xff] %vm351, 0.0
        %vm744 = vcmask 25600
        %745 = vst.msk [vmem:[#allocation2 + $0x10] sm:$0x3] %vm744, 0.0
        %s746 = scalar_lea.vmem [#allocation2], 408
        %747 = vst.msk [vmem:[%s746] sm:$0xff] %vm351, 0.0
        %748 = vst.msk [vmem:[%s746 + $0x8] sm:$0xff] %vm351, 0.0
        %749 = vst.msk [vmem:[%s746 + $0x10] sm:$0x3] %vm744, 0.0
        %vm750 = vcmask 24576
        %751 = vst.msk [vmem:[#allocation2] sm:$0x1] %vm750, 0.0
        %752 = vst.msk [vmem:[#allocation2 + $0x18] sm:$0x1] %vm750, 0.0
        %753 = vst.msk [vmem:[#allocation2 + $0x30] sm:$0x1] %vm750, 0.0
        %754 = vst.msk [vmem:[#allocation2 + $0x48] sm:$0x1] %vm750, 0.0
        %755 = vst.msk [vmem:[#allocation2 + $0x60] sm:$0x1] %vm750, 0.0
        %756 = vst.msk [vmem:[#allocation2 + $0x78] sm:$0x1] %vm750, 0.0
        %757 = vst.msk [vmem:[#allocation2 + $0x90] sm:$0x1] %vm750, 0.0
        %758 = vst.msk [vmem:[#allocation2 + $0xa8] sm:$0x1] %vm750, 0.0
        %759 = vst.msk [vmem:[#allocation2 + $0xc0] sm:$0x1] %vm750, 0.0
        %760 = vst.msk [vmem:[#allocation2 + $0xd8] sm:$0x1] %vm750, 0.0
        %761 = vst.msk [vmem:[#allocation2 + $0xf0] sm:$0x1] %vm750, 0.0
        %762 = vst.msk [vmem:[#allocation2 + $0x108] sm:$0x1] %vm750, 0.0
        %763 = vst.msk [vmem:[#allocation2 + $0x120] sm:$0x1] %vm750, 0.0
        %764 = vst.msk [vmem:[#allocation2 + $0x138] sm:$0x1] %vm750, 0.0
        %765 = vst.msk [vmem:[#allocation2 + $0x150] sm:$0x1] %vm750, 0.0
        %766 = vst.msk [vmem:[#allocation2 + $0x168] sm:$0x1] %vm750, 0.0
        %767 = vst.msk [vmem:[#allocation2 + $0x180] sm:$0x1] %vm750, 0.0
        %768 = vst.msk [vmem:[#allocation2 + $0x198] sm:$0x1] %vm750, 0.0
        %769 = vst.msk [vmem:[#allocation2 + $0x11] sm:$0x1] %vm750, 0.0
        %770 = vst.msk [vmem:[#allocation2 + $0x29] sm:$0x1] %vm750, 0.0
        %771 = vst.msk [vmem:[#allocation2 + $0x41] sm:$0x1] %vm750, 0.0
        %772 = vst.msk [vmem:[#allocation2 + $0x59] sm:$0x1] %vm750, 0.0
        %773 = vst.msk [vmem:[#allocation2 + $0x71] sm:$0x1] %vm750, 0.0
        %774 = vst.msk [vmem:[#allocation2 + $0x89] sm:$0x1] %vm750, 0.0
        %775 = vst.msk [vmem:[#allocation2 + $0xa1] sm:$0x1] %vm750, 0.0
        %776 = vst.msk [vmem:[#allocation2 + $0xb9] sm:$0x1] %vm750, 0.0
        %777 = vst.msk [vmem:[#allocation2 + $0xd1] sm:$0x1] %vm750, 0.0
        %778 = vst.msk [vmem:[#allocation2 + $0xe9] sm:$0x1] %vm750, 0.0
        %779 = vst.msk [vmem:[#allocation2 + $0x101] sm:$0x1] %vm750, 0.0
        %780 = vst.msk [vmem:[#allocation2 + $0x119] sm:$0x1] %vm750, 0.0
        %781 = vst.msk [vmem:[#allocation2 + $0x131] sm:$0x1] %vm750, 0.0
        %782 = vst.msk [vmem:[#allocation2 + $0x149] sm:$0x1] %vm750, 0.0
        %783 = vst.msk [vmem:[#allocation2 + $0x161] sm:$0x1] %vm750, 0.0
        %784 = vst.msk [vmem:[#allocation2 + $0x179] sm:$0x1] %vm750, 0.0
        %785 = vst.msk [vmem:[#allocation2 + $0x191] sm:$0x1] %vm750, 0.0
        %786 = vst.msk [vmem:[#allocation2 + $0x1a9] sm:$0x1] %vm750, 0.0
        %v787 = vld [vmem:[%s4] sm:$0x1]
        %v788 = vld [vmem:[#allocation2] sm:$0xff]
        %v789 = vld [vmem:[#allocation2 + $0x8] sm:$0xff]
        %v790 = vld [vmem:[#allocation2 + $0x18] sm:$0xff]
        %v791 = vld [vmem:[#allocation2 + $0x20] sm:$0xff]
        %v792 = vld [vmem:[#allocation2 + $0x30] sm:$0xff]
        %v793 = vld [vmem:[#allocation2 + $0x38] sm:$0xff]
        %v794 = vld [vmem:[#allocation2 + $0x48] sm:$0xff]
        %v795 = vld [vmem:[#allocation2 + $0x50] sm:$0xff]
        %v796 = vld [vmem:[#allocation2 + $0x60] sm:$0xff]
        %v797 = vld [vmem:[#allocation2 + $0x68] sm:$0xff]
        %v798 = vld [vmem:[#allocation2 + $0x78] sm:$0xff]
        %v799 = vld [vmem:[#allocation2 + $0x80] sm:$0xff]
        %v800 = vld [vmem:[#allocation2 + $0x90] sm:$0xff]
        %v801 = vld [vmem:[#allocation2 + $0x98] sm:$0xff]
        %v802 = vld [vmem:[#allocation2 + $0xa8] sm:$0xff]
        %v803 = vld [vmem:[#allocation2 + $0xb0] sm:$0xff]
        %v804 = vld [vmem:[#allocation2 + $0xc0] sm:$0xff]
        %v805 = vld [vmem:[#allocation2 + $0xc8] sm:$0xff]
        %v806 = vld [vmem:[#allocation2 + $0xd8] sm:$0xff]
        %v807 = vld [vmem:[#allocation2 + $0xe0] sm:$0xff]
        %v808 = vld [vmem:[#allocation2 + $0xf0] sm:$0xff]
        %v809 = vld [vmem:[#allocation2 + $0xf8] sm:$0xff]
        %v810 = vld [vmem:[#allocation2 + $0x108] sm:$0xff]
        %v811 = vld [vmem:[#allocation2 + $0x110] sm:$0xff]
        %v812 = vld [vmem:[#allocation2 + $0x120] sm:$0xff]
        %v813 = vld [vmem:[#allocation2 + $0x128] sm:$0xff]
        %v814 = vld [vmem:[#allocation2 + $0x138] sm:$0xff]
        %v815 = vld [vmem:[#allocation2 + $0x140] sm:$0xff]
        %v816 = vld [vmem:[#allocation2 + $0x150] sm:$0xff]
        %v817 = vld [vmem:[#allocation2 + $0x158] sm:$0xff]
        %v818 = vld [vmem:[#allocation2 + $0x168] sm:$0xff]
        %v819 = vld [vmem:[#allocation2 + $0x170] sm:$0xff]
        %v820 = vld [vmem:[#allocation2 + $0x1] sm:$0xff]
        %v821 = vld [vmem:[#allocation2 + $0x9] sm:$0xff]
        %v822 = vld [vmem:[#allocation2 + $0x19] sm:$0xff]
        %v823 = vld [vmem:[#allocation2 + $0x21] sm:$0xff]
        %v824 = vld [vmem:[#allocation2 + $0x31] sm:$0xff]
        %v825 = vld [vmem:[#allocation2 + $0x39] sm:$0xff]
        %v826 = vld [vmem:[#allocation2 + $0x49] sm:$0xff]
        %v827 = vld [vmem:[#allocation2 + $0x51] sm:$0xff]
        %v828 = vld [vmem:[#allocation2 + $0x61] sm:$0xff]
        %v829 = vld [vmem:[#allocation2 + $0x69] sm:$0xff]
        %v830 = vld [vmem:[#allocation2 + $0x79] sm:$0xff]
        %v831 = vld [vmem:[#allocation2 + $0x81] sm:$0xff]
        %v832 = vld [vmem:[#allocation2 + $0x91] sm:$0xff]
        %v833 = vld [vmem:[#allocation2 + $0x99] sm:$0xff]
        %v834 = vld [vmem:[#allocation2 + $0xa9] sm:$0xff]
        %v835 = vld [vmem:[#allocation2 + $0xb1] sm:$0xff]
        %v836 = vld [vmem:[#allocation2 + $0xc1] sm:$0xff]
        %v837 = vld [vmem:[#allocation2 + $0xc9] sm:$0xff]
        %v838 = vld [vmem:[#allocation2 + $0xd9] sm:$0xff]
        %v839 = vld [vmem:[#allocation2 + $0xe1] sm:$0xff]
        %v840 = vld [vmem:[#allocation2 + $0xf1] sm:$0xff]
        %v841 = vld [vmem:[#allocation2 + $0xf9] sm:$0xff]
        %v842 = vld [vmem:[#allocation2 + $0x109] sm:$0xff]
        %v843 = vld [vmem:[#allocation2 + $0x111] sm:$0xff]
        %v844 = vld [vmem:[#allocation2 + $0x121] sm:$0xff]
        %v845 = vld [vmem:[#allocation2 + $0x129] sm:$0xff]
        %v846 = vld [vmem:[#allocation2 + $0x139] sm:$0xff]
        %v847 = vld [vmem:[#allocation2 + $0x141] sm:$0xff]
        %v848 = vld [vmem:[#allocation2 + $0x151] sm:$0xff]
        %v849 = vld [vmem:[#allocation2 + $0x159] sm:$0xff]
        %v850 = vld [vmem:[#allocation2 + $0x169] sm:$0xff]
        %v851 = vld [vmem:[#allocation2 + $0x171] sm:$0xff]
        %v852 = vld [vmem:[#allocation2 + $0x2] sm:$0xff]
        %v853 = vld [vmem:[#allocation2 + $0xa] sm:$0xff]
        %v854 = vld [vmem:[#allocation2 + $0x1a] sm:$0xff]
        %v855 = vld [vmem:[#allocation2 + $0x22] sm:$0xff]
        %v856 = vld [vmem:[#allocation2 + $0x32] sm:$0xff]
        %v857 = vld [vmem:[#allocation2 + $0x3a] sm:$0xff]
        %v858 = vld [vmem:[#allocation2 + $0x4a] sm:$0xff]
        %v859 = vld [vmem:[#allocation2 + $0x52] sm:$0xff]
        %v860 = vld [vmem:[#allocation2 + $0x62] sm:$0xff]
        %v861 = vld [vmem:[#allocation2 + $0x6a] sm:$0xff]
        %v862 = vld [vmem:[#allocation2 + $0x7a] sm:$0xff]
        %v863 = vld [vmem:[#allocation2 + $0x82] sm:$0xff]
        %v864 = vld [vmem:[#allocation2 + $0x92] sm:$0xff]
        %v865 = vld [vmem:[#allocation2 + $0x9a] sm:$0xff]
        %v866 = vld [vmem:[#allocation2 + $0xaa] sm:$0xff]
        %v867 = vld [vmem:[#allocation2 + $0xb2] sm:$0xff]
        %v868 = vld [vmem:[#allocation2 + $0xc2] sm:$0xff]
        %v869 = vld [vmem:[#allocation2 + $0xca] sm:$0xff]
        %v870 = vld [vmem:[#allocation2 + $0xda] sm:$0xff]
        %v871 = vld [vmem:[#allocation2 + $0xe2] sm:$0xff]
        %v872 = vld [vmem:[#allocation2 + $0xf2] sm:$0xff]
        %v873 = vld [vmem:[#allocation2 + $0xfa] sm:$0xff]
        %v874 = vld [vmem:[#allocation2 + $0x10a] sm:$0xff]
        %v875 = vld [vmem:[#allocation2 + $0x112] sm:$0xff]
        %v876 = vld [vmem:[#allocation2 + $0x122] sm:$0xff]
        %v877 = vld [vmem:[#allocation2 + $0x12a] sm:$0xff]
        %v878 = vld [vmem:[#allocation2 + $0x13a] sm:$0xff]
        %v879 = vld [vmem:[#allocation2 + $0x142] sm:$0xff]
        %v880 = vld [vmem:[#allocation2 + $0x152] sm:$0xff]
        %v881 = vld [vmem:[#allocation2 + $0x15a] sm:$0xff]
        %v882 = vld [vmem:[#allocation2 + $0x16a] sm:$0xff]
        %v883 = vld [vmem:[#allocation2 + $0x172] sm:$0xff]
        %916 = vrot.lane.b32.xlu0 %v820, 4
        %v917 = vpop.permute.xlu0 %916
        %918 = vrot.lane.b32.xlu0 %v821, 4
        %v919 = vpop.permute.xlu0 %918
        %920 = vrot.lane.b32.xlu0 %v822, 4
        %v921 = vpop.permute.xlu0 %920
        %922 = vrot.lane.b32.xlu0 %v823, 4
        %v923 = vpop.permute.xlu0 %922
        %924 = vrot.lane.b32.xlu0 %v824, 4
        %v925 = vpop.permute.xlu0 %924
        %926 = vrot.lane.b32.xlu0 %v825, 4
        %v927 = vpop.permute.xlu0 %926
        %928 = vrot.lane.b32.xlu0 %v826, 4
        %v929 = vpop.permute.xlu0 %928
        %930 = vrot.lane.b32.xlu0 %v827, 4
        %v931 = vpop.permute.xlu0 %930
        %932 = vrot.lane.b32.xlu0 %v828, 4
        %v933 = vpop.permute.xlu0 %932
        %934 = vrot.lane.b32.xlu0 %v829, 4
        %v935 = vpop.permute.xlu0 %934
        %936 = vrot.lane.b32.xlu0 %v830, 4
        %v937 = vpop.permute.xlu0 %936
        %938 = vrot.lane.b32.xlu0 %v831, 4
        %v939 = vpop.permute.xlu0 %938
        %940 = vrot.lane.b32.xlu0 %v832, 4
        %v941 = vpop.permute.xlu0 %940
        %942 = vrot.lane.b32.xlu0 %v833, 4
        %v943 = vpop.permute.xlu0 %942
        %944 = vrot.lane.b32.xlu0 %v834, 4
        %v945 = vpop.permute.xlu0 %944
        %946 = vrot.lane.b32.xlu0 %v835, 4
        %v947 = vpop.permute.xlu0 %946
        %948 = vrot.lane.b32.xlu0 %v836, 4
        %v949 = vpop.permute.xlu0 %948
        %950 = vrot.lane.b32.xlu0 %v837, 4
        %v951 = vpop.permute.xlu0 %950
        %952 = vrot.lane.b32.xlu0 %v838, 4
        %v953 = vpop.permute.xlu0 %952
        %954 = vrot.lane.b32.xlu0 %v839, 4
        %v955 = vpop.permute.xlu0 %954
        %956 = vrot.lane.b32.xlu0 %v840, 4
        %v957 = vpop.permute.xlu0 %956
        %958 = vrot.lane.b32.xlu0 %v841, 4
        %v959 = vpop.permute.xlu0 %958
        %960 = vrot.lane.b32.xlu0 %v842, 4
        %v961 = vpop.permute.xlu0 %960
        %962 = vrot.lane.b32.xlu0 %v843, 4
        %v963 = vpop.permute.xlu0 %962
        %964 = vrot.lane.b32.xlu0 %v844, 4
        %v965 = vpop.permute.xlu0 %964
        %966 = vrot.lane.b32.xlu0 %v845, 4
        %v967 = vpop.permute.xlu0 %966
        %968 = vrot.lane.b32.xlu0 %v846, 4
        %v969 = vpop.permute.xlu0 %968
        %970 = vrot.lane.b32.xlu0 %v847, 4
        %v971 = vpop.permute.xlu0 %970
        %972 = vrot.lane.b32.xlu0 %v848, 4
        %v973 = vpop.permute.xlu0 %972
        %974 = vrot.lane.b32.xlu0 %v849, 4
        %v975 = vpop.permute.xlu0 %974
        %976 = vrot.lane.b32.xlu0 %v850, 4
        %v977 = vpop.permute.xlu0 %976
        %978 = vrot.lane.b32.xlu0 %v851, 4
        %v979 = vpop.permute.xlu0 %978
        %1044 = vrot.lane.b32.xlu0 %v852, 8
        %v1045 = vpop.permute.xlu0 %1044
        %1046 = vrot.lane.b32.xlu0 %v853, 8
        %v1047 = vpop.permute.xlu0 %1046
        %1048 = vrot.lane.b32.xlu0 %v854, 8
        %v1049 = vpop.permute.xlu0 %1048
        %1050 = vrot.lane.b32.xlu0 %v855, 8
        %v1051 = vpop.permute.xlu0 %1050
        %1052 = vrot.lane.b32.xlu0 %v856, 8
        %v1053 = vpop.permute.xlu0 %1052
        %1054 = vrot.lane.b32.xlu0 %v857, 8
        %v1055 = vpop.permute.xlu0 %1054
        %1056 = vrot.lane.b32.xlu0 %v858, 8
        %v1057 = vpop.permute.xlu0 %1056
        %1058 = vrot.lane.b32.xlu0 %v859, 8
        %v1059 = vpop.permute.xlu0 %1058
        %1060 = vrot.lane.b32.xlu0 %v860, 8
        %v1061 = vpop.permute.xlu0 %1060
        %1062 = vrot.lane.b32.xlu0 %v861, 8
        %v1063 = vpop.permute.xlu0 %1062
        %1064 = vrot.lane.b32.xlu0 %v862, 8
        %v1065 = vpop.permute.xlu0 %1064
        %1066 = vrot.lane.b32.xlu0 %v863, 8
        %v1067 = vpop.permute.xlu0 %1066
        %1068 = vrot.lane.b32.xlu0 %v864, 8
        %v1069 = vpop.permute.xlu0 %1068
        %1070 = vrot.lane.b32.xlu0 %v865, 8
        %v1071 = vpop.permute.xlu0 %1070
        %1072 = vrot.lane.b32.xlu0 %v866, 8
        %v1073 = vpop.permute.xlu0 %1072
        %1074 = vrot.lane.b32.xlu0 %v867, 8
        %v1075 = vpop.permute.xlu0 %1074
        %1076 = vrot.lane.b32.xlu0 %v868, 8
        %v1077 = vpop.permute.xlu0 %1076
        %1078 = vrot.lane.b32.xlu0 %v869, 8
        %v1079 = vpop.permute.xlu0 %1078
        %1080 = vrot.lane.b32.xlu0 %v870, 8
        %v1081 = vpop.permute.xlu0 %1080
        %1082 = vrot.lane.b32.xlu0 %v871, 8
        %v1083 = vpop.permute.xlu0 %1082
        %1084 = vrot.lane.b32.xlu0 %v872, 8
        %v1085 = vpop.permute.xlu0 %1084
        %1086 = vrot.lane.b32.xlu0 %v873, 8
        %v1087 = vpop.permute.xlu0 %1086
        %1088 = vrot.lane.b32.xlu0 %v874, 8
        %v1089 = vpop.permute.xlu0 %1088
        %1090 = vrot.lane.b32.xlu0 %v875, 8
        %v1091 = vpop.permute.xlu0 %1090
        %1092 = vrot.lane.b32.xlu0 %v876, 8
        %v1093 = vpop.permute.xlu0 %1092
        %1094 = vrot.lane.b32.xlu0 %v877, 8
        %v1095 = vpop.permute.xlu0 %1094
        %1096 = vrot.lane.b32.xlu0 %v878, 8
        %v1097 = vpop.permute.xlu0 %1096
        %1098 = vrot.lane.b32.xlu0 %v879, 8
        %v1099 = vpop.permute.xlu0 %1098
        %1100 = vrot.lane.b32.xlu0 %v880, 8
        %v1101 = vpop.permute.xlu0 %1100
        %1102 = vrot.lane.b32.xlu0 %v881, 8
        %v1103 = vpop.permute.xlu0 %1102
        %1104 = vrot.lane.b32.xlu0 %v882, 8
        %v1105 = vpop.permute.xlu0 %1104
        %1106 = vrot.lane.b32.xlu0 %v883, 8
        %v1107 = vpop.permute.xlu0 %1106
        %v1140 = vsel %vm351, %v788, %v917
        %v1141 = vsel %vm351, %v789, %v919
        %v1142 = vsel %vm351, %v790, %v921
        %v1143 = vsel %vm351, %v791, %v923
        %v1144 = vsel %vm351, %v792, %v925
        %v1145 = vsel %vm351, %v793, %v927
        %v1146 = vsel %vm351, %v794, %v929
        %v1147 = vsel %vm351, %v795, %v931
        %v1148 = vsel %vm351, %v796, %v933
        %v1149 = vsel %vm351, %v797, %v935
        %v1150 = vsel %vm351, %v798, %v937
        %v1151 = vsel %vm351, %v799, %v939
        %v1152 = vsel %vm351, %v800, %v941
        %v1153 = vsel %vm351, %v801, %v943
        %v1154 = vsel %vm351, %v802, %v945
        %v1155 = vsel %vm351, %v803, %v947
        %v1156 = vsel %vm351, %v804, %v949
        %v1157 = vsel %vm351, %v805, %v951
        %v1158 = vsel %vm351, %v806, %v953
        %v1159 = vsel %vm351, %v807, %v955
        %v1160 = vsel %vm351, %v808, %v957
        %v1161 = vsel %vm351, %v809, %v959
        %v1162 = vsel %vm351, %v810, %v961
        %v1163 = vsel %vm351, %v811, %v963
        %v1164 = vsel %vm351, %v812, %v965
        %v1165 = vsel %vm351, %v813, %v967
        %v1166 = vsel %vm351, %v814, %v969
        %v1167 = vsel %vm351, %v815, %v971
        %v1168 = vsel %vm351, %v816, %v973
        %v1169 = vsel %vm351, %v817, %v975
        %v1170 = vsel %vm351, %v818, %v977
        %v1171 = vsel %vm351, %v819, %v979
        %vm1172 = vcmask 64512
        %v1173 = vsel %vm1172, %v1140, %v1045
        %v1174 = vsel %vm1172, %v1141, %v1047
        %v1175 = vsel %vm1172, %v1142, %v1049
        %v1176 = vsel %vm1172, %v1143, %v1051
        %v1177 = vsel %vm1172, %v1144, %v1053
        %v1178 = vsel %vm1172, %v1145, %v1055
        %v1179 = vsel %vm1172, %v1146, %v1057
        %v1180 = vsel %vm1172, %v1147, %v1059
        %v1181 = vsel %vm1172, %v1148, %v1061
        %v1182 = vsel %vm1172, %v1149, %v1063
        %v1183 = vsel %vm1172, %v1150, %v1065
        %v1184 = vsel %vm1172, %v1151, %v1067
        %v1185 = vsel %vm1172, %v1152, %v1069
        %v1186 = vsel %vm1172, %v1153, %v1071
        %v1187 = vsel %vm1172, %v1154, %v1073
        %v1188 = vsel %vm1172, %v1155, %v1075
        %v1189 = vsel %vm1172, %v1156, %v1077
        %v1190 = vsel %vm1172, %v1157, %v1079
        %v1191 = vsel %vm1172, %v1158, %v1081
        %v1192 = vsel %vm1172, %v1159, %v1083
        %v1193 = vsel %vm1172, %v1160, %v1085
        %v1194 = vsel %vm1172, %v1161, %v1087
        %v1195 = vsel %vm1172, %v1162, %v1089
        %v1196 = vsel %vm1172, %v1163, %v1091
        %v1197 = vsel %vm1172, %v1164, %v1093
        %v1198 = vsel %vm1172, %v1165, %v1095
        %v1199 = vsel %vm1172, %v1166, %v1097
        %v1200 = vsel %vm1172, %v1167, %v1099
        %v1201 = vsel %vm1172, %v1168, %v1101
        %v1202 = vsel %vm1172, %v1169, %v1103
        %v1203 = vsel %vm1172, %v1170, %v1105
        %v1204 = vsel %vm1172, %v1171, %v1107
        %v1205 = vld [vmem:[%s3] sm:$0xff]
        %v1206 = vld [vmem:[%s3 + $0x8] sm:$0xf]
        %v1207 = vld [vmem:[%s709] sm:$0xff]
        %v1208 = vld [vmem:[%s709 + $0x8] sm:$0xff]
        %v1209 = vld [vmem:[%s709 + $0x18] sm:$0xff]
        %v1210 = vld [vmem:[%s709 + $0x20] sm:$0xff]
        %v1211 = vld [vmem:[%s709 + $0x30] sm:$0xff]
        %v1212 = vld [vmem:[%s709 + $0x38] sm:$0xff]
        %v1213 = vld [vmem:[%s709 + $0x48] sm:$0xff]
        %v1214 = vld [vmem:[%s709 + $0x50] sm:$0xff]
        %v1215 = vld [vmem:[%s709 + $0x60] sm:$0xff]
        %v1216 = vld [vmem:[%s709 + $0x68] sm:$0xff]
        %v1217 = vld [vmem:[%s709 + $0x78] sm:$0xff]
        %v1218 = vld [vmem:[%s709 + $0x80] sm:$0xff]
        %v1219 = vld [vmem:[%s709 + $0x90] sm:$0xff]
        %v1220 = vld [vmem:[%s709 + $0x98] sm:$0xff]
        %v1221 = vld [vmem:[%s709 + $0xa8] sm:$0xff]
        %v1222 = vld [vmem:[%s709 + $0xb0] sm:$0xff]
        %v1223 = vld [vmem:[%s709 + $0xc0] sm:$0xff]
        %v1224 = vld [vmem:[%s709 + $0xc8] sm:$0xff]
        %v1225 = vld [vmem:[%s709 + $0xd8] sm:$0xff]
        %v1226 = vld [vmem:[%s709 + $0xe0] sm:$0xff]
        %v1227 = vld [vmem:[%s709 + $0xf0] sm:$0xff]
        %v1228 = vld [vmem:[%s709 + $0xf8] sm:$0xff]
        %v1229 = vld [vmem:[%s709 + $0x108] sm:$0xff]
        %v1230 = vld [vmem:[%s709 + $0x110] sm:$0xff]
        %v1231 = vld [vmem:[%s709 + $0x120] sm:$0xff]
        %v1232 = vld [vmem:[%s709 + $0x128] sm:$0xff]
        %v1233 = vld [vmem:[%s709 + $0x138] sm:$0xff]
        %v1234 = vld [vmem:[%s709 + $0x140] sm:$0xff]
        %v1235 = vld [vmem:[%s709 + $0x150] sm:$0xff]
        %v1236 = vld [vmem:[%s709 + $0x158] sm:$0xff]
        %v1237 = vld [vmem:[%s709 + $0x168] sm:$0xff]
        %v1238 = vld [vmem:[%s709 + $0x170] sm:$0xff]
        %v1239 = vld [vmem:[%s709 + $0x1] sm:$0xff]
        %v1240 = vld [vmem:[%s709 + $0x9] sm:$0xff]
        %v1241 = vld [vmem:[%s709 + $0x19] sm:$0xff]
        %v1242 = vld [vmem:[%s709 + $0x21] sm:$0xff]
        %v1243 = vld [vmem:[%s709 + $0x31] sm:$0xff]
        %v1244 = vld [vmem:[%s709 + $0x39] sm:$0xff]
        %v1245 = vld [vmem:[%s709 + $0x49] sm:$0xff]
        %v1246 = vld [vmem:[%s709 + $0x51] sm:$0xff]
        %v1247 = vld [vmem:[%s709 + $0x61] sm:$0xff]
        %v1248 = vld [vmem:[%s709 + $0x69] sm:$0xff]
        %v1249 = vld [vmem:[%s709 + $0x79] sm:$0xff]
        %v1250 = vld [vmem:[%s709 + $0x81] sm:$0xff]
        %v1251 = vld [vmem:[%s709 + $0x91] sm:$0xff]
        %v1252 = vld [vmem:[%s709 + $0x99] sm:$0xff]
        %v1253 = vld [vmem:[%s709 + $0xa9] sm:$0xff]
        %v1254 = vld [vmem:[%s709 + $0xb1] sm:$0xff]
        %v1255 = vld [vmem:[%s709 + $0xc1] sm:$0xff]
        %v1256 = vld [vmem:[%s709 + $0xc9] sm:$0xff]
        %v1257 = vld [vmem:[%s709 + $0xd9] sm:$0xff]
        %v1258 = vld [vmem:[%s709 + $0xe1] sm:$0xff]
        %v1259 = vld [vmem:[%s709 + $0xf1] sm:$0xff]
        %v1260 = vld [vmem:[%s709 + $0xf9] sm:$0xff]
        %v1261 = vld [vmem:[%s709 + $0x109] sm:$0xff]
        %v1262 = vld [vmem:[%s709 + $0x111] sm:$0xff]
        %v1263 = vld [vmem:[%s709 + $0x121] sm:$0xff]
        %v1264 = vld [vmem:[%s709 + $0x129] sm:$0xff]
        %v1265 = vld [vmem:[%s709 + $0x139] sm:$0xff]
        %v1266 = vld [vmem:[%s709 + $0x141] sm:$0xff]
        %v1267 = vld [vmem:[%s709 + $0x151] sm:$0xff]
        %v1268 = vld [vmem:[%s709 + $0x159] sm:$0xff]
        %v1269 = vld [vmem:[%s709 + $0x169] sm:$0xff]
        %v1270 = vld [vmem:[%s709 + $0x171] sm:$0xff]
        %v1271 = vld [vmem:[%s709 + $0x2] sm:$0xff]
        %v1272 = vld [vmem:[%s709 + $0xa] sm:$0xff]
        %v1273 = vld [vmem:[%s709 + $0x1a] sm:$0xff]
        %v1274 = vld [vmem:[%s709 + $0x22] sm:$0xff]
        %v1275 = vld [vmem:[%s709 + $0x32] sm:$0xff]
        %v1276 = vld [vmem:[%s709 + $0x3a] sm:$0xff]
        %v1277 = vld [vmem:[%s709 + $0x4a] sm:$0xff]
        %v1278 = vld [vmem:[%s709 + $0x52] sm:$0xff]
        %v1279 = vld [vmem:[%s709 + $0x62] sm:$0xff]
        %v1280 = vld [vmem:[%s709 + $0x6a] sm:$0xff]
        %v1281 = vld [vmem:[%s709 + $0x7a] sm:$0xff]
        %v1282 = vld [vmem:[%s709 + $0x82] sm:$0xff]
        %v1283 = vld [vmem:[%s709 + $0x92] sm:$0xff]
        %v1284 = vld [vmem:[%s709 + $0x9a] sm:$0xff]
        %v1285 = vld [vmem:[%s709 + $0xaa] sm:$0xff]
        %v1286 = vld [vmem:[%s709 + $0xb2] sm:$0xff]
        %v1287 = vld [vmem:[%s709 + $0xc2] sm:$0xff]
        %v1288 = vld [vmem:[%s709 + $0xca] sm:$0xff]
        %v1289 = vld [vmem:[%s709 + $0xda] sm:$0xff]
        %v1290 = vld [vmem:[%s709 + $0xe2] sm:$0xff]
        %v1291 = vld [vmem:[%s709 + $0xf2] sm:$0xff]
        %v1292 = vld [vmem:[%s709 + $0xfa] sm:$0xff]
        %v1293 = vld [vmem:[%s709 + $0x10a] sm:$0xff]
        %v1294 = vld [vmem:[%s709 + $0x112] sm:$0xff]
        %v1295 = vld [vmem:[%s709 + $0x122] sm:$0xff]
        %v1296 = vld [vmem:[%s709 + $0x12a] sm:$0xff]
        %v1297 = vld [vmem:[%s709 + $0x13a] sm:$0xff]
        %v1298 = vld [vmem:[%s709 + $0x142] sm:$0xff]
        %v1299 = vld [vmem:[%s709 + $0x152] sm:$0xff]
        %v1300 = vld [vmem:[%s709 + $0x15a] sm:$0xff]
        %v1301 = vld [vmem:[%s709 + $0x16a] sm:$0xff]
        %v1302 = vld [vmem:[%s709 + $0x172] sm:$0xff]
        %1335 = vrot.lane.b32.xlu0 %v1239, 4
        %v1336 = vpop.permute.xlu0 %1335
        %1337 = vrot.lane.b32.xlu0 %v1240, 4
        %v1338 = vpop.permute.xlu0 %1337
        %1339 = vrot.lane.b32.xlu0 %v1241, 4
        %v1340 = vpop.permute.xlu0 %1339
        %1341 = vrot.lane.b32.xlu0 %v1242, 4
        %v1342 = vpop.permute.xlu0 %1341
        %1343 = vrot.lane.b32.xlu0 %v1243, 4
        %v1344 = vpop.permute.xlu0 %1343
        %1345 = vrot.lane.b32.xlu0 %v1244, 4
        %v1346 = vpop.permute.xlu0 %1345
        %1347 = vrot.lane.b32.xlu0 %v1245, 4
        %v1348 = vpop.permute.xlu0 %1347
        %1349 = vrot.lane.b32.xlu0 %v1246, 4
        %v1350 = vpop.permute.xlu0 %1349
        %1351 = vrot.lane.b32.xlu0 %v1247, 4
        %v1352 = vpop.permute.xlu0 %1351
        %1353 = vrot.lane.b32.xlu0 %v1248, 4
        %v1354 = vpop.permute.xlu0 %1353
        %1355 = vrot.lane.b32.xlu0 %v1249, 4
        %v1356 = vpop.permute.xlu0 %1355
        %1357 = vrot.lane.b32.xlu0 %v1250, 4
        %v1358 = vpop.permute.xlu0 %1357
        %1359 = vrot.lane.b32.xlu0 %v1251, 4
        %v1360 = vpop.permute.xlu0 %1359
        %1361 = vrot.lane.b32.xlu0 %v1252, 4
        %v1362 = vpop.permute.xlu0 %1361
        %1363 = vrot.lane.b32.xlu0 %v1253, 4
        %v1364 = vpop.permute.xlu0 %1363
        %1365 = vrot.lane.b32.xlu0 %v1254, 4
        %v1366 = vpop.permute.xlu0 %1365
        %1367 = vrot.lane.b32.xlu0 %v1255, 4
        %v1368 = vpop.permute.xlu0 %1367
        %1369 = vrot.lane.b32.xlu0 %v1256, 4
        %v1370 = vpop.permute.xlu0 %1369
        %1371 = vrot.lane.b32.xlu0 %v1257, 4
        %v1372 = vpop.permute.xlu0 %1371
        %1373 = vrot.lane.b32.xlu0 %v1258, 4
        %v1374 = vpop.permute.xlu0 %1373
        %1375 = vrot.lane.b32.xlu0 %v1259, 4
        %v1376 = vpop.permute.xlu0 %1375
        %1377 = vrot.lane.b32.xlu0 %v1260, 4
        %v1378 = vpop.permute.xlu0 %1377
        %1379 = vrot.lane.b32.xlu0 %v1261, 4
        %v1380 = vpop.permute.xlu0 %1379
        %1381 = vrot.lane.b32.xlu0 %v1262, 4
        %v1382 = vpop.permute.xlu0 %1381
        %1383 = vrot.lane.b32.xlu0 %v1263, 4
        %v1384 = vpop.permute.xlu0 %1383
        %1385 = vrot.lane.b32.xlu0 %v1264, 4
        %v1386 = vpop.permute.xlu0 %1385
        %1387 = vrot.lane.b32.xlu0 %v1265, 4
        %v1388 = vpop.permute.xlu0 %1387
        %1389 = vrot.lane.b32.xlu0 %v1266, 4
        %v1390 = vpop.permute.xlu0 %1389
        %1391 = vrot.lane.b32.xlu0 %v1267, 4
        %v1392 = vpop.permute.xlu0 %1391
        %1393 = vrot.lane.b32.xlu0 %v1268, 4
        %v1394 = vpop.permute.xlu0 %1393
        %1395 = vrot.lane.b32.xlu0 %v1269, 4
        %v1396 = vpop.permute.xlu0 %1395
        %1397 = vrot.lane.b32.xlu0 %v1270, 4
        %v1398 = vpop.permute.xlu0 %1397
        %1463 = vrot.lane.b32.xlu0 %v1271, 8
        %v1464 = vpop.permute.xlu0 %1463
        %1465 = vrot.lane.b32.xlu0 %v1272, 8
        %v1466 = vpop.permute.xlu0 %1465
        %1467 = vrot.lane.b32.xlu0 %v1273, 8
        %v1468 = vpop.permute.xlu0 %1467
        %1469 = vrot.lane.b32.xlu0 %v1274, 8
        %v1470 = vpop.permute.xlu0 %1469
        %1471 = vrot.lane.b32.xlu0 %v1275, 8
        %v1472 = vpop.permute.xlu0 %1471
        %1473 = vrot.lane.b32.xlu0 %v1276, 8
        %v1474 = vpop.permute.xlu0 %1473
        %1475 = vrot.lane.b32.xlu0 %v1277, 8
        %v1476 = vpop.permute.xlu0 %1475
        %1477 = vrot.lane.b32.xlu0 %v1278, 8
        %v1478 = vpop.permute.xlu0 %1477
        %1479 = vrot.lane.b32.xlu0 %v1279, 8
        %v1480 = vpop.permute.xlu0 %1479
        %1481 = vrot.lane.b32.xlu0 %v1280, 8
        %v1482 = vpop.permute.xlu0 %1481
        %1483 = vrot.lane.b32.xlu0 %v1281, 8
        %v1484 = vpop.permute.xlu0 %1483
        %1485 = vrot.lane.b32.xlu0 %v1282, 8
        %v1486 = vpop.permute.xlu0 %1485
        %1487 = vrot.lane.b32.xlu0 %v1283, 8
        %v1488 = vpop.permute.xlu0 %1487
        %1489 = vrot.lane.b32.xlu0 %v1284, 8
        %v1490 = vpop.permute.xlu0 %1489
        %1491 = vrot.lane.b32.xlu0 %v1285, 8
        %v1492 = vpop.permute.xlu0 %1491
        %1493 = vrot.lane.b32.xlu0 %v1286, 8
        %v1494 = vpop.permute.xlu0 %1493
        %1495 = vrot.lane.b32.xlu0 %v1287, 8
        %v1496 = vpop.permute.xlu0 %1495
        %1497 = vrot.lane.b32.xlu0 %v1288, 8
        %v1498 = vpop.permute.xlu0 %1497
        %1499 = vrot.lane.b32.xlu0 %v1289, 8
        %v1500 = vpop.permute.xlu0 %1499
        %1501 = vrot.lane.b32.xlu0 %v1290, 8
        %v1502 = vpop.permute.xlu0 %1501
        %1503 = vrot.lane.b32.xlu0 %v1291, 8
        %v1504 = vpop.permute.xlu0 %1503
        %1505 = vrot.lane.b32.xlu0 %v1292, 8
        %v1506 = vpop.permute.xlu0 %1505
        %1507 = vrot.lane.b32.xlu0 %v1293, 8
        %v1508 = vpop.permute.xlu0 %1507
        %1509 = vrot.lane.b32.xlu0 %v1294, 8
        %v1510 = vpop.permute.xlu0 %1509
        %1511 = vrot.lane.b32.xlu0 %v1295, 8
        %v1512 = vpop.permute.xlu0 %1511
        %1513 = vrot.lane.b32.xlu0 %v1296, 8
        %v1514 = vpop.permute.xlu0 %1513
        %1515 = vrot.lane.b32.xlu0 %v1297, 8
        %v1516 = vpop.permute.xlu0 %1515
        %1517 = vrot.lane.b32.xlu0 %v1298, 8
        %v1518 = vpop.permute.xlu0 %1517
        %1519 = vrot.lane.b32.xlu0 %v1299, 8
        %v1520 = vpop.permute.xlu0 %1519
        %1521 = vrot.lane.b32.xlu0 %v1300, 8
        %v1522 = vpop.permute.xlu0 %1521
        %1523 = vrot.lane.b32.xlu0 %v1301, 8
        %v1524 = vpop.permute.xlu0 %1523
        %1525 = vrot.lane.b32.xlu0 %v1302, 8
        %v1526 = vpop.permute.xlu0 %1525
        %v1559 = vsel %vm351, %v1207, %v1336
        %v1560 = vsel %vm351, %v1208, %v1338
        %v1561 = vsel %vm351, %v1209, %v1340
        %v1562 = vsel %vm351, %v1210, %v1342
        %v1563 = vsel %vm351, %v1211, %v1344
        %v1564 = vsel %vm351, %v1212, %v1346
        %v1565 = vsel %vm351, %v1213, %v1348
        %v1566 = vsel %vm351, %v1214, %v1350
        %v1567 = vsel %vm351, %v1215, %v1352
        %v1568 = vsel %vm351, %v1216, %v1354
        %v1569 = vsel %vm351, %v1217, %v1356
        %v1570 = vsel %vm351, %v1218, %v1358
        %v1571 = vsel %vm351, %v1219, %v1360
        %v1572 = vsel %vm351, %v1220, %v1362
        %v1573 = vsel %vm351, %v1221, %v1364
        %v1574 = vsel %vm351, %v1222, %v1366
        %v1575 = vsel %vm351, %v1223, %v1368
        %v1576 = vsel %vm351, %v1224, %v1370
        %v1577 = vsel %vm351, %v1225, %v1372
        %v1578 = vsel %vm351, %v1226, %v1374
        %v1579 = vsel %vm351, %v1227, %v1376
        %v1580 = vsel %vm351, %v1228, %v1378
        %v1581 = vsel %vm351, %v1229, %v1380
        %v1582 = vsel %vm351, %v1230, %v1382
        %v1583 = vsel %vm351, %v1231, %v1384
        %v1584 = vsel %vm351, %v1232, %v1386
        %v1585 = vsel %vm351, %v1233, %v1388
        %v1586 = vsel %vm351, %v1234, %v1390
        %v1587 = vsel %vm351, %v1235, %v1392
        %v1588 = vsel %vm351, %v1236, %v1394
        %v1589 = vsel %vm351, %v1237, %v1396
        %v1590 = vsel %vm351, %v1238, %v1398
        %v1591 = vsel %vm1172, %v1559, %v1464
        %v1592 = vsel %vm1172, %v1560, %v1466
        %v1593 = vsel %vm1172, %v1561, %v1468
        %v1594 = vsel %vm1172, %v1562, %v1470
        %v1595 = vsel %vm1172, %v1563, %v1472
        %v1596 = vsel %vm1172, %v1564, %v1474
        %v1597 = vsel %vm1172, %v1565, %v1476
        %v1598 = vsel %vm1172, %v1566, %v1478
        %v1599 = vsel %vm1172, %v1567, %v1480
        %v1600 = vsel %vm1172, %v1568, %v1482
        %v1601 = vsel %vm1172, %v1569, %v1484
        %v1602 = vsel %vm1172, %v1570, %v1486
        %v1603 = vsel %vm1172, %v1571, %v1488
        %v1604 = vsel %vm1172, %v1572, %v1490
        %v1605 = vsel %vm1172, %v1573, %v1492
        %v1606 = vsel %vm1172, %v1574, %v1494
        %v1607 = vsel %vm1172, %v1575, %v1496
        %v1608 = vsel %vm1172, %v1576, %v1498
        %v1609 = vsel %vm1172, %v1577, %v1500
        %v1610 = vsel %vm1172, %v1578, %v1502
        %v1611 = vsel %vm1172, %v1579, %v1504
        %v1612 = vsel %vm1172, %v1580, %v1506
        %v1613 = vsel %vm1172, %v1581, %v1508
        %v1614 = vsel %vm1172, %v1582, %v1510
        %v1615 = vsel %vm1172, %v1583, %v1512
        %v1616 = vsel %vm1172, %v1584, %v1514
        %v1617 = vsel %vm1172, %v1585, %v1516
        %v1618 = vsel %vm1172, %v1586, %v1518
        %v1619 = vsel %vm1172, %v1587, %v1520
        %v1620 = vsel %vm1172, %v1588, %v1522
        %v1621 = vsel %vm1172, %v1589, %v1524
        %v1622 = vsel %vm1172, %v1590, %v1526
        %s1623 = scalar_lea.vmem %s3, 16
        %v1624 = vld [vmem:[%s1623] sm:$0xff]
        %v1625 = vld [vmem:[%s1623 + $0x8] sm:$0xf]
        %vm1626 = vcmask 97280
        %v1628 = vsel %vm1626, %v1591, 0
        %v1631 = vsel %vm1626, %v1592, 0
        %v1634 = vsel %vm1626, %v1593, 0
        %v1637 = vsel %vm1626, %v1594, 0
        %v1640 = vsel %vm1626, %v1595, 0
        %v1643 = vsel %vm1626, %v1596, 0
        %v1646 = vsel %vm1626, %v1597, 0
        %v1649 = vsel %vm1626, %v1598, 0
        %v1652 = vsel %vm1626, %v1599, 0
        %v1655 = vsel %vm1626, %v1600, 0
        %v1658 = vsel %vm1626, %v1601, 0
        %v1661 = vsel %vm1626, %v1602, 0
        %v1664 = vsel %vm1626, %v1603, 0
        %v1667 = vsel %vm1626, %v1604, 0
        %v1670 = vsel %vm1626, %v1605, 0
        %v1673 = vsel %vm1626, %v1606, 0
        %v1676 = vsel %vm1626, %v1607, 0
        %v1679 = vsel %vm1626, %v1608, 0
        %v1682 = vsel %vm1626, %v1609, 0
        %v1685 = vsel %vm1626, %v1610, 0
        %v1688 = vsel %vm1626, %v1611, 0
        %v1691 = vsel %vm1626, %v1612, 0
        %v1694 = vsel %vm1626, %v1613, 0
        %v1697 = vsel %vm1626, %v1614, 0
        %v1700 = vsel %vm1626, %v1615, 0
        %v1703 = vsel %vm1626, %v1616, 0
        %v1706 = vsel %vm1626, %v1617, 0
        %v1709 = vsel %vm1626, %v1618, 0
        %v1712 = vsel %vm1626, %v1619, 0
        %v1715 = vsel %vm1626, %v1620, 0
        %v1718 = vsel %vm1626, %v1621, 0
        %v1721 = vsel %vm1626, %v1622, 0
        %v1724 = vsel %vm448, %v1625, 0
        %1726 = vmatprep.subr.mxu0 0.0
        %1727 = vmatpush1.msra.mxu0 %v1624
        %1728 = vmatprep.subr.mxu0 0.0
        %1729 = vmatpush1.msra.mxu0 %v1724
        %1730 = vmatprep.subr.mxu0 0.0
        %1731 = vmatpush1.msra.mxu0 0.0
        %1732 = vmatprep.subr.mxu0 0.0
        %1733 = vmatpush1.msra.mxu0 0.0
        %1734 = vmatprep.subr.mxu0 0.0
        %1735 = vmatpush1.msra.mxu0 0.0
        %1736 = vmatprep.subr.mxu0 0.0
        %1737 = vmatpush1.msra.mxu0 0.0
        %1738 = vmatprep.subr.mxu0 0.0
        %1739 = vmatpush1.msra.mxu0 0.0
        %1740 = vmatprep.subr.mxu0 0.0
        %1741 = vmatpush1.msra.mxu0 0.0
        %1742 = vmatprep.subr.mxu0 0.0
        %1743 = vmatpush1.msra.mxu0 0.0
        %1744 = vmatprep.subr.mxu0 0.0
        %1745 = vmatpush1.msra.mxu0 0.0
        %1746 = vmatprep.subr.mxu0 0.0
        %1747 = vmatpush1.msra.mxu0 0.0
        %1748 = vmatprep.subr.mxu0 0.0
        %1749 = vmatpush1.msra.mxu0 0.0
        %1750 = vmatprep.subr.mxu0 0.0
        %1751 = vmatpush1.msra.mxu0 0.0
        %1752 = vmatprep.subr.mxu0 0.0
        %1753 = vmatpush1.msra.mxu0 0.0
        %1754 = vmatprep.subr.mxu0 0.0
        %1755 = vmatpush1.msra.mxu0 0.0
        %1756 = vmatprep.subr.mxu0 0.0
        %1757 = vmatpush1.msra.mxu0 0.0
        %1758 = vmatprep.subr.mxu0 0.0
        %1759 = vmatpush1.msra.mxu0 0.0
        %1760 = vmatprep.subr.mxu0 0.0
        %1761 = vmatpush1.msra.mxu0 0.0
        %1762 = vmatprep.subr.mxu0 0.0
        %1763 = vmatpush1.msra.mxu0 0.0
        %1764 = vmatprep.subr.mxu0 0.0
        %1765 = vmatpush1.msra.mxu0 0.0
        %1766 = vmatprep.subr.mxu0 0.0
        %1767 = vmatpush1.msra.mxu0 0.0
        %1768 = vmatprep.subr.mxu0 0.0
        %1769 = vmatpush1.msra.mxu0 0.0
        %1770 = vmatprep.subr.mxu0 0.0
        %1771 = vmatpush1.msra.mxu0 0.0
        %1772 = vmatprep.subr.mxu0 0.0
        %1773 = vmatpush1.msra.mxu0 0.0
        %1774 = vmatprep.subr.mxu0 0.0
        %1775 = vmatpush1.msra.mxu0 0.0
        %1776 = vmatprep.subr.mxu0 0.0
        %1777 = vmatpush1.msra.mxu0 0.0
        %1778 = vmatprep.subr.mxu0 0.0
        %1779 = vmatpush1.msra.mxu0 0.0
        %1780 = vmatprep.subr.mxu0 0.0
        %1781 = vmatpush1.msra.mxu0 0.0
        %1782 = vmatprep.subr.mxu0 0.0
        %1783 = vmatpush1.msra.mxu0 0.0
        %1784 = vmatprep.subr.mxu0 0.0
        %1785 = vmatpush1.msra.mxu0 0.0
        %1786 = vmatprep.subr.mxu0 0.0
        %1787 = vmatpush1.msra.mxu0 0.0
        %1788 = vmatprep.subr.mxu0 0.0
        %1789 = vmatpush1.msra.mxu0 0.0
        %1790 = vmatprep.mubr.f32.mxu0 0.0
        %1791 = vmatmul.mubr.f32.gmra.mrb[0].mxu0 %v1628
        %v1792 = vpop.f32.mrb[0].mxu0
        %v1793 = vadd.f32 0.0, %v1792
        %v1794 = vpop.f32.mrb[0].mxu0
        %1795 = vmatprep.mubr.f32.mxu0 0.0
        %1796 = vmatmul.mubr.f32.gmra.mrb[0].mxu0 %v1631
        %v1797 = vpop.f32.mrb[0].mxu0
        %v1798 = vadd.f32 0.0, %v1797
        %v1799 = vpop.f32.mrb[0].mxu0
        %1800 = vmatprep.mubr.f32.mxu0 0.0
        %1801 = vmatmul.mubr.f32.gmra.mrb[0].mxu0 %v1634
        %v1802 = vpop.f32.mrb[0].mxu0
        %v1803 = vadd.f32 0.0, %v1802
        %v1804 = vpop.f32.mrb[0].mxu0
        %1805 = vmatprep.mubr.f32.mxu0 0.0
        %1806 = vmatmul.mubr.f32.gmra.mrb[0].mxu0 %v1637
        %v1807 = vpop.f32.mrb[0].mxu0
        %v1808 = vadd.f32 0.0, %v1807
        %v1809 = vpop.f32.mrb[0].mxu0
        %1810 = vmatprep.mubr.f32.mxu0 0.0
        %1811 = vmatmul.mubr.f32.gmra.mrb[0].mxu0 %v1640
        %v1812 = vpop.f32.mrb[0].mxu0
        %v1813 = vadd.f32 0.0, %v1812
        %v1814 = vpop.f32.mrb[0].mxu0
        %1815 = vmatprep.mubr.f32.mxu0 0.0
        %1816 = vmatmul.mubr.f32.gmra.mrb[0].mxu0 %v1643
        %v1817 = vpop.f32.mrb[0].mxu0
        %v1818 = vadd.f32 0.0, %v1817
        %v1819 = vpop.f32.mrb[0].mxu0
        %1820 = vmatprep.mubr.f32.mxu0 0.0
        %1821 = vmatmul.mubr.f32.gmra.mrb[0].mxu0 %v1646
        %v1822 = vpop.f32.mrb[0].mxu0
        %v1823 = vadd.f32 0.0, %v1822
        %v1824 = vpop.f32.mrb[0].mxu0
        %1825 = vmatprep.mubr.f32.mxu0 0.0
        %1826 = vmatmul.mubr.f32.gmra.mrb[0].mxu0 %v1649
        %v1827 = vpop.f32.mrb[0].mxu0
        %v1828 = vadd.f32 0.0, %v1827
        %v1829 = vpop.f32.mrb[0].mxu0
        %1830 = vmatprep.mubr.f32.mxu0 0.0
        %1831 = vmatmul.mubr.f32.gmra.mrb[0].mxu0 %v1652
        %v1832 = vpop.f32.mrb[0].mxu0
        %v1833 = vadd.f32 0.0, %v1832
        %v1834 = vpop.f32.mrb[0].mxu0
        %1835 = vmatprep.mubr.f32.mxu0 0.0
        %1836 = vmatmul.mubr.f32.gmra.mrb[0].mxu0 %v1655
        %v1837 = vpop.f32.mrb[0].mxu0
        %v1838 = vadd.f32 0.0, %v1837
        %v1839 = vpop.f32.mrb[0].mxu0
        %1840 = vmatprep.mubr.f32.mxu0 0.0
        %1841 = vmatmul.mubr.f32.gmra.mrb[0].mxu0 %v1658
        %v1842 = vpop.f32.mrb[0].mxu0
        %v1843 = vadd.f32 0.0, %v1842
        %v1844 = vpop.f32.mrb[0].mxu0
        %1845 = vmatprep.mubr.f32.mxu0 0.0
        %1846 = vmatmul.mubr.f32.gmra.mrb[0].mxu0 %v1661
        %v1847 = vpop.f32.mrb[0].mxu0
        %v1848 = vadd.f32 0.0, %v1847
        %v1849 = vpop.f32.mrb[0].mxu0
        %1850 = vmatprep.mubr.f32.mxu0 0.0
        %1851 = vmatmul.mubr.f32.gmra.mrb[0].mxu0 %v1664
        %v1852 = vpop.f32.mrb[0].mxu0
        %v1853 = vadd.f32 0.0, %v1852
        %v1854 = vpop.f32.mrb[0].mxu0
        %1855 = vmatprep.mubr.f32.mxu0 0.0
        %1856 = vmatmul.mubr.f32.gmra.mrb[0].mxu0 %v1667
        %v1857 = vpop.f32.mrb[0].mxu0
        %v1858 = vadd.f32 0.0, %v1857
        %v1859 = vpop.f32.mrb[0].mxu0
        %1860 = vmatprep.mubr.f32.mxu0 0.0
        %1861 = vmatmul.mubr.f32.gmra.mrb[0].mxu0 %v1670
        %v1862 = vpop.f32.mrb[0].mxu0
        %v1863 = vadd.f32 0.0, %v1862
        %v1864 = vpop.f32.mrb[0].mxu0
        %1865 = vmatprep.mubr.f32.mxu0 0.0
        %1866 = vmatmul.mubr.f32.gmra.mrb[0].mxu0 %v1673
        %v1867 = vpop.f32.mrb[0].mxu0
        %v1868 = vadd.f32 0.0, %v1867
        %v1869 = vpop.f32.mrb[0].mxu0
        %1870 = vmatprep.mubr.f32.mxu0 0.0
        %1871 = vmatmul.mubr.f32.gmra.mrb[0].mxu0 %v1676
        %v1872 = vpop.f32.mrb[0].mxu0
        %v1873 = vadd.f32 0.0, %v1872
        %v1874 = vpop.f32.mrb[0].mxu0
        %1875 = vmatprep.mubr.f32.mxu0 0.0
        %1876 = vmatmul.mubr.f32.gmra.mrb[0].mxu0 %v1679
        %v1877 = vpop.f32.mrb[0].mxu0
        %v1878 = vadd.f32 0.0, %v1877
        %v1879 = vpop.f32.mrb[0].mxu0
        %1880 = vmatprep.mubr.f32.mxu0 0.0
        %1881 = vmatmul.mubr.f32.gmra.mrb[0].mxu0 %v1682
        %v1882 = vpop.f32.mrb[0].mxu0
        %v1883 = vadd.f32 0.0, %v1882
        %v1884 = vpop.f32.mrb[0].mxu0
        %1885 = vmatprep.mubr.f32.mxu0 0.0
        %1886 = vmatmul.mubr.f32.gmra.mrb[0].mxu0 %v1685
        %v1887 = vpop.f32.mrb[0].mxu0
        %v1888 = vadd.f32 0.0, %v1887
        %v1889 = vpop.f32.mrb[0].mxu0
        %1890 = vmatprep.mubr.f32.mxu0 0.0
        %1891 = vmatmul.mubr.f32.gmra.mrb[0].mxu0 %v1688
        %v1892 = vpop.f32.mrb[0].mxu0
        %v1893 = vadd.f32 0.0, %v1892
        %v1894 = vpop.f32.mrb[0].mxu0
        %1895 = vmatprep.mubr.f32.mxu0 0.0
        %1896 = vmatmul.mubr.f32.gmra.mrb[0].mxu0 %v1691
        %v1897 = vpop.f32.mrb[0].mxu0
        %v1898 = vadd.f32 0.0, %v1897
        %v1899 = vpop.f32.mrb[0].mxu0
        %1900 = vmatprep.mubr.f32.mxu0 0.0
        %1901 = vmatmul.mubr.f32.gmra.mrb[0].mxu0 %v1694
        %v1902 = vpop.f32.mrb[0].mxu0
        %v1903 = vadd.f32 0.0, %v1902
        %v1904 = vpop.f32.mrb[0].mxu0
        %1905 = vmatprep.mubr.f32.mxu0 0.0
        %1906 = vmatmul.mubr.f32.gmra.mrb[0].mxu0 %v1697
        %v1907 = vpop.f32.mrb[0].mxu0
        %v1908 = vadd.f32 0.0, %v1907
        %v1909 = vpop.f32.mrb[0].mxu0
        %1910 = vmatprep.mubr.f32.mxu0 0.0
        %1911 = vmatmul.mubr.f32.gmra.mrb[0].mxu0 %v1700
        %v1912 = vpop.f32.mrb[0].mxu0
        %v1913 = vadd.f32 0.0, %v1912
        %v1914 = vpop.f32.mrb[0].mxu0
        %1915 = vmatprep.mubr.f32.mxu0 0.0
        %1916 = vmatmul.mubr.f32.gmra.mrb[0].mxu0 %v1703
        %v1917 = vpop.f32.mrb[0].mxu0
        %v1918 = vadd.f32 0.0, %v1917
        %v1919 = vpop.f32.mrb[0].mxu0
        %1920 = vmatprep.mubr.f32.mxu0 0.0
        %1921 = vmatmul.mubr.f32.gmra.mrb[0].mxu0 %v1706
        %v1922 = vpop.f32.mrb[0].mxu0
        %v1923 = vadd.f32 0.0, %v1922
        %v1924 = vpop.f32.mrb[0].mxu0
        %1925 = vmatprep.mubr.f32.mxu0 0.0
        %1926 = vmatmul.mubr.f32.gmra.mrb[0].mxu0 %v1709
        %v1927 = vpop.f32.mrb[0].mxu0
        %v1928 = vadd.f32 0.0, %v1927
        %v1929 = vpop.f32.mrb[0].mxu0
        %1930 = vmatprep.mubr.f32.mxu0 0.0
        %1931 = vmatmul.mubr.f32.gmra.mrb[0].mxu0 %v1712
        %v1932 = vpop.f32.mrb[0].mxu0
        %v1933 = vadd.f32 0.0, %v1932
        %v1934 = vpop.f32.mrb[0].mxu0
        %1935 = vmatprep.mubr.f32.mxu0 0.0
        %1936 = vmatmul.mubr.f32.gmra.mrb[0].mxu0 %v1715
        %v1937 = vpop.f32.mrb[0].mxu0
        %v1938 = vadd.f32 0.0, %v1937
        %v1939 = vpop.f32.mrb[0].mxu0
        %1940 = vmatprep.mubr.f32.mxu0 0.0
        %1941 = vmatmul.mubr.f32.gmra.mrb[0].mxu0 %v1718
        %v1942 = vpop.f32.mrb[0].mxu0
        %v1943 = vadd.f32 0.0, %v1942
        %v1944 = vpop.f32.mrb[0].mxu0
        %1945 = vmatprep.mubr.f32.mxu0 0.0
        %1946 = vmatmul.mubr.f32.gmra.mrb[0].mxu0 %v1721
        %v1947 = vpop.f32.mrb[0].mxu0
        %v1948 = vadd.f32 0.0, %v1947
        %v1949 = vpop.f32.mrb[0].mxu0
        %1950 = vdwg.mxu0
        %v1952 = vsel %vm1626, %v1173, 0
        %v1955 = vsel %vm1626, %v1174, 0
        %v1958 = vsel %vm1626, %v1175, 0
        %v1961 = vsel %vm1626, %v1176, 0
        %v1964 = vsel %vm1626, %v1177, 0
        %v1967 = vsel %vm1626, %v1178, 0
        %v1970 = vsel %vm1626, %v1179, 0
        %v1973 = vsel %vm1626, %v1180, 0
        %v1976 = vsel %vm1626, %v1181, 0
        %v1979 = vsel %vm1626, %v1182, 0
        %v1982 = vsel %vm1626, %v1183, 0
        %v1985 = vsel %vm1626, %v1184, 0
        %v1988 = vsel %vm1626, %v1185, 0
        %v1991 = vsel %vm1626, %v1186, 0
        %v1994 = vsel %vm1626, %v1187, 0
        %v1997 = vsel %vm1626, %v1188, 0
        %v2000 = vsel %vm1626, %v1189, 0
        %v2003 = vsel %vm1626, %v1190, 0
        %v2006 = vsel %vm1626, %v1191, 0
        %v2009 = vsel %vm1626, %v1192, 0
        %v2012 = vsel %vm1626, %v1193, 0
        %v2015 = vsel %vm1626, %v1194, 0
        %v2018 = vsel %vm1626, %v1195, 0
        %v2021 = vsel %vm1626, %v1196, 0
        %v2024 = vsel %vm1626, %v1197, 0
        %v2027 = vsel %vm1626, %v1198, 0
        %v2030 = vsel %vm1626, %v1199, 0
        %v2033 = vsel %vm1626, %v1200, 0
        %v2036 = vsel %vm1626, %v1201, 0
        %v2039 = vsel %vm1626, %v1202, 0
        %v2042 = vsel %vm1626, %v1203, 0
        %v2045 = vsel %vm1626, %v1204, 0
        %v2048 = vsel %vm448, %v1206, 0
        %2050 = vmatprep.subr.mxu0 0.0
        %2051 = vmatpush1.msra.mxu0 %v1205
        %2052 = vmatprep.subr.mxu0 0.0
        %2053 = vmatpush1.msra.mxu0 %v2048
        %2054 = vmatprep.subr.mxu0 0.0
        %2055 = vmatpush1.msra.mxu0 0.0
        %2056 = vmatprep.subr.mxu0 0.0
        %2057 = vmatpush1.msra.mxu0 0.0
        %2058 = vmatprep.subr.mxu0 0.0
        %2059 = vmatpush1.msra.mxu0 0.0
        %2060 = vmatprep.subr.mxu0 0.0
        %2061 = vmatpush1.msra.mxu0 0.0
        %2062 = vmatprep.subr.mxu0 0.0
        %2063 = vmatpush1.msra.mxu0 0.0
        %2064 = vmatprep.subr.mxu0 0.0
        %2065 = vmatpush1.msra.mxu0 0.0
        %2066 = vmatprep.subr.mxu0 0.0
        %2067 = vmatpush1.msra.mxu0 0.0
        %2068 = vmatprep.subr.mxu0 0.0
        %2069 = vmatpush1.msra.mxu0 0.0
        %2070 = vmatprep.subr.mxu0 0.0
        %2071 = vmatpush1.msra.mxu0 0.0
        %2072 = vmatprep.subr.mxu0 0.0
        %2073 = vmatpush1.msra.mxu0 0.0
        %2074 = vmatprep.subr.mxu0 0.0
        %2075 = vmatpush1.msra.mxu0 0.0
        %2076 = vmatprep.subr.mxu0 0.0
        %2077 = vmatpush1.msra.mxu0 0.0
        %2078 = vmatprep.subr.mxu0 0.0
        %2079 = vmatpush1.msra.mxu0 0.0
        %2080 = vmatprep.subr.mxu0 0.0
        %2081 = vmatpush1.msra.mxu0 0.0
        %2082 = vmatprep.subr.mxu0 0.0
        %2083 = vmatpush1.msra.mxu0 0.0
        %2084 = vmatprep.subr.mxu0 0.0
        %2085 = vmatpush1.msra.mxu0 0.0
        %2086 = vmatprep.subr.mxu0 0.0
        %2087 = vmatpush1.msra.mxu0 0.0
        %2088 = vmatprep.subr.mxu0 0.0
        %2089 = vmatpush1.msra.mxu0 0.0
        %2090 = vmatprep.subr.mxu0 0.0
        %2091 = vmatpush1.msra.mxu0 0.0
        %2092 = vmatprep.subr.mxu0 0.0
        %2093 = vmatpush1.msra.mxu0 0.0
        %2094 = vmatprep.subr.mxu0 0.0
        %2095 = vmatpush1.msra.mxu0 0.0
        %2096 = vmatprep.subr.mxu0 0.0
        %2097 = vmatpush1.msra.mxu0 0.0
        %2098 = vmatprep.subr.mxu0 0.0
        %2099 = vmatpush1.msra.mxu0 0.0
        %2100 = vmatprep.subr.mxu0 0.0
        %2101 = vmatpush1.msra.mxu0 0.0
        %2102 = vmatprep.subr.mxu0 0.0
        %2103 = vmatpush1.msra.mxu0 0.0
        %2104 = vmatprep.subr.mxu0 0.0
        %2105 = vmatpush1.msra.mxu0 0.0
        %2106 = vmatprep.subr.mxu0 0.0
        %2107 = vmatpush1.msra.mxu0 0.0
        %2108 = vmatprep.subr.mxu0 0.0
        %2109 = vmatpush1.msra.mxu0 0.0
        %2110 = vmatprep.subr.mxu0 0.0
        %2111 = vmatpush1.msra.mxu0 0.0
        %2112 = vmatprep.subr.mxu0 0.0
        %2113 = vmatpush1.msra.mxu0 0.0
        %2114 = vmatprep.mubr.f32.mxu0 0.0
        %2115 = vmatmul.mubr.f32.gmra.mrb[0].mxu0 %v1952
        %v2116 = vpop.f32.mrb[0].mxu0
        %v2117 = vadd.f32 %v1793, %v2116
        %v2118 = vpop.f32.mrb[0].mxu0
        %2119 = vmatprep.mubr.f32.mxu0 0.0
        %2120 = vmatmul.mubr.f32.gmra.mrb[0].mxu0 %v1955
        %v2121 = vpop.f32.mrb[0].mxu0
        %v2122 = vadd.f32 %v1798, %v2121
        %v2123 = vpop.f32.mrb[0].mxu0
        %2124 = vmatprep.mubr.f32.mxu0 0.0
        %2125 = vmatmul.mubr.f32.gmra.mrb[0].mxu0 %v1958
        %v2126 = vpop.f32.mrb[0].mxu0
        %v2127 = vadd.f32 %v1803, %v2126
        %v2128 = vpop.f32.mrb[0].mxu0
        %2129 = vmatprep.mubr.f32.mxu0 0.0
        %2130 = vmatmul.mubr.f32.gmra.mrb[0].mxu0 %v1961
        %v2131 = vpop.f32.mrb[0].mxu0
        %v2132 = vadd.f32 %v1808, %v2131
        %v2133 = vpop.f32.mrb[0].mxu0
        %2134 = vmatprep.mubr.f32.mxu0 0.0
        %2135 = vmatmul.mubr.f32.gmra.mrb[0].mxu0 %v1964
        %v2136 = vpop.f32.mrb[0].mxu0
        %v2137 = vadd.f32 %v1813, %v2136
        %v2138 = vpop.f32.mrb[0].mxu0
        %2139 = vmatprep.mubr.f32.mxu0 0.0
        %2140 = vmatmul.mubr.f32.gmra.mrb[0].mxu0 %v1967
        %v2141 = vpop.f32.mrb[0].mxu0
        %v2142 = vadd.f32 %v1818, %v2141
        %v2143 = vpop.f32.mrb[0].mxu0
        %2144 = vmatprep.mubr.f32.mxu0 0.0
        %2145 = vmatmul.mubr.f32.gmra.mrb[0].mxu0 %v1970
        %v2146 = vpop.f32.mrb[0].mxu0
        %v2147 = vadd.f32 %v1823, %v2146
        %v2148 = vpop.f32.mrb[0].mxu0
        %2149 = vmatprep.mubr.f32.mxu0 0.0
        %2150 = vmatmul.mubr.f32.gmra.mrb[0].mxu0 %v1973
        %v2151 = vpop.f32.mrb[0].mxu0
        %v2152 = vadd.f32 %v1828, %v2151
        %v2153 = vpop.f32.mrb[0].mxu0
        %2154 = vmatprep.mubr.f32.mxu0 0.0
        %2155 = vmatmul.mubr.f32.gmra.mrb[0].mxu0 %v1976
        %v2156 = vpop.f32.mrb[0].mxu0
        %v2157 = vadd.f32 %v1833, %v2156
        %v2158 = vpop.f32.mrb[0].mxu0
        %2159 = vmatprep.mubr.f32.mxu0 0.0
        %2160 = vmatmul.mubr.f32.gmra.mrb[0].mxu0 %v1979
        %v2161 = vpop.f32.mrb[0].mxu0
        %v2162 = vadd.f32 %v1838, %v2161
        %v2163 = vpop.f32.mrb[0].mxu0
        %2164 = vmatprep.mubr.f32.mxu0 0.0
        %2165 = vmatmul.mubr.f32.gmra.mrb[0].mxu0 %v1982
        %v2166 = vpop.f32.mrb[0].mxu0
        %v2167 = vadd.f32 %v1843, %v2166
        %v2168 = vpop.f32.mrb[0].mxu0
        %2169 = vmatprep.mubr.f32.mxu0 0.0
        %2170 = vmatmul.mubr.f32.gmra.mrb[0].mxu0 %v1985
        %v2171 = vpop.f32.mrb[0].mxu0
        %v2172 = vadd.f32 %v1848, %v2171
        %v2173 = vpop.f32.mrb[0].mxu0
        %2174 = vmatprep.mubr.f32.mxu0 0.0
        %2175 = vmatmul.mubr.f32.gmra.mrb[0].mxu0 %v1988
        %v2176 = vpop.f32.mrb[0].mxu0
        %v2177 = vadd.f32 %v1853, %v2176
        %v2178 = vpop.f32.mrb[0].mxu0
        %2179 = vmatprep.mubr.f32.mxu0 0.0
        %2180 = vmatmul.mubr.f32.gmra.mrb[0].mxu0 %v1991
        %v2181 = vpop.f32.mrb[0].mxu0
        %v2182 = vadd.f32 %v1858, %v2181
        %v2183 = vpop.f32.mrb[0].mxu0
        %2184 = vmatprep.mubr.f32.mxu0 0.0
        %2185 = vmatmul.mubr.f32.gmra.mrb[0].mxu0 %v1994
        %v2186 = vpop.f32.mrb[0].mxu0
        %v2187 = vadd.f32 %v1863, %v2186
        %v2188 = vpop.f32.mrb[0].mxu0
        %2189 = vmatprep.mubr.f32.mxu0 0.0
        %2190 = vmatmul.mubr.f32.gmra.mrb[0].mxu0 %v1997
        %v2191 = vpop.f32.mrb[0].mxu0
        %v2192 = vadd.f32 %v1868, %v2191
        %v2193 = vpop.f32.mrb[0].mxu0
        %2194 = vmatprep.mubr.f32.mxu0 0.0
        %2195 = vmatmul.mubr.f32.gmra.mrb[0].mxu0 %v2000
        %v2196 = vpop.f32.mrb[0].mxu0
        %v2197 = vadd.f32 %v1873, %v2196
        %v2198 = vpop.f32.mrb[0].mxu0
        %2199 = vmatprep.mubr.f32.mxu0 0.0
        %2200 = vmatmul.mubr.f32.gmra.mrb[0].mxu0 %v2003
        %v2201 = vpop.f32.mrb[0].mxu0
        %v2202 = vadd.f32 %v1878, %v2201
        %v2203 = vpop.f32.mrb[0].mxu0
        %2204 = vmatprep.mubr.f32.mxu0 0.0
        %2205 = vmatmul.mubr.f32.gmra.mrb[0].mxu0 %v2006
        %v2206 = vpop.f32.mrb[0].mxu0
        %v2207 = vadd.f32 %v1883, %v2206
        %v2208 = vpop.f32.mrb[0].mxu0
        %2209 = vmatprep.mubr.f32.mxu0 0.0
        %2210 = vmatmul.mubr.f32.gmra.mrb[0].mxu0 %v2009
        %v2211 = vpop.f32.mrb[0].mxu0
        %v2212 = vadd.f32 %v1888, %v2211
        %v2213 = vpop.f32.mrb[0].mxu0
        %2214 = vmatprep.mubr.f32.mxu0 0.0
        %2215 = vmatmul.mubr.f32.gmra.mrb[0].mxu0 %v2012
        %v2216 = vpop.f32.mrb[0].mxu0
        %v2217 = vadd.f32 %v1893, %v2216
        %v2218 = vpop.f32.mrb[0].mxu0
        %2219 = vmatprep.mubr.f32.mxu0 0.0
        %2220 = vmatmul.mubr.f32.gmra.mrb[0].mxu0 %v2015
        %v2221 = vpop.f32.mrb[0].mxu0
        %v2222 = vadd.f32 %v1898, %v2221
        %v2223 = vpop.f32.mrb[0].mxu0
        %2224 = vmatprep.mubr.f32.mxu0 0.0
        %2225 = vmatmul.mubr.f32.gmra.mrb[0].mxu0 %v2018
        %v2226 = vpop.f32.mrb[0].mxu0
        %v2227 = vadd.f32 %v1903, %v2226
        %v2228 = vpop.f32.mrb[0].mxu0
        %2229 = vmatprep.mubr.f32.mxu0 0.0
        %2230 = vmatmul.mubr.f32.gmra.mrb[0].mxu0 %v2021
        %v2231 = vpop.f32.mrb[0].mxu0
        %v2232 = vadd.f32 %v1908, %v2231
        %v2233 = vpop.f32.mrb[0].mxu0
        %2234 = vmatprep.mubr.f32.mxu0 0.0
        %2235 = vmatmul.mubr.f32.gmra.mrb[0].mxu0 %v2024
        %v2236 = vpop.f32.mrb[0].mxu0
        %v2237 = vadd.f32 %v1913, %v2236
        %v2238 = vpop.f32.mrb[0].mxu0
        %2239 = vmatprep.mubr.f32.mxu0 0.0
        %2240 = vmatmul.mubr.f32.gmra.mrb[0].mxu0 %v2027
        %v2241 = vpop.f32.mrb[0].mxu0
        %v2242 = vadd.f32 %v1918, %v2241
        %v2243 = vpop.f32.mrb[0].mxu0
        %2244 = vmatprep.mubr.f32.mxu0 0.0
        %2245 = vmatmul.mubr.f32.gmra.mrb[0].mxu0 %v2030
        %v2246 = vpop.f32.mrb[0].mxu0
        %v2247 = vadd.f32 %v1923, %v2246
        %v2248 = vpop.f32.mrb[0].mxu0
        %2249 = vmatprep.mubr.f32.mxu0 0.0
        %2250 = vmatmul.mubr.f32.gmra.mrb[0].mxu0 %v2033
        %v2251 = vpop.f32.mrb[0].mxu0
        %v2252 = vadd.f32 %v1928, %v2251
        %v2253 = vpop.f32.mrb[0].mxu0
        %2254 = vmatprep.mubr.f32.mxu0 0.0
        %2255 = vmatmul.mubr.f32.gmra.mrb[0].mxu0 %v2036
        %v2256 = vpop.f32.mrb[0].mxu0
        %v2257 = vadd.f32 %v1933, %v2256
        %v2258 = vpop.f32.mrb[0].mxu0
        %2259 = vmatprep.mubr.f32.mxu0 0.0
        %2260 = vmatmul.mubr.f32.gmra.mrb[0].mxu0 %v2039
        %v2261 = vpop.f32.mrb[0].mxu0
        %v2262 = vadd.f32 %v1938, %v2261
        %v2263 = vpop.f32.mrb[0].mxu0
        %2264 = vmatprep.mubr.f32.mxu0 0.0
        %2265 = vmatmul.mubr.f32.gmra.mrb[0].mxu0 %v2042
        %v2266 = vpop.f32.mrb[0].mxu0
        %v2267 = vadd.f32 %v1943, %v2266
        %v2268 = vpop.f32.mrb[0].mxu0
        %2269 = vmatprep.mubr.f32.mxu0 0.0
        %2270 = vmatmul.mubr.f32.gmra.mrb[0].mxu0 %v2045
        %v2271 = vpop.f32.mrb[0].mxu0
        %v2272 = vadd.f32 %v1948, %v2271
        %v2273 = vpop.f32.mrb[0].mxu0
        %2274 = vdwg.mxu0
        %s2275 = scalar_lea.vmem [#allocation2], 48
        %v2276 = vld [vmem:[%s2275] sm:$0xff]
        %v2277 = vld [vmem:[%s2275 + $0x8] sm:$0xff]
        %v2278 = vld [vmem:[%s2275 + $0x18] sm:$0xff]
        %v2279 = vld [vmem:[%s2275 + $0x20] sm:$0xff]
        %v2280 = vld [vmem:[%s2275 + $0x30] sm:$0xff]
        %v2281 = vld [vmem:[%s2275 + $0x38] sm:$0xff]
        %v2282 = vld [vmem:[%s2275 + $0x48] sm:$0xff]
        %v2283 = vld [vmem:[%s2275 + $0x50] sm:$0xff]
        %v2284 = vld [vmem:[%s2275 + $0x60] sm:$0xff]
        %v2285 = vld [vmem:[%s2275 + $0x68] sm:$0xff]
        %v2286 = vld [vmem:[%s2275 + $0x78] sm:$0xff]
        %v2287 = vld [vmem:[%s2275 + $0x80] sm:$0xff]
        %v2288 = vld [vmem:[%s2275 + $0x90] sm:$0xff]
        %v2289 = vld [vmem:[%s2275 + $0x98] sm:$0xff]
        %v2290 = vld [vmem:[%s2275 + $0xa8] sm:$0xff]
        %v2291 = vld [vmem:[%s2275 + $0xb0] sm:$0xff]
        %v2292 = vld [vmem:[%s2275 + $0xc0] sm:$0xff]
        %v2293 = vld [vmem:[%s2275 + $0xc8] sm:$0xff]
        %v2294 = vld [vmem:[%s2275 + $0xd8] sm:$0xff]
        %v2295 = vld [vmem:[%s2275 + $0xe0] sm:$0xff]
        %v2296 = vld [vmem:[%s2275 + $0xf0] sm:$0xff]
        %v2297 = vld [vmem:[%s2275 + $0xf8] sm:$0xff]
        %v2298 = vld [vmem:[%s2275 + $0x108] sm:$0xff]
        %v2299 = vld [vmem:[%s2275 + $0x110] sm:$0xff]
        %v2300 = vld [vmem:[%s2275 + $0x120] sm:$0xff]
        %v2301 = vld [vmem:[%s2275 + $0x128] sm:$0xff]
        %v2302 = vld [vmem:[%s2275 + $0x138] sm:$0xff]
        %v2303 = vld [vmem:[%s2275 + $0x140] sm:$0xff]
        %v2304 = vld [vmem:[%s2275 + $0x150] sm:$0xff]
        %v2305 = vld [vmem:[%s2275 + $0x158] sm:$0xff]
        %v2306 = vld [vmem:[%s2275 + $0x168] sm:$0xff]
        %v2307 = vld [vmem:[%s2275 + $0x170] sm:$0xff]
        %v2308 = vld [vmem:[%s2275 + $0x1] sm:$0xff]
        %v2309 = vld [vmem:[%s2275 + $0x9] sm:$0xff]
        %v2310 = vld [vmem:[%s2275 + $0x19] sm:$0xff]
        %v2311 = vld [vmem:[%s2275 + $0x21] sm:$0xff]
        %v2312 = vld [vmem:[%s2275 + $0x31] sm:$0xff]
        %v2313 = vld [vmem:[%s2275 + $0x39] sm:$0xff]
        %v2314 = vld [vmem:[%s2275 + $0x49] sm:$0xff]
        %v2315 = vld [vmem:[%s2275 + $0x51] sm:$0xff]
        %v2316 = vld [vmem:[%s2275 + $0x61] sm:$0xff]
        %v2317 = vld [vmem:[%s2275 + $0x69] sm:$0xff]
        %v2318 = vld [vmem:[%s2275 + $0x79] sm:$0xff]
        %v2319 = vld [vmem:[%s2275 + $0x81] sm:$0xff]
        %v2320 = vld [vmem:[%s2275 + $0x91] sm:$0xff]
        %v2321 = vld [vmem:[%s2275 + $0x99] sm:$0xff]
        %v2322 = vld [vmem:[%s2275 + $0xa9] sm:$0xff]
        %v2323 = vld [vmem:[%s2275 + $0xb1] sm:$0xff]
        %v2324 = vld [vmem:[%s2275 + $0xc1] sm:$0xff]
        %v2325 = vld [vmem:[%s2275 + $0xc9] sm:$0xff]
        %v2326 = vld [vmem:[%s2275 + $0xd9] sm:$0xff]
        %v2327 = vld [vmem:[%s2275 + $0xe1] sm:$0xff]
        %v2328 = vld [vmem:[%s2275 + $0xf1] sm:$0xff]
        %v2329 = vld [vmem:[%s2275 + $0xf9] sm:$0xff]
        %v2330 = vld [vmem:[%s2275 + $0x109] sm:$0xff]
        %v2331 = vld [vmem:[%s2275 + $0x111] sm:$0xff]
        %v2332 = vld [vmem:[%s2275 + $0x121] sm:$0xff]
        %v2333 = vld [vmem:[%s2275 + $0x129] sm:$0xff]
        %v2334 = vld [vmem:[%s2275 + $0x139] sm:$0xff]
        %v2335 = vld [vmem:[%s2275 + $0x141] sm:$0xff]
        %v2336 = vld [vmem:[%s2275 + $0x151] sm:$0xff]
        %v2337 = vld [vmem:[%s2275 + $0x159] sm:$0xff]
        %v2338 = vld [vmem:[%s2275 + $0x169] sm:$0xff]
        %v2339 = vld [vmem:[%s2275 + $0x171] sm:$0xff]
        %v2340 = vld [vmem:[%s2275 + $0x2] sm:$0xff]
        %v2341 = vld [vmem:[%s2275 + $0xa] sm:$0xff]
        %v2342 = vld [vmem:[%s2275 + $0x1a] sm:$0xff]
        %v2343 = vld [vmem:[%s2275 + $0x22] sm:$0xff]
        %v2344 = vld [vmem:[%s2275 + $0x32] sm:$0xff]
        %v2345 = vld [vmem:[%s2275 + $0x3a] sm:$0xff]
        %v2346 = vld [vmem:[%s2275 + $0x4a] sm:$0xff]
        %v2347 = vld [vmem:[%s2275 + $0x52] sm:$0xff]
        %v2348 = vld [vmem:[%s2275 + $0x62] sm:$0xff]
        %v2349 = vld [vmem:[%s2275 + $0x6a] sm:$0xff]
        %v2350 = vld [vmem:[%s2275 + $0x7a] sm:$0xff]
        %v2351 = vld [vmem:[%s2275 + $0x82] sm:$0xff]
        %v2352 = vld [vmem:[%s2275 + $0x92] sm:$0xff]
        %v2353 = vld [vmem:[%s2275 + $0x9a] sm:$0xff]
        %v2354 = vld [vmem:[%s2275 + $0xaa] sm:$0xff]
        %v2355 = vld [vmem:[%s2275 + $0xb2] sm:$0xff]
        %v2356 = vld [vmem:[%s2275 + $0xc2] sm:$0xff]
        %v2357 = vld [vmem:[%s2275 + $0xca] sm:$0xff]
        %v2358 = vld [vmem:[%s2275 + $0xda] sm:$0xff]
        %v2359 = vld [vmem:[%s2275 + $0xe2] sm:$0xff]
        %v2360 = vld [vmem:[%s2275 + $0xf2] sm:$0xff]
        %v2361 = vld [vmem:[%s2275 + $0xfa] sm:$0xff]
        %v2362 = vld [vmem:[%s2275 + $0x10a] sm:$0xff]
        %v2363 = vld [vmem:[%s2275 + $0x112] sm:$0xff]
        %v2364 = vld [vmem:[%s2275 + $0x122] sm:$0xff]
        %v2365 = vld [vmem:[%s2275 + $0x12a] sm:$0xff]
        %v2366 = vld [vmem:[%s2275 + $0x13a] sm:$0xff]
        %v2367 = vld [vmem:[%s2275 + $0x142] sm:$0xff]
        %v2368 = vld [vmem:[%s2275 + $0x152] sm:$0xff]
        %v2369 = vld [vmem:[%s2275 + $0x15a] sm:$0xff]
        %v2370 = vld [vmem:[%s2275 + $0x16a] sm:$0xff]
        %v2371 = vld [vmem:[%s2275 + $0x172] sm:$0xff]
        %2404 = vrot.lane.b32.xlu0 %v2308, 4
        %v2405 = vpop.permute.xlu0 %2404
        %2406 = vrot.lane.b32.xlu0 %v2309, 4
        %v2407 = vpop.permute.xlu0 %2406
        %2408 = vrot.lane.b32.xlu0 %v2310, 4
        %v2409 = vpop.permute.xlu0 %2408
        %2410 = vrot.lane.b32.xlu0 %v2311, 4
        %v2411 = vpop.permute.xlu0 %2410
        %2412 = vrot.lane.b32.xlu0 %v2312, 4
        %v2413 = vpop.permute.xlu0 %2412
        %2414 = vrot.lane.b32.xlu0 %v2313, 4
        %v2415 = vpop.permute.xlu0 %2414
        %2416 = vrot.lane.b32.xlu0 %v2314, 4
        %v2417 = vpop.permute.xlu0 %2416
        %2418 = vrot.lane.b32.xlu0 %v2315, 4
        %v2419 = vpop.permute.xlu0 %2418
        %2420 = vrot.lane.b32.xlu0 %v2316, 4
        %v2421 = vpop.permute.xlu0 %2420
        %2422 = vrot.lane.b32.xlu0 %v2317, 4
        %v2423 = vpop.permute.xlu0 %2422
        %2424 = vrot.lane.b32.xlu0 %v2318, 4
        %v2425 = vpop.permute.xlu0 %2424
        %2426 = vrot.lane.b32.xlu0 %v2319, 4
        %v2427 = vpop.permute.xlu0 %2426
        %2428 = vrot.lane.b32.xlu0 %v2320, 4
        %v2429 = vpop.permute.xlu0 %2428
        %2430 = vrot.lane.b32.xlu0 %v2321, 4
        %v2431 = vpop.permute.xlu0 %2430
        %2432 = vrot.lane.b32.xlu0 %v2322, 4
        %v2433 = vpop.permute.xlu0 %2432
        %2434 = vrot.lane.b32.xlu0 %v2323, 4
        %v2435 = vpop.permute.xlu0 %2434
        %2436 = vrot.lane.b32.xlu0 %v2324, 4
        %v2437 = vpop.permute.xlu0 %2436
        %2438 = vrot.lane.b32.xlu0 %v2325, 4
        %v2439 = vpop.permute.xlu0 %2438
        %2440 = vrot.lane.b32.xlu0 %v2326, 4
        %v2441 = vpop.permute.xlu0 %2440
        %2442 = vrot.lane.b32.xlu0 %v2327, 4
        %v2443 = vpop.permute.xlu0 %2442
        %2444 = vrot.lane.b32.xlu0 %v2328, 4
        %v2445 = vpop.permute.xlu0 %2444
        %2446 = vrot.lane.b32.xlu0 %v2329, 4
        %v2447 = vpop.permute.xlu0 %2446
        %2448 = vrot.lane.b32.xlu0 %v2330, 4
        %v2449 = vpop.permute.xlu0 %2448
        %2450 = vrot.lane.b32.xlu0 %v2331, 4
        %v2451 = vpop.permute.xlu0 %2450
        %2452 = vrot.lane.b32.xlu0 %v2332, 4
        %v2453 = vpop.permute.xlu0 %2452
        %2454 = vrot.lane.b32.xlu0 %v2333, 4
        %v2455 = vpop.permute.xlu0 %2454
        %2456 = vrot.lane.b32.xlu0 %v2334, 4
        %v2457 = vpop.permute.xlu0 %2456
        %2458 = vrot.lane.b32.xlu0 %v2335, 4
        %v2459 = vpop.permute.xlu0 %2458
        %2460 = vrot.lane.b32.xlu0 %v2336, 4
        %v2461 = vpop.permute.xlu0 %2460
        %2462 = vrot.lane.b32.xlu0 %v2337, 4
        %v2463 = vpop.permute.xlu0 %2462
        %2464 = vrot.lane.b32.xlu0 %v2338, 4
        %v2465 = vpop.permute.xlu0 %2464
        %2466 = vrot.lane.b32.xlu0 %v2339, 4
        %v2467 = vpop.permute.xlu0 %2466
        %2532 = vrot.lane.b32.xlu0 %v2340, 8
        %v2533 = vpop.permute.xlu0 %2532
        %2534 = vrot.lane.b32.xlu0 %v2341, 8
        %v2535 = vpop.permute.xlu0 %2534
        %2536 = vrot.lane.b32.xlu0 %v2342, 8
        %v2537 = vpop.permute.xlu0 %2536
        %2538 = vrot.lane.b32.xlu0 %v2343, 8
        %v2539 = vpop.permute.xlu0 %2538
        %2540 = vrot.lane.b32.xlu0 %v2344, 8
        %v2541 = vpop.permute.xlu0 %2540
        %2542 = vrot.lane.b32.xlu0 %v2345, 8
        %v2543 = vpop.permute.xlu0 %2542
        %2544 = vrot.lane.b32.xlu0 %v2346, 8
        %v2545 = vpop.permute.xlu0 %2544
        %2546 = vrot.lane.b32.xlu0 %v2347, 8
        %v2547 = vpop.permute.xlu0 %2546
        %2548 = vrot.lane.b32.xlu0 %v2348, 8
        %v2549 = vpop.permute.xlu0 %2548
        %2550 = vrot.lane.b32.xlu0 %v2349, 8
        %v2551 = vpop.permute.xlu0 %2550
        %2552 = vrot.lane.b32.xlu0 %v2350, 8
        %v2553 = vpop.permute.xlu0 %2552
        %2554 = vrot.lane.b32.xlu0 %v2351, 8
        %v2555 = vpop.permute.xlu0 %2554
        %2556 = vrot.lane.b32.xlu0 %v2352, 8
        %v2557 = vpop.permute.xlu0 %2556
        %2558 = vrot.lane.b32.xlu0 %v2353, 8
        %v2559 = vpop.permute.xlu0 %2558
        %2560 = vrot.lane.b32.xlu0 %v2354, 8
        %v2561 = vpop.permute.xlu0 %2560
        %2562 = vrot.lane.b32.xlu0 %v2355, 8
        %v2563 = vpop.permute.xlu0 %2562
        %2564 = vrot.lane.b32.xlu0 %v2356, 8
        %v2565 = vpop.permute.xlu0 %2564
        %2566 = vrot.lane.b32.xlu0 %v2357, 8
        %v2567 = vpop.permute.xlu0 %2566
        %2568 = vrot.lane.b32.xlu0 %v2358, 8
        %v2569 = vpop.permute.xlu0 %2568
        %2570 = vrot.lane.b32.xlu0 %v2359, 8
        %v2571 = vpop.permute.xlu0 %2570
        %2572 = vrot.lane.b32.xlu0 %v2360, 8
        %v2573 = vpop.permute.xlu0 %2572
        %2574 = vrot.lane.b32.xlu0 %v2361, 8
        %v2575 = vpop.permute.xlu0 %2574
        %2576 = vrot.lane.b32.xlu0 %v2362, 8
        %v2577 = vpop.permute.xlu0 %2576
        %2578 = vrot.lane.b32.xlu0 %v2363, 8
        %v2579 = vpop.permute.xlu0 %2578
        %2580 = vrot.lane.b32.xlu0 %v2364, 8
        %v2581 = vpop.permute.xlu0 %2580
        %2582 = vrot.lane.b32.xlu0 %v2365, 8
        %v2583 = vpop.permute.xlu0 %2582
        %2584 = vrot.lane.b32.xlu0 %v2366, 8
        %v2585 = vpop.permute.xlu0 %2584
        %2586 = vrot.lane.b32.xlu0 %v2367, 8
        %v2587 = vpop.permute.xlu0 %2586
        %2588 = vrot.lane.b32.xlu0 %v2368, 8
        %v2589 = vpop.permute.xlu0 %2588
        %2590 = vrot.lane.b32.xlu0 %v2369, 8
        %v2591 = vpop.permute.xlu0 %2590
        %2592 = vrot.lane.b32.xlu0 %v2370, 8
        %v2593 = vpop.permute.xlu0 %2592
        %2594 = vrot.lane.b32.xlu0 %v2371, 8
        %v2595 = vpop.permute.xlu0 %2594
        %v2628 = vsel %vm351, %v2276, %v2405
        %v2629 = vsel %vm351, %v2277, %v2407
        %v2630 = vsel %vm351, %v2278, %v2409
        %v2631 = vsel %vm351, %v2279, %v2411
        %v2632 = vsel %vm351, %v2280, %v2413
        %v2633 = vsel %vm351, %v2281, %v2415
        %v2634 = vsel %vm351, %v2282, %v2417
        %v2635 = vsel %vm351, %v2283, %v2419
        %v2636 = vsel %vm351, %v2284, %v2421
        %v2637 = vsel %vm351, %v2285, %v2423
        %v2638 = vsel %vm351, %v2286, %v2425
        %v2639 = vsel %vm351, %v2287, %v2427
        %v2640 = vsel %vm351, %v2288, %v2429
        %v2641 = vsel %vm351, %v2289, %v2431
        %v2642 = vsel %vm351, %v2290, %v2433
        %v2643 = vsel %vm351, %v2291, %v2435
        %v2644 = vsel %vm351, %v2292, %v2437
        %v2645 = vsel %vm351, %v2293, %v2439
        %v2646 = vsel %vm351, %v2294, %v2441
        %v2647 = vsel %vm351, %v2295, %v2443
        %v2648 = vsel %vm351, %v2296, %v2445
        %v2649 = vsel %vm351, %v2297, %v2447
        %v2650 = vsel %vm351, %v2298, %v2449
        %v2651 = vsel %vm351, %v2299, %v2451
        %v2652 = vsel %vm351, %v2300, %v2453
        %v2653 = vsel %vm351, %v2301, %v2455
        %v2654 = vsel %vm351, %v2302, %v2457
        %v2655 = vsel %vm351, %v2303, %v2459
        %v2656 = vsel %vm351, %v2304, %v2461
        %v2657 = vsel %vm351, %v2305, %v2463
        %v2658 = vsel %vm351, %v2306, %v2465
        %v2659 = vsel %vm351, %v2307, %v2467
        %v2660 = vsel %vm1172, %v2628, %v2533
        %v2661 = vsel %vm1172, %v2629, %v2535
        %v2662 = vsel %vm1172, %v2630, %v2537
        %v2663 = vsel %vm1172, %v2631, %v2539
        %v2664 = vsel %vm1172, %v2632, %v2541
        %v2665 = vsel %vm1172, %v2633, %v2543
        %v2666 = vsel %vm1172, %v2634, %v2545
        %v2667 = vsel %vm1172, %v2635, %v2547
        %v2668 = vsel %vm1172, %v2636, %v2549
        %v2669 = vsel %vm1172, %v2637, %v2551
        %v2670 = vsel %vm1172, %v2638, %v2553
        %v2671 = vsel %vm1172, %v2639, %v2555
        %v2672 = vsel %vm1172, %v2640, %v2557
        %v2673 = vsel %vm1172, %v2641, %v2559
        %v2674 = vsel %vm1172, %v2642, %v2561
        %v2675 = vsel %vm1172, %v2643, %v2563
        %v2676 = vsel %vm1172, %v2644, %v2565
        %v2677 = vsel %vm1172, %v2645, %v2567
        %v2678 = vsel %vm1172, %v2646, %v2569
        %v2679 = vsel %vm1172, %v2647, %v2571
        %v2680 = vsel %vm1172, %v2648, %v2573
        %v2681 = vsel %vm1172, %v2649, %v2575
        %v2682 = vsel %vm1172, %v2650, %v2577
        %v2683 = vsel %vm1172, %v2651, %v2579
        %v2684 = vsel %vm1172, %v2652, %v2581
        %v2685 = vsel %vm1172, %v2653, %v2583
        %v2686 = vsel %vm1172, %v2654, %v2585
        %v2687 = vsel %vm1172, %v2655, %v2587
        %v2688 = vsel %vm1172, %v2656, %v2589
        %v2689 = vsel %vm1172, %v2657, %v2591
        %v2690 = vsel %vm1172, %v2658, %v2593
        %v2691 = vsel %vm1172, %v2659, %v2595
        %s2692 = scalar_lea.vmem %s3, 32
        %v2693 = vld [vmem:[%s2692] sm:$0xff]
        %v2694 = vld [vmem:[%s2692 + $0x8] sm:$0xf]
        %v2696 = vsel %vm1626, %v2660, 0
        %v2699 = vsel %vm1626, %v2661, 0
        %v2702 = vsel %vm1626, %v2662, 0
        %v2705 = vsel %vm1626, %v2663, 0
        %v2708 = vsel %vm1626, %v2664, 0
        %v2711 = vsel %vm1626, %v2665, 0
        %v2714 = vsel %vm1626, %v2666, 0
        %v2717 = vsel %vm1626, %v2667, 0
        %v2720 = vsel %vm1626, %v2668, 0
        %v2723 = vsel %vm1626, %v2669, 0
        %v2726 = vsel %vm1626, %v2670, 0
        %v2729 = vsel %vm1626, %v2671, 0
        %v2732 = vsel %vm1626, %v2672, 0
        %v2735 = vsel %vm1626, %v2673, 0
        %v2738 = vsel %vm1626, %v2674, 0
        %v2741 = vsel %vm1626, %v2675, 0
        %v2744 = vsel %vm1626, %v2676, 0
        %v2747 = vsel %vm1626, %v2677, 0
        %v2750 = vsel %vm1626, %v2678, 0
        %v2753 = vsel %vm1626, %v2679, 0
        %v2756 = vsel %vm1626, %v2680, 0
        %v2759 = vsel %vm1626, %v2681, 0
        %v2762 = vsel %vm1626, %v2682, 0
        %v2765 = vsel %vm1626, %v2683, 0
        %v2768 = vsel %vm1626, %v2684, 0
        %v2771 = vsel %vm1626, %v2685, 0
        %v2774 = vsel %vm1626, %v2686, 0
        %v2777 = vsel %vm1626, %v2687, 0
        %v2780 = vsel %vm1626, %v2688, 0
        %v2783 = vsel %vm1626, %v2689, 0
        %v2786 = vsel %vm1626, %v2690, 0
        %v2789 = vsel %vm1626, %v2691, 0
        %v2792 = vsel %vm448, %v2694, 0
        %2794 = vmatprep.subr.mxu0 0.0
        %2795 = vmatpush1.msra.mxu0 %v2693
        %2796 = vmatprep.subr.mxu0 0.0
        %2797 = vmatpush1.msra.mxu0 %v2792
        %2798 = vmatprep.subr.mxu0 0.0
        %2799 = vmatpush1.msra.mxu0 0.0
        %2800 = vmatprep.subr.mxu0 0.0
        %2801 = vmatpush1.msra.mxu0 0.0
        %2802 = vmatprep.subr.mxu0 0.0
        %2803 = vmatpush1.msra.mxu0 0.0
        %2804 = vmatprep.subr.mxu0 0.0
        %2805 = vmatpush1.msra.mxu0 0.0
        %2806 = vmatprep.subr.mxu0 0.0
        %2807 = vmatpush1.msra.mxu0 0.0
        %2808 = vmatprep.subr.mxu0 0.0
        %2809 = vmatpush1.msra.mxu0 0.0
        %2810 = vmatprep.subr.mxu0 0.0
        %2811 = vmatpush1.msra.mxu0 0.0
        %2812 = vmatprep.subr.mxu0 0.0
        %2813 = vmatpush1.msra.mxu0 0.0
        %2814 = vmatprep.subr.mxu0 0.0
        %2815 = vmatpush1.msra.mxu0 0.0
        %2816 = vmatprep.subr.mxu0 0.0
        %2817 = vmatpush1.msra.mxu0 0.0
        %2818 = vmatprep.subr.mxu0 0.0
        %2819 = vmatpush1.msra.mxu0 0.0
        %2820 = vmatprep.subr.mxu0 0.0
        %2821 = vmatpush1.msra.mxu0 0.0
        %2822 = vmatprep.subr.mxu0 0.0
        %2823 = vmatpush1.msra.mxu0 0.0
        %2824 = vmatprep.subr.mxu0 0.0
        %2825 = vmatpush1.msra.mxu0 0.0
        %2826 = vmatprep.subr.mxu0 0.0
        %2827 = vmatpush1.msra.mxu0 0.0
        %2828 = vmatprep.subr.mxu0 0.0
        %2829 = vmatpush1.msra.mxu0 0.0
        %2830 = vmatprep.subr.mxu0 0.0
        %2831 = vmatpush1.msra.mxu0 0.0
        %2832 = vmatprep.subr.mxu0 0.0
        %2833 = vmatpush1.msra.mxu0 0.0
        %2834 = vmatprep.subr.mxu0 0.0
        %2835 = vmatpush1.msra.mxu0 0.0
        %2836 = vmatprep.subr.mxu0 0.0
        %2837 = vmatpush1.msra.mxu0 0.0
        %2838 = vmatprep.subr.mxu0 0.0
        %2839 = vmatpush1.msra.mxu0 0.0
        %2840 = vmatprep.subr.mxu0 0.0
        %2841 = vmatpush1.msra.mxu0 0.0
        %2842 = vmatprep.subr.mxu0 0.0
        %2843 = vmatpush1.msra.mxu0 0.0
        %2844 = vmatprep.subr.mxu0 0.0
        %2845 = vmatpush1.msra.mxu0 0.0
        %2846 = vmatprep.subr.mxu0 0.0
        %2847 = vmatpush1.msra.mxu0 0.0
        %2848 = vmatprep.subr.mxu0 0.0
        %2849 = vmatpush1.msra.mxu0 0.0
        %2850 = vmatprep.subr.mxu0 0.0
        %2851 = vmatpush1.msra.mxu0 0.0
        %2852 = vmatprep.subr.mxu0 0.0
        %2853 = vmatpush1.msra.mxu0 0.0
        %2854 = vmatprep.subr.mxu0 0.0
        %2855 = vmatpush1.msra.mxu0 0.0
        %2856 = vmatprep.subr.mxu0 0.0
        %2857 = vmatpush1.msra.mxu0 0.0
        %2858 = vmatprep.mubr.f32.mxu0 0.0
        %2859 = vmatmul.mubr.f32.gmra.mrb[0].mxu0 %v2696
        %v2860 = vpop.f32.mrb[0].mxu0
        %v2861 = vadd.f32 0.0, %v2860
        %v2862 = vpop.f32.mrb[0].mxu0
        %2863 = vmatprep.mubr.f32.mxu0 0.0
        %2864 = vmatmul.mubr.f32.gmra.mrb[0].mxu0 %v2699
        %v2865 = vpop.f32.mrb[0].mxu0
        %v2866 = vadd.f32 0.0, %v2865
        %v2867 = vpop.f32.mrb[0].mxu0
        %2868 = vmatprep.mubr.f32.mxu0 0.0
        %2869 = vmatmul.mubr.f32.gmra.mrb[0].mxu0 %v2702
        %v2870 = vpop.f32.mrb[0].mxu0
        %v2871 = vadd.f32 0.0, %v2870
        %v2872 = vpop.f32.mrb[0].mxu0
        %2873 = vmatprep.mubr.f32.mxu0 0.0
        %2874 = vmatmul.mubr.f32.gmra.mrb[0].mxu0 %v2705
        %v2875 = vpop.f32.mrb[0].mxu0
        %v2876 = vadd.f32 0.0, %v2875
        %v2877 = vpop.f32.mrb[0].mxu0
        %2878 = vmatprep.mubr.f32.mxu0 0.0
        %2879 = vmatmul.mubr.f32.gmra.mrb[0].mxu0 %v2708
        %v2880 = vpop.f32.mrb[0].mxu0
        %v2881 = vadd.f32 0.0, %v2880
        %v2882 = vpop.f32.mrb[0].mxu0
        %2883 = vmatprep.mubr.f32.mxu0 0.0
        %2884 = vmatmul.mubr.f32.gmra.mrb[0].mxu0 %v2711
        %v2885 = vpop.f32.mrb[0].mxu0
        %v2886 = vadd.f32 0.0, %v2885
        %v2887 = vpop.f32.mrb[0].mxu0
        %2888 = vmatprep.mubr.f32.mxu0 0.0
        %2889 = vmatmul.mubr.f32.gmra.mrb[0].mxu0 %v2714
        %v2890 = vpop.f32.mrb[0].mxu0
        %v2891 = vadd.f32 0.0, %v2890
        %v2892 = vpop.f32.mrb[0].mxu0
        %2893 = vmatprep.mubr.f32.mxu0 0.0
        %2894 = vmatmul.mubr.f32.gmra.mrb[0].mxu0 %v2717
        %v2895 = vpop.f32.mrb[0].mxu0
        %v2896 = vadd.f32 0.0, %v2895
        %v2897 = vpop.f32.mrb[0].mxu0
        %2898 = vmatprep.mubr.f32.mxu0 0.0
        %2899 = vmatmul.mubr.f32.gmra.mrb[0].mxu0 %v2720
        %v2900 = vpop.f32.mrb[0].mxu0
        %v2901 = vadd.f32 0.0, %v2900
        %v2902 = vpop.f32.mrb[0].mxu0
        %2903 = vmatprep.mubr.f32.mxu0 0.0
        %2904 = vmatmul.mubr.f32.gmra.mrb[0].mxu0 %v2723
        %v2905 = vpop.f32.mrb[0].mxu0
        %v2906 = vadd.f32 0.0, %v2905
        %v2907 = vpop.f32.mrb[0].mxu0
        %2908 = vmatprep.mubr.f32.mxu0 0.0
        %2909 = vmatmul.mubr.f32.gmra.mrb[0].mxu0 %v2726
        %v2910 = vpop.f32.mrb[0].mxu0
        %v2911 = vadd.f32 0.0, %v2910
        %v2912 = vpop.f32.mrb[0].mxu0
        %2913 = vmatprep.mubr.f32.mxu0 0.0
        %2914 = vmatmul.mubr.f32.gmra.mrb[0].mxu0 %v2729
        %v2915 = vpop.f32.mrb[0].mxu0
        %v2916 = vadd.f32 0.0, %v2915
        %v2917 = vpop.f32.mrb[0].mxu0
        %2918 = vmatprep.mubr.f32.mxu0 0.0
        %2919 = vmatmul.mubr.f32.gmra.mrb[0].mxu0 %v2732
        %v2920 = vpop.f32.mrb[0].mxu0
        %v2921 = vadd.f32 0.0, %v2920
        %v2922 = vpop.f32.mrb[0].mxu0
        %2923 = vmatprep.mubr.f32.mxu0 0.0
        %2924 = vmatmul.mubr.f32.gmra.mrb[0].mxu0 %v2735
        %v2925 = vpop.f32.mrb[0].mxu0
        %v2926 = vadd.f32 0.0, %v2925
        %v2927 = vpop.f32.mrb[0].mxu0
        %2928 = vmatprep.mubr.f32.mxu0 0.0
        %2929 = vmatmul.mubr.f32.gmra.mrb[0].mxu0 %v2738
        %v2930 = vpop.f32.mrb[0].mxu0
        %v2931 = vadd.f32 0.0, %v2930
        %v2932 = vpop.f32.mrb[0].mxu0
        %2933 = vmatprep.mubr.f32.mxu0 0.0
        %2934 = vmatmul.mubr.f32.gmra.mrb[0].mxu0 %v2741
        %v2935 = vpop.f32.mrb[0].mxu0
        %v2936 = vadd.f32 0.0, %v2935
        %v2937 = vpop.f32.mrb[0].mxu0
        %2938 = vmatprep.mubr.f32.mxu0 0.0
        %2939 = vmatmul.mubr.f32.gmra.mrb[0].mxu0 %v2744
        %v2940 = vpop.f32.mrb[0].mxu0
        %v2941 = vadd.f32 0.0, %v2940
        %v2942 = vpop.f32.mrb[0].mxu0
        %2943 = vmatprep.mubr.f32.mxu0 0.0
        %2944 = vmatmul.mubr.f32.gmra.mrb[0].mxu0 %v2747
        %v2945 = vpop.f32.mrb[0].mxu0
        %v2946 = vadd.f32 0.0, %v2945
        %v2947 = vpop.f32.mrb[0].mxu0
        %2948 = vmatprep.mubr.f32.mxu0 0.0
        %2949 = vmatmul.mubr.f32.gmra.mrb[0].mxu0 %v2750
        %v2950 = vpop.f32.mrb[0].mxu0
        %v2951 = vadd.f32 0.0, %v2950
        %v2952 = vpop.f32.mrb[0].mxu0
        %2953 = vmatprep.mubr.f32.mxu0 0.0
        %2954 = vmatmul.mubr.f32.gmra.mrb[0].mxu0 %v2753
        %v2955 = vpop.f32.mrb[0].mxu0
        %v2956 = vadd.f32 0.0, %v2955
        %v2957 = vpop.f32.mrb[0].mxu0
        %2958 = vmatprep.mubr.f32.mxu0 0.0
        %2959 = vmatmul.mubr.f32.gmra.mrb[0].mxu0 %v2756
        %v2960 = vpop.f32.mrb[0].mxu0
        %v2961 = vadd.f32 0.0, %v2960
        %v2962 = vpop.f32.mrb[0].mxu0
        %2963 = vmatprep.mubr.f32.mxu0 0.0
        %2964 = vmatmul.mubr.f32.gmra.mrb[0].mxu0 %v2759
        %v2965 = vpop.f32.mrb[0].mxu0
        %v2966 = vadd.f32 0.0, %v2965
        %v2967 = vpop.f32.mrb[0].mxu0
        %2968 = vmatprep.mubr.f32.mxu0 0.0
        %2969 = vmatmul.mubr.f32.gmra.mrb[0].mxu0 %v2762
        %v2970 = vpop.f32.mrb[0].mxu0
        %v2971 = vadd.f32 0.0, %v2970
        %v2972 = vpop.f32.mrb[0].mxu0
        %2973 = vmatprep.mubr.f32.mxu0 0.0
        %2974 = vmatmul.mubr.f32.gmra.mrb[0].mxu0 %v2765
        %v2975 = vpop.f32.mrb[0].mxu0
        %v2976 = vadd.f32 0.0, %v2975
        %v2977 = vpop.f32.mrb[0].mxu0
        %2978 = vmatprep.mubr.f32.mxu0 0.0
        %2979 = vmatmul.mubr.f32.gmra.mrb[0].mxu0 %v2768
        %v2980 = vpop.f32.mrb[0].mxu0
        %v2981 = vadd.f32 0.0, %v2980
        %v2982 = vpop.f32.mrb[0].mxu0
        %2983 = vmatprep.mubr.f32.mxu0 0.0
        %2984 = vmatmul.mubr.f32.gmra.mrb[0].mxu0 %v2771
        %v2985 = vpop.f32.mrb[0].mxu0
        %v2986 = vadd.f32 0.0, %v2985
        %v2987 = vpop.f32.mrb[0].mxu0
        %2988 = vmatprep.mubr.f32.mxu0 0.0
        %2989 = vmatmul.mubr.f32.gmra.mrb[0].mxu0 %v2774
        %v2990 = vpop.f32.mrb[0].mxu0
        %v2991 = vadd.f32 0.0, %v2990
        %v2992 = vpop.f32.mrb[0].mxu0
        %2993 = vmatprep.mubr.f32.mxu0 0.0
        %2994 = vmatmul.mubr.f32.gmra.mrb[0].mxu0 %v2777
        %v2995 = vpop.f32.mrb[0].mxu0
        %v2996 = vadd.f32 0.0, %v2995
        %v2997 = vpop.f32.mrb[0].mxu0
        %2998 = vmatprep.mubr.f32.mxu0 0.0
        %2999 = vmatmul.mubr.f32.gmra.mrb[0].mxu0 %v2780
        %v3000 = vpop.f32.mrb[0].mxu0
        %v3001 = vadd.f32 0.0, %v3000
        %v3002 = vpop.f32.mrb[0].mxu0
        %3003 = vmatprep.mubr.f32.mxu0 0.0
        %3004 = vmatmul.mubr.f32.gmra.mrb[0].mxu0 %v2783
        %v3005 = vpop.f32.mrb[0].mxu0
        %v3006 = vadd.f32 0.0, %v3005
        %v3007 = vpop.f32.mrb[0].mxu0
        %3008 = vmatprep.mubr.f32.mxu0 0.0
        %3009 = vmatmul.mubr.f32.gmra.mrb[0].mxu0 %v2786
        %v3010 = vpop.f32.mrb[0].mxu0
        %v3011 = vadd.f32 0.0, %v3010
        %v3012 = vpop.f32.mrb[0].mxu0
        %3013 = vmatprep.mubr.f32.mxu0 0.0
        %3014 = vmatmul.mubr.f32.gmra.mrb[0].mxu0 %v2789
        %v3015 = vpop.f32.mrb[0].mxu0
        %v3016 = vadd.f32 0.0, %v3015
        %v3017 = vpop.f32.mrb[0].mxu0
        %3018 = vdwg.mxu0
        %v3019 = vadd.f32 %v2117, %v2861
        %v3020 = vadd.f32 %v2122, %v2866
        %v3021 = vadd.f32 %v2127, %v2871
        %v3022 = vadd.f32 %v2132, %v2876
        %v3023 = vadd.f32 %v2137, %v2881
        %v3024 = vadd.f32 %v2142, %v2886
        %v3025 = vadd.f32 %v2147, %v2891
        %v3026 = vadd.f32 %v2152, %v2896
        %v3027 = vadd.f32 %v2157, %v2901
        %v3028 = vadd.f32 %v2162, %v2906
        %v3029 = vadd.f32 %v2167, %v2911
        %v3030 = vadd.f32 %v2172, %v2916
        %v3031 = vadd.f32 %v2177, %v2921
        %v3032 = vadd.f32 %v2182, %v2926
        %v3033 = vadd.f32 %v2187, %v2931
        %v3034 = vadd.f32 %v2192, %v2936
        %v3035 = vadd.f32 %v2197, %v2941
        %v3036 = vadd.f32 %v2202, %v2946
        %v3037 = vadd.f32 %v2207, %v2951
        %v3038 = vadd.f32 %v2212, %v2956
        %v3039 = vadd.f32 %v2217, %v2961
        %v3040 = vadd.f32 %v2222, %v2966
        %v3041 = vadd.f32 %v2227, %v2971
        %v3042 = vadd.f32 %v2232, %v2976
        %v3043 = vadd.f32 %v2237, %v2981
        %v3044 = vadd.f32 %v2242, %v2986
        %v3045 = vadd.f32 %v2247, %v2991
        %v3046 = vadd.f32 %v2252, %v2996
        %v3047 = vadd.f32 %v2257, %v3001
        %v3048 = vadd.f32 %v2262, %v3006
        %v3049 = vadd.f32 %v2267, %v3011
        %v3050 = vadd.f32 %v2272, %v3016
        %v3052 = vlaneseq
        %v3053 = vshrl.u32 %v3052, 7
        %v3054 = vsub.s32 0, %v3053
        %v3055 = vrot.slane %v787, %v3054
        %v3057 = vadd.f32 %v3019, %v3055
        %v3058 = vadd.f32 %v3020, %v3055
        %v3059 = vadd.f32 %v3021, %v3055
        %v3060 = vadd.f32 %v3022, %v3055
        %v3061 = vadd.f32 %v3023, %v3055
        %v3062 = vadd.f32 %v3024, %v3055
        %v3063 = vadd.f32 %v3025, %v3055
        %v3064 = vadd.f32 %v3026, %v3055
        %v3065 = vadd.f32 %v3027, %v3055
        %v3066 = vadd.f32 %v3028, %v3055
        %v3067 = vadd.f32 %v3029, %v3055
        %v3068 = vadd.f32 %v3030, %v3055
        %v3069 = vadd.f32 %v3031, %v3055
        %v3070 = vadd.f32 %v3032, %v3055
        %v3071 = vadd.f32 %v3033, %v3055
        %v3072 = vadd.f32 %v3034, %v3055
        %v3073 = vadd.f32 %v3035, %v3055
        %v3074 = vadd.f32 %v3036, %v3055
        %v3075 = vadd.f32 %v3037, %v3055
        %v3076 = vadd.f32 %v3038, %v3055
        %v3077 = vadd.f32 %v3039, %v3055
        %v3078 = vadd.f32 %v3040, %v3055
        %v3079 = vadd.f32 %v3041, %v3055
        %v3080 = vadd.f32 %v3042, %v3055
        %v3081 = vadd.f32 %v3043, %v3055
        %v3082 = vadd.f32 %v3044, %v3055
        %v3083 = vadd.f32 %v3045, %v3055
        %v3084 = vadd.f32 %v3046, %v3055
        %v3085 = vadd.f32 %v3047, %v3055
        %v3086 = vadd.f32 %v3048, %v3055
        %v3087 = vadd.f32 %v3049, %v3055
        %v3088 = vadd.f32 %v3050, %v3055
        %v3089 = vmax.f32 %v3057, 0.0
        %v3090 = vmax.f32 %v3058, 0.0
        %v3091 = vmax.f32 %v3059, 0.0
        %v3092 = vmax.f32 %v3060, 0.0
        %v3093 = vmax.f32 %v3061, 0.0
        %v3094 = vmax.f32 %v3062, 0.0
        %v3095 = vmax.f32 %v3063, 0.0
        %v3096 = vmax.f32 %v3064, 0.0
        %v3097 = vmax.f32 %v3065, 0.0
        %v3098 = vmax.f32 %v3066, 0.0
        %v3099 = vmax.f32 %v3067, 0.0
        %v3100 = vmax.f32 %v3068, 0.0
        %v3101 = vmax.f32 %v3069, 0.0
        %v3102 = vmax.f32 %v3070, 0.0
        %v3103 = vmax.f32 %v3071, 0.0
        %v3104 = vmax.f32 %v3072, 0.0
        %v3105 = vmax.f32 %v3073, 0.0
        %v3106 = vmax.f32 %v3074, 0.0
        %v3107 = vmax.f32 %v3075, 0.0
        %v3108 = vmax.f32 %v3076, 0.0
        %v3109 = vmax.f32 %v3077, 0.0
        %v3110 = vmax.f32 %v3078, 0.0
        %v3111 = vmax.f32 %v3079, 0.0
        %v3112 = vmax.f32 %v3080, 0.0
        %v3113 = vmax.f32 %v3081, 0.0
        %v3114 = vmax.f32 %v3082, 0.0
        %v3115 = vmax.f32 %v3083, 0.0
        %v3116 = vmax.f32 %v3084, 0.0
        %v3117 = vmax.f32 %v3085, 0.0
        %v3118 = vmax.f32 %v3086, 0.0
        %v3119 = vmax.f32 %v3087, 0.0
        %v3120 = vmax.f32 %v3088, 0.0
        %3121 = vrot.lane.b32.xlu0 %v311, 4
        %v3122 = vpop.permute.xlu0 %3121
        %3123 = vrot.lane.b32.xlu0 %v312, 4
        %v3124 = vpop.permute.xlu0 %3123
        %3125 = vrot.lane.b32.xlu0 %v313, 4
        %v3126 = vpop.permute.xlu0 %3125
        %3127 = vrot.lane.b32.xlu0 %v314, 4
        %v3128 = vpop.permute.xlu0 %3127
        %3129 = vrot.lane.b32.xlu0 %v315, 4
        %v3130 = vpop.permute.xlu0 %3129
        %3131 = vrot.lane.b32.xlu0 %v316, 4
        %v3132 = vpop.permute.xlu0 %3131
        %3133 = vrot.lane.b32.xlu0 %v317, 4
        %v3134 = vpop.permute.xlu0 %3133
        %3135 = vrot.lane.b32.xlu0 %v318, 4
        %v3136 = vpop.permute.xlu0 %3135
        %3137 = vrot.lane.b32.xlu0 %v319, 4
        %v3138 = vpop.permute.xlu0 %3137
        %3139 = vrot.lane.b32.xlu0 %v320, 4
        %v3140 = vpop.permute.xlu0 %3139
        %3141 = vrot.lane.b32.xlu0 %v321, 4
        %v3142 = vpop.permute.xlu0 %3141
        %3143 = vrot.lane.b32.xlu0 %v322, 4
        %v3144 = vpop.permute.xlu0 %3143
        %3145 = vrot.lane.b32.xlu0 %v323, 4
        %v3146 = vpop.permute.xlu0 %3145
        %3147 = vrot.lane.b32.xlu0 %v324, 4
        %v3148 = vpop.permute.xlu0 %3147
        %3149 = vrot.lane.b32.xlu0 %v325, 4
        %v3150 = vpop.permute.xlu0 %3149
        %3151 = vrot.lane.b32.xlu0 %v326, 4
        %v3152 = vpop.permute.xlu0 %3151
        %3153 = vrot.lane.b32.xlu0 %v327, 4
        %v3154 = vpop.permute.xlu0 %3153
        %3155 = vrot.lane.b32.xlu0 %v328, 4
        %v3156 = vpop.permute.xlu0 %3155
        %3157 = vrot.lane.b32.xlu0 %v329, 4
        %v3158 = vpop.permute.xlu0 %3157
        %3159 = vrot.lane.b32.xlu0 %v330, 4
        %v3160 = vpop.permute.xlu0 %3159
        %3161 = vrot.lane.b32.xlu0 %v331, 4
        %v3162 = vpop.permute.xlu0 %3161
        %3163 = vrot.lane.b32.xlu0 %v332, 4
        %v3164 = vpop.permute.xlu0 %3163
        %3165 = vrot.lane.b32.xlu0 %v333, 4
        %v3166 = vpop.permute.xlu0 %3165
        %3167 = vrot.lane.b32.xlu0 %v334, 4
        %v3168 = vpop.permute.xlu0 %3167
        %3169 = vrot.lane.b32.xlu0 %v335, 4
        %v3170 = vpop.permute.xlu0 %3169
        %3171 = vrot.lane.b32.xlu0 %v336, 4
        %v3172 = vpop.permute.xlu0 %3171
        %3173 = vrot.lane.b32.xlu0 %v337, 4
        %v3174 = vpop.permute.xlu0 %3173
        %3175 = vrot.lane.b32.xlu0 %v338, 4
        %v3176 = vpop.permute.xlu0 %3175
        %3177 = vrot.lane.b32.xlu0 %v339, 4
        %v3178 = vpop.permute.xlu0 %3177
        %3179 = vrot.lane.b32.xlu0 %v340, 4
        %v3180 = vpop.permute.xlu0 %3179
        %3181 = vrot.lane.b32.xlu0 %v341, 4
        %v3182 = vpop.permute.xlu0 %3181
        %3183 = vrot.lane.b32.xlu0 %v342, 4
        %v3184 = vpop.permute.xlu0 %3183
        %v3217 = vsel %vm351, %v3089, %v3122
        %v3218 = vsel %vm351, %v3090, %v3124
        %v3219 = vsel %vm351, %v3091, %v3126
        %v3220 = vsel %vm351, %v3092, %v3128
        %v3221 = vsel %vm351, %v3093, %v3130
        %v3222 = vsel %vm351, %v3094, %v3132
        %v3223 = vsel %vm351, %v3095, %v3134
        %v3224 = vsel %vm351, %v3096, %v3136
        %v3225 = vsel %vm351, %v3097, %v3138
        %v3226 = vsel %vm351, %v3098, %v3140
        %v3227 = vsel %vm351, %v3099, %v3142
        %v3228 = vsel %vm351, %v3100, %v3144
        %v3229 = vsel %vm351, %v3101, %v3146
        %v3230 = vsel %vm351, %v3102, %v3148
        %v3231 = vsel %vm351, %v3103, %v3150
        %v3232 = vsel %vm351, %v3104, %v3152
        %v3233 = vsel %vm351, %v3105, %v3154
        %v3234 = vsel %vm351, %v3106, %v3156
        %v3235 = vsel %vm351, %v3107, %v3158
        %v3236 = vsel %vm351, %v3108, %v3160
        %v3237 = vsel %vm351, %v3109, %v3162
        %v3238 = vsel %vm351, %v3110, %v3164
        %v3239 = vsel %vm351, %v3111, %v3166
        %v3240 = vsel %vm351, %v3112, %v3168
        %v3241 = vsel %vm351, %v3113, %v3170
        %v3242 = vsel %vm351, %v3114, %v3172
        %v3243 = vsel %vm351, %v3115, %v3174
        %v3244 = vsel %vm351, %v3116, %v3176
        %v3245 = vsel %vm351, %v3117, %v3178
        %v3246 = vsel %vm351, %v3118, %v3180
        %v3247 = vsel %vm351, %v3119, %v3182
        %v3248 = vsel %vm351, %v3120, %v3184
        %v3249 = vld [vmem:[%s5] sm:$0xff]
        %v3250 = vld [vmem:[%s6] sm:$0x1]
        %v3252 = vlaneseq
        %v3253 = vshrl.u32 %v3252, 7
        %v3254 = vsub.s32 0, %v3253
        %v3255 = vrot.slane %v3250, %v3254
        %v3258 = vsel %vm1172, %v3217, 0
        %v3261 = vsel %vm1172, %v3218, 0
        %v3264 = vsel %vm1172, %v3219, 0
        %v3267 = vsel %vm1172, %v3220, 0
        %v3270 = vsel %vm1172, %v3221, 0
        %v3273 = vsel %vm1172, %v3222, 0
        %v3276 = vsel %vm1172, %v3223, 0
        %v3279 = vsel %vm1172, %v3224, 0
        %v3282 = vsel %vm1172, %v3225, 0
        %v3285 = vsel %vm1172, %v3226, 0
        %v3288 = vsel %vm1172, %v3227, 0
        %v3291 = vsel %vm1172, %v3228, 0
        %v3294 = vsel %vm1172, %v3229, 0
        %v3297 = vsel %vm1172, %v3230, 0
        %v3300 = vsel %vm1172, %v3231, 0
        %v3303 = vsel %vm1172, %v3232, 0
        %v3306 = vsel %vm1172, %v3233, 0
        %v3309 = vsel %vm1172, %v3234, 0
        %v3312 = vsel %vm1172, %v3235, 0
        %v3315 = vsel %vm1172, %v3236, 0
        %v3318 = vsel %vm1172, %v3237, 0
        %v3321 = vsel %vm1172, %v3238, 0
        %v3324 = vsel %vm1172, %v3239, 0
        %v3327 = vsel %vm1172, %v3240, 0
        %v3330 = vsel %vm1172, %v3241, 0
        %v3333 = vsel %vm1172, %v3242, 0
        %v3336 = vsel %vm1172, %v3243, 0
        %v3339 = vsel %vm1172, %v3244, 0
        %v3342 = vsel %vm1172, %v3245, 0
        %v3345 = vsel %vm1172, %v3246, 0
        %v3348 = vsel %vm1172, %v3247, 0
        %v3351 = vsel %vm1172, %v3248, 0
        %3353 = vmatprep.subr.mxu0 0.0
        %3354 = vmatpush1.msra.mxu0 %v3249
        %3355 = vmatprep.subr.mxu0 0.0
        %3356 = vmatpush1.msra.mxu0 0.0
        %3357 = vmatprep.subr.mxu0 0.0
        %3358 = vmatpush1.msra.mxu0 0.0
        %3359 = vmatprep.subr.mxu0 0.0
        %3360 = vmatpush1.msra.mxu0 0.0
        %3361 = vmatprep.subr.mxu0 0.0
        %3362 = vmatpush1.msra.mxu0 0.0
        %3363 = vmatprep.subr.mxu0 0.0
        %3364 = vmatpush1.msra.mxu0 0.0
        %3365 = vmatprep.subr.mxu0 0.0
        %3366 = vmatpush1.msra.mxu0 0.0
        %3367 = vmatprep.subr.mxu0 0.0
        %3368 = vmatpush1.msra.mxu0 0.0
        %3369 = vmatprep.subr.mxu0 0.0
        %3370 = vmatpush1.msra.mxu0 0.0
        %3371 = vmatprep.subr.mxu0 0.0
        %3372 = vmatpush1.msra.mxu0 0.0
        %3373 = vmatprep.subr.mxu0 0.0
        %3374 = vmatpush1.msra.mxu0 0.0
        %3375 = vmatprep.subr.mxu0 0.0
        %3376 = vmatpush1.msra.mxu0 0.0
        %3377 = vmatprep.subr.mxu0 0.0
        %3378 = vmatpush1.msra.mxu0 0.0
        %3379 = vmatprep.subr.mxu0 0.0
        %3380 = vmatpush1.msra.mxu0 0.0
        %3381 = vmatprep.subr.mxu0 0.0
        %3382 = vmatpush1.msra.mxu0 0.0
        %3383 = vmatprep.subr.mxu0 0.0
        %3384 = vmatpush1.msra.mxu0 0.0
        %3385 = vmatprep.subr.mxu0 0.0
        %3386 = vmatpush1.msra.mxu0 0.0
        %3387 = vmatprep.subr.mxu0 0.0
        %3388 = vmatpush1.msra.mxu0 0.0
        %3389 = vmatprep.subr.mxu0 0.0
        %3390 = vmatpush1.msra.mxu0 0.0
        %3391 = vmatprep.subr.mxu0 0.0
        %3392 = vmatpush1.msra.mxu0 0.0
        %3393 = vmatprep.subr.mxu0 0.0
        %3394 = vmatpush1.msra.mxu0 0.0
        %3395 = vmatprep.subr.mxu0 0.0
        %3396 = vmatpush1.msra.mxu0 0.0
        %3397 = vmatprep.subr.mxu0 0.0
        %3398 = vmatpush1.msra.mxu0 0.0
        %3399 = vmatprep.subr.mxu0 0.0
        %3400 = vmatpush1.msra.mxu0 0.0
        %3401 = vmatprep.subr.mxu0 0.0
        %3402 = vmatpush1.msra.mxu0 0.0
        %3403 = vmatprep.subr.mxu0 0.0
        %3404 = vmatpush1.msra.mxu0 0.0
        %3405 = vmatprep.subr.mxu0 0.0
        %3406 = vmatpush1.msra.mxu0 0.0
        %3407 = vmatprep.subr.mxu0 0.0
        %3408 = vmatpush1.msra.mxu0 0.0
        %3409 = vmatprep.subr.mxu0 0.0
        %3410 = vmatpush1.msra.mxu0 0.0
        %3411 = vmatprep.subr.mxu0 0.0
        %3412 = vmatpush1.msra.mxu0 0.0
        %3413 = vmatprep.subr.mxu0 0.0
        %3414 = vmatpush1.msra.mxu0 0.0
        %3415 = vmatprep.subr.mxu0 0.0
        %3416 = vmatpush1.msra.mxu0 0.0
        %3417 = vmatprep.mubr.f32.mxu0 0.0
        %3418 = vmatmul.mubr.f32.gmra.mrb[0].mxu0 %v3258
        %v3419 = vpop.f32.mrb[0].mxu0
        %v3420 = vadd.f32 %v3255, %v3419
        %v3421 = vpop.f32.mrb[0].mxu0
        %3422 = vmatprep.mubr.f32.mxu0 0.0
        %3423 = vmatmul.mubr.f32.gmra.mrb[0].mxu0 %v3261
        %v3424 = vpop.f32.mrb[0].mxu0
        %v3425 = vadd.f32 %v3255, %v3424
        %v3426 = vpop.f32.mrb[0].mxu0
        %3427 = vmatprep.mubr.f32.mxu0 0.0
        %3428 = vmatmul.mubr.f32.gmra.mrb[0].mxu0 %v3264
        %v3429 = vpop.f32.mrb[0].mxu0
        %v3430 = vadd.f32 %v3255, %v3429
        %v3431 = vpop.f32.mrb[0].mxu0
        %3432 = vmatprep.mubr.f32.mxu0 0.0
        %3433 = vmatmul.mubr.f32.gmra.mrb[0].mxu0 %v3267
        %v3434 = vpop.f32.mrb[0].mxu0
        %v3435 = vadd.f32 %v3255, %v3434
        %v3436 = vpop.f32.mrb[0].mxu0
        %3437 = vmatprep.mubr.f32.mxu0 0.0
        %3438 = vmatmul.mubr.f32.gmra.mrb[0].mxu0 %v3270
        %v3439 = vpop.f32.mrb[0].mxu0
        %v3440 = vadd.f32 %v3255, %v3439
        %v3441 = vpop.f32.mrb[0].mxu0
        %3442 = vmatprep.mubr.f32.mxu0 0.0
        %3443 = vmatmul.mubr.f32.gmra.mrb[0].mxu0 %v3273
        %v3444 = vpop.f32.mrb[0].mxu0
        %v3445 = vadd.f32 %v3255, %v3444
        %v3446 = vpop.f32.mrb[0].mxu0
        %3447 = vmatprep.mubr.f32.mxu0 0.0
        %3448 = vmatmul.mubr.f32.gmra.mrb[0].mxu0 %v3276
        %v3449 = vpop.f32.mrb[0].mxu0
        %v3450 = vadd.f32 %v3255, %v3449
        %v3451 = vpop.f32.mrb[0].mxu0
        %3452 = vmatprep.mubr.f32.mxu0 0.0
        %3453 = vmatmul.mubr.f32.gmra.mrb[0].mxu0 %v3279
        %v3454 = vpop.f32.mrb[0].mxu0
        %v3455 = vadd.f32 %v3255, %v3454
        %v3456 = vpop.f32.mrb[0].mxu0
        %3457 = vmatprep.mubr.f32.mxu0 0.0
        %3458 = vmatmul.mubr.f32.gmra.mrb[0].mxu0 %v3282
        %v3459 = vpop.f32.mrb[0].mxu0
        %v3460 = vadd.f32 %v3255, %v3459
        %v3461 = vpop.f32.mrb[0].mxu0
        %3462 = vmatprep.mubr.f32.mxu0 0.0
        %3463 = vmatmul.mubr.f32.gmra.mrb[0].mxu0 %v3285
        %v3464 = vpop.f32.mrb[0].mxu0
        %v3465 = vadd.f32 %v3255, %v3464
        %v3466 = vpop.f32.mrb[0].mxu0
        %3467 = vmatprep.mubr.f32.mxu0 0.0
        %3468 = vmatmul.mubr.f32.gmra.mrb[0].mxu0 %v3288
        %v3469 = vpop.f32.mrb[0].mxu0
        %v3470 = vadd.f32 %v3255, %v3469
        %v3471 = vpop.f32.mrb[0].mxu0
        %3472 = vmatprep.mubr.f32.mxu0 0.0
        %3473 = vmatmul.mubr.f32.gmra.mrb[0].mxu0 %v3291
        %v3474 = vpop.f32.mrb[0].mxu0
        %v3475 = vadd.f32 %v3255, %v3474
        %v3476 = vpop.f32.mrb[0].mxu0
        %3477 = vmatprep.mubr.f32.mxu0 0.0
        %3478 = vmatmul.mubr.f32.gmra.mrb[0].mxu0 %v3294
        %v3479 = vpop.f32.mrb[0].mxu0
        %v3480 = vadd.f32 %v3255, %v3479
        %v3481 = vpop.f32.mrb[0].mxu0
        %3482 = vmatprep.mubr.f32.mxu0 0.0
        %3483 = vmatmul.mubr.f32.gmra.mrb[0].mxu0 %v3297
        %v3484 = vpop.f32.mrb[0].mxu0
        %v3485 = vadd.f32 %v3255, %v3484
        %v3486 = vpop.f32.mrb[0].mxu0
        %3487 = vmatprep.mubr.f32.mxu0 0.0
        %3488 = vmatmul.mubr.f32.gmra.mrb[0].mxu0 %v3300
        %v3489 = vpop.f32.mrb[0].mxu0
        %v3490 = vadd.f32 %v3255, %v3489
        %v3491 = vpop.f32.mrb[0].mxu0
        %3492 = vmatprep.mubr.f32.mxu0 0.0
        %3493 = vmatmul.mubr.f32.gmra.mrb[0].mxu0 %v3303
        %v3494 = vpop.f32.mrb[0].mxu0
        %v3495 = vadd.f32 %v3255, %v3494
        %v3496 = vpop.f32.mrb[0].mxu0
        %3497 = vmatprep.mubr.f32.mxu0 0.0
        %3498 = vmatmul.mubr.f32.gmra.mrb[0].mxu0 %v3306
        %v3499 = vpop.f32.mrb[0].mxu0
        %v3500 = vadd.f32 %v3255, %v3499
        %v3501 = vpop.f32.mrb[0].mxu0
        %3502 = vmatprep.mubr.f32.mxu0 0.0
        %3503 = vmatmul.mubr.f32.gmra.mrb[0].mxu0 %v3309
        %v3504 = vpop.f32.mrb[0].mxu0
        %v3505 = vadd.f32 %v3255, %v3504
        %v3506 = vpop.f32.mrb[0].mxu0
        %3507 = vmatprep.mubr.f32.mxu0 0.0
        %3508 = vmatmul.mubr.f32.gmra.mrb[0].mxu0 %v3312
        %v3509 = vpop.f32.mrb[0].mxu0
        %v3510 = vadd.f32 %v3255, %v3509
        %v3511 = vpop.f32.mrb[0].mxu0
        %3512 = vmatprep.mubr.f32.mxu0 0.0
        %3513 = vmatmul.mubr.f32.gmra.mrb[0].mxu0 %v3315
        %v3514 = vpop.f32.mrb[0].mxu0
        %v3515 = vadd.f32 %v3255, %v3514
        %v3516 = vpop.f32.mrb[0].mxu0
        %3517 = vmatprep.mubr.f32.mxu0 0.0
        %3518 = vmatmul.mubr.f32.gmra.mrb[0].mxu0 %v3318
        %v3519 = vpop.f32.mrb[0].mxu0
        %v3520 = vadd.f32 %v3255, %v3519
        %v3521 = vpop.f32.mrb[0].mxu0
        %3522 = vmatprep.mubr.f32.mxu0 0.0
        %3523 = vmatmul.mubr.f32.gmra.mrb[0].mxu0 %v3321
        %v3524 = vpop.f32.mrb[0].mxu0
        %v3525 = vadd.f32 %v3255, %v3524
        %v3526 = vpop.f32.mrb[0].mxu0
        %3527 = vmatprep.mubr.f32.mxu0 0.0
        %3528 = vmatmul.mubr.f32.gmra.mrb[0].mxu0 %v3324
        %v3529 = vpop.f32.mrb[0].mxu0
        %v3530 = vadd.f32 %v3255, %v3529
        %v3531 = vpop.f32.mrb[0].mxu0
        %3532 = vmatprep.mubr.f32.mxu0 0.0
        %3533 = vmatmul.mubr.f32.gmra.mrb[0].mxu0 %v3327
        %v3534 = vpop.f32.mrb[0].mxu0
        %v3535 = vadd.f32 %v3255, %v3534
        %v3536 = vpop.f32.mrb[0].mxu0
        %3537 = vmatprep.mubr.f32.mxu0 0.0
        %3538 = vmatmul.mubr.f32.gmra.mrb[0].mxu0 %v3330
        %v3539 = vpop.f32.mrb[0].mxu0
        %v3540 = vadd.f32 %v3255, %v3539
        %v3541 = vpop.f32.mrb[0].mxu0
        %3542 = vmatprep.mubr.f32.mxu0 0.0
        %3543 = vmatmul.mubr.f32.gmra.mrb[0].mxu0 %v3333
        %v3544 = vpop.f32.mrb[0].mxu0
        %v3545 = vadd.f32 %v3255, %v3544
        %v3546 = vpop.f32.mrb[0].mxu0
        %3547 = vmatprep.mubr.f32.mxu0 0.0
        %3548 = vmatmul.mubr.f32.gmra.mrb[0].mxu0 %v3336
        %v3549 = vpop.f32.mrb[0].mxu0
        %v3550 = vadd.f32 %v3255, %v3549
        %v3551 = vpop.f32.mrb[0].mxu0
        %3552 = vmatprep.mubr.f32.mxu0 0.0
        %3553 = vmatmul.mubr.f32.gmra.mrb[0].mxu0 %v3339
        %v3554 = vpop.f32.mrb[0].mxu0
        %v3555 = vadd.f32 %v3255, %v3554
        %v3556 = vpop.f32.mrb[0].mxu0
        %3557 = vmatprep.mubr.f32.mxu0 0.0
        %3558 = vmatmul.mubr.f32.gmra.mrb[0].mxu0 %v3342
        %v3559 = vpop.f32.mrb[0].mxu0
        %v3560 = vadd.f32 %v3255, %v3559
        %v3561 = vpop.f32.mrb[0].mxu0
        %3562 = vmatprep.mubr.f32.mxu0 0.0
        %3563 = vmatmul.mubr.f32.gmra.mrb[0].mxu0 %v3345
        %v3564 = vpop.f32.mrb[0].mxu0
        %v3565 = vadd.f32 %v3255, %v3564
        %v3566 = vpop.f32.mrb[0].mxu0
        %3567 = vmatprep.mubr.f32.mxu0 0.0
        %3568 = vmatmul.mubr.f32.gmra.mrb[0].mxu0 %v3348
        %v3569 = vpop.f32.mrb[0].mxu0
        %v3570 = vadd.f32 %v3255, %v3569
        %v3571 = vpop.f32.mrb[0].mxu0
        %3572 = vmatprep.mubr.f32.mxu0 0.0
        %3573 = vmatmul.mubr.f32.gmra.mrb[0].mxu0 %v3351
        %v3574 = vpop.f32.mrb[0].mxu0
        %v3575 = vadd.f32 %v3255, %v3574
        %v3576 = vpop.f32.mrb[0].mxu0
        %3577 = vdwg.mxu0
        %v3578 = vmax.f32 %v3420, 0.0
        %v3579 = vmax.f32 %v3425, 0.0
        %v3580 = vmax.f32 %v3430, 0.0
        %v3581 = vmax.f32 %v3435, 0.0
        %v3582 = vmax.f32 %v3440, 0.0
        %v3583 = vmax.f32 %v3445, 0.0
        %v3584 = vmax.f32 %v3450, 0.0
        %v3585 = vmax.f32 %v3455, 0.0
        %v3586 = vmax.f32 %v3460, 0.0
        %v3587 = vmax.f32 %v3465, 0.0
        %v3588 = vmax.f32 %v3470, 0.0
        %v3589 = vmax.f32 %v3475, 0.0
        %v3590 = vmax.f32 %v3480, 0.0
        %v3591 = vmax.f32 %v3485, 0.0
        %v3592 = vmax.f32 %v3490, 0.0
        %v3593 = vmax.f32 %v3495, 0.0
        %v3594 = vmax.f32 %v3500, 0.0
        %v3595 = vmax.f32 %v3505, 0.0
        %v3596 = vmax.f32 %v3510, 0.0
        %v3597 = vmax.f32 %v3515, 0.0
        %v3598 = vmax.f32 %v3520, 0.0
        %v3599 = vmax.f32 %v3525, 0.0
        %v3600 = vmax.f32 %v3530, 0.0
        %v3601 = vmax.f32 %v3535, 0.0
        %v3602 = vmax.f32 %v3540, 0.0
        %v3603 = vmax.f32 %v3545, 0.0
        %v3604 = vmax.f32 %v3550, 0.0
        %v3605 = vmax.f32 %v3555, 0.0
        %v3606 = vmax.f32 %v3560, 0.0
        %v3607 = vmax.f32 %v3565, 0.0
        %v3608 = vmax.f32 %v3570, 0.0
        %v3609 = vmax.f32 %v3575, 0.0
        %vm3610 = vcmask 130048
        %3611 = vst.msk [vmem:[%s298] sm:$0xff] %vm3610, %v3578
        %3612 = vst.msk [vmem:[%s298 + $0x8] sm:$0xff] %vm3610, %v3579
        %3613 = vst.msk [vmem:[%s298 + $0x10] sm:$0xff] %vm3610, %v3580
        %3614 = vst.msk [vmem:[%s298 + $0x18] sm:$0xff] %vm3610, %v3581
        %3615 = vst.msk [vmem:[%s298 + $0x20] sm:$0xff] %vm3610, %v3582
        %3616 = vst.msk [vmem:[%s298 + $0x28] sm:$0xff] %vm3610, %v3583
        %3617 = vst.msk [vmem:[%s298 + $0x30] sm:$0xff] %vm3610, %v3584
        %3618 = vst.msk [vmem:[%s298 + $0x38] sm:$0xff] %vm3610, %v3585
        %3619 = vst.msk [vmem:[%s298 + $0x40] sm:$0xff] %vm3610, %v3586
        %3620 = vst.msk [vmem:[%s298 + $0x48] sm:$0xff] %vm3610, %v3587
        %3621 = vst.msk [vmem:[%s298 + $0x50] sm:$0xff] %vm3610, %v3588
        %3622 = vst.msk [vmem:[%s298 + $0x58] sm:$0xff] %vm3610, %v3589
        %3623 = vst.msk [vmem:[%s298 + $0x60] sm:$0xff] %vm3610, %v3590
        %3624 = vst.msk [vmem:[%s298 + $0x68] sm:$0xff] %vm3610, %v3591
        %3625 = vst.msk [vmem:[%s298 + $0x70] sm:$0xff] %vm3610, %v3592
        %3626 = vst.msk [vmem:[%s298 + $0x78] sm:$0xff] %vm3610, %v3593
        %3627 = vst.msk [vmem:[%s298 + $0x80] sm:$0xff] %vm3610, %v3594
        %3628 = vst.msk [vmem:[%s298 + $0x88] sm:$0xff] %vm3610, %v3595
        %3629 = vst.msk [vmem:[%s298 + $0x90] sm:$0xff] %vm3610, %v3596
        %3630 = vst.msk [vmem:[%s298 + $0x98] sm:$0xff] %vm3610, %v3597
        %3631 = vst.msk [vmem:[%s298 + $0xa0] sm:$0xff] %vm3610, %v3598
        %3632 = vst.msk [vmem:[%s298 + $0xa8] sm:$0xff] %vm3610, %v3599
        %3633 = vst.msk [vmem:[%s298 + $0xb0] sm:$0xff] %vm3610, %v3600
        %3634 = vst.msk [vmem:[%s298 + $0xb8] sm:$0xff] %vm3610, %v3601
        %3635 = vst.msk [vmem:[%s298 + $0xc0] sm:$0xff] %vm3610, %v3602
        %3636 = vst.msk [vmem:[%s298 + $0xc8] sm:$0xff] %vm3610, %v3603
        %3637 = vst.msk [vmem:[%s298 + $0xd0] sm:$0xff] %vm3610, %v3604
        %3638 = vst.msk [vmem:[%s298 + $0xd8] sm:$0xff] %vm3610, %v3605
        %3639 = vst.msk [vmem:[%s298 + $0xe0] sm:$0xff] %vm3610, %v3606
        %3640 = vst.msk [vmem:[%s298 + $0xe8] sm:$0xff] %vm3610, %v3607
        %3641 = vst.msk [vmem:[%s298 + $0xf0] sm:$0xff] %vm3610, %v3608
        %3642 = vst.msk [vmem:[%s298 + $0xf8] sm:$0xff] %vm3610, %v3609
        %s3643 = sand.u32 %s197, 1
        %s3644 = scalar_lea.sflag [#allocation4], %s3643
        %s3645 = sand.u32 %s197, 1
        %s3646 = smul.addr %s3645, 256
        %s3647 = scalar_lea.vmem [#allocation3], %s3646
        // Predicated region
        $region49: #{tpu_custom_call.1} parent=47 // pred_check
          %p3648 = pneg %p207
        $region50: #{tpu_custom_call.1} parent=47 // pred_check_branch
          %3650 = sbr.rel (%p3648) target = $region52
        $region51: #{tpu_custom_call.1} parent=47 // pred_region
          %s3651 = smul.u32 16, %s26
          %s3653 = ssub.s32 4096, 4096
          %3654 = vsyncadd %s3644, %s3653
          %s3655 = smul.addr %s3651, 2
          %s3656 = smul.addr %s25, 32
          %s3657 = sadd.s32 %s3655, %s3656
          %s3658 = smul.addr %s3657, 128
          %s3659 = scalar_lea.hbm %s7, %s3658
          %s3660 = sshll.u32 %s3647, 4
          %s3661 = int_to_ptr.vmem [resolvable:$true] %s3660
          %3666 = dma.vmem_to_hbm [thread:$0]  %s3661, 4096, %s3659, %s3644, 128, 128, 8
        $region52: #{tpu_custom_call.1} parent=47 // pred_fallthru
          _
      $region48: #{tpu_custom_call.1} parent=5 // pred_fallthru
        _
      %p3667 = scmp.le.s32.totalorder 2, %s16
      // Predicated region
      $region53: #{tpu_custom_call.1} parent=5 // pred_check
        %p3668 = pneg %p3667
      $region54: #{tpu_custom_call.1} parent=5 // pred_check_branch
        %3670 = sbr.rel (%p3668) target = $region56
      $region55: #{tpu_custom_call.1} parent=5 // pred_region
        %s3671 = ssub.s32 %s16, 2
        // Predicated region
        $region57: #{tpu_custom_call.1} parent=55 // pred_check
          %p3672 = pneg %p213
        $region58: #{tpu_custom_call.1} parent=55 // pred_check_branch
          %3674 = sbr.rel (%p3672) target = $region60
        $region59: #{tpu_custom_call.1} parent=55 // pred_region
          %s3675 = sand.u32 %s198, 1
          %s3676 = scalar_lea.sflag [#allocation4], %s3675
          %s3677 = sand.u32 %s198, 1
          %s3678 = smul.addr %s3677, 256
          %s3679 = scalar_lea.vmem [#allocation3], %s3678
          %3680 = dma.done %s3676, 4096
        $region60: #{tpu_custom_call.1} parent=55 // pred_fallthru
          _
      $region56: #{tpu_custom_call.1} parent=5 // pred_fallthru
        _
    $region6: #{tpu_custom_call.1} parent=1 // loop_footer
      %s20 = sadd.s32 1, %s16
    $region7: #{tpu_custom_call.1} parent=1 // loop_footer_branch
      %15 = sbr.rel target = $region3
    $region8: #{tpu_custom_call.1} parent=1 // loop_exit
      _
    %3681 = vsyncpa [#allocation4], 1
    %s3682 = scalar_lea.sflag [#allocation4], 1
    %3683 = vsyncpa %s3682, 1

// kernel: tpu_custom_call.1
$region0: #{tpu_custom_call.1}
  #allocation0 [shape = 'u32[]', space=smem, size = 0x4, offset = 0x4, fixed_abs, tag = 'smem constant byte address 0x4 - core index']
  #allocation1 [shape = 'u32[144,128]{1,0:T(1,128)}', space=vmem, size = 0x12000, scoped, tag = 'internal scratch']
  #allocation2 [shape = 'f32[1,18,18,4]{3,2,1,0:T(8,128)}', space=vmem, size = 0x36000, scoped, tag = 'scratch operand']
  %s0 = inlined_call_operand.vmem [shape: f32[2,16,16,4], index: 0, kind: input, shape index: {}]
  %s1 = inlined_call_operand.vmem [shape: f32[4,4], index: 1, kind: input, shape index: {}]
  %s2 = inlined_call_operand.vmem [shape: f32[1,4], index: 2, kind: input, shape index: {}]
  %s3 = inlined_call_operand.vmem [shape: f32[3,12,4], index: 3, kind: input, shape index: {}]
  %s4 = inlined_call_operand.vmem [shape: f32[1,4], index: 4, kind: input, shape index: {}]
  %s5 = inlined_call_operand.vmem [shape: f32[8,16], index: 5, kind: input, shape index: {}]
  %s6 = inlined_call_operand.vmem [shape: f32[1,16], index: 6, kind: input, shape index: {}]
  %s7 = inlined_call_operand.hbm [shape: f32[2,16,16,16], index: 7, kind: output, shape index: {}]
  %s8 = sld [smem:[#allocation0]]
  $region61: #{tpu_custom_call.1} parent=0
    _
  %s10 = ssub.s32 1, %s8
  %s11 = scalar_select 0, %s10, %s8
  $region1: #{tpu_custom_call.1} parent=0
    #allocation3 [shape = 'u8[262144]{0}', space=vmem, size = 0x40000, scoped, tag = 'output window, operand 0']
    #allocation4 [shape = 's32[2]{0}', space=sflag, size = 0x8, scoped, tag = 'scoped memory for tpu_custom_call.1']
    %12 = vsyncpa [#allocation4], 0
    %s13 = scalar_lea.sflag [#allocation4], 1
    %14 = vsyncpa %s13, 0
    loop: start=0, step=1, limit=4
    $region2: #{tpu_custom_call.1} parent=1 // loop_pre_header
      _
    $region3: #{tpu_custom_call.1} parent=1 // loop_header
      %s16 = sphi 0, %s20
      %p17 = scmp.ge.s32.totalorder %s16, 4
      %s23 = sphi 0, %s35
      %s24 = sphi 0, %s31
      %s25 = sphi 0, %s23
      %s26 = sphi 0, %s24
      %s27 = sphi 0, %s25
      %s28 = sphi 0, %s26
      %s40 = sphi 0, %s42
      %s43 = sphi 0, %s40
      %s44 = sphi 0, %s43
      %s60 = sphi 0, %s44
      %s64 = sphi 0, %s64
      %s66 = sphi 0, %s64
      %s67 = sphi 0, %s66
      %s81 = sphi 0, %s67
      %s85 = sphi 0, %s85
      %s87 = sphi 0, %s85
      %s88 = sphi 0, %s87
      %s102 = sphi 0, %s88
      %s106 = sphi 0, %s106
      %s108 = sphi 0, %s106
      %s109 = sphi 0, %s108
      %s123 = sphi 0, %s109
      %s127 = sphi 0, %s127
      %s129 = sphi 0, %s127
      %s130 = sphi 0, %s129
      %s144 = sphi 0, %s130
      %s148 = sphi 0, %s148
      %s150 = sphi 0, %s148
      %s151 = sphi 0, %s150
      %s165 = sphi 0, %s151
      %s169 = sphi 0, %s169
      %s171 = sphi 0, %s169
      %s172 = sphi 0, %s171
      %s186 = sphi 0, %s172
      %s194 = sphi 0, %s196
      %s197 = sphi 0, %s194
      %s198 = sphi 0, %s197
      %s214 = sphi 0, %s198
    $region4: #{tpu_custom_call.1} parent=1 // loop_header_branch
      %19 = sbr.rel (%p17) target = $region8
    $region5: #{tpu_custom_call.1} parent=1 // loop_body
      %s21 = ssub.s32 %s16, 1
      %s22 = ssub.s32 %s16, 2
      %s29 = sadd.s32 1, %s24
      %p30 = scmp.ge.s32.totalorder %s29, 1
      %s31 = scalar_select %p30, 0, %s29
      %s32 = sadd.s32 1, %s23
      %s33 = scalar_select %p30, %s32, %s23
      %p34 = scmp.ge.s32.totalorder %s33, 2
      %s35 = scalar_select %p34, 0, %s33
      %s36 = ssub.s32 %s23, %s35
      %s37 = ssub.s32 %s24, %s31
      %s38 = sor.u32 %s36, %s37
      %p39 = scmp.eq.s32.totalorder %s38, 0
      %s41 = sadd.s32 %s40, 1
      %s42 = scalar_select %p39, %s40, %s41
      %p45 = pneg %p39
      %p46 = scmp.eq.s32.totalorder %s16, 1
      %p47 = por %p45, %p46
      %p48 = scmp.ne.s32.totalorder %s40, %s43
      %p49 = scmp.eq.s32.totalorder %s16, 0
      %p50 = por %p48, %p49
      %p51 = scmp.ne.s32.totalorder %s40, %s43
      %p52 = scmp.eq.s32.totalorder %s21, 1
      %p53 = por %p51, %p52
      %p54 = scmp.ne.s32.totalorder %s43, %s44
      %p55 = scmp.eq.s32.totalorder %s21, 0
      %p56 = por %p54, %p55
      %p57 = scmp.ne.s32.totalorder %s43, %s44
      %p58 = scmp.eq.s32.totalorder %s22, 1
      %p59 = por %p57, %p58
      %p61 = scmp.ne.s32.totalorder %s44, %s60
      %p62 = scmp.eq.s32.totalorder %s22, 0
      %p63 = por %p61, %p62
      %s65 = sadd.s32 %s64, 1
      %p68 = scmp.eq.s32.totalorder %s16, 1
      %p69 = scmp.ne.s32.totalorder %s64, %s66
      %p70 = scmp.eq.s32.totalorder %s16, 0
      %p71 = por %p69, %p70
      %p72 = scmp.ne.s32.totalorder %s64, %s66
      %p73 = scmp.eq.s32.totalorder %s21, 1
      %p74 = por %p72, %p73
      %p75 = scmp.ne.s32.totalorder %s66, %s67
      %p76 = scmp.eq.s32.totalorder %s21, 0
      %p77 = por %p75, %p76
      %p78 = scmp.ne.s32.totalorder %s66, %s67
      %p79 = scmp.eq.s32.totalorder %s22, 1
      %p80 = por %p78, %p79
      %p82 = scmp.ne.s32.totalorder %s67, %s81
      %p83 = scmp.eq.s32.totalorder %s22, 0
      %p84 = por %p82, %p83
      %s86 = sadd.s32 %s85, 1
      %p89 = scmp.eq.s32.totalorder %s16, 1
      %p90 = scmp.ne.s32.totalorder %s85, %s87
      %p91 = scmp.eq.s32.totalorder %s16, 0
      %p92 = por %p90, %p91
      %p93 = scmp.ne.s32.totalorder %s85, %s87
      %p94 = scmp.eq.s32.totalorder %s21, 1
      %p95 = por %p93, %p94
      %p96 = scmp.ne.s32.totalorder %s87, %s88
      %p97 = scmp.eq.s32.totalorder %s21, 0
      %p98 = por %p96, %p97
      %p99 = scmp.ne.s32.totalorder %s87, %s88
      %p100 = scmp.eq.s32.totalorder %s22, 1
      %p101 = por %p99, %p100
      %p103 = scmp.ne.s32.totalorder %s88, %s102
      %p104 = scmp.eq.s32.totalorder %s22, 0
      %p105 = por %p103, %p104
      %s107 = sadd.s32 %s106, 1
      %p110 = scmp.eq.s32.totalorder %s16, 1
      %p111 = scmp.ne.s32.totalorder %s106, %s108
      %p112 = scmp.eq.s32.totalorder %s16, 0
      %p113 = por %p111, %p112
      %p114 = scmp.ne.s32.totalorder %s106, %s108
      %p115 = scmp.eq.s32.totalorder %s21, 1
      %p116 = por %p114, %p115
      %p117 = scmp.ne.s32.totalorder %s108, %s109
      %p118 = scmp.eq.s32.totalorder %s21, 0
      %p119 = por %p117, %p118
      %p120 = scmp.ne.s32.totalorder %s108, %s109
      %p121 = scmp.eq.s32.totalorder %s22, 1
      %p122 = por %p120, %p121
      %p124 = scmp.ne.s32.totalorder %s109, %s123
      %p125 = scmp.eq.s32.totalorder %s22, 0
      %p126 = por %p124, %p125
      %s128 = sadd.s32 %s127, 1
      %p131 = scmp.eq.s32.totalorder %s16, 1
      %p132 = scmp.ne.s32.totalorder %s127, %s129
      %p133 = scmp.eq.s32.totalorder %s16, 0
      %p134 = por %p132, %p133
      %p135 = scmp.ne.s32.totalorder %s127, %s129
      %p136 = scmp.eq.s32.totalorder %s21, 1
      %p137 = por %p135, %p136
      %p138 = scmp.ne.s32.totalorder %s129, %s130
      %p139 = scmp.eq.s32.totalorder %s21, 0
      %p140 = por %p138, %p139
      %p141 = scmp.ne.s32.totalorder %s129, %s130
      %p142 = scmp.eq.s32.totalorder %s22, 1
      %p143 = por %p141, %p142
      %p145 = scmp.ne.s32.totalorder %s130, %s144
      %p146 = scmp.eq.s32.totalorder %s22, 0
      %p147 = por %p145, %p146
      %s149 = sadd.s32 %s148, 1
      %p152 = scmp.eq.s32.totalorder %s16, 1
      %p153 = scmp.ne.s32.totalorder %s148, %s150
      %p154 = scmp.eq.s32.totalorder %s16, 0
      %p155 = por %p153, %p154
      %p156 = scmp.ne.s32.totalorder %s148, %s150
      %p157 = scmp.eq.s32.totalorder %s21, 1
      %p158 = por %p156, %p157
      %p159 = scmp.ne.s32.totalorder %s150, %s151
      %p160 = scmp.eq.s32.totalorder %s21, 0
      %p161 = por %p159, %p160
      %p162 = scmp.ne.s32.totalorder %s150, %s151
      %p163 = scmp.eq.s32.totalorder %s22, 1
      %p164 = por %p162, %p163
      %p166 = scmp.ne.s32.totalorder %s151, %s165
      %p167 = scmp.eq.s32.totalorder %s22, 0
      %p168 = por %p166, %p167
      %s170 = sadd.s32 %s169, 1
      %p173 = scmp.eq.s32.totalorder %s16, 1
      %p174 = scmp.ne.s32.totalorder %s169, %s171
      %p175 = scmp.eq.s32.totalorder %s16, 0
      %p176 = por %p174, %p175
      %p177 = scmp.ne.s32.totalorder %s169, %s171
      %p178 = scmp.eq.s32.totalorder %s21, 1
      %p179 = por %p177, %p178
      %p180 = scmp.ne.s32.totalorder %s171, %s172
      %p181 = scmp.eq.s32.totalorder %s21, 0
      %p182 = por %p180, %p181
      %p183 = scmp.ne.s32.totalorder %s171, %s172
      %p184 = scmp.eq.s32.totalorder %s22, 1
      %p185 = por %p183, %p184
      %p187 = scmp.ne.s32.totalorder %s172, %s186
      %p188 = scmp.eq.s32.totalorder %s22, 0
      %p189 = por %p187, %p188
      %s190 = ssub.s32 %s23, %s35
      %s191 = ssub.s32 %s24, %s31
      %s192 = sor.u32 %s190, %s191
      %p193 = scmp.eq.s32.totalorder %s192, 0
      %s195 = sadd.s32 %s194, 1
      %s196 = scalar_select %p193, %s194, %s195
      %p199 = pneg %p193
      %p200 = scmp.eq.s32.totalorder %s16, 1
      %p201 = por %p199, %p200
      %p202 = scmp.ne.s32.totalorder %s194, %s197
      %p203 = scmp.eq.s32.totalorder %s16, 0
      %p204 = por %p202, %p203
      %p205 = scmp.ne.s32.totalorder %s194, %s197
      %p206 = scmp.eq.s32.totalorder %s21, 1
      %p207 = por %p205, %p206
      %p208 = scmp.ne.s32.totalorder %s197, %s198
      %p209 = scmp.eq.s32.totalorder %s21, 0
      %p210 = por %p208, %p209
      %p211 = scmp.ne.s32.totalorder %s197, %s198
      %p212 = scmp.eq.s32.totalorder %s22, 1
      %p213 = por %p211, %p212
      %p215 = scmp.ne.s32.totalorder %s198, %s214
      %p216 = scmp.eq.s32.totalorder %s22, 0
      %p217 = por %p215, %p216
      %p218 = scmp.le.s32.totalorder 1, %s16
      %p219 = scmp.lt.s32.totalorder %s16, 3
      %p220 = pnand %p218, %p219
      %p221 = pneg %p220
      // Predicated region
      $region9: #{tpu_custom_call.1} parent=5 // pred_check
        _
      $region10: #{tpu_custom_call.1} parent=5 // pred_check_branch
        %223 = sbr.rel (%p220) target = $region12
      $region11: #{tpu_custom_call.1} parent=5 // pred_region
        %s224 = ssub.s32 %s16, 1
        // Predicated region
        $region13: #{tpu_custom_call.1} parent=11 // pred_check
          %p225 = pneg %p77
        $region14: #{tpu_custom_call.1} parent=11 // pred_check_branch
          %227 = sbr.rel (%p225) target = $region16
        $region15: #{tpu_custom_call.1} parent=11 // pred_region
          _
        $region16: #{tpu_custom_call.1} parent=11 // pred_fallthru
          _
        // Predicated region
        $region17: #{tpu_custom_call.1} parent=11 // pred_check
          %p228 = pneg %p98
        $region18: #{tpu_custom_call.1} parent=11 // pred_check_branch
          %230 = sbr.rel (%p228) target = $region20
        $region19: #{tpu_custom_call.1} parent=11 // pred_region
          _
        $region20: #{tpu_custom_call.1} parent=11 // pred_fallthru
          _
        // Predicated region
        $region21: #{tpu_custom_call.1} parent=11 // pred_check
          %p231 = pneg %p119
        $region22: #{tpu_custom_call.1} parent=11 // pred_check_branch
          %233 = sbr.rel (%p231) target = $region24
        $region23: #{tpu_custom_call.1} parent=11 // pred_region
          _
        $region24: #{tpu_custom_call.1} parent=11 // pred_fallthru
          _
        // Predicated region
        $region25: #{tpu_custom_call.1} parent=11 // pred_check
          %p234 = pneg %p140
        $region26: #{tpu_custom_call.1} parent=11 // pred_check_branch
          %236 = sbr.rel (%p234) target = $region28
        $region27: #{tpu_custom_call.1} parent=11 // pred_region
          _
        $region28: #{tpu_custom_call.1} parent=11 // pred_fallthru
          _
        // Predicated region
        $region29: #{tpu_custom_call.1} parent=11 // pred_check
          %p237 = pneg %p161
        $region30: #{tpu_custom_call.1} parent=11 // pred_check_branch
          %239 = sbr.rel (%p237) target = $region32
        $region31: #{tpu_custom_call.1} parent=11 // pred_region
          _
        $region32: #{tpu_custom_call.1} parent=11 // pred_fallthru
          _
        // Predicated region
        $region33: #{tpu_custom_call.1} parent=11 // pred_check
          %p240 = pneg %p182
        $region34: #{tpu_custom_call.1} parent=11 // pred_check_branch
          %242 = sbr.rel (%p240) target = $region36
        $region35: #{tpu_custom_call.1} parent=11 // pred_region
          _
        $region36: #{tpu_custom_call.1} parent=11 // pred_fallthru
          _
      $region12: #{tpu_custom_call.1} parent=5 // pred_fallthru
        _
      %p243 = scmp.lt.s32.totalorder %s16, 2
      // Predicated region
      $region37: #{tpu_custom_call.1} parent=5 // pred_check
        %p244 = pneg %p243
      $region38: #{tpu_custom_call.1} parent=5 // pred_check_branch
        %246 = sbr.rel (%p244) target = $region40
      $region39: #{tpu_custom_call.1} parent=5 // pred_region
        // Predicated region
        $region41: #{tpu_custom_call.1} parent=39 // pred_check
          %p247 = pneg %p50
        $region42: #{tpu_custom_call.1} parent=39 // pred_check_branch
          %249 = sbr.rel (%p247) target = $region44
        $region43: #{tpu_custom_call.1} parent=39 // pred_region
          %s250 = smul.u32 16, %s24
          %p251 = scmp.lt.s32.totalorder %s23, 1
          %s252 = scalar_select %p251, %s23, 1
          %p253 = scmp.lt.s32.totalorder %s250, 15
          %s254 = scalar_select %p253, %s250, 15
          %s255 = smul.addr %s254, 2
          %s256 = smul.addr %s252, 32
          %s257 = sadd.s32 %s255, %s256
          %s258 = smul.addr %s257, 8
          %s259 = scalar_lea.vmem %s0, %s258
          %s260 = smul.u32 16, %s24
        $region44: #{tpu_custom_call.1} parent=39 // pred_fallthru
          _
      $region40: #{tpu_custom_call.1} parent=5 // pred_fallthru
        _
      %p261 = scmp.le.s32.totalorder 1, %s16
      %p262 = scmp.lt.s32.totalorder %s16, 3
      %p263 = pnand %p261, %p262
      %p264 = pneg %p263
      // Predicated region
      $region45: #{tpu_custom_call.1} parent=5 // pred_check
        _
      $region46: #{tpu_custom_call.1} parent=5 // pred_check_branch
        %266 = sbr.rel (%p263) target = $region48
      $region47: #{tpu_custom_call.1} parent=5 // pred_region
        %s267 = ssub.s32 %s16, 1
        %s268 = smul.u32 16, %s26
        %p269 = scmp.lt.s32.totalorder %s25, 1
        %s270 = scalar_select %p269, %s25, 1
        %p271 = scmp.lt.s32.totalorder %s268, 15
        %s272 = scalar_select %p271, %s268, 15
        %s273 = smul.addr %s272, 2
        %s274 = smul.addr %s270, 32
        %s275 = sadd.s32 %s273, %s274
        %s276 = smul.addr %s275, 8
        %s277 = scalar_lea.vmem %s0, %s276
        %p278 = pneg %p56
        %p279 = pneg %p53
        %p280 = pneg %p77
        %p281 = pneg %p74
        %p282 = pneg %p98
        %p283 = pneg %p95
        %p284 = pneg %p119
        %p285 = pneg %p116
        %p286 = pneg %p140
        %p287 = pneg %p137
        %p288 = pneg %p161
        %p289 = pneg %p158
        %p290 = pneg %p182
        %p291 = pneg %p179
        %p292 = pneg %p210
        %p293 = pneg %p207
        %s294 = sand.u32 %s197, 1
        %s295 = scalar_lea.sflag [#allocation4], %s294
        %s296 = sand.u32 %s197, 1
        %s297 = smul.addr %s296, 256
        %s298 = scalar_lea.vmem [#allocation3], %s297
        %s299 = smul.u32 16, %s26
        %p300 = scmp.lt.s32.totalorder %s25, 1
        %s301 = scalar_select %p300, %s25, 1
        %p302 = scmp.lt.s32.totalorder %s299, 15
        %s303 = scalar_select %p302, %s299, 15
        %s304 = smul.addr %s303, 2
        %s305 = smul.addr %s301, 32
        %s306 = sadd.s32 %s304, %s305
        %s307 = smul.addr %s306, 8
        %s308 = scalar_lea.vmem %s0, %s307
        %s309 = smul.u32 16, %s26
        %s310 = smul.u32 16, %s26
        %v311 = vld [vmem:[%s308] sm:$0xff]
        %v312 = vld [vmem:[%s308 + $0x8] sm:$0xff]
        %v313 = vld [vmem:[%s308 + $0x10] sm:$0xff]
        %v314 = vld [vmem:[%s308 + $0x18] sm:$0xff]
        %v315 = vld [vmem:[%s308 + $0x20] sm:$0xff]
        %v316 = vld [vmem:[%s308 + $0x28] sm:$0xff]
        %v317 = vld [vmem:[%s308 + $0x30] sm:$0xff]
        %v318 = vld [vmem:[%s308 + $0x38] sm:$0xff]
        %v319 = vld [vmem:[%s308 + $0x40] sm:$0xff]
        %v320 = vld [vmem:[%s308 + $0x48] sm:$0xff]
        %v321 = vld [vmem:[%s308 + $0x50] sm:$0xff]
        %v322 = vld [vmem:[%s308 + $0x58] sm:$0xff]
        %v323 = vld [vmem:[%s308 + $0x60] sm:$0xff]
        %v324 = vld [vmem:[%s308 + $0x68] sm:$0xff]
        %v325 = vld [vmem:[%s308 + $0x70] sm:$0xff]
        %v326 = vld [vmem:[%s308 + $0x78] sm:$0xff]
        %v327 = vld [vmem:[%s308 + $0x80] sm:$0xff]
        %v328 = vld [vmem:[%s308 + $0x88] sm:$0xff]
        %v329 = vld [vmem:[%s308 + $0x90] sm:$0xff]
        %v330 = vld [vmem:[%s308 + $0x98] sm:$0xff]
        %v331 = vld [vmem:[%s308 + $0xa0] sm:$0xff]
        %v332 = vld [vmem:[%s308 + $0xa8] sm:$0xff]
        %v333 = vld [vmem:[%s308 + $0xb0] sm:$0xff]
        %v334 = vld [vmem:[%s308 + $0xb8] sm:$0xff]
        %v335 = vld [vmem:[%s308 + $0xc0] sm:$0xff]
        %v336 = vld [vmem:[%s308 + $0xc8] sm:$0xff]
        %v337 = vld [vmem:[%s308 + $0xd0] sm:$0xff]
        %v338 = vld [vmem:[%s308 + $0xd8] sm:$0xff]
        %v339 = vld [vmem:[%s308 + $0xe0] sm:$0xff]
        %v340 = vld [vmem:[%s308 + $0xe8] sm:$0xff]
        %v341 = vld [vmem:[%s308 + $0xf0] sm:$0xff]
        %v342 = vld [vmem:[%s308 + $0xf8] sm:$0xff]
        %v343 = vld [vmem:[%s1] sm:$0xf]
        %v344 = vld [vmem:[%s2] sm:$0x1]
        %v346 = vlaneseq
        %v347 = vshrl.u32 %v346, 7
        %v348 = vsub.s32 0, %v347
        %v349 = vrot.slane %v344, %v348
        %vm351 = vcmask 31744
        %v353 = vsel %vm351, %v311, 0
        %v356 = vsel %vm351, %v312, 0
        %v359 = vsel %vm351, %v313, 0
        %v362 = vsel %vm351, %v314, 0
        %v365 = vsel %vm351, %v315, 0
        %v368 = vsel %vm351, %v316, 0
        %v371 = vsel %vm351, %v317, 0
        %v374 = vsel %vm351, %v318, 0
        %v377 = vsel %vm351, %v319, 0
        %v380 = vsel %vm351, %v320, 0
        %v383 = vsel %vm351, %v321, 0
        %v386 = vsel %vm351, %v322, 0
        %v389 = vsel %vm351, %v323, 0
        %v392 = vsel %vm351, %v324, 0
        %v395 = vsel %vm351, %v325, 0
        %v398 = vsel %vm351, %v326, 0
        %v401 = vsel %vm351, %v327, 0
        %v404 = vsel %vm351, %v328, 0
        %v407 = vsel %vm351, %v329, 0
        %v410 = vsel %vm351, %v330, 0
        %v413 = vsel %vm351, %v331, 0
        %v416 = vsel %vm351, %v332, 0
        %v419 = vsel %vm351, %v333, 0
        %v422 = vsel %vm351, %v334, 0
        %v425 = vsel %vm351, %v335, 0
        %v428 = vsel %vm351, %v336, 0
        %v431 = vsel %vm351, %v337, 0
        %v434 = vsel %vm351, %v338, 0
        %v437 = vsel %vm351, %v339, 0
        %v440 = vsel %vm351, %v340, 0
        %v443 = vsel %vm351, %v341, 0
        %v446 = vsel %vm351, %v342, 0
        %vm448 = vcmask 1043456
        %v450 = vsel %vm448, %v343, 0
        %452 = vmatprep.subr.mxu0 0.0
        %453 = vmatpush1.msra.mxu0 %v450
        %454 = vmatprep.subr.mxu0 0.0
        %455 = vmatpush1.msra.mxu0 0.0
        %456 = vmatprep.subr.mxu0 0.0
        %457 = vmatpush1.msra.mxu0 0.0
        %458 = vmatprep.subr.mxu0 0.0
        %459 = vmatpush1.msra.mxu0 0.0
        %460 = vmatprep.subr.mxu0 0.0
        %461 = vmatpush1.msra.mxu0 0.0
        %462 = vmatprep.subr.mxu0 0.0
        %463 = vmatpush1.msra.mxu0 0.0
        %464 = vmatprep.subr.mxu0 0.0
        %465 = vmatpush1.msra.mxu0 0.0
        %466 = vmatprep.subr.mxu0 0.0
        %467 = vmatpush1.msra.mxu0 0.0
        %468 = vmatprep.subr.mxu0 0.0
        %469 = vmatpush1.msra.mxu0 0.0
        %470 = vmatprep.subr.mxu0 0.0
        %471 = vmatpush1.msra.mxu0 0.0
        %472 = vmatprep.subr.mxu0 0.0
        %473 = vmatpush1.msra.mxu0 0.0
        %474 = vmatprep.subr.mxu0 0.0
        %475 = vmatpush1.msra.mxu0 0.0
        %476 = vmatprep.subr.mxu0 0.0
        %477 = vmatpush1.msra.mxu0 0.0
        %478 = vmatprep.subr.mxu0 0.0
        %479 = vmatpush1.msra.mxu0 0.0
        %480 = vmatprep.subr.mxu0 0.0
        %481 = vmatpush1.msra.mxu0 0.0
        %482 = vmatprep.subr.mxu0 0.0
        %483 = vmatpush1.msra.mxu0 0.0
        %484 = vmatprep.subr.mxu0 0.0
        %485 = vmatpush1.msra.mxu0 0.0
        %486 = vmatprep.subr.mxu0 0.0
        %487 = vmatpush1.msra.mxu0 0.0
        %488 = vmatprep.subr.mxu0 0.0
        %489 = vmatpush1.msra.mxu0 0.0
        %490 = vmatprep.subr.mxu0 0.0
        %491 = vmatpush1.msra.mxu0 0.0
        %492 = vmatprep.subr.mxu0 0.0
        %493 = vmatpush1.msra.mxu0 0.0
        %494 = vmatprep.subr.mxu0 0.0
        %495 = vmatpush1.msra.mxu0 0.0
        %496 = vmatprep.subr.mxu0 0.0
        %497 = vmatpush1.msra.mxu0 0.0
        %498 = vmatprep.subr.mxu0 0.0
        %499 = vmatpush1.msra.mxu0 0.0
        %500 = vmatprep.subr.mxu0 0.0
        %501 = vmatpush1.msra.mxu0 0.0
        %502 = vmatprep.subr.mxu0 0.0
        %503 = vmatpush1.msra.mxu0 0.0
        %504 = vmatprep.subr.mxu0 0.0
        %505 = vmatpush1.msra.mxu0 0.0
        %506 = vmatprep.subr.mxu0 0.0
        %507 = vmatpush1.msra.mxu0 0.0
        %508 = vmatprep.subr.mxu0 0.0
        %509 = vmatpush1.msra.mxu0 0.0
        %510 = vmatprep.subr.mxu0 0.0
        %511 = vmatpush1.msra.mxu0 0.0
        %512 = vmatprep.subr.mxu0 0.0
        %513 = vmatpush1.msra.mxu0 0.0
        %514 = vmatprep.subr.mxu0 0.0
        %515 = vmatpush1.msra.mxu0 0.0
        %516 = vmatprep.mubr.f32.mxu0 0.0
        %517 = vmatmul.mubr.f32.gmra.mrb[0].mxu0 %v353
        %v518 = vpop.f32.mrb[0].mxu0
        %v519 = vadd.f32 %v349, %v518
        %v520 = vpop.f32.mrb[0].mxu0
        %521 = vmatprep.mubr.f32.mxu0 0.0
        %522 = vmatmul.mubr.f32.gmra.mrb[0].mxu0 %v356
        %v523 = vpop.f32.mrb[0].mxu0
        %v524 = vadd.f32 %v349, %v523
        %v525 = vpop.f32.mrb[0].mxu0
        %526 = vmatprep.mubr.f32.mxu0 0.0
        %527 = vmatmul.mubr.f32.gmra.mrb[0].mxu0 %v359
        %v528 = vpop.f32.mrb[0].mxu0
        %v529 = vadd.f32 %v349, %v528
        %v530 = vpop.f32.mrb[0].mxu0
        %531 = vmatprep.mubr.f32.mxu0 0.0
        %532 = vmatmul.mubr.f32.gmra.mrb[0].mxu0 %v362
        %v533 = vpop.f32.mrb[0].mxu0
        %v534 = vadd.f32 %v349, %v533
        %v535 = vpop.f32.mrb[0].mxu0
        %536 = vmatprep.mubr.f32.mxu0 0.0
        %537 = vmatmul.mubr.f32.gmra.mrb[0].mxu0 %v365
        %v538 = vpop.f32.mrb[0].mxu0
        %v539 = vadd.f32 %v349, %v538
        %v540 = vpop.f32.mrb[0].mxu0
        %541 = vmatprep.mubr.f32.mxu0 0.0
        %542 = vmatmul.mubr.f32.gmra.mrb[0].mxu0 %v368
        %v543 = vpop.f32.mrb[0].mxu0
        %v544 = vadd.f32 %v349, %v543
        %v545 = vpop.f32.mrb[0].mxu0
        %546 = vmatprep.mubr.f32.mxu0 0.0
        %547 = vmatmul.mubr.f32.gmra.mrb[0].mxu0 %v371
        %v548 = vpop.f32.mrb[0].mxu0
        %v549 = vadd.f32 %v349, %v548
        %v550 = vpop.f32.mrb[0].mxu0
        %551 = vmatprep.mubr.f32.mxu0 0.0
        %552 = vmatmul.mubr.f32.gmra.mrb[0].mxu0 %v374
        %v553 = vpop.f32.mrb[0].mxu0
        %v554 = vadd.f32 %v349, %v553
        %v555 = vpop.f32.mrb[0].mxu0
        %556 = vmatprep.mubr.f32.mxu0 0.0
        %557 = vmatmul.mubr.f32.gmra.mrb[0].mxu0 %v377
        %v558 = vpop.f32.mrb[0].mxu0
        %v559 = vadd.f32 %v349, %v558
        %v560 = vpop.f32.mrb[0].mxu0
        %561 = vmatprep.mubr.f32.mxu0 0.0
        %562 = vmatmul.mubr.f32.gmra.mrb[0].mxu0 %v380
        %v563 = vpop.f32.mrb[0].mxu0
        %v564 = vadd.f32 %v349, %v563
        %v565 = vpop.f32.mrb[0].mxu0
        %566 = vmatprep.mubr.f32.mxu0 0.0
        %567 = vmatmul.mubr.f32.gmra.mrb[0].mxu0 %v383
        %v568 = vpop.f32.mrb[0].mxu0
        %v569 = vadd.f32 %v349, %v568
        %v570 = vpop.f32.mrb[0].mxu0
        %571 = vmatprep.mubr.f32.mxu0 0.0
        %572 = vmatmul.mubr.f32.gmra.mrb[0].mxu0 %v386
        %v573 = vpop.f32.mrb[0].mxu0
        %v574 = vadd.f32 %v349, %v573
        %v575 = vpop.f32.mrb[0].mxu0
        %576 = vmatprep.mubr.f32.mxu0 0.0
        %577 = vmatmul.mubr.f32.gmra.mrb[0].mxu0 %v389
        %v578 = vpop.f32.mrb[0].mxu0
        %v579 = vadd.f32 %v349, %v578
        %v580 = vpop.f32.mrb[0].mxu0
        %581 = vmatprep.mubr.f32.mxu0 0.0
        %582 = vmatmul.mubr.f32.gmra.mrb[0].mxu0 %v392
        %v583 = vpop.f32.mrb[0].mxu0
        %v584 = vadd.f32 %v349, %v583
        %v585 = vpop.f32.mrb[0].mxu0
        %586 = vmatprep.mubr.f32.mxu0 0.0
        %587 = vmatmul.mubr.f32.gmra.mrb[0].mxu0 %v395
        %v588 = vpop.f32.mrb[0].mxu0
        %v589 = vadd.f32 %v349, %v588
        %v590 = vpop.f32.mrb[0].mxu0
        %591 = vmatprep.mubr.f32.mxu0 0.0
        %592 = vmatmul.mubr.f32.gmra.mrb[0].mxu0 %v398
        %v593 = vpop.f32.mrb[0].mxu0
        %v594 = vadd.f32 %v349, %v593
        %v595 = vpop.f32.mrb[0].mxu0
        %596 = vmatprep.mubr.f32.mxu0 0.0
        %597 = vmatmul.mubr.f32.gmra.mrb[0].mxu0 %v401
        %v598 = vpop.f32.mrb[0].mxu0
        %v599 = vadd.f32 %v349, %v598
        %v600 = vpop.f32.mrb[0].mxu0
        %601 = vmatprep.mubr.f32.mxu0 0.0
        %602 = vmatmul.mubr.f32.gmra.mrb[0].mxu0 %v404
        %v603 = vpop.f32.mrb[0].mxu0
        %v604 = vadd.f32 %v349, %v603
        %v605 = vpop.f32.mrb[0].mxu0
        %606 = vmatprep.mubr.f32.mxu0 0.0
        %607 = vmatmul.mubr.f32.gmra.mrb[0].mxu0 %v407
        %v608 = vpop.f32.mrb[0].mxu0
        %v609 = vadd.f32 %v349, %v608
        %v610 = vpop.f32.mrb[0].mxu0
        %611 = vmatprep.mubr.f32.mxu0 0.0
        %612 = vmatmul.mubr.f32.gmra.mrb[0].mxu0 %v410
        %v613 = vpop.f32.mrb[0].mxu0
        %v614 = vadd.f32 %v349, %v613
        %v615 = vpop.f32.mrb[0].mxu0
        %616 = vmatprep.mubr.f32.mxu0 0.0
        %617 = vmatmul.mubr.f32.gmra.mrb[0].mxu0 %v413
        %v618 = vpop.f32.mrb[0].mxu0
        %v619 = vadd.f32 %v349, %v618
        %v620 = vpop.f32.mrb[0].mxu0
        %621 = vmatprep.mubr.f32.mxu0 0.0
        %622 = vmatmul.mubr.f32.gmra.mrb[0].mxu0 %v416
        %v623 = vpop.f32.mrb[0].mxu0
        %v624 = vadd.f32 %v349, %v623
        %v625 = vpop.f32.mrb[0].mxu0
        %626 = vmatprep.mubr.f32.mxu0 0.0
        %627 = vmatmul.mubr.f32.gmra.mrb[0].mxu0 %v419
        %v628 = vpop.f32.mrb[0].mxu0
        %v629 = vadd.f32 %v349, %v628
        %v630 = vpop.f32.mrb[0].mxu0
        %631 = vmatprep.mubr.f32.mxu0 0.0
        %632 = vmatmul.mubr.f32.gmra.mrb[0].mxu0 %v422
        %v633 = vpop.f32.mrb[0].mxu0
        %v634 = vadd.f32 %v349, %v633
        %v635 = vpop.f32.mrb[0].mxu0
        %636 = vmatprep.mubr.f32.mxu0 0.0
        %637 = vmatmul.mubr.f32.gmra.mrb[0].mxu0 %v425
        %v638 = vpop.f32.mrb[0].mxu0
        %v639 = vadd.f32 %v349, %v638
        %v640 = vpop.f32.mrb[0].mxu0
        %641 = vmatprep.mubr.f32.mxu0 0.0
        %642 = vmatmul.mubr.f32.gmra.mrb[0].mxu0 %v428
        %v643 = vpop.f32.mrb[0].mxu0
        %v644 = vadd.f32 %v349, %v643
        %v645 = vpop.f32.mrb[0].mxu0
        %646 = vmatprep.mubr.f32.mxu0 0.0
        %647 = vmatmul.mubr.f32.gmra.mrb[0].mxu0 %v431
        %v648 = vpop.f32.mrb[0].mxu0
        %v649 = vadd.f32 %v349, %v648
        %v650 = vpop.f32.mrb[0].mxu0
        %651 = vmatprep.mubr.f32.mxu0 0.0
        %652 = vmatmul.mubr.f32.gmra.mrb[0].mxu0 %v434
        %v653 = vpop.f32.mrb[0].mxu0
        %v654 = vadd.f32 %v349, %v653
        %v655 = vpop.f32.mrb[0].mxu0
        %656 = vmatprep.mubr.f32.mxu0 0.0
        %657 = vmatmul.mubr.f32.gmra.mrb[0].mxu0 %v437
        %v658 = vpop.f32.mrb[0].mxu0
        %v659 = vadd.f32 %v349, %v658
        %v660 = vpop.f32.mrb[0].mxu0
        %661 = vmatprep.mubr.f32.mxu0 0.0
        %662 = vmatmul.mubr.f32.gmra.mrb[0].mxu0 %v440
        %v663 = vpop.f32.mrb[0].mxu0
        %v664 = vadd.f32 %v349, %v663
        %v665 = vpop.f32.mrb[0].mxu0
        %666 = vmatprep.mubr.f32.mxu0 0.0
        %667 = vmatmul.mubr.f32.gmra.mrb[0].mxu0 %v443
        %v668 = vpop.f32.mrb[0].mxu0
        %v669 = vadd.f32 %v349, %v668
        %v670 = vpop.f32.mrb[0].mxu0
        %671 = vmatprep.mubr.f32.mxu0 0.0
        %672 = vmatmul.mubr.f32.gmra.mrb[0].mxu0 %v446
        %v673 = vpop.f32.mrb[0].mxu0
        %v674 = vadd.f32 %v349, %v673
        %v675 = vpop.f32.mrb[0].mxu0
        %676 = vdwg.mxu0
        %v677 = vmax.f32 %v519, 0.0
        %v678 = vmax.f32 %v524, 0.0
        %v679 = vmax.f32 %v529, 0.0
        %v680 = vmax.f32 %v534, 0.0
        %v681 = vmax.f32 %v539, 0.0
        %v682 = vmax.f32 %v544, 0.0
        %v683 = vmax.f32 %v549, 0.0
        %v684 = vmax.f32 %v554, 0.0
        %v685 = vmax.f32 %v559, 0.0
        %v686 = vmax.f32 %v564, 0.0
        %v687 = vmax.f32 %v569, 0.0
        %v688 = vmax.f32 %v574, 0.0
        %v689 = vmax.f32 %v579, 0.0
        %v690 = vmax.f32 %v584, 0.0
        %v691 = vmax.f32 %v589, 0.0
        %v692 = vmax.f32 %v594, 0.0
        %v693 = vmax.f32 %v599, 0.0
        %v694 = vmax.f32 %v604, 0.0
        %v695 = vmax.f32 %v609, 0.0
        %v696 = vmax.f32 %v614, 0.0
        %v697 = vmax.f32 %v619, 0.0
        %v698 = vmax.f32 %v624, 0.0
        %v699 = vmax.f32 %v629, 0.0
        %v700 = vmax.f32 %v634, 0.0
        %v701 = vmax.f32 %v639, 0.0
        %v702 = vmax.f32 %v644, 0.0
        %v703 = vmax.f32 %v649, 0.0
        %v704 = vmax.f32 %v654, 0.0
        %v705 = vmax.f32 %v659, 0.0
        %v706 = vmax.f32 %v664, 0.0
        %v707 = vmax.f32 %v669, 0.0
        %v708 = vmax.f32 %v674, 0.0
        %s709 = scalar_lea.vmem [#allocation2], 24
        %710 = vst.msk [vmem:[%s709 + $0x1] sm:$0xff] %vm351, %v677
        %711 = vst.msk [vmem:[%s709 + $0x9] sm:$0xff] %vm351, %v678
        %712 = vst.msk [vmem:[%s709 + $0x19] sm:$0xff] %vm351, %v679
        %713 = vst.msk [vmem:[%s709 + $0x21] sm:$0xff] %vm351, %v680
        %714 = vst.msk [vmem:[%s709 + $0x31] sm:$0xff] %vm351, %v681
        %715 = vst.msk [vmem:[%s709 + $0x39] sm:$0xff] %vm351, %v682
        %716 = vst.msk [vmem:[%s709 + $0x49] sm:$0xff] %vm351, %v683
        %717 = vst.msk [vmem:[%s709 + $0x51] sm:$0xff] %vm351, %v684
        %718 = vst.msk [vmem:[%s709 + $0x61] sm:$0xff] %vm351, %v685
        %719 = vst.msk [vmem:[%s709 + $0x69] sm:$0xff] %vm351, %v686
        %720 = vst.msk [vmem:[%s709 + $0x79] sm:$0xff] %vm351, %v687
        %721 = vst.msk [vmem:[%s709 + $0x81] sm:$0xff] %vm351, %v688
        %722 = vst.msk [vmem:[%s709 + $0x91] sm:$0xff] %vm351, %v689
        %723 = vst.msk [vmem:[%s709 + $0x99] sm:$0xff] %vm351, %v690
        %724 = vst.msk [vmem:[%s709 + $0xa9] sm:$0xff] %vm351, %v691
        %725 = vst.msk [vmem:[%s709 + $0xb1] sm:$0xff] %vm351, %v692
        %726 = vst.msk [vmem:[%s709 + $0xc1] sm:$0xff] %vm351, %v693
        %727 = vst.msk [vmem:[%s709 + $0xc9] sm:$0xff] %vm351, %v694
        %728 = vst.msk [vmem:[%s709 + $0xd9] sm:$0xff] %vm351, %v695
        %729 = vst.msk [vmem:[%s709 + $0xe1] sm:$0xff] %vm351, %v696
        %730 = vst.msk [vmem:[%s709 + $0xf1] sm:$0xff] %vm351, %v697
        %731 = vst.msk [vmem:[%s709 + $0xf9] sm:$0xff] %vm351, %v698
        %732 = vst.msk [vmem:[%s709 + $0x109] sm:$0xff] %vm351, %v699
        %733 = vst.msk [vmem:[%s709 + $0x111] sm:$0xff] %vm351, %v700
        %734 = vst.msk [vmem:[%s709 + $0x121] sm:$0xff] %vm351, %v701
        %735 = vst.msk [vmem:[%s709 + $0x129] sm:$0xff] %vm351, %v702
        %736 = vst.msk [vmem:[%s709 + $0x139] sm:$0xff] %vm351, %v703
        %737 = vst.msk [vmem:[%s709 + $0x141] sm:$0xff] %vm351, %v704
        %738 = vst.msk [vmem:[%s709 + $0x151] sm:$0xff] %vm351, %v705
        %739 = vst.msk [vmem:[%s709 + $0x159] sm:$0xff] %vm351, %v706
        %740 = vst.msk [vmem:[%s709 + $0x169] sm:$0xff] %vm351, %v707
        %741 = vst.msk [vmem:[%s709 + $0x171] sm:$0xff] %vm351, %v708
        %742 = vst.msk [vmem:[#allocation2] sm:$0xff] %vm351, 0.0
        %743 = vst.msk [vmem:[#allocation2 + $0x8] sm:$0xff] %vm351, 0.0
        %vm744 = vcmask 25600
        %745 = vst.msk [vmem:[#allocation2 + $0x10] sm:$0x3] %vm744, 0.0
        %s746 = scalar_lea.vmem [#allocation2], 408
        %747 = vst.msk [vmem:[%s746] sm:$0xff] %vm351, 0.0
        %748 = vst.msk [vmem:[%s746 + $0x8] sm:$0xff] %vm351, 0.0
        %749 = vst.msk [vmem:[%s746 + $0x10] sm:$0x3] %vm744, 0.0
        %vm750 = vcmask 24576
        %751 = vst.msk [vmem:[#allocation2] sm:$0x1] %vm750, 0.0
        %752 = vst.msk [vmem:[#allocation2 + $0x18] sm:$0x1] %vm750, 0.0
        %753 = vst.msk [vmem:[#allocation2 + $0x30] sm:$0x1] %vm750, 0.0
        %754 = vst.msk [vmem:[#allocation2 + $0x48] sm:$0x1] %vm750, 0.0
        %755 = vst.msk [vmem:[#allocation2 + $0x60] sm:$0x1] %vm750, 0.0
        %756 = vst.msk [vmem:[#allocation2 + $0x78] sm:$0x1] %vm750, 0.0
        %757 = vst.msk [vmem:[#allocation2 + $0x90] sm:$0x1] %vm750, 0.0
        %758 = vst.msk [vmem:[#allocation2 + $0xa8] sm:$0x1] %vm750, 0.0
        %759 = vst.msk [vmem:[#allocation2 + $0xc0] sm:$0x1] %vm750, 0.0
        %760 = vst.msk [vmem:[#allocation2 + $0xd8] sm:$0x1] %vm750, 0.0
        %761 = vst.msk [vmem:[#allocation2 + $0xf0] sm:$0x1] %vm750, 0.0
        %762 = vst.msk [vmem:[#allocation2 + $0x108] sm:$0x1] %vm750, 0.0
        %763 = vst.msk [vmem:[#allocation2 + $0x120] sm:$0x1] %vm750, 0.0
        %764 = vst.msk [vmem:[#allocation2 + $0x138] sm:$0x1] %vm750, 0.0
        %765 = vst.msk [vmem:[#allocation2 + $0x150] sm:$0x1] %vm750, 0.0
        %766 = vst.msk [vmem:[#allocation2 + $0x168] sm:$0x1] %vm750, 0.0
        %767 = vst.msk [vmem:[#allocation2 + $0x180] sm:$0x1] %vm750, 0.0
        %768 = vst.msk [vmem:[#allocation2 + $0x198] sm:$0x1] %vm750, 0.0
        %769 = vst.msk [vmem:[#allocation2 + $0x11] sm:$0x1] %vm750, 0.0
        %770 = vst.msk [vmem:[#allocation2 + $0x29] sm:$0x1] %vm750, 0.0
        %771 = vst.msk [vmem:[#allocation2 + $0x41] sm:$0x1] %vm750, 0.0
        %772 = vst.msk [vmem:[#allocation2 + $0x59] sm:$0x1] %vm750, 0.0
        %773 = vst.msk [vmem:[#allocation2 + $0x71] sm:$0x1] %vm750, 0.0
        %774 = vst.msk [vmem:[#allocation2 + $0x89] sm:$0x1] %vm750, 0.0
        %775 = vst.msk [vmem:[#allocation2 + $0xa1] sm:$0x1] %vm750, 0.0
        %776 = vst.msk [vmem:[#allocation2 + $0xb9] sm:$0x1] %vm750, 0.0
        %777 = vst.msk [vmem:[#allocation2 + $0xd1] sm:$0x1] %vm750, 0.0
        %778 = vst.msk [vmem:[#allocation2 + $0xe9] sm:$0x1] %vm750, 0.0
        %779 = vst.msk [vmem:[#allocation2 + $0x101] sm:$0x1] %vm750, 0.0
        %780 = vst.msk [vmem:[#allocation2 + $0x119] sm:$0x1] %vm750, 0.0
        %781 = vst.msk [vmem:[#allocation2 + $0x131] sm:$0x1] %vm750, 0.0
        %782 = vst.msk [vmem:[#allocation2 + $0x149] sm:$0x1] %vm750, 0.0
        %783 = vst.msk [vmem:[#allocation2 + $0x161] sm:$0x1] %vm750, 0.0
        %784 = vst.msk [vmem:[#allocation2 + $0x179] sm:$0x1] %vm750, 0.0
        %785 = vst.msk [vmem:[#allocation2 + $0x191] sm:$0x1] %vm750, 0.0
        %786 = vst.msk [vmem:[#allocation2 + $0x1a9] sm:$0x1] %vm750, 0.0
        %v787 = vld [vmem:[%s4] sm:$0x1]
        %v788 = vld [vmem:[#allocation2] sm:$0xff]
        %v789 = vld [vmem:[#allocation2 + $0x8] sm:$0xff]
        %v790 = vld [vmem:[#allocation2 + $0x18] sm:$0xff]
        %v791 = vld [vmem:[#allocation2 + $0x20] sm:$0xff]
        %v792 = vld [vmem:[#allocation2 + $0x30] sm:$0xff]
        %v793 = vld [vmem:[#allocation2 + $0x38] sm:$0xff]
        %v794 = vld [vmem:[#allocation2 + $0x48] sm:$0xff]
        %v795 = vld [vmem:[#allocation2 + $0x50] sm:$0xff]
        %v796 = vld [vmem:[#allocation2 + $0x60] sm:$0xff]
        %v797 = vld [vmem:[#allocation2 + $0x68] sm:$0xff]
        %v798 = vld [vmem:[#allocation2 + $0x78] sm:$0xff]
        %v799 = vld [vmem:[#allocation2 + $0x80] sm:$0xff]
        %v800 = vld [vmem:[#allocation2 + $0x90] sm:$0xff]
        %v801 = vld [vmem:[#allocation2 + $0x98] sm:$0xff]
        %v802 = vld [vmem:[#allocation2 + $0xa8] sm:$0xff]
        %v803 = vld [vmem:[#allocation2 + $0xb0] sm:$0xff]
        %v804 = vld [vmem:[#allocation2 + $0xc0] sm:$0xff]
        %v805 = vld [vmem:[#allocation2 + $0xc8] sm:$0xff]
        %v806 = vld [vmem:[#allocation2 + $0xd8] sm:$0xff]
        %v807 = vld [vmem:[#allocation2 + $0xe0] sm:$0xff]
        %v808 = vld [vmem:[#allocation2 + $0xf0] sm:$0xff]
        %v809 = vld [vmem:[#allocation2 + $0xf8] sm:$0xff]
        %v810 = vld [vmem:[#allocation2 + $0x108] sm:$0xff]
        %v811 = vld [vmem:[#allocation2 + $0x110] sm:$0xff]
        %v812 = vld [vmem:[#allocation2 + $0x120] sm:$0xff]
        %v813 = vld [vmem:[#allocation2 + $0x128] sm:$0xff]
        %v814 = vld [vmem:[#allocation2 + $0x138] sm:$0xff]
        %v815 = vld [vmem:[#allocation2 + $0x140] sm:$0xff]
        %v816 = vld [vmem:[#allocation2 + $0x150] sm:$0xff]
        %v817 = vld [vmem:[#allocation2 + $0x158] sm:$0xff]
        %v818 = vld [vmem:[#allocation2 + $0x168] sm:$0xff]
        %v819 = vld [vmem:[#allocation2 + $0x170] sm:$0xff]
        %v820 = vld [vmem:[#allocation2 + $0x1] sm:$0xff]
        %v821 = vld [vmem:[#allocation2 + $0x9] sm:$0xff]
        %v822 = vld [vmem:[#allocation2 + $0x19] sm:$0xff]
        %v823 = vld [vmem:[#allocation2 + $0x21] sm:$0xff]
        %v824 = vld [vmem:[#allocation2 + $0x31] sm:$0xff]
        %v825 = vld [vmem:[#allocation2 + $0x39] sm:$0xff]
        %v826 = vld [vmem:[#allocation2 + $0x49] sm:$0xff]
        %v827 = vld [vmem:[#allocation2 + $0x51] sm:$0xff]
        %v828 = vld [vmem:[#allocation2 + $0x61] sm:$0xff]
        %v829 = vld [vmem:[#allocation2 + $0x69] sm:$0xff]
        %v830 = vld [vmem:[#allocation2 + $0x79] sm:$0xff]
        %v831 = vld [vmem:[#allocation2 + $0x81] sm:$0xff]
        %v832 = vld [vmem:[#allocation2 + $0x91] sm:$0xff]
        %v833 = vld [vmem:[#allocation2 + $0x99] sm:$0xff]
        %v834 = vld [vmem:[#allocation2 + $0xa9] sm:$0xff]
        %v835 = vld [vmem:[#allocation2 + $0xb1] sm:$0xff]
        %v836 = vld [vmem:[#allocation2 + $0xc1] sm:$0xff]
        %v837 = vld [vmem:[#allocation2 + $0xc9] sm:$0xff]
        %v838 = vld [vmem:[#allocation2 + $0xd9] sm:$0xff]
        %v839 = vld [vmem:[#allocation2 + $0xe1] sm:$0xff]
        %v840 = vld [vmem:[#allocation2 + $0xf1] sm:$0xff]
        %v841 = vld [vmem:[#allocation2 + $0xf9] sm:$0xff]
        %v842 = vld [vmem:[#allocation2 + $0x109] sm:$0xff]
        %v843 = vld [vmem:[#allocation2 + $0x111] sm:$0xff]
        %v844 = vld [vmem:[#allocation2 + $0x121] sm:$0xff]
        %v845 = vld [vmem:[#allocation2 + $0x129] sm:$0xff]
        %v846 = vld [vmem:[#allocation2 + $0x139] sm:$0xff]
        %v847 = vld [vmem:[#allocation2 + $0x141] sm:$0xff]
        %v848 = vld [vmem:[#allocation2 + $0x151] sm:$0xff]
        %v849 = vld [vmem:[#allocation2 + $0x159] sm:$0xff]
        %v850 = vld [vmem:[#allocation2 + $0x169] sm:$0xff]
        %v851 = vld [vmem:[#allocation2 + $0x171] sm:$0xff]
        %v852 = vld [vmem:[#allocation2 + $0x2] sm:$0xff]
        %v853 = vld [vmem:[#allocation2 + $0xa] sm:$0xff]
        %v854 = vld [vmem:[#allocation2 + $0x1a] sm:$0xff]
        %v855 = vld [vmem:[#allocation2 + $0x22] sm:$0xff]
        %v856 = vld [vmem:[#allocation2 + $0x32] sm:$0xff]
        %v857 = vld [vmem:[#allocation2 + $0x3a] sm:$0xff]
        %v858 = vld [vmem:[#allocation2 + $0x4a] sm:$0xff]
        %v859 = vld [vmem:[#allocation2 + $0x52] sm:$0xff]
        %v860 = vld [vmem:[#allocation2 + $0x62] sm:$0xff]
        %v861 = vld [vmem:[#allocation2 + $0x6a] sm:$0xff]
        %v862 = vld [vmem:[#allocation2 + $0x7a] sm:$0xff]
        %v863 = vld [vmem:[#allocation2 + $0x82] sm:$0xff]
        %v864 = vld [vmem:[#allocation2 + $0x92] sm:$0xff]
        %v865 = vld [vmem:[#allocation2 + $0x9a] sm:$0xff]
        %v866 = vld [vmem:[#allocation2 + $0xaa] sm:$0xff]
        %v867 = vld [vmem:[#allocation2 + $0xb2] sm:$0xff]
        %v868 = vld [vmem:[#allocation2 + $0xc2] sm:$0xff]
        %v869 = vld [vmem:[#allocation2 + $0xca] sm:$0xff]
        %v870 = vld [vmem:[#allocation2 + $0xda] sm:$0xff]
        %v871 = vld [vmem:[#allocation2 + $0xe2] sm:$0xff]
        %v872 = vld [vmem:[#allocation2 + $0xf2] sm:$0xff]
        %v873 = vld [vmem:[#allocation2 + $0xfa] sm:$0xff]
        %v874 = vld [vmem:[#allocation2 + $0x10a] sm:$0xff]
        %v875 = vld [vmem:[#allocation2 + $0x112] sm:$0xff]
        %v876 = vld [vmem:[#allocation2 + $0x122] sm:$0xff]
        %v877 = vld [vmem:[#allocation2 + $0x12a] sm:$0xff]
        %v878 = vld [vmem:[#allocation2 + $0x13a] sm:$0xff]
        %v879 = vld [vmem:[#allocation2 + $0x142] sm:$0xff]
        %v880 = vld [vmem:[#allocation2 + $0x152] sm:$0xff]
        %v881 = vld [vmem:[#allocation2 + $0x15a] sm:$0xff]
        %v882 = vld [vmem:[#allocation2 + $0x16a] sm:$0xff]
        %v883 = vld [vmem:[#allocation2 + $0x172] sm:$0xff]
        %916 = vrot.lane.b32.xlu0 %v820, 4
        %v917 = vpop.permute.xlu0 %916
        %918 = vrot.lane.b32.xlu0 %v821, 4
        %v919 = vpop.permute.xlu0 %918
        %920 = vrot.lane.b32.xlu0 %v822, 4
        %v921 = vpop.permute.xlu0 %920
        %922 = vrot.lane.b32.xlu0 %v823, 4
        %v923 = vpop.permute.xlu0 %922
        %924 = vrot.lane.b32.xlu0 %v824, 4
        %v925 = vpop.permute.xlu0 %924
        %926 = vrot.lane.b32.xlu0 %v825, 4
        %v927 = vpop.permute.xlu0 %926
        %928 = vrot.lane.b32.xlu0 %v826, 4
        %v929 = vpop.permute.xlu0 %928
        %930 = vrot.lane.b32.xlu0 %v827, 4
        %v931 = vpop.permute.xlu0 %930
        %932 = vrot.lane.b32.xlu0 %v828, 4
        %v933 = vpop.permute.xlu0 %932
        %934 = vrot.lane.b32.xlu0 %v829, 4
        %v935 = vpop.permute.xlu0 %934
        %936 = vrot.lane.b32.xlu0 %v830, 4
        %v937 = vpop.permute.xlu0 %936
        %938 = vrot.lane.b32.xlu0 %v831, 4
        %v939 = vpop.permute.xlu0 %938
        %940 = vrot.lane.b32.xlu0 %v832, 4
        %v941 = vpop.permute.xlu0 %940
        %942 = vrot.lane.b32.xlu0 %v833, 4
        %v943 = vpop.permute.xlu0 %942
        %944 = vrot.lane.b32.xlu0 %v834, 4
        %v945 = vpop.permute.xlu0 %944
        %946 = vrot.lane.b32.xlu0 %v835, 4
        %v947 = vpop.permute.xlu0 %946
        %948 = vrot.lane.b32.xlu0 %v836, 4
        %v949 = vpop.permute.xlu0 %948
        %950 = vrot.lane.b32.xlu0 %v837, 4
        %v951 = vpop.permute.xlu0 %950
        %952 = vrot.lane.b32.xlu0 %v838, 4
        %v953 = vpop.permute.xlu0 %952
        %954 = vrot.lane.b32.xlu0 %v839, 4
        %v955 = vpop.permute.xlu0 %954
        %956 = vrot.lane.b32.xlu0 %v840, 4
        %v957 = vpop.permute.xlu0 %956
        %958 = vrot.lane.b32.xlu0 %v841, 4
        %v959 = vpop.permute.xlu0 %958
        %960 = vrot.lane.b32.xlu0 %v842, 4
        %v961 = vpop.permute.xlu0 %960
        %962 = vrot.lane.b32.xlu0 %v843, 4
        %v963 = vpop.permute.xlu0 %962
        %964 = vrot.lane.b32.xlu0 %v844, 4
        %v965 = vpop.permute.xlu0 %964
        %966 = vrot.lane.b32.xlu0 %v845, 4
        %v967 = vpop.permute.xlu0 %966
        %968 = vrot.lane.b32.xlu0 %v846, 4
        %v969 = vpop.permute.xlu0 %968
        %970 = vrot.lane.b32.xlu0 %v847, 4
        %v971 = vpop.permute.xlu0 %970
        %972 = vrot.lane.b32.xlu0 %v848, 4
        %v973 = vpop.permute.xlu0 %972
        %974 = vrot.lane.b32.xlu0 %v849, 4
        %v975 = vpop.permute.xlu0 %974
        %976 = vrot.lane.b32.xlu0 %v850, 4
        %v977 = vpop.permute.xlu0 %976
        %978 = vrot.lane.b32.xlu0 %v851, 4
        %v979 = vpop.permute.xlu0 %978
        %1044 = vrot.lane.b32.xlu0 %v852, 8
        %v1045 = vpop.permute.xlu0 %1044
        %1046 = vrot.lane.b32.xlu0 %v853, 8
        %v1047 = vpop.permute.xlu0 %1046
        %1048 = vrot.lane.b32.xlu0 %v854, 8
        %v1049 = vpop.permute.xlu0 %1048
        %1050 = vrot.lane.b32.xlu0 %v855, 8
        %v1051 = vpop.permute.xlu0 %1050
        %1052 = vrot.lane.b32.xlu0 %v856, 8
        %v1053 = vpop.permute.xlu0 %1052
        %1054 = vrot.lane.b32.xlu0 %v857, 8
        %v1055 = vpop.permute.xlu0 %1054
        %1056 = vrot.lane.b32.xlu0 %v858, 8
        %v1057 = vpop.permute.xlu0 %1056
        %1058 = vrot.lane.b32.xlu0 %v859, 8
        %v1059 = vpop.permute.xlu0 %1058
        %1060 = vrot.lane.b32.xlu0 %v860, 8
        %v1061 = vpop.permute.xlu0 %1060
        %1062 = vrot.lane.b32.xlu0 %v861, 8
        %v1063 = vpop.permute.xlu0 %1062
        %1064 = vrot.lane.b32.xlu0 %v862, 8
        %v1065 = vpop.permute.xlu0 %1064
        %1066 = vrot.lane.b32.xlu0 %v863, 8
        %v1067 = vpop.permute.xlu0 %1066
        %1068 = vrot.lane.b32.xlu0 %v864, 8
        %v1069 = vpop.permute.xlu0 %1068
        %1070 = vrot.lane.b32.xlu0 %v865, 8
        %v1071 = vpop.permute.xlu0 %1070
        %1072 = vrot.lane.b32.xlu0 %v866, 8
        %v1073 = vpop.permute.xlu0 %1072
        %1074 = vrot.lane.b32.xlu0 %v867, 8
        %v1075 = vpop.permute.xlu0 %1074
        %1076 = vrot.lane.b32.xlu0 %v868, 8
        %v1077 = vpop.permute.xlu0 %1076
        %1078 = vrot.lane.b32.xlu0 %v869, 8
        %v1079 = vpop.permute.xlu0 %1078
        %1080 = vrot.lane.b32.xlu0 %v870, 8
        %v1081 = vpop.permute.xlu0 %1080
        %1082 = vrot.lane.b32.xlu0 %v871, 8
        %v1083 = vpop.permute.xlu0 %1082
        %1084 = vrot.lane.b32.xlu0 %v872, 8
        %v1085 = vpop.permute.xlu0 %1084
        %1086 = vrot.lane.b32.xlu0 %v873, 8
        %v1087 = vpop.permute.xlu0 %1086
        %1088 = vrot.lane.b32.xlu0 %v874, 8
        %v1089 = vpop.permute.xlu0 %1088
        %1090 = vrot.lane.b32.xlu0 %v875, 8
        %v1091 = vpop.permute.xlu0 %1090
        %1092 = vrot.lane.b32.xlu0 %v876, 8
        %v1093 = vpop.permute.xlu0 %1092
        %1094 = vrot.lane.b32.xlu0 %v877, 8
        %v1095 = vpop.permute.xlu0 %1094
        %1096 = vrot.lane.b32.xlu0 %v878, 8
        %v1097 = vpop.permute.xlu0 %1096
        %1098 = vrot.lane.b32.xlu0 %v879, 8
        %v1099 = vpop.permute.xlu0 %1098
        %1100 = vrot.lane.b32.xlu0 %v880, 8
        %v1101 = vpop.permute.xlu0 %1100
        %1102 = vrot.lane.b32.xlu0 %v881, 8
        %v1103 = vpop.permute.xlu0 %1102
        %1104 = vrot.lane.b32.xlu0 %v882, 8
        %v1105 = vpop.permute.xlu0 %1104
        %1106 = vrot.lane.b32.xlu0 %v883, 8
        %v1107 = vpop.permute.xlu0 %1106
        %v1140 = vsel %vm351, %v788, %v917
        %v1141 = vsel %vm351, %v789, %v919
        %v1142 = vsel %vm351, %v790, %v921
        %v1143 = vsel %vm351, %v791, %v923
        %v1144 = vsel %vm351, %v792, %v925
        %v1145 = vsel %vm351, %v793, %v927
        %v1146 = vsel %vm351, %v794, %v929
        %v1147 = vsel %vm351, %v795, %v931
        %v1148 = vsel %vm351, %v796, %v933
        %v1149 = vsel %vm351, %v797, %v935
        %v1150 = vsel %vm351, %v798, %v937
        %v1151 = vsel %vm351, %v799, %v939
        %v1152 = vsel %vm351, %v800, %v941
        %v1153 = vsel %vm351, %v801, %v943
        %v1154 = vsel %vm351, %v802, %v945
        %v1155 = vsel %vm351, %v803, %v947
        %v1156 = vsel %vm351, %v804, %v949
        %v1157 = vsel %vm351, %v805, %v951
        %v1158 = vsel %vm351, %v806, %v953
        %v1159 = vsel %vm351, %v807, %v955
        %v1160 = vsel %vm351, %v808, %v957
        %v1161 = vsel %vm351, %v809, %v959
        %v1162 = vsel %vm351, %v810, %v961
        %v1163 = vsel %vm351, %v811, %v963
        %v1164 = vsel %vm351, %v812, %v965
        %v1165 = vsel %vm351, %v813, %v967
        %v1166 = vsel %vm351, %v814, %v969
        %v1167 = vsel %vm351, %v815, %v971
        %v1168 = vsel %vm351, %v816, %v973
        %v1169 = vsel %vm351, %v817, %v975
        %v1170 = vsel %vm351, %v818, %v977
        %v1171 = vsel %vm351, %v819, %v979
        %vm1172 = vcmask 64512
        %v1173 = vsel %vm1172, %v1140, %v1045
        %v1174 = vsel %vm1172, %v1141, %v1047
        %v1175 = vsel %vm1172, %v1142, %v1049
        %v1176 = vsel %vm1172, %v1143, %v1051
        %v1177 = vsel %vm1172, %v1144, %v1053
        %v1178 = vsel %vm1172, %v1145, %v1055
        %v1179 = vsel %vm1172, %v1146, %v1057
        %v1180 = vsel %vm1172, %v1147, %v1059
        %v1181 = vsel %vm1172, %v1148, %v1061
        %v1182 = vsel %vm1172, %v1149, %v1063
        %v1183 = vsel %vm1172, %v1150, %v1065
        %v1184 = vsel %vm1172, %v1151, %v1067
        %v1185 = vsel %vm1172, %v1152, %v1069
        %v1186 = vsel %vm1172, %v1153, %v1071
        %v1187 = vsel %vm1172, %v1154, %v1073
        %v1188 = vsel %vm1172, %v1155, %v1075
        %v1189 = vsel %vm1172, %v1156, %v1077
        %v1190 = vsel %vm1172, %v1157, %v1079
        %v1191 = vsel %vm1172, %v1158, %v1081
        %v1192 = vsel %vm1172, %v1159, %v1083
        %v1193 = vsel %vm1172, %v1160, %v1085
        %v1194 = vsel %vm1172, %v1161, %v1087
        %v1195 = vsel %vm1172, %v1162, %v1089
        %v1196 = vsel %vm1172, %v1163, %v1091
        %v1197 = vsel %vm1172, %v1164, %v1093
        %v1198 = vsel %vm1172, %v1165, %v1095
        %v1199 = vsel %vm1172, %v1166, %v1097
        %v1200 = vsel %vm1172, %v1167, %v1099
        %v1201 = vsel %vm1172, %v1168, %v1101
        %v1202 = vsel %vm1172, %v1169, %v1103
        %v1203 = vsel %vm1172, %v1170, %v1105
        %v1204 = vsel %vm1172, %v1171, %v1107
        %v1205 = vld [vmem:[%s3] sm:$0xff]
        %v1206 = vld [vmem:[%s3 + $0x8] sm:$0xf]
        %v1207 = vld [vmem:[%s709] sm:$0xff]
        %v1208 = vld [vmem:[%s709 + $0x8] sm:$0xff]
        %v1209 = vld [vmem:[%s709 + $0x18] sm:$0xff]
        %v1210 = vld [vmem:[%s709 + $0x20] sm:$0xff]
        %v1211 = vld [vmem:[%s709 + $0x30] sm:$0xff]
        %v1212 = vld [vmem:[%s709 + $0x38] sm:$0xff]
        %v1213 = vld [vmem:[%s709 + $0x48] sm:$0xff]
        %v1214 = vld [vmem:[%s709 + $0x50] sm:$0xff]
        %v1215 = vld [vmem:[%s709 + $0x60] sm:$0xff]
        %v1216 = vld [vmem:[%s709 + $0x68] sm:$0xff]
        %v1217 = vld [vmem:[%s709 + $0x78] sm:$0xff]
        %v1218 = vld [vmem:[%s709 + $0x80] sm:$0xff]
        %v1219 = vld [vmem:[%s709 + $0x90] sm:$0xff]
        %v1220 = vld [vmem:[%s709 + $0x98] sm:$0xff]
        %v1221 = vld [vmem:[%s709 + $0xa8] sm:$0xff]
        %v1222 = vld [vmem:[%s709 + $0xb0] sm:$0xff]
        %v1223 = vld [vmem:[%s709 + $0xc0] sm:$0xff]
        %v1224 = vld [vmem:[%s709 + $0xc8] sm:$0xff]
        %v1225 = vld [vmem:[%s709 + $0xd8] sm:$0xff]
        %v1226 = vld [vmem:[%s709 + $0xe0] sm:$0xff]
        %v1227 = vld [vmem:[%s709 + $0xf0] sm:$0xff]
        %v1228 = vld [vmem:[%s709 + $0xf8] sm:$0xff]
        %v1229 = vld [vmem:[%s709 + $0x108] sm:$0xff]
        %v1230 = vld [vmem:[%s709 + $0x110] sm:$0xff]
        %v1231 = vld [vmem:[%s709 + $0x120] sm:$0xff]
        %v1232 = vld [vmem:[%s709 + $0x128] sm:$0xff]
        %v1233 = vld [vmem:[%s709 + $0x138] sm:$0xff]
        %v1234 = vld [vmem:[%s709 + $0x140] sm:$0xff]
        %v1235 = vld [vmem:[%s709 + $0x150] sm:$0xff]
        %v1236 = vld [vmem:[%s709 + $0x158] sm:$0xff]
        %v1237 = vld [vmem:[%s709 + $0x168] sm:$0xff]
        %v1238 = vld [vmem:[%s709 + $0x170] sm:$0xff]
        %v1239 = vld [vmem:[%s709 + $0x1] sm:$0xff]
        %v1240 = vld [vmem:[%s709 + $0x9] sm:$0xff]
        %v1241 = vld [vmem:[%s709 + $0x19] sm:$0xff]
        %v1242 = vld [vmem:[%s709 + $0x21] sm:$0xff]
        %v1243 = vld [vmem:[%s709 + $0x31] sm:$0xff]
        %v1244 = vld [vmem:[%s709 + $0x39] sm:$0xff]
        %v1245 = vld [vmem:[%s709 + $0x49] sm:$0xff]
        %v1246 = vld [vmem:[%s709 + $0x51] sm:$0xff]
        %v1247 = vld [vmem:[%s709 + $0x61] sm:$0xff]
        %v1248 = vld [vmem:[%s709 + $0x69] sm:$0xff]
        %v1249 = vld [vmem:[%s709 + $0x79] sm:$0xff]
        %v1250 = vld [vmem:[%s709 + $0x81] sm:$0xff]
        %v1251 = vld [vmem:[%s709 + $0x91] sm:$0xff]
        %v1252 = vld [vmem:[%s709 + $0x99] sm:$0xff]
        %v1253 = vld [vmem:[%s709 + $0xa9] sm:$0xff]
        %v1254 = vld [vmem:[%s709 + $0xb1] sm:$0xff]
        %v1255 = vld [vmem:[%s709 + $0xc1] sm:$0xff]
        %v1256 = vld [vmem:[%s709 + $0xc9] sm:$0xff]
        %v1257 = vld [vmem:[%s709 + $0xd9] sm:$0xff]
        %v1258 = vld [vmem:[%s709 + $0xe1] sm:$0xff]
        %v1259 = vld [vmem:[%s709 + $0xf1] sm:$0xff]
        %v1260 = vld [vmem:[%s709 + $0xf9] sm:$0xff]
        %v1261 = vld [vmem:[%s709 + $0x109] sm:$0xff]
        %v1262 = vld [vmem:[%s709 + $0x111] sm:$0xff]
        %v1263 = vld [vmem:[%s709 + $0x121] sm:$0xff]
        %v1264 = vld [vmem:[%s709 + $0x129] sm:$0xff]
        %v1265 = vld [vmem:[%s709 + $0x139] sm:$0xff]
        %v1266 = vld [vmem:[%s709 + $0x141] sm:$0xff]
        %v1267 = vld [vmem:[%s709 + $0x151] sm:$0xff]
        %v1268 = vld [vmem:[%s709 + $0x159] sm:$0xff]
        %v1269 = vld [vmem:[%s709 + $0x169] sm:$0xff]
        %v1270 = vld [vmem:[%s709 + $0x171] sm:$0xff]
        %v1271 = vld [vmem:[%s709 + $0x2] sm:$0xff]
        %v1272 = vld [vmem:[%s709 + $0xa] sm:$0xff]
        %v1273 = vld [vmem:[%s709 + $0x1a] sm:$0xff]
        %v1274 = vld [vmem:[%s709 + $0x22] sm:$0xff]
        %v1275 = vld [vmem:[%s709 + $0x32] sm:$0xff]
        %v1276 = vld [vmem:[%s709 + $0x3a] sm:$0xff]
        %v1277 = vld [vmem:[%s709 + $0x4a] sm:$0xff]
        %v1278 = vld [vmem:[%s709 + $0x52] sm:$0xff]
        %v1279 = vld [vmem:[%s709 + $0x62] sm:$0xff]
        %v1280 = vld [vmem:[%s709 + $0x6a] sm:$0xff]
        %v1281 = vld [vmem:[%s709 + $0x7a] sm:$0xff]
        %v1282 = vld [vmem:[%s709 + $0x82] sm:$0xff]
        %v1283 = vld [vmem:[%s709 + $0x92] sm:$0xff]
        %v1284 = vld [vmem:[%s709 + $0x9a] sm:$0xff]
        %v1285 = vld [vmem:[%s709 + $0xaa] sm:$0xff]
        %v1286 = vld [vmem:[%s709 + $0xb2] sm:$0xff]
        %v1287 = vld [vmem:[%s709 + $0xc2] sm:$0xff]
        %v1288 = vld [vmem:[%s709 + $0xca] sm:$0xff]
        %v1289 = vld [vmem:[%s709 + $0xda] sm:$0xff]
        %v1290 = vld [vmem:[%s709 + $0xe2] sm:$0xff]
        %v1291 = vld [vmem:[%s709 + $0xf2] sm:$0xff]
        %v1292 = vld [vmem:[%s709 + $0xfa] sm:$0xff]
        %v1293 = vld [vmem:[%s709 + $0x10a] sm:$0xff]
        %v1294 = vld [vmem:[%s709 + $0x112] sm:$0xff]
        %v1295 = vld [vmem:[%s709 + $0x122] sm:$0xff]
        %v1296 = vld [vmem:[%s709 + $0x12a] sm:$0xff]
        %v1297 = vld [vmem:[%s709 + $0x13a] sm:$0xff]
        %v1298 = vld [vmem:[%s709 + $0x142] sm:$0xff]
        %v1299 = vld [vmem:[%s709 + $0x152] sm:$0xff]
        %v1300 = vld [vmem:[%s709 + $0x15a] sm:$0xff]
        %v1301 = vld [vmem:[%s709 + $0x16a] sm:$0xff]
        %v1302 = vld [vmem:[%s709 + $0x172] sm:$0xff]
        %1335 = vrot.lane.b32.xlu0 %v1239, 4
        %v1336 = vpop.permute.xlu0 %1335
        %1337 = vrot.lane.b32.xlu0 %v1240, 4
        %v1338 = vpop.permute.xlu0 %1337
        %1339 = vrot.lane.b32.xlu0 %v1241, 4
        %v1340 = vpop.permute.xlu0 %1339
        %1341 = vrot.lane.b32.xlu0 %v1242, 4
        %v1342 = vpop.permute.xlu0 %1341
        %1343 = vrot.lane.b32.xlu0 %v1243, 4
        %v1344 = vpop.permute.xlu0 %1343
        %1345 = vrot.lane.b32.xlu0 %v1244, 4
        %v1346 = vpop.permute.xlu0 %1345
        %1347 = vrot.lane.b32.xlu0 %v1245, 4
        %v1348 = vpop.permute.xlu0 %1347
        %1349 = vrot.lane.b32.xlu0 %v1246, 4
        %v1350 = vpop.permute.xlu0 %1349
        %1351 = vrot.lane.b32.xlu0 %v1247, 4
        %v1352 = vpop.permute.xlu0 %1351
        %1353 = vrot.lane.b32.xlu0 %v1248, 4
        %v1354 = vpop.permute.xlu0 %1353
        %1355 = vrot.lane.b32.xlu0 %v1249, 4
        %v1356 = vpop.permute.xlu0 %1355
        %1357 = vrot.lane.b32.xlu0 %v1250, 4
        %v1358 = vpop.permute.xlu0 %1357
        %1359 = vrot.lane.b32.xlu0 %v1251, 4
        %v1360 = vpop.permute.xlu0 %1359
        %1361 = vrot.lane.b32.xlu0 %v1252, 4
        %v1362 = vpop.permute.xlu0 %1361
        %1363 = vrot.lane.b32.xlu0 %v1253, 4
        %v1364 = vpop.permute.xlu0 %1363
        %1365 = vrot.lane.b32.xlu0 %v1254, 4
        %v1366 = vpop.permute.xlu0 %1365
        %1367 = vrot.lane.b32.xlu0 %v1255, 4
        %v1368 = vpop.permute.xlu0 %1367
        %1369 = vrot.lane.b32.xlu0 %v1256, 4
        %v1370 = vpop.permute.xlu0 %1369
        %1371 = vrot.lane.b32.xlu0 %v1257, 4
        %v1372 = vpop.permute.xlu0 %1371
        %1373 = vrot.lane.b32.xlu0 %v1258, 4
        %v1374 = vpop.permute.xlu0 %1373
        %1375 = vrot.lane.b32.xlu0 %v1259, 4
        %v1376 = vpop.permute.xlu0 %1375
        %1377 = vrot.lane.b32.xlu0 %v1260, 4
        %v1378 = vpop.permute.xlu0 %1377
        %1379 = vrot.lane.b32.xlu0 %v1261, 4
        %v1380 = vpop.permute.xlu0 %1379
        %1381 = vrot.lane.b32.xlu0 %v1262, 4
        %v1382 = vpop.permute.xlu0 %1381
        %1383 = vrot.lane.b32.xlu0 %v1263, 4
        %v1384 = vpop.permute.xlu0 %1383
        %1385 = vrot.lane.b32.xlu0 %v1264, 4
        %v1386 = vpop.permute.xlu0 %1385
        %1387 = vrot.lane.b32.xlu0 %v1265, 4
        %v1388 = vpop.permute.xlu0 %1387
        %1389 = vrot.lane.b32.xlu0 %v1266, 4
        %v1390 = vpop.permute.xlu0 %1389
        %1391 = vrot.lane.b32.xlu0 %v1267, 4
        %v1392 = vpop.permute.xlu0 %1391
        %1393 = vrot.lane.b32.xlu0 %v1268, 4
        %v1394 = vpop.permute.xlu0 %1393
        %1395 = vrot.lane.b32.xlu0 %v1269, 4
        %v1396 = vpop.permute.xlu0 %1395
        %1397 = vrot.lane.b32.xlu0 %v1270, 4
        %v1398 = vpop.permute.xlu0 %1397
        %1463 = vrot.lane.b32.xlu0 %v1271, 8
        %v1464 = vpop.permute.xlu0 %1463
        %1465 = vrot.lane.b32.xlu0 %v1272, 8
        %v1466 = vpop.permute.xlu0 %1465
        %1467 = vrot.lane.b32.xlu0 %v1273, 8
        %v1468 = vpop.permute.xlu0 %1467
        %1469 = vrot.lane.b32.xlu0 %v1274, 8
        %v1470 = vpop.permute.xlu0 %1469
        %1471 = vrot.lane.b32.xlu0 %v1275, 8
        %v1472 = vpop.permute.xlu0 %1471
        %1473 = vrot.lane.b32.xlu0 %v1276, 8
        %v1474 = vpop.permute.xlu0 %1473
        %1475 = vrot.lane.b32.xlu0 %v1277, 8
        %v1476 = vpop.permute.xlu0 %1475
        %1477 = vrot.lane.b32.xlu0 %v1278, 8
        %v1478 = vpop.permute.xlu0 %1477
        %1479 = vrot.lane.b32.xlu0 %v1279, 8
        %v1480 = vpop.permute.xlu0 %1479
        %1481 = vrot.lane.b32.xlu0 %v1280, 8
        %v1482 = vpop.permute.xlu0 %1481
        %1483 = vrot.lane.b32.xlu0 %v1281, 8
        %v1484 = vpop.permute.xlu0 %1483
        %1485 = vrot.lane.b32.xlu0 %v1282, 8
        %v1486 = vpop.permute.xlu0 %1485
        %1487 = vrot.lane.b32.xlu0 %v1283, 8
        %v1488 = vpop.permute.xlu0 %1487
        %1489 = vrot.lane.b32.xlu0 %v1284, 8
        %v1490 = vpop.permute.xlu0 %1489
        %1491 = vrot.lane.b32.xlu0 %v1285, 8
        %v1492 = vpop.permute.xlu0 %1491
        %1493 = vrot.lane.b32.xlu0 %v1286, 8
        %v1494 = vpop.permute.xlu0 %1493
        %1495 = vrot.lane.b32.xlu0 %v1287, 8
        %v1496 = vpop.permute.xlu0 %1495
        %1497 = vrot.lane.b32.xlu0 %v1288, 8
        %v1498 = vpop.permute.xlu0 %1497
        %1499 = vrot.lane.b32.xlu0 %v1289, 8
        %v1500 = vpop.permute.xlu0 %1499
        %1501 = vrot.lane.b32.xlu0 %v1290, 8
        %v1502 = vpop.permute.xlu0 %1501
        %1503 = vrot.lane.b32.xlu0 %v1291, 8
        %v1504 = vpop.permute.xlu0 %1503
        %1505 = vrot.lane.b32.xlu0 %v1292, 8
        %v1506 = vpop.permute.xlu0 %1505
        %1507 = vrot.lane.b32.xlu0 %v1293, 8
        %v1508 = vpop.permute.xlu0 %1507
        %1509 = vrot.lane.b32.xlu0 %v1294, 8
        %v1510 = vpop.permute.xlu0 %1509
        %1511 = vrot.lane.b32.xlu0 %v1295, 8
        %v1512 = vpop.permute.xlu0 %1511
        %1513 = vrot.lane.b32.xlu0 %v1296, 8
        %v1514 = vpop.permute.xlu0 %1513
        %1515 = vrot.lane.b32.xlu0 %v1297, 8
        %v1516 = vpop.permute.xlu0 %1515
        %1517 = vrot.lane.b32.xlu0 %v1298, 8
        %v1518 = vpop.permute.xlu0 %1517
        %1519 = vrot.lane.b32.xlu0 %v1299, 8
        %v1520 = vpop.permute.xlu0 %1519
        %1521 = vrot.lane.b32.xlu0 %v1300, 8
        %v1522 = vpop.permute.xlu0 %1521
        %1523 = vrot.lane.b32.xlu0 %v1301, 8
        %v1524 = vpop.permute.xlu0 %1523
        %1525 = vrot.lane.b32.xlu0 %v1302, 8
        %v1526 = vpop.permute.xlu0 %1525
        %v1559 = vsel %vm351, %v1207, %v1336
        %v1560 = vsel %vm351, %v1208, %v1338
        %v1561 = vsel %vm351, %v1209, %v1340
        %v1562 = vsel %vm351, %v1210, %v1342
        %v1563 = vsel %vm351, %v1211, %v1344
        %v1564 = vsel %vm351, %v1212, %v1346
        %v1565 = vsel %vm351, %v1213, %v1348
        %v1566 = vsel %vm351, %v1214, %v1350
        %v1567 = vsel %vm351, %v1215, %v1352
        %v1568 = vsel %vm351, %v1216, %v1354
        %v1569 = vsel %vm351, %v1217, %v1356
        %v1570 = vsel %vm351, %v1218, %v1358
        %v1571 = vsel %vm351, %v1219, %v1360
        %v1572 = vsel %vm351, %v1220, %v1362
        %v1573 = vsel %vm351, %v1221, %v1364
        %v1574 = vsel %vm351, %v1222, %v1366
        %v1575 = vsel %vm351, %v1223, %v1368
        %v1576 = vsel %vm351, %v1224, %v1370
        %v1577 = vsel %vm351, %v1225, %v1372
        %v1578 = vsel %vm351, %v1226, %v1374
        %v1579 = vsel %vm351, %v1227, %v1376
        %v1580 = vsel %vm351, %v1228, %v1378
        %v1581 = vsel %vm351, %v1229, %v1380
        %v1582 = vsel %vm351, %v1230, %v1382
        %v1583 = vsel %vm351, %v1231, %v1384
        %v1584 = vsel %vm351, %v1232, %v1386
        %v1585 = vsel %vm351, %v1233, %v1388
        %v1586 = vsel %vm351, %v1234, %v1390
        %v1587 = vsel %vm351, %v1235, %v1392
        %v1588 = vsel %vm351, %v1236, %v1394
        %v1589 = vsel %vm351, %v1237, %v1396
        %v1590 = vsel %vm351, %v1238, %v1398
        %v1591 = vsel %vm1172, %v1559, %v1464
        %v1592 = vsel %vm1172, %v1560, %v1466
        %v1593 = vsel %vm1172, %v1561, %v1468
        %v1594 = vsel %vm1172, %v1562, %v1470
        %v1595 = vsel %vm1172, %v1563, %v1472
        %v1596 = vsel %vm1172, %v1564, %v1474
        %v1597 = vsel %vm1172, %v1565, %v1476
        %v1598 = vsel %vm1172, %v1566, %v1478
        %v1599 = vsel %vm1172, %v1567, %v1480
        %v1600 = vsel %vm1172, %v1568, %v1482
        %v1601 = vsel %vm1172, %v1569, %v1484
        %v1602 = vsel %vm1172, %v1570, %v1486
        %v1603 = vsel %vm1172, %v1571, %v1488
        %v1604 = vsel %vm1172, %v1572, %v1490
        %v1605 = vsel %vm1172, %v1573, %v1492
        %v1606 = vsel %vm1172, %v1574, %v1494
        %v1607 = vsel %vm1172, %v1575, %v1496
        %v1608 = vsel %vm1172, %v1576, %v1498
        %v1609 = vsel %vm1172, %v1577, %v1500
        %v1610 = vsel %vm1172, %v1578, %v1502
        %v1611 = vsel %vm1172, %v1579, %v1504
        %v1612 = vsel %vm1172, %v1580, %v1506
        %v1613 = vsel %vm1172, %v1581, %v1508
        %v1614 = vsel %vm1172, %v1582, %v1510
        %v1615 = vsel %vm1172, %v1583, %v1512
        %v1616 = vsel %vm1172, %v1584, %v1514
        %v1617 = vsel %vm1172, %v1585, %v1516
        %v1618 = vsel %vm1172, %v1586, %v1518
        %v1619 = vsel %vm1172, %v1587, %v1520
        %v1620 = vsel %vm1172, %v1588, %v1522
        %v1621 = vsel %vm1172, %v1589, %v1524
        %v1622 = vsel %vm1172, %v1590, %v1526
        %s1623 = scalar_lea.vmem %s3, 16
        %v1624 = vld [vmem:[%s1623] sm:$0xff]
        %v1625 = vld [vmem:[%s1623 + $0x8] sm:$0xf]
        %vm1626 = vcmask 97280
        %v1628 = vsel %vm1626, %v1591, 0
        %v1631 = vsel %vm1626, %v1592, 0
        %v1634 = vsel %vm1626, %v1593, 0
        %v1637 = vsel %vm1626, %v1594, 0
        %v1640 = vsel %vm1626, %v1595, 0
        %v1643 = vsel %vm1626, %v1596, 0
        %v1646 = vsel %vm1626, %v1597, 0
        %v1649 = vsel %vm1626, %v1598, 0
        %v1652 = vsel %vm1626, %v1599, 0
        %v1655 = vsel %vm1626, %v1600, 0
        %v1658 = vsel %vm1626, %v1601, 0
        %v1661 = vsel %vm1626, %v1602, 0
        %v1664 = vsel %vm1626, %v1603, 0
        %v1667 = vsel %vm1626, %v1604, 0
        %v1670 = vsel %vm1626, %v1605, 0
        %v1673 = vsel %vm1626, %v1606, 0
        %v1676 = vsel %vm1626, %v1607, 0
        %v1679 = vsel %vm1626, %v1608, 0
        %v1682 = vsel %vm1626, %v1609, 0
        %v1685 = vsel %vm1626, %v1610, 0
        %v1688 = vsel %vm1626, %v1611, 0
        %v1691 = vsel %vm1626, %v1612, 0
        %v1694 = vsel %vm1626, %v1613, 0
        %v1697 = vsel %vm1626, %v1614, 0
        %v1700 = vsel %vm1626, %v1615, 0
        %v1703 = vsel %vm1626, %v1616, 0
        %v1706 = vsel %vm1626, %v1617, 0
        %v1709 = vsel %vm1626, %v1618, 0
        %v1712 = vsel %vm1626, %v1619, 0
        %v1715 = vsel %vm1626, %v1620, 0
        %v1718 = vsel %vm1626, %v1621, 0
        %v1721 = vsel %vm1626, %v1622, 0
        %v1724 = vsel %vm448, %v1625, 0
        %1726 = vmatprep.subr.mxu0 0.0
        %1727 = vmatpush1.msra.mxu0 %v1624
        %1728 = vmatprep.subr.mxu0 0.0
        %1729 = vmatpush1.msra.mxu0 %v1724
        %1730 = vmatprep.subr.mxu0 0.0
        %1731 = vmatpush1.msra.mxu0 0.0
        %1732 = vmatprep.subr.mxu0 0.0
        %1733 = vmatpush1.msra.mxu0 0.0
        %1734 = vmatprep.subr.mxu0 0.0
        %1735 = vmatpush1.msra.mxu0 0.0
        %1736 = vmatprep.subr.mxu0 0.0
        %1737 = vmatpush1.msra.mxu0 0.0
        %1738 = vmatprep.subr.mxu0 0.0
        %1739 = vmatpush1.msra.mxu0 0.0
        %1740 = vmatprep.subr.mxu0 0.0
        %1741 = vmatpush1.msra.mxu0 0.0
        %1742 = vmatprep.subr.mxu0 0.0
        %1743 = vmatpush1.msra.mxu0 0.0
        %1744 = vmatprep.subr.mxu0 0.0
        %1745 = vmatpush1.msra.mxu0 0.0
        %1746 = vmatprep.subr.mxu0 0.0
        %1747 = vmatpush1.msra.mxu0 0.0
        %1748 = vmatprep.subr.mxu0 0.0
        %1749 = vmatpush1.msra.mxu0 0.0
        %1750 = vmatprep.subr.mxu0 0.0
        %1751 = vmatpush1.msra.mxu0 0.0
        %1752 = vmatprep.subr.mxu0 0.0
        %1753 = vmatpush1.msra.mxu0 0.0
        %1754 = vmatprep.subr.mxu0 0.0
        %1755 = vmatpush1.msra.mxu0 0.0
        %1756 = vmatprep.subr.mxu0 0.0
        %1757 = vmatpush1.msra.mxu0 0.0
        %1758 = vmatprep.subr.mxu0 0.0
        %1759 = vmatpush1.msra.mxu0 0.0
        %1760 = vmatprep.subr.mxu0 0.0
        %1761 = vmatpush1.msra.mxu0 0.0
        %1762 = vmatprep.subr.mxu0 0.0
        %1763 = vmatpush1.msra.mxu0 0.0
        %1764 = vmatprep.subr.mxu0 0.0
        %1765 = vmatpush1.msra.mxu0 0.0
        %1766 = vmatprep.subr.mxu0 0.0
        %1767 = vmatpush1.msra.mxu0 0.0
        %1768 = vmatprep.subr.mxu0 0.0
        %1769 = vmatpush1.msra.mxu0 0.0
        %1770 = vmatprep.subr.mxu0 0.0
        %1771 = vmatpush1.msra.mxu0 0.0
        %1772 = vmatprep.subr.mxu0 0.0
        %1773 = vmatpush1.msra.mxu0 0.0
        %1774 = vmatprep.subr.mxu0 0.0
        %1775 = vmatpush1.msra.mxu0 0.0
        %1776 = vmatprep.subr.mxu0 0.0
        %1777 = vmatpush1.msra.mxu0 0.0
        %1778 = vmatprep.subr.mxu0 0.0
        %1779 = vmatpush1.msra.mxu0 0.0
        %1780 = vmatprep.subr.mxu0 0.0
        %1781 = vmatpush1.msra.mxu0 0.0
        %1782 = vmatprep.subr.mxu0 0.0
        %1783 = vmatpush1.msra.mxu0 0.0
        %1784 = vmatprep.subr.mxu0 0.0
        %1785 = vmatpush1.msra.mxu0 0.0
        %1786 = vmatprep.subr.mxu0 0.0
        %1787 = vmatpush1.msra.mxu0 0.0
        %1788 = vmatprep.subr.mxu0 0.0
        %1789 = vmatpush1.msra.mxu0 0.0
        %1790 = vmatprep.mubr.f32.mxu0 0.0
        %1791 = vmatmul.mubr.f32.gmra.mrb[0].mxu0 %v1628
        %v1792 = vpop.f32.mrb[0].mxu0
        %v1793 = vadd.f32 0.0, %v1792
        %v1794 = vpop.f32.mrb[0].mxu0
        %1795 = vmatprep.mubr.f32.mxu0 0.0
        %1796 = vmatmul.mubr.f32.gmra.mrb[0].mxu0 %v1631
        %v1797 = vpop.f32.mrb[0].mxu0
        %v1798 = vadd.f32 0.0, %v1797
        %v1799 = vpop.f32.mrb[0].mxu0
        %1800 = vmatprep.mubr.f32.mxu0 0.0
        %1801 = vmatmul.mubr.f32.gmra.mrb[0].mxu0 %v1634
        %v1802 = vpop.f32.mrb[0].mxu0
        %v1803 = vadd.f32 0.0, %v1802
        %v1804 = vpop.f32.mrb[0].mxu0
        %1805 = vmatprep.mubr.f32.mxu0 0.0
        %1806 = vmatmul.mubr.f32.gmra.mrb[0].mxu0 %v1637
        %v1807 = vpop.f32.mrb[0].mxu0
        %v1808 = vadd.f32 0.0, %v1807
        %v1809 = vpop.f32.mrb[0].mxu0
        %1810 = vmatprep.mubr.f32.mxu0 0.0
        %1811 = vmatmul.mubr.f32.gmra.mrb[0].mxu0 %v1640
        %v1812 = vpop.f32.mrb[0].mxu0
        %v1813 = vadd.f32 0.0, %v1812
        %v1814 = vpop.f32.mrb[0].mxu0
        %1815 = vmatprep.mubr.f32.mxu0 0.0
        %1816 = vmatmul.mubr.f32.gmra.mrb[0].mxu0 %v1643
        %v1817 = vpop.f32.mrb[0].mxu0
        %v1818 = vadd.f32 0.0, %v1817
        %v1819 = vpop.f32.mrb[0].mxu0
        %1820 = vmatprep.mubr.f32.mxu0 0.0
        %1821 = vmatmul.mubr.f32.gmra.mrb[0].mxu0 %v1646
        %v1822 = vpop.f32.mrb[0].mxu0
        %v1823 = vadd.f32 0.0, %v1822
        %v1824 = vpop.f32.mrb[0].mxu0
        %1825 = vmatprep.mubr.f32.mxu0 0.0
        %1826 = vmatmul.mubr.f32.gmra.mrb[0].mxu0 %v1649
        %v1827 = vpop.f32.mrb[0].mxu0
        %v1828 = vadd.f32 0.0, %v1827
        %v1829 = vpop.f32.mrb[0].mxu0
        %1830 = vmatprep.mubr.f32.mxu0 0.0
        %1831 = vmatmul.mubr.f32.gmra.mrb[0].mxu0 %v1652
        %v1832 = vpop.f32.mrb[0].mxu0
        %v1833 = vadd.f32 0.0, %v1832
        %v1834 = vpop.f32.mrb[0].mxu0
        %1835 = vmatprep.mubr.f32.mxu0 0.0
        %1836 = vmatmul.mubr.f32.gmra.mrb[0].mxu0 %v1655
        %v1837 = vpop.f32.mrb[0].mxu0
        %v1838 = vadd.f32 0.0, %v1837
        %v1839 = vpop.f32.mrb[0].mxu0
        %1840 = vmatprep.mubr.f32.mxu0 0.0
        %1841 = vmatmul.mubr.f32.gmra.mrb[0].mxu0 %v1658
        %v1842 = vpop.f32.mrb[0].mxu0
        %v1843 = vadd.f32 0.0, %v1842
        %v1844 = vpop.f32.mrb[0].mxu0
        %1845 = vmatprep.mubr.f32.mxu0 0.0
        %1846 = vmatmul.mubr.f32.gmra.mrb[0].mxu0 %v1661
        %v1847 = vpop.f32.mrb[0].mxu0
        %v1848 = vadd.f32 0.0, %v1847
        %v1849 = vpop.f32.mrb[0].mxu0
        %1850 = vmatprep.mubr.f32.mxu0 0.0
        %1851 = vmatmul.mubr.f32.gmra.mrb[0].mxu0 %v1664
        %v1852 = vpop.f32.mrb[0].mxu0
        %v1853 = vadd.f32 0.0, %v1852
        %v1854 = vpop.f32.mrb[0].mxu0
        %1855 = vmatprep.mubr.f32.mxu0 0.0
        %1856 = vmatmul.mubr.f32.gmra.mrb[0].mxu0 %v1667
        %v1857 = vpop.f32.mrb[0].mxu0
        %v1858 = vadd.f32 0.0, %v1857
        %v1859 = vpop.f32.mrb[0].mxu0
        %1860 = vmatprep.mubr.f32.mxu0 0.0
        %1861 = vmatmul.mubr.f32.gmra.mrb[0].mxu0 %v1670
        %v1862 = vpop.f32.mrb[0].mxu0
        %v1863 = vadd.f32 0.0, %v1862
        %v1864 = vpop.f32.mrb[0].mxu0
        %1865 = vmatprep.mubr.f32.mxu0 0.0
        %1866 = vmatmul.mubr.f32.gmra.mrb[0].mxu0 %v1673
        %v1867 = vpop.f32.mrb[0].mxu0
        %v1868 = vadd.f32 0.0, %v1867
        %v1869 = vpop.f32.mrb[0].mxu0
        %1870 = vmatprep.mubr.f32.mxu0 0.0
        %1871 = vmatmul.mubr.f32.gmra.mrb[0].mxu0 %v1676
        %v1872 = vpop.f32.mrb[0].mxu0
        %v1873 = vadd.f32 0.0, %v1872
        %v1874 = vpop.f32.mrb[0].mxu0
        %1875 = vmatprep.mubr.f32.mxu0 0.0
        %1876 = vmatmul.mubr.f32.gmra.mrb[0].mxu0 %v1679
        %v1877 = vpop.f32.mrb[0].mxu0
        %v1878 = vadd.f32 0.0, %v1877
        %v1879 = vpop.f32.mrb[0].mxu0
        %1880 = vmatprep.mubr.f32.mxu0 0.0
        %1881 = vmatmul.mubr.f32.gmra.mrb[0].mxu0 %v1682
        %v1882 = vpop.f32.mrb[0].mxu0
        %v1883 = vadd.f32 0.0, %v1882
        %v1884 = vpop.f32.mrb[0].mxu0
        %1885 = vmatprep.mubr.f32.mxu0 0.0
        %1886 = vmatmul.mubr.f32.gmra.mrb[0].mxu0 %v1685
        %v1887 = vpop.f32.mrb[0].mxu0
        %v1888 = vadd.f32 0.0, %v1887
        %v1889 = vpop.f32.mrb[0].mxu0
        %1890 = vmatprep.mubr.f32.mxu0 0.0
        %1891 = vmatmul.mubr.f32.gmra.mrb[0].mxu0 %v1688
        %v1892 = vpop.f32.mrb[0].mxu0
        %v1893 = vadd.f32 0.0, %v1892
        %v1894 = vpop.f32.mrb[0].mxu0
        %1895 = vmatprep.mubr.f32.mxu0 0.0
        %1896 = vmatmul.mubr.f32.gmra.mrb[0].mxu0 %v1691
        %v1897 = vpop.f32.mrb[0].mxu0
        %v1898 = vadd.f32 0.0, %v1897
        %v1899 = vpop.f32.mrb[0].mxu0
        %1900 = vmatprep.mubr.f32.mxu0 0.0
        %1901 = vmatmul.mubr.f32.gmra.mrb[0].mxu0 %v1694
        %v1902 = vpop.f32.mrb[0].mxu0
        %v1903 = vadd.f32 0.0, %v1902
        %v1904 = vpop.f32.mrb[0].mxu0
        %1905 = vmatprep.mubr.f32.mxu0 0.0
        %1906 = vmatmul.mubr.f32.gmra.mrb[0].mxu0 %v1697
        %v1907 = vpop.f32.mrb[0].mxu0
        %v1908 = vadd.f32 0.0, %v1907
        %v1909 = vpop.f32.mrb[0].mxu0
        %1910 = vmatprep.mubr.f32.mxu0 0.0
        %1911 = vmatmul.mubr.f32.gmra.mrb[0].mxu0 %v1700
        %v1912 = vpop.f32.mrb[0].mxu0
        %v1913 = vadd.f32 0.0, %v1912
        %v1914 = vpop.f32.mrb[0].mxu0
        %1915 = vmatprep.mubr.f32.mxu0 0.0
        %1916 = vmatmul.mubr.f32.gmra.mrb[0].mxu0 %v1703
        %v1917 = vpop.f32.mrb[0].mxu0
        %v1918 = vadd.f32 0.0, %v1917
        %v1919 = vpop.f32.mrb[0].mxu0
        %1920 = vmatprep.mubr.f32.mxu0 0.0
        %1921 = vmatmul.mubr.f32.gmra.mrb[0].mxu0 %v1706
        %v1922 = vpop.f32.mrb[0].mxu0
        %v1923 = vadd.f32 0.0, %v1922
        %v1924 = vpop.f32.mrb[0].mxu0
        %1925 = vmatprep.mubr.f32.mxu0 0.0
        %1926 = vmatmul.mubr.f32.gmra.mrb[0].mxu0 %v1709
        %v1927 = vpop.f32.mrb[0].mxu0
        %v1928 = vadd.f32 0.0, %v1927
        %v1929 = vpop.f32.mrb[0].mxu0
        %1930 = vmatprep.mubr.f32.mxu0 0.0
        %1931 = vmatmul.mubr.f32.gmra.mrb[0].mxu0 %v1712
        %v1932 = vpop.f32.mrb[0].mxu0
        %v1933 = vadd.f32 0.0, %v1932
        %v1934 = vpop.f32.mrb[0].mxu0
        %1935 = vmatprep.mubr.f32.mxu0 0.0
        %1936 = vmatmul.mubr.f32.gmra.mrb[0].mxu0 %v1715
        %v1937 = vpop.f32.mrb[0].mxu0
        %v1938 = vadd.f32 0.0, %v1937
        %v1939 = vpop.f32.mrb[0].mxu0
        %1940 = vmatprep.mubr.f32.mxu0 0.0
        %1941 = vmatmul.mubr.f32.gmra.mrb[0].mxu0 %v1718
        %v1942 = vpop.f32.mrb[0].mxu0
        %v1943 = vadd.f32 0.0, %v1942
        %v1944 = vpop.f32.mrb[0].mxu0
        %1945 = vmatprep.mubr.f32.mxu0 0.0
        %1946 = vmatmul.mubr.f32.gmra.mrb[0].mxu0 %v1721
        %v1947 = vpop.f32.mrb[0].mxu0
        %v1948 = vadd.f32 0.0, %v1947
        %v1949 = vpop.f32.mrb[0].mxu0
        %1950 = vdwg.mxu0
        %v1952 = vsel %vm1626, %v1173, 0
        %v1955 = vsel %vm1626, %v1174, 0
        %v1958 = vsel %vm1626, %v1175, 0
        %v1961 = vsel %vm1626, %v1176, 0
        %v1964 = vsel %vm1626, %v1177, 0
        %v1967 = vsel %vm1626, %v1178, 0
        %v1970 = vsel %vm1626, %v1179, 0
        %v1973 = vsel %vm1626, %v1180, 0
        %v1976 = vsel %vm1626, %v1181, 0
        %v1979 = vsel %vm1626, %v1182, 0
        %v1982 = vsel %vm1626, %v1183, 0
        %v1985 = vsel %vm1626, %v1184, 0
        %v1988 = vsel %vm1626, %v1185, 0
        %v1991 = vsel %vm1626, %v1186, 0
        %v1994 = vsel %vm1626, %v1187, 0
        %v1997 = vsel %vm1626, %v1188, 0
        %v2000 = vsel %vm1626, %v1189, 0
        %v2003 = vsel %vm1626, %v1190, 0
        %v2006 = vsel %vm1626, %v1191, 0
        %v2009 = vsel %vm1626, %v1192, 0
        %v2012 = vsel %vm1626, %v1193, 0
        %v2015 = vsel %vm1626, %v1194, 0
        %v2018 = vsel %vm1626, %v1195, 0
        %v2021 = vsel %vm1626, %v1196, 0
        %v2024 = vsel %vm1626, %v1197, 0
        %v2027 = vsel %vm1626, %v1198, 0
        %v2030 = vsel %vm1626, %v1199, 0
        %v2033 = vsel %vm1626, %v1200, 0
        %v2036 = vsel %vm1626, %v1201, 0
        %v2039 = vsel %vm1626, %v1202, 0
        %v2042 = vsel %vm1626, %v1203, 0
        %v2045 = vsel %vm1626, %v1204, 0
        %v2048 = vsel %vm448, %v1206, 0
        %2050 = vmatprep.subr.mxu0 0.0
        %2051 = vmatpush1.msra.mxu0 %v1205
        %2052 = vmatprep.subr.mxu0 0.0
        %2053 = vmatpush1.msra.mxu0 %v2048
        %2054 = vmatprep.subr.mxu0 0.0
        %2055 = vmatpush1.msra.mxu0 0.0
        %2056 = vmatprep.subr.mxu0 0.0
        %2057 = vmatpush1.msra.mxu0 0.0
        %2058 = vmatprep.subr.mxu0 0.0
        %2059 = vmatpush1.msra.mxu0 0.0
        %2060 = vmatprep.subr.mxu0 0.0
        %2061 = vmatpush1.msra.mxu0 0.0
        %2062 = vmatprep.subr.mxu0 0.0
        %2063 = vmatpush1.msra.mxu0 0.0
        %2064 = vmatprep.subr.mxu0 0.0
        %2065 = vmatpush1.msra.mxu0 0.0
        %2066 = vmatprep.subr.mxu0 0.0
        %2067 = vmatpush1.msra.mxu0 0.0
        %2068 = vmatprep.subr.mxu0 0.0
        %2069 = vmatpush1.msra.mxu0 0.0
        %2070 = vmatprep.subr.mxu0 0.0
        %2071 = vmatpush1.msra.mxu0 0.0
        %2072 = vmatprep.subr.mxu0 0.0
        %2073 = vmatpush1.msra.mxu0 0.0
        %2074 = vmatprep.subr.mxu0 0.0
        %2075 = vmatpush1.msra.mxu0 0.0
        %2076 = vmatprep.subr.mxu0 0.0
        %2077 = vmatpush1.msra.mxu0 0.0
        %2078 = vmatprep.subr.mxu0 0.0
        %2079 = vmatpush1.msra.mxu0 0.0
        %2080 = vmatprep.subr.mxu0 0.0
        %2081 = vmatpush1.msra.mxu0 0.0
        %2082 = vmatprep.subr.mxu0 0.0
        %2083 = vmatpush1.msra.mxu0 0.0
        %2084 = vmatprep.subr.mxu0 0.0
        %2085 = vmatpush1.msra.mxu0 0.0
        %2086 = vmatprep.subr.mxu0 0.0
        %2087 = vmatpush1.msra.mxu0 0.0
        %2088 = vmatprep.subr.mxu0 0.0
        %2089 = vmatpush1.msra.mxu0 0.0
        %2090 = vmatprep.subr.mxu0 0.0
        %2091 = vmatpush1.msra.mxu0 0.0
        %2092 = vmatprep.subr.mxu0 0.0
        %2093 = vmatpush1.msra.mxu0 0.0
        %2094 = vmatprep.subr.mxu0 0.0
        %2095 = vmatpush1.msra.mxu0 0.0
        %2096 = vmatprep.subr.mxu0 0.0
        %2097 = vmatpush1.msra.mxu0 0.0
        %2098 = vmatprep.subr.mxu0 0.0
        %2099 = vmatpush1.msra.mxu0 0.0
        %2100 = vmatprep.subr.mxu0 0.0
        %2101 = vmatpush1.msra.mxu0 0.0
        %2102 = vmatprep.subr.mxu0 0.0
        %2103 = vmatpush1.msra.mxu0 0.0
        %2104 = vmatprep.subr.mxu0 0.0
        %2105 = vmatpush1.msra.mxu0 0.0
        %2106 = vmatprep.subr.mxu0 0.0
        %2107 = vmatpush1.msra.mxu0 0.0
        %2108 = vmatprep.subr.mxu0 0.0
        %2109 = vmatpush1.msra.mxu0 0.0
        %2110 = vmatprep.subr.mxu0 0.0
        %2111 = vmatpush1.msra.mxu0 0.0
        %2112 = vmatprep.subr.mxu0 0.0
        %2113 = vmatpush1.msra.mxu0 0.0
        %2114 = vmatprep.mubr.f32.mxu0 0.0
        %2115 = vmatmul.mubr.f32.gmra.mrb[0].mxu0 %v1952
        %v2116 = vpop.f32.mrb[0].mxu0
        %v2117 = vadd.f32 %v1793, %v2116
        %v2118 = vpop.f32.mrb[0].mxu0
        %2119 = vmatprep.mubr.f32.mxu0 0.0
        %2120 = vmatmul.mubr.f32.gmra.mrb[0].mxu0 %v1955
        %v2121 = vpop.f32.mrb[0].mxu0
        %v2122 = vadd.f32 %v1798, %v2121
        %v2123 = vpop.f32.mrb[0].mxu0
        %2124 = vmatprep.mubr.f32.mxu0 0.0
        %2125 = vmatmul.mubr.f32.gmra.mrb[0].mxu0 %v1958
        %v2126 = vpop.f32.mrb[0].mxu0
        %v2127 = vadd.f32 %v1803, %v2126
        %v2128 = vpop.f32.mrb[0].mxu0
        %2129 = vmatprep.mubr.f32.mxu0 0.0
        %2130 = vmatmul.mubr.f32.gmra.mrb[0].mxu0 %v1961
        %v2131 = vpop.f32.mrb[0].mxu0
        %v2132 = vadd.f32 %v1808, %v2131
        %v2133 = vpop.f32.mrb[0].mxu0
        %2134 = vmatprep.mubr.f32.mxu0 0.0
        %2135 = vmatmul.mubr.f32.gmra.mrb[0].mxu0 %v1964
        %v2136 = vpop.f32.mrb[0].mxu0
        %v2137 = vadd.f32 %v1813, %v2136
        %v2138 = vpop.f32.mrb[0].mxu0
        %2139 = vmatprep.mubr.f32.mxu0 0.0
        %2140 = vmatmul.mubr.f32.gmra.mrb[0].mxu0 %v1967
        %v2141 = vpop.f32.mrb[0].mxu0
        %v2142 = vadd.f32 %v1818, %v2141
        %v2143 = vpop.f32.mrb[0].mxu0
        %2144 = vmatprep.mubr.f32.mxu0 0.0
        %2145 = vmatmul.mubr.f32.gmra.mrb[0].mxu0 %v1970
        %v2146 = vpop.f32.mrb[0].mxu0
        %v2147 = vadd.f32 %v1823, %v2146
        %v2148 = vpop.f32.mrb[0].mxu0
        %2149 = vmatprep.mubr.f32.mxu0 0.0
        %2150 = vmatmul.mubr.f32.gmra.mrb[0].mxu0 %v1973
        %v2151 = vpop.f32.mrb[0].mxu0
        %v2152 = vadd.f32 %v1828, %v2151
        %v2153 = vpop.f32.mrb[0].mxu0
        %2154 = vmatprep.mubr.f32.mxu0 0.0
        %2155 = vmatmul.mubr.f32.gmra.mrb[0].mxu0 %v1976
        %v2156 = vpop.f32.mrb[0].mxu0
        %v2157 = vadd.f32 %v1833, %v2156
        %v2158 = vpop.f32.mrb[0].mxu0
        %2159 = vmatprep.mubr.f32.mxu0 0.0
        %2160 = vmatmul.mubr.f32.gmra.mrb[0].mxu0 %v1979
        %v2161 = vpop.f32.mrb[0].mxu0
        %v2162 = vadd.f32 %v1838, %v2161
        %v2163 = vpop.f32.mrb[0].mxu0
        %2164 = vmatprep.mubr.f32.mxu0 0.0
        %2165 = vmatmul.mubr.f32.gmra.mrb[0].mxu0 %v1982
        %v2166 = vpop.f32.mrb[0].mxu0
        %v2167 = vadd.f32 %v1843, %v2166
        %v2168 = vpop.f32.mrb[0].mxu0
        %2169 = vmatprep.mubr.f32.mxu0 0.0
        %2170 = vmatmul.mubr.f32.gmra.mrb[0].mxu0 %v1985
        %v2171 = vpop.f32.mrb[0].mxu0
        %v2172 = vadd.f32 %v1848, %v2171
        %v2173 = vpop.f32.mrb[0].mxu0
        %2174 = vmatprep.mubr.f32.mxu0 0.0
        %2175 = vmatmul.mubr.f32.gmra.mrb[0].mxu0 %v1988
        %v2176 = vpop.f32.mrb[0].mxu0
        %v2177 = vadd.f32 %v1853, %v2176
        %v2178 = vpop.f32.mrb[0].mxu0
        %2179 = vmatprep.mubr.f32.mxu0 0.0
        %2180 = vmatmul.mubr.f32.gmra.mrb[0].mxu0 %v1991
        %v2181 = vpop.f32.mrb[0].mxu0
        %v2182 = vadd.f32 %v1858, %v2181
        %v2183 = vpop.f32.mrb[0].mxu0
        %2184 = vmatprep.mubr.f32.mxu0 0.0
        %2185 = vmatmul.mubr.f32.gmra.mrb[0].mxu0 %v1994
        %v2186 = vpop.f32.mrb[0].mxu0
        %v2187 = vadd.f32 %v1863, %v2186
        %v2188 = vpop.f32.mrb[0].mxu0
        %2189 = vmatprep.mubr.f32.mxu0 0.0
        %2190 = vmatmul.mubr.f32.gmra.mrb[0].mxu0 %v1997
        %v2191 = vpop.f32.mrb[0].mxu0
        %v2192 = vadd.f32 %v1868, %v2191
        %v2193 = vpop.f32.mrb[0].mxu0
        %2194 = vmatprep.mubr.f32.mxu0 0.0
        %2195 = vmatmul.mubr.f32.gmra.mrb[0].mxu0 %v2000
        %v2196 = vpop.f32.mrb[0].mxu0
        %v2197 = vadd.f32 %v1873, %v2196
        %v2198 = vpop.f32.mrb[0].mxu0
        %2199 = vmatprep.mubr.f32.mxu0 0.0
        %2200 = vmatmul.mubr.f32.gmra.mrb[0].mxu0 %v2003
        %v2201 = vpop.f32.mrb[0].mxu0
        %v2202 = vadd.f32 %v1878, %v2201
        %v2203 = vpop.f32.mrb[0].mxu0
        %2204 = vmatprep.mubr.f32.mxu0 0.0
        %2205 = vmatmul.mubr.f32.gmra.mrb[0].mxu0 %v2006
        %v2206 = vpop.f32.mrb[0].mxu0
        %v2207 = vadd.f32 %v1883, %v2206
        %v2208 = vpop.f32.mrb[0].mxu0
        %2209 = vmatprep.mubr.f32.mxu0 0.0
        %2210 = vmatmul.mubr.f32.gmra.mrb[0].mxu0 %v2009
        %v2211 = vpop.f32.mrb[0].mxu0
        %v2212 = vadd.f32 %v1888, %v2211
        %v2213 = vpop.f32.mrb[0].mxu0
        %2214 = vmatprep.mubr.f32.mxu0 0.0
        %2215 = vmatmul.mubr.f32.gmra.mrb[0].mxu0 %v2012
        %v2216 = vpop.f32.mrb[0].mxu0
        %v2217 = vadd.f32 %v1893, %v2216
        %v2218 = vpop.f32.mrb[0].mxu0
        %2219 = vmatprep.mubr.f32.mxu0 0.0
        %2220 = vmatmul.mubr.f32.gmra.mrb[0].mxu0 %v2015
        %v2221 = vpop.f32.mrb[0].mxu0
        %v2222 = vadd.f32 %v1898, %v2221
        %v2223 = vpop.f32.mrb[0].mxu0
        %2224 = vmatprep.mubr.f32.mxu0 0.0
        %2225 = vmatmul.mubr.f32.gmra.mrb[0].mxu0 %v2018
        %v2226 = vpop.f32.mrb[0].mxu0
        %v2227 = vadd.f32 %v1903, %v2226
        %v2228 = vpop.f32.mrb[0].mxu0
        %2229 = vmatprep.mubr.f32.mxu0 0.0
        %2230 = vmatmul.mubr.f32.gmra.mrb[0].mxu0 %v2021
        %v2231 = vpop.f32.mrb[0].mxu0
        %v2232 = vadd.f32 %v1908, %v2231
        %v2233 = vpop.f32.mrb[0].mxu0
        %2234 = vmatprep.mubr.f32.mxu0 0.0
        %2235 = vmatmul.mubr.f32.gmra.mrb[0].mxu0 %v2024
        %v2236 = vpop.f32.mrb[0].mxu0
        %v2237 = vadd.f32 %v1913, %v2236
        %v2238 = vpop.f32.mrb[0].mxu0
        %2239 = vmatprep.mubr.f32.mxu0 0.0
        %2240 = vmatmul.mubr.f32.gmra.mrb[0].mxu0 %v2027
        %v2241 = vpop.f32.mrb[0].mxu0
        %v2242 = vadd.f32 %v1918, %v2241
        %v2243 = vpop.f32.mrb[0].mxu0
        %2244 = vmatprep.mubr.f32.mxu0 0.0
        %2245 = vmatmul.mubr.f32.gmra.mrb[0].mxu0 %v2030
        %v2246 = vpop.f32.mrb[0].mxu0
        %v2247 = vadd.f32 %v1923, %v2246
        %v2248 = vpop.f32.mrb[0].mxu0
        %2249 = vmatprep.mubr.f32.mxu0 0.0
        %2250 = vmatmul.mubr.f32.gmra.mrb[0].mxu0 %v2033
        %v2251 = vpop.f32.mrb[0].mxu0
        %v2252 = vadd.f32 %v1928, %v2251
        %v2253 = vpop.f32.mrb[0].mxu0
        %2254 = vmatprep.mubr.f32.mxu0 0.0
        %2255 = vmatmul.mubr.f32.gmra.mrb[0].mxu0 %v2036
        %v2256 = vpop.f32.mrb[0].mxu0
        %v2257 = vadd.f32 %v1933, %v2256
        %v2258 = vpop.f32.mrb[0].mxu0
        %2259 = vmatprep.mubr.f32.mxu0 0.0
        %2260 = vmatmul.mubr.f32.gmra.mrb[0].mxu0 %v2039
        %v2261 = vpop.f32.mrb[0].mxu0
        %v2262 = vadd.f32 %v1938, %v2261
        %v2263 = vpop.f32.mrb[0].mxu0
        %2264 = vmatprep.mubr.f32.mxu0 0.0
        %2265 = vmatmul.mubr.f32.gmra.mrb[0].mxu0 %v2042
        %v2266 = vpop.f32.mrb[0].mxu0
        %v2267 = vadd.f32 %v1943, %v2266
        %v2268 = vpop.f32.mrb[0].mxu0
        %2269 = vmatprep.mubr.f32.mxu0 0.0
        %2270 = vmatmul.mubr.f32.gmra.mrb[0].mxu0 %v2045
        %v2271 = vpop.f32.mrb[0].mxu0
        %v2272 = vadd.f32 %v1948, %v2271
        %v2273 = vpop.f32.mrb[0].mxu0
        %2274 = vdwg.mxu0
        %s2275 = scalar_lea.vmem [#allocation2], 48
        %v2276 = vld [vmem:[%s2275] sm:$0xff]
        %v2277 = vld [vmem:[%s2275 + $0x8] sm:$0xff]
        %v2278 = vld [vmem:[%s2275 + $0x18] sm:$0xff]
        %v2279 = vld [vmem:[%s2275 + $0x20] sm:$0xff]
        %v2280 = vld [vmem:[%s2275 + $0x30] sm:$0xff]
        %v2281 = vld [vmem:[%s2275 + $0x38] sm:$0xff]
        %v2282 = vld [vmem:[%s2275 + $0x48] sm:$0xff]
        %v2283 = vld [vmem:[%s2275 + $0x50] sm:$0xff]
        %v2284 = vld [vmem:[%s2275 + $0x60] sm:$0xff]
        %v2285 = vld [vmem:[%s2275 + $0x68] sm:$0xff]
        %v2286 = vld [vmem:[%s2275 + $0x78] sm:$0xff]
        %v2287 = vld [vmem:[%s2275 + $0x80] sm:$0xff]
        %v2288 = vld [vmem:[%s2275 + $0x90] sm:$0xff]
        %v2289 = vld [vmem:[%s2275 + $0x98] sm:$0xff]
        %v2290 = vld [vmem:[%s2275 + $0xa8] sm:$0xff]
        %v2291 = vld [vmem:[%s2275 + $0xb0] sm:$0xff]
        %v2292 = vld [vmem:[%s2275 + $0xc0] sm:$0xff]
        %v2293 = vld [vmem:[%s2275 + $0xc8] sm:$0xff]
        %v2294 = vld [vmem:[%s2275 + $0xd8] sm:$0xff]
        %v2295 = vld [vmem:[%s2275 + $0xe0] sm:$0xff]
        %v2296 = vld [vmem:[%s2275 + $0xf0] sm:$0xff]
        %v2297 = vld [vmem:[%s2275 + $0xf8] sm:$0xff]
        %v2298 = vld [vmem:[%s2275 + $0x108] sm:$0xff]
        %v2299 = vld [vmem:[%s2275 + $0x110] sm:$0xff]
        %v2300 = vld [vmem:[%s2275 + $0x120] sm:$0xff]
        %v2301 = vld [vmem:[%s2275 + $0x128] sm:$0xff]
        %v2302 = vld [vmem:[%s2275 + $0x138] sm:$0xff]
        %v2303 = vld [vmem:[%s2275 + $0x140] sm:$0xff]
        %v2304 = vld [vmem:[%s2275 + $0x150] sm:$0xff]
        %v2305 = vld [vmem:[%s2275 + $0x158] sm:$0xff]
        %v2306 = vld [vmem:[%s2275 + $0x168] sm:$0xff]
        %v2307 = vld [vmem:[%s2275 + $0x170] sm:$0xff]
        %v2308 = vld [vmem:[%s2275 + $0x1] sm:$0xff]
        %v2309 = vld [vmem:[%s2275 + $0x9] sm:$0xff]
        %v2310 = vld [vmem:[%s2275 + $0x19] sm:$0xff]
        %v2311 = vld [vmem:[%s2275 + $0x21] sm:$0xff]
        %v2312 = vld [vmem:[%s2275 + $0x31] sm:$0xff]
        %v2313 = vld [vmem:[%s2275 + $0x39] sm:$0xff]
        %v2314 = vld [vmem:[%s2275 + $0x49] sm:$0xff]
        %v2315 = vld [vmem:[%s2275 + $0x51] sm:$0xff]
        %v2316 = vld [vmem:[%s2275 + $0x61] sm:$0xff]
        %v2317 = vld [vmem:[%s2275 + $0x69] sm:$0xff]
        %v2318 = vld [vmem:[%s2275 + $0x79] sm:$0xff]
        %v2319 = vld [vmem:[%s2275 + $0x81] sm:$0xff]
        %v2320 = vld [vmem:[%s2275 + $0x91] sm:$0xff]
        %v2321 = vld [vmem:[%s2275 + $0x99] sm:$0xff]
        %v2322 = vld [vmem:[%s2275 + $0xa9] sm:$0xff]
        %v2323 = vld [vmem:[%s2275 + $0xb1] sm:$0xff]
        %v2324 = vld [vmem:[%s2275 + $0xc1] sm:$0xff]
        %v2325 = vld [vmem:[%s2275 + $0xc9] sm:$0xff]
        %v2326 = vld [vmem:[%s2275 + $0xd9] sm:$0xff]
        %v2327 = vld [vmem:[%s2275 + $0xe1] sm:$0xff]
        %v2328 = vld [vmem:[%s2275 + $0xf1] sm:$0xff]
        %v2329 = vld [vmem:[%s2275 + $0xf9] sm:$0xff]
        %v2330 = vld [vmem:[%s2275 + $0x109] sm:$0xff]
        %v2331 = vld [vmem:[%s2275 + $0x111] sm:$0xff]
        %v2332 = vld [vmem:[%s2275 + $0x121] sm:$0xff]
        %v2333 = vld [vmem:[%s2275 + $0x129] sm:$0xff]
        %v2334 = vld [vmem:[%s2275 + $0x139] sm:$0xff]
        %v2335 = vld [vmem:[%s2275 + $0x141] sm:$0xff]
        %v2336 = vld [vmem:[%s2275 + $0x151] sm:$0xff]
        %v2337 = vld [vmem:[%s2275 + $0x159] sm:$0xff]
        %v2338 = vld [vmem:[%s2275 + $0x169] sm:$0xff]
        %v2339 = vld [vmem:[%s2275 + $0x171] sm:$0xff]
        %v2340 = vld [vmem:[%s2275 + $0x2] sm:$0xff]
        %v2341 = vld [vmem:[%s2275 + $0xa] sm:$0xff]
        %v2342 = vld [vmem:[%s2275 + $0x1a] sm:$0xff]
        %v2343 = vld [vmem:[%s2275 + $0x22] sm:$0xff]
        %v2344 = vld [vmem:[%s2275 + $0x32] sm:$0xff]
        %v2345 = vld [vmem:[%s2275 + $0x3a] sm:$0xff]
        %v2346 = vld [vmem:[%s2275 + $0x4a] sm:$0xff]
        %v2347 = vld [vmem:[%s2275 + $0x52] sm:$0xff]
        %v2348 = vld [vmem:[%s2275 + $0x62] sm:$0xff]
        %v2349 = vld [vmem:[%s2275 + $0x6a] sm:$0xff]
        %v2350 = vld [vmem:[%s2275 + $0x7a] sm:$0xff]
        %v2351 = vld [vmem:[%s2275 + $0x82] sm:$0xff]
        %v2352 = vld [vmem:[%s2275 + $0x92] sm:$0xff]
        %v2353 = vld [vmem:[%s2275 + $0x9a] sm:$0xff]
        %v2354 = vld [vmem:[%s2275 + $0xaa] sm:$0xff]
        %v2355 = vld [vmem:[%s2275 + $0xb2] sm:$0xff]
        %v2356 = vld [vmem:[%s2275 + $0xc2] sm:$0xff]
        %v2357 = vld [vmem:[%s2275 + $0xca] sm:$0xff]
        %v2358 = vld [vmem:[%s2275 + $0xda] sm:$0xff]
        %v2359 = vld [vmem:[%s2275 + $0xe2] sm:$0xff]
        %v2360 = vld [vmem:[%s2275 + $0xf2] sm:$0xff]
        %v2361 = vld [vmem:[%s2275 + $0xfa] sm:$0xff]
        %v2362 = vld [vmem:[%s2275 + $0x10a] sm:$0xff]
        %v2363 = vld [vmem:[%s2275 + $0x112] sm:$0xff]
        %v2364 = vld [vmem:[%s2275 + $0x122] sm:$0xff]
        %v2365 = vld [vmem:[%s2275 + $0x12a] sm:$0xff]
        %v2366 = vld [vmem:[%s2275 + $0x13a] sm:$0xff]
        %v2367 = vld [vmem:[%s2275 + $0x142] sm:$0xff]
        %v2368 = vld [vmem:[%s2275 + $0x152] sm:$0xff]
        %v2369 = vld [vmem:[%s2275 + $0x15a] sm:$0xff]
        %v2370 = vld [vmem:[%s2275 + $0x16a] sm:$0xff]
        %v2371 = vld [vmem:[%s2275 + $0x172] sm:$0xff]
        %2404 = vrot.lane.b32.xlu0 %v2308, 4
        %v2405 = vpop.permute.xlu0 %2404
        %2406 = vrot.lane.b32.xlu0 %v2309, 4
        %v2407 = vpop.permute.xlu0 %2406
        %2408 = vrot.lane.b32.xlu0 %v2310, 4
        %v2409 = vpop.permute.xlu0 %2408
        %2410 = vrot.lane.b32.xlu0 %v2311, 4
        %v2411 = vpop.permute.xlu0 %2410
        %2412 = vrot.lane.b32.xlu0 %v2312, 4
        %v2413 = vpop.permute.xlu0 %2412
        %2414 = vrot.lane.b32.xlu0 %v2313, 4
        %v2415 = vpop.permute.xlu0 %2414
        %2416 = vrot.lane.b32.xlu0 %v2314, 4
        %v2417 = vpop.permute.xlu0 %2416
        %2418 = vrot.lane.b32.xlu0 %v2315, 4
        %v2419 = vpop.permute.xlu0 %2418
        %2420 = vrot.lane.b32.xlu0 %v2316, 4
        %v2421 = vpop.permute.xlu0 %2420
        %2422 = vrot.lane.b32.xlu0 %v2317, 4
        %v2423 = vpop.permute.xlu0 %2422
        %2424 = vrot.lane.b32.xlu0 %v2318, 4
        %v2425 = vpop.permute.xlu0 %2424
        %2426 = vrot.lane.b32.xlu0 %v2319, 4
        %v2427 = vpop.permute.xlu0 %2426
        %2428 = vrot.lane.b32.xlu0 %v2320, 4
        %v2429 = vpop.permute.xlu0 %2428
        %2430 = vrot.lane.b32.xlu0 %v2321, 4
        %v2431 = vpop.permute.xlu0 %2430
        %2432 = vrot.lane.b32.xlu0 %v2322, 4
        %v2433 = vpop.permute.xlu0 %2432
        %2434 = vrot.lane.b32.xlu0 %v2323, 4
        %v2435 = vpop.permute.xlu0 %2434
        %2436 = vrot.lane.b32.xlu0 %v2324, 4
        %v2437 = vpop.permute.xlu0 %2436
        %2438 = vrot.lane.b32.xlu0 %v2325, 4
        %v2439 = vpop.permute.xlu0 %2438
        %2440 = vrot.lane.b32.xlu0 %v2326, 4
        %v2441 = vpop.permute.xlu0 %2440
        %2442 = vrot.lane.b32.xlu0 %v2327, 4
        %v2443 = vpop.permute.xlu0 %2442
        %2444 = vrot.lane.b32.xlu0 %v2328, 4
        %v2445 = vpop.permute.xlu0 %2444
        %2446 = vrot.lane.b32.xlu0 %v2329, 4
        %v2447 = vpop.permute.xlu0 %2446
        %2448 = vrot.lane.b32.xlu0 %v2330, 4
        %v2449 = vpop.permute.xlu0 %2448
        %2450 = vrot.lane.b32.xlu0 %v2331, 4
        %v2451 = vpop.permute.xlu0 %2450
        %2452 = vrot.lane.b32.xlu0 %v2332, 4
        %v2453 = vpop.permute.xlu0 %2452
        %2454 = vrot.lane.b32.xlu0 %v2333, 4
        %v2455 = vpop.permute.xlu0 %2454
        %2456 = vrot.lane.b32.xlu0 %v2334, 4
        %v2457 = vpop.permute.xlu0 %2456
        %2458 = vrot.lane.b32.xlu0 %v2335, 4
        %v2459 = vpop.permute.xlu0 %2458
        %2460 = vrot.lane.b32.xlu0 %v2336, 4
        %v2461 = vpop.permute.xlu0 %2460
        %2462 = vrot.lane.b32.xlu0 %v2337, 4
        %v2463 = vpop.permute.xlu0 %2462
        %2464 = vrot.lane.b32.xlu0 %v2338, 4
        %v2465 = vpop.permute.xlu0 %2464
        %2466 = vrot.lane.b32.xlu0 %v2339, 4
        %v2467 = vpop.permute.xlu0 %2466
        %2532 = vrot.lane.b32.xlu0 %v2340, 8
        %v2533 = vpop.permute.xlu0 %2532
        %2534 = vrot.lane.b32.xlu0 %v2341, 8
        %v2535 = vpop.permute.xlu0 %2534
        %2536 = vrot.lane.b32.xlu0 %v2342, 8
        %v2537 = vpop.permute.xlu0 %2536
        %2538 = vrot.lane.b32.xlu0 %v2343, 8
        %v2539 = vpop.permute.xlu0 %2538
        %2540 = vrot.lane.b32.xlu0 %v2344, 8
        %v2541 = vpop.permute.xlu0 %2540
        %2542 = vrot.lane.b32.xlu0 %v2345, 8
        %v2543 = vpop.permute.xlu0 %2542
        %2544 = vrot.lane.b32.xlu0 %v2346, 8
        %v2545 = vpop.permute.xlu0 %2544
        %2546 = vrot.lane.b32.xlu0 %v2347, 8
        %v2547 = vpop.permute.xlu0 %2546
        %2548 = vrot.lane.b32.xlu0 %v2348, 8
        %v2549 = vpop.permute.xlu0 %2548
        %2550 = vrot.lane.b32.xlu0 %v2349, 8
        %v2551 = vpop.permute.xlu0 %2550
        %2552 = vrot.lane.b32.xlu0 %v2350, 8
        %v2553 = vpop.permute.xlu0 %2552
        %2554 = vrot.lane.b32.xlu0 %v2351, 8
        %v2555 = vpop.permute.xlu0 %2554
        %2556 = vrot.lane.b32.xlu0 %v2352, 8
        %v2557 = vpop.permute.xlu0 %2556
        %2558 = vrot.lane.b32.xlu0 %v2353, 8
        %v2559 = vpop.permute.xlu0 %2558
        %2560 = vrot.lane.b32.xlu0 %v2354, 8
        %v2561 = vpop.permute.xlu0 %2560
        %2562 = vrot.lane.b32.xlu0 %v2355, 8
        %v2563 = vpop.permute.xlu0 %2562
        %2564 = vrot.lane.b32.xlu0 %v2356, 8
        %v2565 = vpop.permute.xlu0 %2564
        %2566 = vrot.lane.b32.xlu0 %v2357, 8
        %v2567 = vpop.permute.xlu0 %2566
        %2568 = vrot.lane.b32.xlu0 %v2358, 8
        %v2569 = vpop.permute.xlu0 %2568
        %2570 = vrot.lane.b32.xlu0 %v2359, 8
        %v2571 = vpop.permute.xlu0 %2570
        %2572 = vrot.lane.b32.xlu0 %v2360, 8
        %v2573 = vpop.permute.xlu0 %2572
        %2574 = vrot.lane.b32.xlu0 %v2361, 8
        %v2575 = vpop.permute.xlu0 %2574
        %2576 = vrot.lane.b32.xlu0 %v2362, 8
        %v2577 = vpop.permute.xlu0 %2576
        %2578 = vrot.lane.b32.xlu0 %v2363, 8
        %v2579 = vpop.permute.xlu0 %2578
        %2580 = vrot.lane.b32.xlu0 %v2364, 8
        %v2581 = vpop.permute.xlu0 %2580
        %2582 = vrot.lane.b32.xlu0 %v2365, 8
        %v2583 = vpop.permute.xlu0 %2582
        %2584 = vrot.lane.b32.xlu0 %v2366, 8
        %v2585 = vpop.permute.xlu0 %2584
        %2586 = vrot.lane.b32.xlu0 %v2367, 8
        %v2587 = vpop.permute.xlu0 %2586
        %2588 = vrot.lane.b32.xlu0 %v2368, 8
        %v2589 = vpop.permute.xlu0 %2588
        %2590 = vrot.lane.b32.xlu0 %v2369, 8
        %v2591 = vpop.permute.xlu0 %2590
        %2592 = vrot.lane.b32.xlu0 %v2370, 8
        %v2593 = vpop.permute.xlu0 %2592
        %2594 = vrot.lane.b32.xlu0 %v2371, 8
        %v2595 = vpop.permute.xlu0 %2594
        %v2628 = vsel %vm351, %v2276, %v2405
        %v2629 = vsel %vm351, %v2277, %v2407
        %v2630 = vsel %vm351, %v2278, %v2409
        %v2631 = vsel %vm351, %v2279, %v2411
        %v2632 = vsel %vm351, %v2280, %v2413
        %v2633 = vsel %vm351, %v2281, %v2415
        %v2634 = vsel %vm351, %v2282, %v2417
        %v2635 = vsel %vm351, %v2283, %v2419
        %v2636 = vsel %vm351, %v2284, %v2421
        %v2637 = vsel %vm351, %v2285, %v2423
        %v2638 = vsel %vm351, %v2286, %v2425
        %v2639 = vsel %vm351, %v2287, %v2427
        %v2640 = vsel %vm351, %v2288, %v2429
        %v2641 = vsel %vm351, %v2289, %v2431
        %v2642 = vsel %vm351, %v2290, %v2433
        %v2643 = vsel %vm351, %v2291, %v2435
        %v2644 = vsel %vm351, %v2292, %v2437
        %v2645 = vsel %vm351, %v2293, %v2439
        %v2646 = vsel %vm351, %v2294, %v2441
        %v2647 = vsel %vm351, %v2295, %v2443
        %v2648 = vsel %vm351, %v2296, %v2445
        %v2649 = vsel %vm351, %v2297, %v2447
        %v2650 = vsel %vm351, %v2298, %v2449
        %v2651 = vsel %vm351, %v2299, %v2451
        %v2652 = vsel %vm351, %v2300, %v2453
        %v2653 = vsel %vm351, %v2301, %v2455
        %v2654 = vsel %vm351, %v2302, %v2457
        %v2655 = vsel %vm351, %v2303, %v2459
        %v2656 = vsel %vm351, %v2304, %v2461
        %v2657 = vsel %vm351, %v2305, %v2463
        %v2658 = vsel %vm351, %v2306, %v2465
        %v2659 = vsel %vm351, %v2307, %v2467
        %v2660 = vsel %vm1172, %v2628, %v2533
        %v2661 = vsel %vm1172, %v2629, %v2535
        %v2662 = vsel %vm1172, %v2630, %v2537
        %v2663 = vsel %vm1172, %v2631, %v2539
        %v2664 = vsel %vm1172, %v2632, %v2541
        %v2665 = vsel %vm1172, %v2633, %v2543
        %v2666 = vsel %vm1172, %v2634, %v2545
        %v2667 = vsel %vm1172, %v2635, %v2547
        %v2668 = vsel %vm1172, %v2636, %v2549
        %v2669 = vsel %vm1172, %v2637, %v2551
        %v2670 = vsel %vm1172, %v2638, %v2553
        %v2671 = vsel %vm1172, %v2639, %v2555
        %v2672 = vsel %vm1172, %v2640, %v2557
        %v2673 = vsel %vm1172, %v2641, %v2559
        %v2674 = vsel %vm1172, %v2642, %v2561
        %v2675 = vsel %vm1172, %v2643, %v2563
        %v2676 = vsel %vm1172, %v2644, %v2565
        %v2677 = vsel %vm1172, %v2645, %v2567
        %v2678 = vsel %vm1172, %v2646, %v2569
        %v2679 = vsel %vm1172, %v2647, %v2571
        %v2680 = vsel %vm1172, %v2648, %v2573
        %v2681 = vsel %vm1172, %v2649, %v2575
        %v2682 = vsel %vm1172, %v2650, %v2577
        %v2683 = vsel %vm1172, %v2651, %v2579
        %v2684 = vsel %vm1172, %v2652, %v2581
        %v2685 = vsel %vm1172, %v2653, %v2583
        %v2686 = vsel %vm1172, %v2654, %v2585
        %v2687 = vsel %vm1172, %v2655, %v2587
        %v2688 = vsel %vm1172, %v2656, %v2589
        %v2689 = vsel %vm1172, %v2657, %v2591
        %v2690 = vsel %vm1172, %v2658, %v2593
        %v2691 = vsel %vm1172, %v2659, %v2595
        %s2692 = scalar_lea.vmem %s3, 32
        %v2693 = vld [vmem:[%s2692] sm:$0xff]
        %v2694 = vld [vmem:[%s2692 + $0x8] sm:$0xf]
        %v2696 = vsel %vm1626, %v2660, 0
        %v2699 = vsel %vm1626, %v2661, 0
        %v2702 = vsel %vm1626, %v2662, 0
        %v2705 = vsel %vm1626, %v2663, 0
        %v2708 = vsel %vm1626, %v2664, 0
        %v2711 = vsel %vm1626, %v2665, 0
        %v2714 = vsel %vm1626, %v2666, 0
        %v2717 = vsel %vm1626, %v2667, 0
        %v2720 = vsel %vm1626, %v2668, 0
        %v2723 = vsel %vm1626, %v2669, 0
        %v2726 = vsel %vm1626, %v2670, 0
        %v2729 = vsel %vm1626, %v2671, 0
        %v2732 = vsel %vm1626, %v2672, 0
        %v2735 = vsel %vm1626, %v2673, 0
        %v2738 = vsel %vm1626, %v2674, 0
        %v2741 = vsel %vm1626, %v2675, 0
        %v2744 = vsel %vm1626, %v2676, 0
        %v2747 = vsel %vm1626, %v2677, 0
        %v2750 = vsel %vm1626, %v2678, 0
        %v2753 = vsel %vm1626, %v2679, 0
        %v2756 = vsel %vm1626, %v2680, 0
        %v2759 = vsel %vm1626, %v2681, 0
        %v2762 = vsel %vm1626, %v2682, 0
        %v2765 = vsel %vm1626, %v2683, 0
        %v2768 = vsel %vm1626, %v2684, 0
        %v2771 = vsel %vm1626, %v2685, 0
        %v2774 = vsel %vm1626, %v2686, 0
        %v2777 = vsel %vm1626, %v2687, 0
        %v2780 = vsel %vm1626, %v2688, 0
        %v2783 = vsel %vm1626, %v2689, 0
        %v2786 = vsel %vm1626, %v2690, 0
        %v2789 = vsel %vm1626, %v2691, 0
        %v2792 = vsel %vm448, %v2694, 0
        %2794 = vmatprep.subr.mxu0 0.0
        %2795 = vmatpush1.msra.mxu0 %v2693
        %2796 = vmatprep.subr.mxu0 0.0
        %2797 = vmatpush1.msra.mxu0 %v2792
        %2798 = vmatprep.subr.mxu0 0.0
        %2799 = vmatpush1.msra.mxu0 0.0
        %2800 = vmatprep.subr.mxu0 0.0
        %2801 = vmatpush1.msra.mxu0 0.0
        %2802 = vmatprep.subr.mxu0 0.0
        %2803 = vmatpush1.msra.mxu0 0.0
        %2804 = vmatprep.subr.mxu0 0.0
        %2805 = vmatpush1.msra.mxu0 0.0
        %2806 = vmatprep.subr.mxu0 0.0
        %2807 = vmatpush1.msra.mxu0 0.0
        %2808 = vmatprep.subr.mxu0 0.0
        %2809 = vmatpush1.msra.mxu0 0.0
        %2810 = vmatprep.subr.mxu0 0.0
        %2811 = vmatpush1.msra.mxu0 0.0
        %2812 = vmatprep.subr.mxu0 0.0
        %2813 = vmatpush1.msra.mxu0 0.0
        %2814 = vmatprep.subr.mxu0 0.0
        %2815 = vmatpush1.msra.mxu0 0.0
        %2816 = vmatprep.subr.mxu0 0.0
        %2817 = vmatpush1.msra.mxu0 0.0
        %2818 = vmatprep.subr.mxu0 0.0
        %2819 = vmatpush1.msra.mxu0 0.0
        %2820 = vmatprep.subr.mxu0 0.0
        %2821 = vmatpush1.msra.mxu0 0.0
        %2822 = vmatprep.subr.mxu0 0.0
        %2823 = vmatpush1.msra.mxu0 0.0
        %2824 = vmatprep.subr.mxu0 0.0
        %2825 = vmatpush1.msra.mxu0 0.0
        %2826 = vmatprep.subr.mxu0 0.0
        %2827 = vmatpush1.msra.mxu0 0.0
        %2828 = vmatprep.subr.mxu0 0.0
        %2829 = vmatpush1.msra.mxu0 0.0
        %2830 = vmatprep.subr.mxu0 0.0
        %2831 = vmatpush1.msra.mxu0 0.0
        %2832 = vmatprep.subr.mxu0 0.0
        %2833 = vmatpush1.msra.mxu0 0.0
        %2834 = vmatprep.subr.mxu0 0.0
        %2835 = vmatpush1.msra.mxu0 0.0
        %2836 = vmatprep.subr.mxu0 0.0
        %2837 = vmatpush1.msra.mxu0 0.0
        %2838 = vmatprep.subr.mxu0 0.0
        %2839 = vmatpush1.msra.mxu0 0.0
        %2840 = vmatprep.subr.mxu0 0.0
        %2841 = vmatpush1.msra.mxu0 0.0
        %2842 = vmatprep.subr.mxu0 0.0
        %2843 = vmatpush1.msra.mxu0 0.0
        %2844 = vmatprep.subr.mxu0 0.0
        %2845 = vmatpush1.msra.mxu0 0.0
        %2846 = vmatprep.subr.mxu0 0.0
        %2847 = vmatpush1.msra.mxu0 0.0
        %2848 = vmatprep.subr.mxu0 0.0
        %2849 = vmatpush1.msra.mxu0 0.0
        %2850 = vmatprep.subr.mxu0 0.0
        %2851 = vmatpush1.msra.mxu0 0.0
        %2852 = vmatprep.subr.mxu0 0.0
        %2853 = vmatpush1.msra.mxu0 0.0
        %2854 = vmatprep.subr.mxu0 0.0
        %2855 = vmatpush1.msra.mxu0 0.0
        %2856 = vmatprep.subr.mxu0 0.0
        %2857 = vmatpush1.msra.mxu0 0.0
        %2858 = vmatprep.mubr.f32.mxu0 0.0
        %2859 = vmatmul.mubr.f32.gmra.mrb[0].mxu0 %v2696
        %v2860 = vpop.f32.mrb[0].mxu0
        %v2861 = vadd.f32 0.0, %v2860
        %v2862 = vpop.f32.mrb[0].mxu0
        %2863 = vmatprep.mubr.f32.mxu0 0.0
        %2864 = vmatmul.mubr.f32.gmra.mrb[0].mxu0 %v2699
        %v2865 = vpop.f32.mrb[0].mxu0
        %v2866 = vadd.f32 0.0, %v2865
        %v2867 = vpop.f32.mrb[0].mxu0
        %2868 = vmatprep.mubr.f32.mxu0 0.0
        %2869 = vmatmul.mubr.f32.gmra.mrb[0].mxu0 %v2702
        %v2870 = vpop.f32.mrb[0].mxu0
        %v2871 = vadd.f32 0.0, %v2870
        %v2872 = vpop.f32.mrb[0].mxu0
        %2873 = vmatprep.mubr.f32.mxu0 0.0
        %2874 = vmatmul.mubr.f32.gmra.mrb[0].mxu0 %v2705
        %v2875 = vpop.f32.mrb[0].mxu0
        %v2876 = vadd.f32 0.0, %v2875
        %v2877 = vpop.f32.mrb[0].mxu0
        %2878 = vmatprep.mubr.f32.mxu0 0.0
        %2879 = vmatmul.mubr.f32.gmra.mrb[0].mxu0 %v2708
        %v2880 = vpop.f32.mrb[0].mxu0
        %v2881 = vadd.f32 0.0, %v2880
        %v2882 = vpop.f32.mrb[0].mxu0
        %2883 = vmatprep.mubr.f32.mxu0 0.0
        %2884 = vmatmul.mubr.f32.gmra.mrb[0].mxu0 %v2711
        %v2885 = vpop.f32.mrb[0].mxu0
        %v2886 = vadd.f32 0.0, %v2885
        %v2887 = vpop.f32.mrb[0].mxu0
        %2888 = vmatprep.mubr.f32.mxu0 0.0
        %2889 = vmatmul.mubr.f32.gmra.mrb[0].mxu0 %v2714
        %v2890 = vpop.f32.mrb[0].mxu0
        %v2891 = vadd.f32 0.0, %v2890
        %v2892 = vpop.f32.mrb[0].mxu0
        %2893 = vmatprep.mubr.f32.mxu0 0.0
        %2894 = vmatmul.mubr.f32.gmra.mrb[0].mxu0 %v2717
        %v2895 = vpop.f32.mrb[0].mxu0
        %v2896 = vadd.f32 0.0, %v2895
        %v2897 = vpop.f32.mrb[0].mxu0
        %2898 = vmatprep.mubr.f32.mxu0 0.0
        %2899 = vmatmul.mubr.f32.gmra.mrb[0].mxu0 %v2720
        %v2900 = vpop.f32.mrb[0].mxu0
        %v2901 = vadd.f32 0.0, %v2900
        %v2902 = vpop.f32.mrb[0].mxu0
        %2903 = vmatprep.mubr.f32.mxu0 0.0
        %2904 = vmatmul.mubr.f32.gmra.mrb[0].mxu0 %v2723
        %v2905 = vpop.f32.mrb[0].mxu0
        %v2906 = vadd.f32 0.0, %v2905
        %v2907 = vpop.f32.mrb[0].mxu0
        %2908 = vmatprep.mubr.f32.mxu0 0.0
        %2909 = vmatmul.mubr.f32.gmra.mrb[0].mxu0 %v2726
        %v2910 = vpop.f32.mrb[0].mxu0
        %v2911 = vadd.f32 0.0, %v2910
        %v2912 = vpop.f32.mrb[0].mxu0
        %2913 = vmatprep.mubr.f32.mxu0 0.0
        %2914 = vmatmul.mubr.f32.gmra.mrb[0].mxu0 %v2729
        %v2915 = vpop.f32.mrb[0].mxu0
        %v2916 = vadd.f32 0.0, %v2915
        %v2917 = vpop.f32.mrb[0].mxu0
        %2918 = vmatprep.mubr.f32.mxu0 0.0
        %2919 = vmatmul.mubr.f32.gmra.mrb[0].mxu0 %v2732
        %v2920 = vpop.f32.mrb[0].mxu0
        %v2921 = vadd.f32 0.0, %v2920
        %v2922 = vpop.f32.mrb[0].mxu0
        %2923 = vmatprep.mubr.f32.mxu0 0.0
        %2924 = vmatmul.mubr.f32.gmra.mrb[0].mxu0 %v2735
        %v2925 = vpop.f32.mrb[0].mxu0
        %v2926 = vadd.f32 0.0, %v2925
        %v2927 = vpop.f32.mrb[0].mxu0
        %2928 = vmatprep.mubr.f32.mxu0 0.0
        %2929 = vmatmul.mubr.f32.gmra.mrb[0].mxu0 %v2738
        %v2930 = vpop.f32.mrb[0].mxu0
        %v2931 = vadd.f32 0.0, %v2930
        %v2932 = vpop.f32.mrb[0].mxu0
        %2933 = vmatprep.mubr.f32.mxu0 0.0
        %2934 = vmatmul.mubr.f32.gmra.mrb[0].mxu0 %v2741
        %v2935 = vpop.f32.mrb[0].mxu0
        %v2936 = vadd.f32 0.0, %v2935
        %v2937 = vpop.f32.mrb[0].mxu0
        %2938 = vmatprep.mubr.f32.mxu0 0.0
        %2939 = vmatmul.mubr.f32.gmra.mrb[0].mxu0 %v2744
        %v2940 = vpop.f32.mrb[0].mxu0
        %v2941 = vadd.f32 0.0, %v2940
        %v2942 = vpop.f32.mrb[0].mxu0
        %2943 = vmatprep.mubr.f32.mxu0 0.0
        %2944 = vmatmul.mubr.f32.gmra.mrb[0].mxu0 %v2747
        %v2945 = vpop.f32.mrb[0].mxu0
        %v2946 = vadd.f32 0.0, %v2945
        %v2947 = vpop.f32.mrb[0].mxu0
        %2948 = vmatprep.mubr.f32.mxu0 0.0
        %2949 = vmatmul.mubr.f32.gmra.mrb[0].mxu0 %v2750
        %v2950 = vpop.f32.mrb[0].mxu0
        %v2951 = vadd.f32 0.0, %v2950
        %v2952 = vpop.f32.mrb[0].mxu0
        %2953 = vmatprep.mubr.f32.mxu0 0.0
        %2954 = vmatmul.mubr.f32.gmra.mrb[0].mxu0 %v2753
        %v2955 = vpop.f32.mrb[0].mxu0
        %v2956 = vadd.f32 0.0, %v2955
        %v2957 = vpop.f32.mrb[0].mxu0
        %2958 = vmatprep.mubr.f32.mxu0 0.0
        %2959 = vmatmul.mubr.f32.gmra.mrb[0].mxu0 %v2756
        %v2960 = vpop.f32.mrb[0].mxu0
        %v2961 = vadd.f32 0.0, %v2960
        %v2962 = vpop.f32.mrb[0].mxu0
        %2963 = vmatprep.mubr.f32.mxu0 0.0
        %2964 = vmatmul.mubr.f32.gmra.mrb[0].mxu0 %v2759
        %v2965 = vpop.f32.mrb[0].mxu0
        %v2966 = vadd.f32 0.0, %v2965
        %v2967 = vpop.f32.mrb[0].mxu0
        %2968 = vmatprep.mubr.f32.mxu0 0.0
        %2969 = vmatmul.mubr.f32.gmra.mrb[0].mxu0 %v2762
        %v2970 = vpop.f32.mrb[0].mxu0
        %v2971 = vadd.f32 0.0, %v2970
        %v2972 = vpop.f32.mrb[0].mxu0
        %2973 = vmatprep.mubr.f32.mxu0 0.0
        %2974 = vmatmul.mubr.f32.gmra.mrb[0].mxu0 %v2765
        %v2975 = vpop.f32.mrb[0].mxu0
        %v2976 = vadd.f32 0.0, %v2975
        %v2977 = vpop.f32.mrb[0].mxu0
        %2978 = vmatprep.mubr.f32.mxu0 0.0
        %2979 = vmatmul.mubr.f32.gmra.mrb[0].mxu0 %v2768
        %v2980 = vpop.f32.mrb[0].mxu0
        %v2981 = vadd.f32 0.0, %v2980
        %v2982 = vpop.f32.mrb[0].mxu0
        %2983 = vmatprep.mubr.f32.mxu0 0.0
        %2984 = vmatmul.mubr.f32.gmra.mrb[0].mxu0 %v2771
        %v2985 = vpop.f32.mrb[0].mxu0
        %v2986 = vadd.f32 0.0, %v2985
        %v2987 = vpop.f32.mrb[0].mxu0
        %2988 = vmatprep.mubr.f32.mxu0 0.0
        %2989 = vmatmul.mubr.f32.gmra.mrb[0].mxu0 %v2774
        %v2990 = vpop.f32.mrb[0].mxu0
        %v2991 = vadd.f32 0.0, %v2990
        %v2992 = vpop.f32.mrb[0].mxu0
        %2993 = vmatprep.mubr.f32.mxu0 0.0
        %2994 = vmatmul.mubr.f32.gmra.mrb[0].mxu0 %v2777
        %v2995 = vpop.f32.mrb[0].mxu0
        %v2996 = vadd.f32 0.0, %v2995
        %v2997 = vpop.f32.mrb[0].mxu0
        %2998 = vmatprep.mubr.f32.mxu0 0.0
        %2999 = vmatmul.mubr.f32.gmra.mrb[0].mxu0 %v2780
        %v3000 = vpop.f32.mrb[0].mxu0
        %v3001 = vadd.f32 0.0, %v3000
        %v3002 = vpop.f32.mrb[0].mxu0
        %3003 = vmatprep.mubr.f32.mxu0 0.0
        %3004 = vmatmul.mubr.f32.gmra.mrb[0].mxu0 %v2783
        %v3005 = vpop.f32.mrb[0].mxu0
        %v3006 = vadd.f32 0.0, %v3005
        %v3007 = vpop.f32.mrb[0].mxu0
        %3008 = vmatprep.mubr.f32.mxu0 0.0
        %3009 = vmatmul.mubr.f32.gmra.mrb[0].mxu0 %v2786
        %v3010 = vpop.f32.mrb[0].mxu0
        %v3011 = vadd.f32 0.0, %v3010
        %v3012 = vpop.f32.mrb[0].mxu0
        %3013 = vmatprep.mubr.f32.mxu0 0.0
        %3014 = vmatmul.mubr.f32.gmra.mrb[0].mxu0 %v2789
        %v3015 = vpop.f32.mrb[0].mxu0
        %v3016 = vadd.f32 0.0, %v3015
        %v3017 = vpop.f32.mrb[0].mxu0
        %3018 = vdwg.mxu0
        %v3019 = vadd.f32 %v2117, %v2861
        %v3020 = vadd.f32 %v2122, %v2866
        %v3021 = vadd.f32 %v2127, %v2871
        %v3022 = vadd.f32 %v2132, %v2876
        %v3023 = vadd.f32 %v2137, %v2881
        %v3024 = vadd.f32 %v2142, %v2886
        %v3025 = vadd.f32 %v2147, %v2891
        %v3026 = vadd.f32 %v2152, %v2896
        %v3027 = vadd.f32 %v2157, %v2901
        %v3028 = vadd.f32 %v2162, %v2906
        %v3029 = vadd.f32 %v2167, %v2911
        %v3030 = vadd.f32 %v2172, %v2916
        %v3031 = vadd.f32 %v2177, %v2921
        %v3032 = vadd.f32 %v2182, %v2926
        %v3033 = vadd.f32 %v2187, %v2931
        %v3034 = vadd.f32 %v2192, %v2936
        %v3035 = vadd.f32 %v2197, %v2941
        %v3036 = vadd.f32 %v2202, %v2946
        %v3037 = vadd.f32 %v2207, %v2951
        %v3038 = vadd.f32 %v2212, %v2956
        %v3039 = vadd.f32 %v2217, %v2961
        %v3040 = vadd.f32 %v2222, %v2966
        %v3041 = vadd.f32 %v2227, %v2971
        %v3042 = vadd.f32 %v2232, %v2976
        %v3043 = vadd.f32 %v2237, %v2981
        %v3044 = vadd.f32 %v2242, %v2986
        %v3045 = vadd.f32 %v2247, %v2991
        %v3046 = vadd.f32 %v2252, %v2996
        %v3047 = vadd.f32 %v2257, %v3001
        %v3048 = vadd.f32 %v2262, %v3006
        %v3049 = vadd.f32 %v2267, %v3011
        %v3050 = vadd.f32 %v2272, %v3016
        %v3052 = vlaneseq
        %v3053 = vshrl.u32 %v3052, 7
        %v3054 = vsub.s32 0, %v3053
        %v3055 = vrot.slane %v787, %v3054
        %v3057 = vadd.f32 %v3019, %v3055
        %v3058 = vadd.f32 %v3020, %v3055
        %v3059 = vadd.f32 %v3021, %v3055
        %v3060 = vadd.f32 %v3022, %v3055
        %v3061 = vadd.f32 %v3023, %v3055
        %v3062 = vadd.f32 %v3024, %v3055
        %v3063 = vadd.f32 %v3025, %v3055
        %v3064 = vadd.f32 %v3026, %v3055
        %v3065 = vadd.f32 %v3027, %v3055
        %v3066 = vadd.f32 %v3028, %v3055
        %v3067 = vadd.f32 %v3029, %v3055
        %v3068 = vadd.f32 %v3030, %v3055
        %v3069 = vadd.f32 %v3031, %v3055
        %v3070 = vadd.f32 %v3032, %v3055
        %v3071 = vadd.f32 %v3033, %v3055
        %v3072 = vadd.f32 %v3034, %v3055
        %v3073 = vadd.f32 %v3035, %v3055
        %v3074 = vadd.f32 %v3036, %v3055
        %v3075 = vadd.f32 %v3037, %v3055
        %v3076 = vadd.f32 %v3038, %v3055
        %v3077 = vadd.f32 %v3039, %v3055
        %v3078 = vadd.f32 %v3040, %v3055
        %v3079 = vadd.f32 %v3041, %v3055
        %v3080 = vadd.f32 %v3042, %v3055
        %v3081 = vadd.f32 %v3043, %v3055
        %v3082 = vadd.f32 %v3044, %v3055
        %v3083 = vadd.f32 %v3045, %v3055
        %v3084 = vadd.f32 %v3046, %v3055
        %v3085 = vadd.f32 %v3047, %v3055
        %v3086 = vadd.f32 %v3048, %v3055
        %v3087 = vadd.f32 %v3049, %v3055
        %v3088 = vadd.f32 %v3050, %v3055
        %v3089 = vmax.f32 %v3057, 0.0
        %v3090 = vmax.f32 %v3058, 0.0
        %v3091 = vmax.f32 %v3059, 0.0
        %v3092 = vmax.f32 %v3060, 0.0
        %v3093 = vmax.f32 %v3061, 0.0
        %v3094 = vmax.f32 %v3062, 0.0
        %v3095 = vmax.f32 %v3063, 0.0
        %v3096 = vmax.f32 %v3064, 0.0
        %v3097 = vmax.f32 %v3065, 0.0
        %v3098 = vmax.f32 %v3066, 0.0
        %v3099 = vmax.f32 %v3067, 0.0
        %v3100 = vmax.f32 %v3068, 0.0
        %v3101 = vmax.f32 %v3069, 0.0
        %v3102 = vmax.f32 %v3070, 0.0
        %v3103 = vmax.f32 %v3071, 0.0
        %v3104 = vmax.f32 %v3072, 0.0
        %v3105 = vmax.f32 %v3073, 0.0
        %v3106 = vmax.f32 %v3074, 0.0
        %v3107 = vmax.f32 %v3075, 0.0
        %v3108 = vmax.f32 %v3076, 0.0
        %v3109 = vmax.f32 %v3077, 0.0
        %v3110 = vmax.f32 %v3078, 0.0
        %v3111 = vmax.f32 %v3079, 0.0
        %v3112 = vmax.f32 %v3080, 0.0
        %v3113 = vmax.f32 %v3081, 0.0
        %v3114 = vmax.f32 %v3082, 0.0
        %v3115 = vmax.f32 %v3083, 0.0
        %v3116 = vmax.f32 %v3084, 0.0
        %v3117 = vmax.f32 %v3085, 0.0
        %v3118 = vmax.f32 %v3086, 0.0
        %v3119 = vmax.f32 %v3087, 0.0
        %v3120 = vmax.f32 %v3088, 0.0
        %3121 = vrot.lane.b32.xlu0 %v311, 4
        %v3122 = vpop.permute.xlu0 %3121
        %3123 = vrot.lane.b32.xlu0 %v312, 4
        %v3124 = vpop.permute.xlu0 %3123
        %3125 = vrot.lane.b32.xlu0 %v313, 4
        %v3126 = vpop.permute.xlu0 %3125
        %3127 = vrot.lane.b32.xlu0 %v314, 4
        %v3128 = vpop.permute.xlu0 %3127
        %3129 = vrot.lane.b32.xlu0 %v315, 4
        %v3130 = vpop.permute.xlu0 %3129
        %3131 = vrot.lane.b32.xlu0 %v316, 4
        %v3132 = vpop.permute.xlu0 %3131
        %3133 = vrot.lane.b32.xlu0 %v317, 4
        %v3134 = vpop.permute.xlu0 %3133
        %3135 = vrot.lane.b32.xlu0 %v318, 4
        %v3136 = vpop.permute.xlu0 %3135
        %3137 = vrot.lane.b32.xlu0 %v319, 4
        %v3138 = vpop.permute.xlu0 %3137
        %3139 = vrot.lane.b32.xlu0 %v320, 4
        %v3140 = vpop.permute.xlu0 %3139
        %3141 = vrot.lane.b32.xlu0 %v321, 4
        %v3142 = vpop.permute.xlu0 %3141
        %3143 = vrot.lane.b32.xlu0 %v322, 4
        %v3144 = vpop.permute.xlu0 %3143
        %3145 = vrot.lane.b32.xlu0 %v323, 4
        %v3146 = vpop.permute.xlu0 %3145
        %3147 = vrot.lane.b32.xlu0 %v324, 4
        %v3148 = vpop.permute.xlu0 %3147
        %3149 = vrot.lane.b32.xlu0 %v325, 4
        %v3150 = vpop.permute.xlu0 %3149
        %3151 = vrot.lane.b32.xlu0 %v326, 4
        %v3152 = vpop.permute.xlu0 %3151
        %3153 = vrot.lane.b32.xlu0 %v327, 4
        %v3154 = vpop.permute.xlu0 %3153
        %3155 = vrot.lane.b32.xlu0 %v328, 4
        %v3156 = vpop.permute.xlu0 %3155
        %3157 = vrot.lane.b32.xlu0 %v329, 4
        %v3158 = vpop.permute.xlu0 %3157
        %3159 = vrot.lane.b32.xlu0 %v330, 4
        %v3160 = vpop.permute.xlu0 %3159
        %3161 = vrot.lane.b32.xlu0 %v331, 4
        %v3162 = vpop.permute.xlu0 %3161
        %3163 = vrot.lane.b32.xlu0 %v332, 4
        %v3164 = vpop.permute.xlu0 %3163
        %3165 = vrot.lane.b32.xlu0 %v333, 4
        %v3166 = vpop.permute.xlu0 %3165
        %3167 = vrot.lane.b32.xlu0 %v334, 4
        %v3168 = vpop.permute.xlu0 %3167
        %3169 = vrot.lane.b32.xlu0 %v335, 4
        %v3170 = vpop.permute.xlu0 %3169
        %3171 = vrot.lane.b32.xlu0 %v336, 4
        %v3172 = vpop.permute.xlu0 %3171
        %3173 = vrot.lane.b32.xlu0 %v337, 4
        %v3174 = vpop.permute.xlu0 %3173
        %3175 = vrot.lane.b32.xlu0 %v338, 4
        %v3176 = vpop.permute.xlu0 %3175
        %3177 = vrot.lane.b32.xlu0 %v339, 4
        %v3178 = vpop.permute.xlu0 %3177
        %3179 = vrot.lane.b32.xlu0 %v340, 4
        %v3180 = vpop.permute.xlu0 %3179
        %3181 = vrot.lane.b32.xlu0 %v341, 4
        %v3182 = vpop.permute.xlu0 %3181
        %3183 = vrot.lane.b32.xlu0 %v342, 4
        %v3184 = vpop.permute.xlu0 %3183
        %v3217 = vsel %vm351, %v3089, %v3122
        %v3218 = vsel %vm351, %v3090, %v3124
        %v3219 = vsel %vm351, %v3091, %v3126
        %v3220 = vsel %vm351, %v3092, %v3128
        %v3221 = vsel %vm351, %v3093, %v3130
        %v3222 = vsel %vm351, %v3094, %v3132
        %v3223 = vsel %vm351, %v3095, %v3134
        %v3224 = vsel %vm351, %v3096, %v3136
        %v3225 = vsel %vm351, %v3097, %v3138
        %v3226 = vsel %vm351, %v3098, %v3140
        %v3227 = vsel %vm351, %v3099, %v3142
        %v3228 = vsel %vm351, %v3100, %v3144
        %v3229 = vsel %vm351, %v3101, %v3146
        %v3230 = vsel %vm351, %v3102, %v3148
        %v3231 = vsel %vm351, %v3103, %v3150
        %v3232 = vsel %vm351, %v3104, %v3152
        %v3233 = vsel %vm351, %v3105, %v3154
        %v3234 = vsel %vm351, %v3106, %v3156
        %v3235 = vsel %vm351, %v3107, %v3158
        %v3236 = vsel %vm351, %v3108, %v3160
        %v3237 = vsel %vm351, %v3109, %v3162
        %v3238 = vsel %vm351, %v3110, %v3164
        %v3239 = vsel %vm351, %v3111, %v3166
        %v3240 = vsel %vm351, %v3112, %v3168
        %v3241 = vsel %vm351, %v3113, %v3170
        %v3242 = vsel %vm351, %v3114, %v3172
        %v3243 = vsel %vm351, %v3115, %v3174
        %v3244 = vsel %vm351, %v3116, %v3176
        %v3245 = vsel %vm351, %v3117, %v3178
        %v3246 = vsel %vm351, %v3118, %v3180
        %v3247 = vsel %vm351, %v3119, %v3182
        %v3248 = vsel %vm351, %v3120, %v3184
        %v3249 = vld [vmem:[%s5] sm:$0xff]
        %v3250 = vld [vmem:[%s6] sm:$0x1]
        %v3252 = vlaneseq
        %v3253 = vshrl.u32 %v3252, 7
        %v3254 = vsub.s32 0, %v3253
        %v3255 = vrot.slane %v3250, %v3254
        %v3258 = vsel %vm1172, %v3217, 0
        %v3261 = vsel %vm1172, %v3218, 0
        %v3264 = vsel %vm1172, %v3219, 0
        %v3267 = vsel %vm1172, %v3220, 0
        %v3270 = vsel %vm1172, %v3221, 0
        %v3273 = vsel %vm1172, %v3222, 0
        %v3276 = vsel %vm1172, %v3223, 0
        %v3279 = vsel %vm1172, %v3224, 0
        %v3282 = vsel %vm1172, %v3225, 0
        %v3285 = vsel %vm1172, %v3226, 0
        %v3288 = vsel %vm1172, %v3227, 0
        %v3291 = vsel %vm1172, %v3228, 0
        %v3294 = vsel %vm1172, %v3229, 0
        %v3297 = vsel %vm1172, %v3230, 0
        %v3300 = vsel %vm1172, %v3231, 0
        %v3303 = vsel %vm1172, %v3232, 0
        %v3306 = vsel %vm1172, %v3233, 0
        %v3309 = vsel %vm1172, %v3234, 0
        %v3312 = vsel %vm1172, %v3235, 0
        %v3315 = vsel %vm1172, %v3236, 0
        %v3318 = vsel %vm1172, %v3237, 0
        %v3321 = vsel %vm1172, %v3238, 0
        %v3324 = vsel %vm1172, %v3239, 0
        %v3327 = vsel %vm1172, %v3240, 0
        %v3330 = vsel %vm1172, %v3241, 0
        %v3333 = vsel %vm1172, %v3242, 0
        %v3336 = vsel %vm1172, %v3243, 0
        %v3339 = vsel %vm1172, %v3244, 0
        %v3342 = vsel %vm1172, %v3245, 0
        %v3345 = vsel %vm1172, %v3246, 0
        %v3348 = vsel %vm1172, %v3247, 0
        %v3351 = vsel %vm1172, %v3248, 0
        %3353 = vmatprep.subr.mxu0 0.0
        %3354 = vmatpush1.msra.mxu0 %v3249
        %3355 = vmatprep.subr.mxu0 0.0
        %3356 = vmatpush1.msra.mxu0 0.0
        %3357 = vmatprep.subr.mxu0 0.0
        %3358 = vmatpush1.msra.mxu0 0.0
        %3359 = vmatprep.subr.mxu0 0.0
        %3360 = vmatpush1.msra.mxu0 0.0
        %3361 = vmatprep.subr.mxu0 0.0
        %3362 = vmatpush1.msra.mxu0 0.0
        %3363 = vmatprep.subr.mxu0 0.0
        %3364 = vmatpush1.msra.mxu0 0.0
        %3365 = vmatprep.subr.mxu0 0.0
        %3366 = vmatpush1.msra.mxu0 0.0
        %3367 = vmatprep.subr.mxu0 0.0
        %3368 = vmatpush1.msra.mxu0 0.0
        %3369 = vmatprep.subr.mxu0 0.0
        %3370 = vmatpush1.msra.mxu0 0.0
        %3371 = vmatprep.subr.mxu0 0.0
        %3372 = vmatpush1.msra.mxu0 0.0
        %3373 = vmatprep.subr.mxu0 0.0
        %3374 = vmatpush1.msra.mxu0 0.0
        %3375 = vmatprep.subr.mxu0 0.0
        %3376 = vmatpush1.msra.mxu0 0.0
        %3377 = vmatprep.subr.mxu0 0.0
        %3378 = vmatpush1.msra.mxu0 0.0
        %3379 = vmatprep.subr.mxu0 0.0
        %3380 = vmatpush1.msra.mxu0 0.0
        %3381 = vmatprep.subr.mxu0 0.0
        %3382 = vmatpush1.msra.mxu0 0.0
        %3383 = vmatprep.subr.mxu0 0.0
        %3384 = vmatpush1.msra.mxu0 0.0
        %3385 = vmatprep.subr.mxu0 0.0
        %3386 = vmatpush1.msra.mxu0 0.0
        %3387 = vmatprep.subr.mxu0 0.0
        %3388 = vmatpush1.msra.mxu0 0.0
        %3389 = vmatprep.subr.mxu0 0.0
        %3390 = vmatpush1.msra.mxu0 0.0
        %3391 = vmatprep.subr.mxu0 0.0
        %3392 = vmatpush1.msra.mxu0 0.0
        %3393 = vmatprep.subr.mxu0 0.0
        %3394 = vmatpush1.msra.mxu0 0.0
        %3395 = vmatprep.subr.mxu0 0.0
        %3396 = vmatpush1.msra.mxu0 0.0
        %3397 = vmatprep.subr.mxu0 0.0
        %3398 = vmatpush1.msra.mxu0 0.0
        %3399 = vmatprep.subr.mxu0 0.0
        %3400 = vmatpush1.msra.mxu0 0.0
        %3401 = vmatprep.subr.mxu0 0.0
        %3402 = vmatpush1.msra.mxu0 0.0
        %3403 = vmatprep.subr.mxu0 0.0
        %3404 = vmatpush1.msra.mxu0 0.0
        %3405 = vmatprep.subr.mxu0 0.0
        %3406 = vmatpush1.msra.mxu0 0.0
        %3407 = vmatprep.subr.mxu0 0.0
        %3408 = vmatpush1.msra.mxu0 0.0
        %3409 = vmatprep.subr.mxu0 0.0
        %3410 = vmatpush1.msra.mxu0 0.0
        %3411 = vmatprep.subr.mxu0 0.0
        %3412 = vmatpush1.msra.mxu0 0.0
        %3413 = vmatprep.subr.mxu0 0.0
        %3414 = vmatpush1.msra.mxu0 0.0
        %3415 = vmatprep.subr.mxu0 0.0
        %3416 = vmatpush1.msra.mxu0 0.0
        %3417 = vmatprep.mubr.f32.mxu0 0.0
        %3418 = vmatmul.mubr.f32.gmra.mrb[0].mxu0 %v3258
        %v3419 = vpop.f32.mrb[0].mxu0
        %v3420 = vadd.f32 %v3255, %v3419
        %v3421 = vpop.f32.mrb[0].mxu0
        %3422 = vmatprep.mubr.f32.mxu0 0.0
        %3423 = vmatmul.mubr.f32.gmra.mrb[0].mxu0 %v3261
        %v3424 = vpop.f32.mrb[0].mxu0
        %v3425 = vadd.f32 %v3255, %v3424
        %v3426 = vpop.f32.mrb[0].mxu0
        %3427 = vmatprep.mubr.f32.mxu0 0.0
        %3428 = vmatmul.mubr.f32.gmra.mrb[0].mxu0 %v3264
        %v3429 = vpop.f32.mrb[0].mxu0
        %v3430 = vadd.f32 %v3255, %v3429
        %v3431 = vpop.f32.mrb[0].mxu0
        %3432 = vmatprep.mubr.f32.mxu0 0.0
        %3433 = vmatmul.mubr.f32.gmra.mrb[0].mxu0 %v3267
        %v3434 = vpop.f32.mrb[0].mxu0
        %v3435 = vadd.f32 %v3255, %v3434
        %v3436 = vpop.f32.mrb[0].mxu0
        %3437 = vmatprep.mubr.f32.mxu0 0.0
        %3438 = vmatmul.mubr.f32.gmra.mrb[0].mxu0 %v3270
        %v3439 = vpop.f32.mrb[0].mxu0
        %v3440 = vadd.f32 %v3255, %v3439
        %v3441 = vpop.f32.mrb[0].mxu0
        %3442 = vmatprep.mubr.f32.mxu0 0.0
        %3443 = vmatmul.mubr.f32.gmra.mrb[0].mxu0 %v3273
        %v3444 = vpop.f32.mrb[0].mxu0
        %v3445 = vadd.f32 %v3255, %v3444
        %v3446 = vpop.f32.mrb[0].mxu0
        %3447 = vmatprep.mubr.f32.mxu0 0.0
        %3448 = vmatmul.mubr.f32.gmra.mrb[0].mxu0 %v3276
        %v3449 = vpop.f32.mrb[0].mxu0
        %v3450 = vadd.f32 %v3255, %v3449
        %v3451 = vpop.f32.mrb[0].mxu0
        %3452 = vmatprep.mubr.f32.mxu0 0.0
        %3453 = vmatmul.mubr.f32.gmra.mrb[0].mxu0 %v3279
        %v3454 = vpop.f32.mrb[0].mxu0
        %v3455 = vadd.f32 %v3255, %v3454
        %v3456 = vpop.f32.mrb[0].mxu0
        %3457 = vmatprep.mubr.f32.mxu0 0.0
        %3458 = vmatmul.mubr.f32.gmra.mrb[0].mxu0 %v3282
        %v3459 = vpop.f32.mrb[0].mxu0
        %v3460 = vadd.f32 %v3255, %v3459
        %v3461 = vpop.f32.mrb[0].mxu0
        %3462 = vmatprep.mubr.f32.mxu0 0.0
        %3463 = vmatmul.mubr.f32.gmra.mrb[0].mxu0 %v3285
        %v3464 = vpop.f32.mrb[0].mxu0
        %v3465 = vadd.f32 %v3255, %v3464
        %v3466 = vpop.f32.mrb[0].mxu0
        %3467 = vmatprep.mubr.f32.mxu0 0.0
        %3468 = vmatmul.mubr.f32.gmra.mrb[0].mxu0 %v3288
        %v3469 = vpop.f32.mrb[0].mxu0
        %v3470 = vadd.f32 %v3255, %v3469
        %v3471 = vpop.f32.mrb[0].mxu0
        %3472 = vmatprep.mubr.f32.mxu0 0.0
        %3473 = vmatmul.mubr.f32.gmra.mrb[0].mxu0 %v3291
        %v3474 = vpop.f32.mrb[0].mxu0
        %v3475 = vadd.f32 %v3255, %v3474
        %v3476 = vpop.f32.mrb[0].mxu0
        %3477 = vmatprep.mubr.f32.mxu0 0.0
        %3478 = vmatmul.mubr.f32.gmra.mrb[0].mxu0 %v3294
        %v3479 = vpop.f32.mrb[0].mxu0
        %v3480 = vadd.f32 %v3255, %v3479
        %v3481 = vpop.f32.mrb[0].mxu0
        %3482 = vmatprep.mubr.f32.mxu0 0.0
        %3483 = vmatmul.mubr.f32.gmra.mrb[0].mxu0 %v3297
        %v3484 = vpop.f32.mrb[0].mxu0
        %v3485 = vadd.f32 %v3255, %v3484
        %v3486 = vpop.f32.mrb[0].mxu0
        %3487 = vmatprep.mubr.f32.mxu0 0.0
        %3488 = vmatmul.mubr.f32.gmra.mrb[0].mxu0 %v3300
        %v3489 = vpop.f32.mrb[0].mxu0
        %v3490 = vadd.f32 %v3255, %v3489
        %v3491 = vpop.f32.mrb[0].mxu0
        %3492 = vmatprep.mubr.f32.mxu0 0.0
        %3493 = vmatmul.mubr.f32.gmra.mrb[0].mxu0 %v3303
        %v3494 = vpop.f32.mrb[0].mxu0
        %v3495 = vadd.f32 %v3255, %v3494
        %v3496 = vpop.f32.mrb[0].mxu0
        %3497 = vmatprep.mubr.f32.mxu0 0.0
        %3498 = vmatmul.mubr.f32.gmra.mrb[0].mxu0 %v3306
        %v3499 = vpop.f32.mrb[0].mxu0
        %v3500 = vadd.f32 %v3255, %v3499
        %v3501 = vpop.f32.mrb[0].mxu0
        %3502 = vmatprep.mubr.f32.mxu0 0.0
        %3503 = vmatmul.mubr.f32.gmra.mrb[0].mxu0 %v3309
        %v3504 = vpop.f32.mrb[0].mxu0
        %v3505 = vadd.f32 %v3255, %v3504
        %v3506 = vpop.f32.mrb[0].mxu0
        %3507 = vmatprep.mubr.f32.mxu0 0.0
        %3508 = vmatmul.mubr.f32.gmra.mrb[0].mxu0 %v3312
        %v3509 = vpop.f32.mrb[0].mxu0
        %v3510 = vadd.f32 %v3255, %v3509
        %v3511 = vpop.f32.mrb[0].mxu0
        %3512 = vmatprep.mubr.f32.mxu0 0.0
        %3513 = vmatmul.mubr.f32.gmra.mrb[0].mxu0 %v3315
        %v3514 = vpop.f32.mrb[0].mxu0
        %v3515 = vadd.f32 %v3255, %v3514
        %v3516 = vpop.f32.mrb[0].mxu0
        %3517 = vmatprep.mubr.f32.mxu0 0.0
        %3518 = vmatmul.mubr.f32.gmra.mrb[0].mxu0 %v3318
        %v3519 = vpop.f32.mrb[0].mxu0
        %v3520 = vadd.f32 %v3255, %v3519
        %v3521 = vpop.f32.mrb[0].mxu0
        %3522 = vmatprep.mubr.f32.mxu0 0.0
        %3523 = vmatmul.mubr.f32.gmra.mrb[0].mxu0 %v3321
        %v3524 = vpop.f32.mrb[0].mxu0
        %v3525 = vadd.f32 %v3255, %v3524
        %v3526 = vpop.f32.mrb[0].mxu0
        %3527 = vmatprep.mubr.f32.mxu0 0.0
        %3528 = vmatmul.mubr.f32.gmra.mrb[0].mxu0 %v3324
        %v3529 = vpop.f32.mrb[0].mxu0
        %v3530 = vadd.f32 %v3255, %v3529
        %v3531 = vpop.f32.mrb[0].mxu0
        %3532 = vmatprep.mubr.f32.mxu0 0.0
        %3533 = vmatmul.mubr.f32.gmra.mrb[0].mxu0 %v3327
        %v3534 = vpop.f32.mrb[0].mxu0
        %v3535 = vadd.f32 %v3255, %v3534
        %v3536 = vpop.f32.mrb[0].mxu0
        %3537 = vmatprep.mubr.f32.mxu0 0.0
        %3538 = vmatmul.mubr.f32.gmra.mrb[0].mxu0 %v3330
        %v3539 = vpop.f32.mrb[0].mxu0
        %v3540 = vadd.f32 %v3255, %v3539
        %v3541 = vpop.f32.mrb[0].mxu0
        %3542 = vmatprep.mubr.f32.mxu0 0.0
        %3543 = vmatmul.mubr.f32.gmra.mrb[0].mxu0 %v3333
        %v3544 = vpop.f32.mrb[0].mxu0
        %v3545 = vadd.f32 %v3255, %v3544
        %v3546 = vpop.f32.mrb[0].mxu0
        %3547 = vmatprep.mubr.f32.mxu0 0.0
        %3548 = vmatmul.mubr.f32.gmra.mrb[0].mxu0 %v3336
        %v3549 = vpop.f32.mrb[0].mxu0
        %v3550 = vadd.f32 %v3255, %v3549
        %v3551 = vpop.f32.mrb[0].mxu0
        %3552 = vmatprep.mubr.f32.mxu0 0.0
        %3553 = vmatmul.mubr.f32.gmra.mrb[0].mxu0 %v3339
        %v3554 = vpop.f32.mrb[0].mxu0
        %v3555 = vadd.f32 %v3255, %v3554
        %v3556 = vpop.f32.mrb[0].mxu0
        %3557 = vmatprep.mubr.f32.mxu0 0.0
        %3558 = vmatmul.mubr.f32.gmra.mrb[0].mxu0 %v3342
        %v3559 = vpop.f32.mrb[0].mxu0
        %v3560 = vadd.f32 %v3255, %v3559
        %v3561 = vpop.f32.mrb[0].mxu0
        %3562 = vmatprep.mubr.f32.mxu0 0.0
        %3563 = vmatmul.mubr.f32.gmra.mrb[0].mxu0 %v3345
        %v3564 = vpop.f32.mrb[0].mxu0
        %v3565 = vadd.f32 %v3255, %v3564
        %v3566 = vpop.f32.mrb[0].mxu0
        %3567 = vmatprep.mubr.f32.mxu0 0.0
        %3568 = vmatmul.mubr.f32.gmra.mrb[0].mxu0 %v3348
        %v3569 = vpop.f32.mrb[0].mxu0
        %v3570 = vadd.f32 %v3255, %v3569
        %v3571 = vpop.f32.mrb[0].mxu0
        %3572 = vmatprep.mubr.f32.mxu0 0.0
        %3573 = vmatmul.mubr.f32.gmra.mrb[0].mxu0 %v3351
        %v3574 = vpop.f32.mrb[0].mxu0
        %v3575 = vadd.f32 %v3255, %v3574
        %v3576 = vpop.f32.mrb[0].mxu0
        %3577 = vdwg.mxu0
        %v3578 = vmax.f32 %v3420, 0.0
        %v3579 = vmax.f32 %v3425, 0.0
        %v3580 = vmax.f32 %v3430, 0.0
        %v3581 = vmax.f32 %v3435, 0.0
        %v3582 = vmax.f32 %v3440, 0.0
        %v3583 = vmax.f32 %v3445, 0.0
        %v3584 = vmax.f32 %v3450, 0.0
        %v3585 = vmax.f32 %v3455, 0.0
        %v3586 = vmax.f32 %v3460, 0.0
        %v3587 = vmax.f32 %v3465, 0.0
        %v3588 = vmax.f32 %v3470, 0.0
        %v3589 = vmax.f32 %v3475, 0.0
        %v3590 = vmax.f32 %v3480, 0.0
        %v3591 = vmax.f32 %v3485, 0.0
        %v3592 = vmax.f32 %v3490, 0.0
        %v3593 = vmax.f32 %v3495, 0.0
        %v3594 = vmax.f32 %v3500, 0.0
        %v3595 = vmax.f32 %v3505, 0.0
        %v3596 = vmax.f32 %v3510, 0.0
        %v3597 = vmax.f32 %v3515, 0.0
        %v3598 = vmax.f32 %v3520, 0.0
        %v3599 = vmax.f32 %v3525, 0.0
        %v3600 = vmax.f32 %v3530, 0.0
        %v3601 = vmax.f32 %v3535, 0.0
        %v3602 = vmax.f32 %v3540, 0.0
        %v3603 = vmax.f32 %v3545, 0.0
        %v3604 = vmax.f32 %v3550, 0.0
        %v3605 = vmax.f32 %v3555, 0.0
        %v3606 = vmax.f32 %v3560, 0.0
        %v3607 = vmax.f32 %v3565, 0.0
        %v3608 = vmax.f32 %v3570, 0.0
        %v3609 = vmax.f32 %v3575, 0.0
        %vm3610 = vcmask 130048
        %3611 = vst.msk [vmem:[%s298] sm:$0xff] %vm3610, %v3578
        %3612 = vst.msk [vmem:[%s298 + $0x8] sm:$0xff] %vm3610, %v3579
        %3613 = vst.msk [vmem:[%s298 + $0x10] sm:$0xff] %vm3610, %v3580
        %3614 = vst.msk [vmem:[%s298 + $0x18] sm:$0xff] %vm3610, %v3581
        %3615 = vst.msk [vmem:[%s298 + $0x20] sm:$0xff] %vm3610, %v3582
        %3616 = vst.msk [vmem:[%s298 + $0x28] sm:$0xff] %vm3610, %v3583
        %3617 = vst.msk [vmem:[%s298 + $0x30] sm:$0xff] %vm3610, %v3584
        %3618 = vst.msk [vmem:[%s298 + $0x38] sm:$0xff] %vm3610, %v3585
        %3619 = vst.msk [vmem:[%s298 + $0x40] sm:$0xff] %vm3610, %v3586
        %3620 = vst.msk [vmem:[%s298 + $0x48] sm:$0xff] %vm3610, %v3587
        %3621 = vst.msk [vmem:[%s298 + $0x50] sm:$0xff] %vm3610, %v3588
        %3622 = vst.msk [vmem:[%s298 + $0x58] sm:$0xff] %vm3610, %v3589
        %3623 = vst.msk [vmem:[%s298 + $0x60] sm:$0xff] %vm3610, %v3590
        %3624 = vst.msk [vmem:[%s298 + $0x68] sm:$0xff] %vm3610, %v3591
        %3625 = vst.msk [vmem:[%s298 + $0x70] sm:$0xff] %vm3610, %v3592
        %3626 = vst.msk [vmem:[%s298 + $0x78] sm:$0xff] %vm3610, %v3593
        %3627 = vst.msk [vmem:[%s298 + $0x80] sm:$0xff] %vm3610, %v3594
        %3628 = vst.msk [vmem:[%s298 + $0x88] sm:$0xff] %vm3610, %v3595
        %3629 = vst.msk [vmem:[%s298 + $0x90] sm:$0xff] %vm3610, %v3596
        %3630 = vst.msk [vmem:[%s298 + $0x98] sm:$0xff] %vm3610, %v3597
        %3631 = vst.msk [vmem:[%s298 + $0xa0] sm:$0xff] %vm3610, %v3598
        %3632 = vst.msk [vmem:[%s298 + $0xa8] sm:$0xff] %vm3610, %v3599
        %3633 = vst.msk [vmem:[%s298 + $0xb0] sm:$0xff] %vm3610, %v3600
        %3634 = vst.msk [vmem:[%s298 + $0xb8] sm:$0xff] %vm3610, %v3601
        %3635 = vst.msk [vmem:[%s298 + $0xc0] sm:$0xff] %vm3610, %v3602
        %3636 = vst.msk [vmem:[%s298 + $0xc8] sm:$0xff] %vm3610, %v3603
        %3637 = vst.msk [vmem:[%s298 + $0xd0] sm:$0xff] %vm3610, %v3604
        %3638 = vst.msk [vmem:[%s298 + $0xd8] sm:$0xff] %vm3610, %v3605
        %3639 = vst.msk [vmem:[%s298 + $0xe0] sm:$0xff] %vm3610, %v3606
        %3640 = vst.msk [vmem:[%s298 + $0xe8] sm:$0xff] %vm3610, %v3607
        %3641 = vst.msk [vmem:[%s298 + $0xf0] sm:$0xff] %vm3610, %v3608
        %3642 = vst.msk [vmem:[%s298 + $0xf8] sm:$0xff] %vm3610, %v3609
        %s3643 = sand.u32 %s197, 1
        %s3644 = scalar_lea.sflag [#allocation4], %s3643
        %s3645 = sand.u32 %s197, 1
        %s3646 = smul.addr %s3645, 256
        %s3647 = scalar_lea.vmem [#allocation3], %s3646
        // Predicated region
        $region49: #{tpu_custom_call.1} parent=47 // pred_check
          %p3648 = pneg %p207
        $region50: #{tpu_custom_call.1} parent=47 // pred_check_branch
          %3650 = sbr.rel (%p3648) target = $region52
        $region51: #{tpu_custom_call.1} parent=47 // pred_region
          %s3651 = smul.u32 16, %s26
          %s3653 = ssub.s32 4096, 4096
          %3654 = vsyncadd %s3644, %s3653
          %s3655 = smul.addr %s3651, 2
          %s3656 = smul.addr %s25, 32
          %s3657 = sadd.s32 %s3655, %s3656
          %s3658 = smul.addr %s3657, 128
          %s3659 = scalar_lea.hbm %s7, %s3658
          %s3660 = sshll.u32 %s3647, 4
          %s3661 = int_to_ptr.vmem [resolvable:$true] %s3660
          %3666 = dma.vmem_to_hbm [thread:$0]  %s3661, 4096, %s3659, %s3644, 128, 128, 8
        $region52: #{tpu_custom_call.1} parent=47 // pred_fallthru
          _
      $region48: #{tpu_custom_call.1} parent=5 // pred_fallthru
        _
      %p3667 = scmp.le.s32.totalorder 2, %s16
      // Predicated region
      $region53: #{tpu_custom_call.1} parent=5 // pred_check
        %p3668 = pneg %p3667
      $region54: #{tpu_custom_call.1} parent=5 // pred_check_branch
        %3670 = sbr.rel (%p3668) target = $region56
      $region55: #{tpu_custom_call.1} parent=5 // pred_region
        %s3671 = ssub.s32 %s16, 2
        // Predicated region
        $region57: #{tpu_custom_call.1} parent=55 // pred_check
          %p3672 = pneg %p213
        $region58: #{tpu_custom_call.1} parent=55 // pred_check_branch
          %3674 = sbr.rel (%p3672) target = $region60
        $region59: #{tpu_custom_call.1} parent=55 // pred_region
          %s3675 = sand.u32 %s198, 1
          %s3676 = scalar_lea.sflag [#allocation4], %s3675
          %s3677 = sand.u32 %s198, 1
          %s3678 = smul.addr %s3677, 256
          %s3679 = scalar_lea.vmem [#allocation3], %s3678
          %3680 = dma.done %s3676, 4096
        $region60: #{tpu_custom_call.1} parent=55 // pred_fallthru
          _
      $region56: #{tpu_custom_call.1} parent=5 // pred_fallthru
        _
    $region6: #{tpu_custom_call.1} parent=1 // loop_footer
      %s20 = sadd.s32 1, %s16
    $region7: #{tpu_custom_call.1} parent=1 // loop_footer_branch
      %15 = sbr.rel target = $region3
    $region8: #{tpu_custom_call.1} parent=1 // loop_exit
      _
    %3681 = vsyncpa [#allocation4], 1
    %s3682 = scalar_lea.sflag [#allocation4], 1
    %3683 = vsyncpa %s3682, 1

</llo_original>
